<compile_context>
chip_gen: v5e
topology: v5e:2x2
jax: 0.10.0
libtpu: 0.0.40
codegen_flags: <defaults>
</compile_context>

<pallas_src>
import functools

import jax
import jax.numpy as jnp
from jax.experimental import pallas as pl
from jax.experimental.pallas import tpu as pltpu


def _round_up(x, m):
    return (x + m - 1) // m * m


# ---------------------------------------------------------------------------
# Pallas kernel: fused 3x3 conv (pad=1, no bias) + folded BN + ReLU, one row tile
# ---------------------------------------------------------------------------
def _conv3x3_bn_relu_kernel(x_mid_ref, x_top_ref, x_bot_ref, w_ref, s_ref,
                            b_ref, o_ref, pad_ref):
    # x_mid_ref: (TH, W, Cin)       bf16  rows [t*TH, t*TH+TH) of one image
    # x_top_ref: (1, W, Cin)        bf16  row t*TH-1 (clamped; ignored at t==0)
    # x_bot_ref: (1, W, Cin)        bf16  row t*TH+TH (clamped; ignored at last t)
    # w_ref    : (9*Cin_p, Cout_p)  bf16  HWIO weights, zero-padded channels
    # s_ref    : (1, Cout_p)        f32   folded BatchNorm scale
    # b_ref    : (1, Cout_p)        f32   folded BatchNorm bias
    # o_ref    : (TH, W, Cout_p)    f32   output row tile (lane-dense, Cout padded)
    # pad_ref  : (TH+2, W+2, Cin_p) f32   VMEM scratch: zero halo + channel pad
    t = pl.program_id(1)
    n_t = pl.num_programs(1)

    th = pad_ref.shape[0] - 2
    w = pad_ref.shape[1] - 2
    cin_p = pad_ref.shape[2]
    cin = x_mid_ref.shape[-1]
    cout_p = o_ref.shape[-1]

    # ---- build the zero-padded input tile in VMEM (no host-side jnp.pad) ----
    if cin < cin_p:
        # Channel-pad slab dominates the scratch; blanket zero is cheapest.
        pad_ref[...] = jnp.zeros(pad_ref.shape, pad_ref.dtype)
    else:
        # Channels already lane-aligned: zero only the 1-pixel halo frame
        # (interior is fully overwritten by real data below).
        pad_ref[0:1, :, :] = jnp.zeros((1, w + 2, cin_p), pad_ref.dtype)
        pad_ref[th + 1:th + 2, :, :] = jnp.zeros((1, w + 2, cin_p), pad_ref.dtype)
        pad_ref[:, 0:1, :] = jnp.zeros((th + 2, 1, cin_p), pad_ref.dtype)
        pad_ref[:, w + 1:w + 2, :] = jnp.zeros((th + 2, 1, cin_p), pad_ref.dtype)

    pad_ref[1:th + 1, 1:w + 1, :cin] = x_mid_ref[...].astype(pad_ref.dtype)

    @pl.when(t > 0)
    def _():
        pad_ref[0:1, 1:w + 1, :cin] = x_top_ref[...].astype(pad_ref.dtype)

    @pl.when(t < n_t - 1)
    def _():
        pad_ref[th + 1:th + 2, 1:w + 1, :cin] = x_bot_ref[...].astype(pad_ref.dtype)

    # ---- im2col -> single deep-K MXU matmul ---------------------------------
    # Each tap is (TH, W, Cin_p) with Cin_p a multiple of 128, so the lane-dim
    # concatenation is fully vreg-aligned.  Taps are cast to bf16 before the
    # concat so the (TH*W, 9*Cin_p) patch only ever exists in bf16.
    p = pad_ref[...]
    taps = [p[dy:dy + th, dx:dx + w, :].astype(jnp.bfloat16)
            for dy in range(3) for dx in range(3)]
    patch = jnp.concatenate(taps, axis=-1)                  # (TH, W, 9*Cin_p) bf16
    patch = patch.reshape(th * w, 9 * cin_p)

    acc = jnp.dot(patch, w_ref[...], preferred_element_type=jnp.float32)

    # ---- fused BatchNorm (eval-mode, folded) + ReLU epilogue ----------------
    y = jnp.maximum(acc * s_ref[...] + b_ref[...], 0.0)
    o_ref[...] = y.reshape(th, w, cout_p).astype(o_ref.dtype)


# ---------------------------------------------------------------------------
# Wrapper
# ---------------------------------------------------------------------------
def _default_row_tile(h, w, cin, cin_p, cout_p, vmem_budget=12 * 1024 * 1024):
    """Largest divisor of H whose per-tile VMEM footprint fits the budget."""
    best = 1
    for th in range(1, h + 1):
        if h % th:
            continue
        pad_bytes = (th + 2) * (w + 2) * cin_p * 4      # f32 halo scratch
        load_bytes = pad_bytes                          # loaded copy of the scratch
        patch_bytes = th * w * 9 * cin_p * 2            # bf16 im2col patch
        acc_bytes = th * w * cout_p * 4                 # f32 matmul accumulator
        out_bytes = 2 * th * w * cout_p * 4             # double-buffered output
        in_bytes = 2 * (th + 2) * w * cin * 2           # double-buffered inputs
        total = pad_bytes + load_bytes + patch_bytes + acc_bytes + out_bytes + in_bytes
        if total <= vmem_budget:
            best = th
    return best


def conv_block_forward(x_nchw, params, *, row_tile=None):
    """ConvBlock.forward: ReLU(BN(Conv3x3(x))); Attention(None) is Identity.

    x_nchw: (N, Cin, H, W) float32 (PyTorch layout). Returns (N, Cout, H, W) f32.
    """
    # TODO(synk): training-mode BatchNorm (batch statistics) is not implemented;
    # eval-mode running stats are folded into a per-channel scale/bias.
    w_oihw = params["conv_weight"]                     # (Cout, Cin, 3, 3)
    gamma, beta = params["bn_weight"], params["bn_bias"]
    mean, var = params["bn_running_mean"], params["bn_running_var"]
    eps = params["bn_eps"]

    n, cin, h, wd = x_nchw.shape
    cout = w_oihw.shape[0]
    cin_p = _round_up(cin, 128)    # lane-aligned im2col pieces
    cout_p = _round_up(cout, 128)  # lane-dense MXU output & stores

    th = row_tile if row_tile is not None else _default_row_tile(
        h, wd, cin, cin_p, cout_p)
    assert h % th == 0, f"row_tile {th} must divide H={h}"
    n_t = h // th

    # NHWC activations in bf16 (halves HBM traffic; f32 accumulation on the MXU).
    x = jnp.transpose(x_nchw, (0, 2, 3, 1)).astype(jnp.bfloat16)

    # Weights: OIHW -> HWIO, zero-pad Cin/Cout, flatten to (9*Cin_p, Cout_p) bf16.
    w_hwio = jnp.transpose(w_oihw, (2, 3, 1, 0)).astype(jnp.float32)
    w_pad = jnp.zeros((3, 3, cin_p, cout_p), jnp.float32)
    w_pad = w_pad.at[:, :, :cin, :cout].set(w_hwio)
    w_mat = w_pad.reshape(9 * cin_p, cout_p).astype(jnp.bfloat16)

    # Fold eval-mode BatchNorm into per-channel scale/bias (f32 epilogue).
    scale = gamma * jax.lax.rsqrt(var + eps)
    bias = beta - mean * scale
    scale_p = jnp.zeros((1, cout_p), jnp.float32).at[0, :cout].set(scale)
    bias_p = jnp.zeros((1, cout_p), jnp.float32).at[0, :cout].set(bias)

    cost = pl.CostEstimate(
        flops=2 * n * h * wd * 9 * cin * cout,
        transcendentals=0,
        bytes_accessed=(n * h * wd * cin * 2            # bf16 activations
                        + 9 * cin_p * cout_p * 2        # bf16 weights
                        + n * h * wd * cout_p * 4))     # f32 output

    out_padded = pl.pallas_call(
        _conv3x3_bn_relu_kernel,
        out_shape=jax.ShapeDtypeStruct((n, h, wd, cout_p), jnp.float32),
        grid=(n, n_t),
        in_specs=[
            # current row tile
            pl.BlockSpec((None, th, wd, cin), lambda b, t: (b, t, 0, 0)),
            # one-row top / bottom halos (clamped at image edges; kernel masks)
            pl.BlockSpec((None, 1, wd, cin),
                         lambda b, t: (b, jnp.maximum(t * th - 1, 0), 0, 0)),
            pl.BlockSpec((None, 1, wd, cin),
                         lambda b, t: (b, jnp.minimum(t * th + th, h - 1), 0, 0)),
            pl.BlockSpec((9 * cin_p, cout_p), lambda b, t: (0, 0)),
            pl.BlockSpec((1, cout_p), lambda b, t: (0, 0)),
            pl.BlockSpec((1, cout_p), lambda b, t: (0, 0)),
        ],
        out_specs=pl.BlockSpec((None, th, wd, cout_p), lambda b, t: (b, t, 0, 0)),
        scratch_shapes=[pltpu.VMEM((th + 2, wd + 2, cin_p), jnp.float32)],
        compiler_params=pltpu.CompilerParams(
            dimension_semantics=("parallel", "parallel"),
            vmem_limit_bytes=32 * 1024 * 1024),
        cost_estimate=cost,
    )(x, x, x, w_mat, scale_p, bias_p)

    # Strip channel padding and return PyTorch NCHW layout.
    out = out_padded[..., :cout]
    return jnp.transpose(out, (0, 3, 1, 2))


# ---------------------------------------------------------------------------
if __name__ == "__main__":
    # Small shapes consistent with a decoder ConvBlock.
    batch, cin, cout = 2, 16, 32
    height = width = 32

    key = jax.random.PRNGKey(0)
    kx, kw, kg, kb, km, kv = jax.random.split(key, 6)

    x = jax.random.normal(kx, (batch, cin, height, width), jnp.float32)

    fan_in = cin * 9
    params = {
        "conv_weight": jax.random.normal(kw, (cout, cin, 3, 3), jnp.float32)
                        / jnp.sqrt(fan_in),
        "bn_weight": 1.0 + 0.1 * jax.random.normal(kg, (cout,), jnp.float32),
        "bn_bias": 0.1 * jax.random.normal(kb, (cout,), jnp.float32),
        "bn_running_mean": 0.1 * jax.random.normal(km, (cout,), jnp.float32),
        "bn_running_var": 1.0 + 0.1 * jax.random.uniform(kv, (cout,), jnp.float32),
        "bn_eps": 1e-5,
    }

    fwd = jax.jit(functools.partial(conv_block_forward, params=params))
    out = fwd(x)
    jax.block_until_ready(out)

    # Reference (pure-XLA f32 conv on the same bf16-rounded inputs the kernel sees).
    def reference(x_nchw):
        xq = x_nchw.astype(jnp.bfloat16).astype(jnp.float32)
        wq = params["conv_weight"].astype(jnp.bfloat16).astype(jnp.float32)
        y = jax.lax.conv_general_dilated(
            xq, wq, window_strides=(1, 1), padding=((1, 1), (1, 1)),
            dimension_numbers=("NCHW", "OIHW", "NCHW"),
            precision=jax.lax.Precision.HIGHEST)
        scale = params["bn_weight"] * jax.lax.rsqrt(
            params["bn_running_var"] + params["bn_eps"])
        bias = params["bn_bias"] - params["bn_running_mean"] * scale
        y = y * scale[None, :, None, None] + bias[None, :, None, None]
        return jnp.maximum(y, 0.0)

    ref = jax.jit(reference)(x)
    jax.block_until_ready(ref)

    assert out.shape == (batch, cout, height, width), out.shape
    assert bool(jnp.all(jnp.isfinite(out)))
    err = float(jnp.max(jnp.abs(out - ref)))
    assert err < 1e-2, f"max abs err {err}"
    print("KERNEL_OK")
</pallas_src>

<mosaic_0001>
module attributes {stable_mosaic.version = 11 : i64} {
  func.func @_conv3x3_bn_relu_kernel(%arg0: i32, %arg1: i32, %arg2: memref<1x32x32x16xbf16, #tpu.memory_space<vmem>>, %arg3: memref<1x1x32x16xbf16, #tpu.memory_space<vmem>>, %arg4: memref<1x1x32x16xbf16, #tpu.memory_space<vmem>>, %arg5: memref<1152x128xbf16, #tpu.memory_space<vmem>>, %arg6: memref<1x128xf32, #tpu.memory_space<vmem>>, %arg7: memref<1x128xf32, #tpu.memory_space<vmem>>, %arg8: memref<1x32x32x128xf32, #tpu.memory_space<vmem>>, %arg9: memref<34x34x128xf32, #tpu.memory_space<vmem>>) attributes {dimension_semantics = [#tpu.dimension_semantics<parallel>, #tpu.dimension_semantics<parallel>], iteration_bounds = array<i64: 2, 1>, scalar_prefetch = 0 : i64, scratch_operands = 1 : i64, tpu.core_type = #tpu.core_type<tc>, window_params = [{transform_indices = @transform_0, window_bounds = array<i64: 1, 32, 32, 16>}, {transform_indices = @transform_1, window_bounds = array<i64: 1, 1, 32, 16>}, {transform_indices = @transform_2, window_bounds = array<i64: 1, 1, 32, 16>}, {pipeline_mode = #tpu.pipeline_mode<synchronous>, transform_indices = @transform_3, window_bounds = array<i64: 1152, 128>}, {pipeline_mode = #tpu.pipeline_mode<synchronous>, transform_indices = @transform_4, window_bounds = array<i64: 1, 128>}, {pipeline_mode = #tpu.pipeline_mode<synchronous>, transform_indices = @transform_5, window_bounds = array<i64: 1, 128>}, {transform_indices = @transform_6, window_bounds = array<i64: 1, 32, 32, 128>}]} {
    %cst = arith.constant 0.000000e+00 : f32
    %0 = vector.broadcast %cst : f32 to vector<34x34x128xf32>
    %c0 = arith.constant 0 : index
    %c0_0 = arith.constant 0 : index
    %c0_1 = arith.constant 0 : index
    %1 = vector.load %arg9[%c0, %c0_0, %c0_1] : memref<34x34x128xf32, #tpu.memory_space<vmem>>, vector<34x34x128xf32>
    tpu.vector_store %arg9[%c0, %c0_0, %c0_1], %0 {strides = array<i32>} : memref<34x34x128xf32, #tpu.memory_space<vmem>>, vector<34x34x128xf32>,
    %c0_2 = arith.constant 0 : index
    %c0_3 = arith.constant 0 : index
    %c0_4 = arith.constant 0 : index
    %c0_5 = arith.constant 0 : index
    %2 = vector.load %arg2[%c0_2, %c0_3, %c0_4, %c0_5] : memref<1x32x32x16xbf16, #tpu.memory_space<vmem>>, vector<1x32x32x16xbf16>
    %3 = vector.shape_cast %2 : vector<1x32x32x16xbf16> to vector<32x32x16xbf16>
    %4 = arith.extf %3 : vector<32x32x16xbf16> to vector<32x32x16xf32>
    %c1 = arith.constant 1 : index
    %c1_6 = arith.constant 1 : index
    %c0_7 = arith.constant 0 : index
    %5 = vector.load %arg9[%c1, %c1_6, %c0_7] : memref<34x34x128xf32, #tpu.memory_space<vmem>>, vector<32x32x16xf32>
    tpu.vector_store %arg9[%c1, %c1_6, %c0_7], %4 {strides = array<i32>} : memref<34x34x128xf32, #tpu.memory_space<vmem>>, vector<32x32x16xf32>,
    %c0_i32 = arith.constant 0 : i32
    %6 = arith.cmpi sgt, %arg1, %c0_i32 : i32
    %7 = arith.extui %6 : i1 to i32
    %c0_i32_8 = arith.constant 0 : i32
    %8 = arith.cmpi ne, %7, %c0_i32_8 : i32
    scf.if %8 {
      %c0_26 = arith.constant 0 : index
      %c0_27 = arith.constant 0 : index
      %c0_28 = arith.constant 0 : index
      %c0_29 = arith.constant 0 : index
      %47 = vector.load %arg3[%c0_26, %c0_27, %c0_28, %c0_29] : memref<1x1x32x16xbf16, #tpu.memory_space<vmem>>, vector<1x1x32x16xbf16>
      %48 = vector.shape_cast %47 : vector<1x1x32x16xbf16> to vector<1x32x16xbf16>
      %49 = arith.extf %48 : vector<1x32x16xbf16> to vector<1x32x16xf32>
      %c0_30 = arith.constant 0 : index
      %c1_31 = arith.constant 1 : index
      %c0_32 = arith.constant 0 : index
      %50 = vector.load %arg9[%c0_30, %c1_31, %c0_32] : memref<34x34x128xf32, #tpu.memory_space<vmem>>, vector<1x32x16xf32>
      tpu.vector_store %arg9[%c0_30, %c1_31, %c0_32], %49 {strides = array<i32>} : memref<34x34x128xf32, #tpu.memory_space<vmem>>, vector<1x32x16xf32>,
    } else {
    }
    %c0_i32_9 = arith.constant 0 : i32
    %9 = arith.cmpi slt, %arg1, %c0_i32_9 : i32
    %10 = arith.extui %9 : i1 to i32
    %c0_i32_10 = arith.constant 0 : i32
    %11 = arith.cmpi ne, %10, %c0_i32_10 : i32
    scf.if %11 {
      %c0_26 = arith.constant 0 : index
      %c0_27 = arith.constant 0 : index
      %c0_28 = arith.constant 0 : index
      %c0_29 = arith.constant 0 : index
      %47 = vector.load %arg4[%c0_26, %c0_27, %c0_28, %c0_29] : memref<1x1x32x16xbf16, #tpu.memory_space<vmem>>, vector<1x1x32x16xbf16>
      %48 = vector.shape_cast %47 : vector<1x1x32x16xbf16> to vector<1x32x16xbf16>
      %49 = arith.extf %48 : vector<1x32x16xbf16> to vector<1x32x16xf32>
      %c33 = arith.constant 33 : index
      %c1_30 = arith.constant 1 : index
      %c0_31 = arith.constant 0 : index
      %50 = vector.load %arg9[%c33, %c1_30, %c0_31] : memref<34x34x128xf32, #tpu.memory_space<vmem>>, vector<1x32x16xf32>
      tpu.vector_store %arg9[%c33, %c1_30, %c0_31], %49 {strides = array<i32>} : memref<34x34x128xf32, #tpu.memory_space<vmem>>, vector<1x32x16xf32>,
    } else {
    }
    %c0_11 = arith.constant 0 : index
    %c0_12 = arith.constant 0 : index
    %c0_13 = arith.constant 0 : index
    %12 = vector.load %arg9[%c0_11, %c0_12, %c0_13] : memref<34x34x128xf32, #tpu.memory_space<vmem>>, vector<34x34x128xf32>
    %13 = vector.extract_strided_slice %12 {offsets = [0, 0, 0], sizes = [32, 32, 128], strides = [1, 1, 1]} : vector<34x34x128xf32> to vector<32x32x128xf32>
    %14 = arith.truncf %13 : vector<32x32x128xf32> to vector<32x32x128xbf16>
    %15 = vector.extract_strided_slice %12 {offsets = [0, 1, 0], sizes = [32, 32, 128], strides = [1, 1, 1]} : vector<34x34x128xf32> to vector<32x32x128xf32>
    %16 = arith.truncf %15 : vector<32x32x128xf32> to vector<32x32x128xbf16>
    %17 = vector.extract_strided_slice %12 {offsets = [0, 2, 0], sizes = [32, 32, 128], strides = [1, 1, 1]} : vector<34x34x128xf32> to vector<32x32x128xf32>
    %18 = arith.truncf %17 : vector<32x32x128xf32> to vector<32x32x128xbf16>
    %19 = vector.extract_strided_slice %12 {offsets = [1, 0, 0], sizes = [32, 32, 128], strides = [1, 1, 1]} : vector<34x34x128xf32> to vector<32x32x128xf32>
    %20 = arith.truncf %19 : vector<32x32x128xf32> to vector<32x32x128xbf16>
    %21 = vector.extract_strided_slice %12 {offsets = [1, 1, 0], sizes = [32, 32, 128], strides = [1, 1, 1]} : vector<34x34x128xf32> to vector<32x32x128xf32>
    %22 = arith.truncf %21 : vector<32x32x128xf32> to vector<32x32x128xbf16>
    %23 = vector.extract_strided_slice %12 {offsets = [1, 2, 0], sizes = [32, 32, 128], strides = [1, 1, 1]} : vector<34x34x128xf32> to vector<32x32x128xf32>
    %24 = arith.truncf %23 : vector<32x32x128xf32> to vector<32x32x128xbf16>
    %25 = vector.extract_strided_slice %12 {offsets = [2, 0, 0], sizes = [32, 32, 128], strides = [1, 1, 1]} : vector<34x34x128xf32> to vector<32x32x128xf32>
    %26 = arith.truncf %25 : vector<32x32x128xf32> to vector<32x32x128xbf16>
    %27 = vector.extract_strided_slice %12 {offsets = [2, 1, 0], sizes = [32, 32, 128], strides = [1, 1, 1]} : vector<34x34x128xf32> to vector<32x32x128xf32>
    %28 = arith.truncf %27 : vector<32x32x128xf32> to vector<32x32x128xbf16>
    %29 = vector.extract_strided_slice %12 {offsets = [2, 2, 0], sizes = [32, 32, 128], strides = [1, 1, 1]} : vector<34x34x128xf32> to vector<32x32x128xf32>
    %30 = arith.truncf %29 : vector<32x32x128xf32> to vector<32x32x128xbf16>
    %31 = tpu.concatenate %14, %16, %18, %20, %22, %24, %26, %28, %30 in 2 : vector<32x32x128xbf16>, vector<32x32x128xbf16>, vector<32x32x128xbf16>, vector<32x32x128xbf16>, vector<32x32x128xbf16>, vector<32x32x128xbf16>, vector<32x32x128xbf16>, vector<32x32x128xbf16>, vector<32x32x128xbf16> -> vector<32x32x1152xbf16>
    %32 = vector.shape_cast %31 : vector<32x32x1152xbf16> to vector<1024x1152xbf16>
    %c0_14 = arith.constant 0 : index
    %c0_15 = arith.constant 0 : index
    %33 = vector.load %arg5[%c0_14, %c0_15] : memref<1152x128xbf16, #tpu.memory_space<vmem>>, vector<1152x128xbf16>
    %cst_16 = arith.constant dense<0.000000e+00> : vector<1024x128xf32>
    %34 = tpu.matmul %32, %33, %cst_16 {dimension_numbers = #tpu.dot_dimension_numbers<[1], [0], [0], [1], [0, 0, 1, 1], [], []>} : vector<1024x1152xbf16>, vector<1152x128xbf16>, vector<1024x128xf32> -> vector<1024x128xf32>
    %c0_17 = arith.constant 0 : index
    %c0_18 = arith.constant 0 : index
    %35 = vector.load %arg6[%c0_17, %c0_18] : memref<1x128xf32, #tpu.memory_space<vmem>>, vector<1x128xf32>
    %36 = vector.broadcast %35 : vector<1x128xf32> to vector<1024x128xf32>
    %37 = arith.mulf %34, %36 : vector<1024x128xf32>
    %c0_19 = arith.constant 0 : index
    %c0_20 = arith.constant 0 : index
    %38 = vector.load %arg7[%c0_19, %c0_20] : memref<1x128xf32, #tpu.memory_space<vmem>>, vector<1x128xf32>
    %39 = vector.broadcast %38 : vector<1x128xf32> to vector<1024x128xf32>
    %40 = arith.addf %37, %39 : vector<1024x128xf32>
    %cst_21 = arith.constant 0.000000e+00 : f32
    %41 = vector.broadcast %cst_21 : f32 to vector<1024x128xf32>
    %42 = arith.maximumf %40, %41 : vector<1024x128xf32>
    %43 = vector.shape_cast %42 : vector<1024x128xf32> to vector<32x32x128xf32>
    %c0_22 = arith.constant 0 : index
    %c0_23 = arith.constant 0 : index
    %c0_24 = arith.constant 0 : index
    %c0_25 = arith.constant 0 : index
    %44 = vector.load %arg8[%c0_22, %c0_23, %c0_24, %c0_25] : memref<1x32x32x128xf32, #tpu.memory_space<vmem>>, vector<1x32x32x128xf32>
    %45 = vector.shape_cast %44 : vector<1x32x32x128xf32> to vector<32x32x128xf32>
    %46 = vector.shape_cast %43 : vector<32x32x128xf32> to vector<1x32x32x128xf32>
    tpu.vector_store %arg8[%c0_22, %c0_23, %c0_24, %c0_25], %46 {strides = array<i32>} : memref<1x32x32x128xf32, #tpu.memory_space<vmem>>, vector<1x32x32x128xf32>,
    return
  }
  func.func @transform_0(%arg0: i32, %arg1: i32) -> (i32, i32, i32, i32) {
    %c0_i32 = arith.constant 0 : i32
    %c0_i32_0 = arith.constant 0 : i32
    %c0_i32_1 = arith.constant 0 : i32
    return %arg0, %arg1, %c0_i32, %c0_i32_0 : i32, i32, i32, i32
  }
  func.func @transform_1(%arg0: i32, %arg1: i32) -> (i32, i32, i32, i32) {
    %c32_i32 = arith.constant 32 : i32
    %0 = arith.muli %arg1, %c32_i32 : i32
    %c1_i32 = arith.constant 1 : i32
    %1 = arith.subi %0, %c1_i32 : i32
    %c0_i32 = arith.constant 0 : i32
    %2 = arith.maxsi %1, %c0_i32 : i32
    %c0_i32_0 = arith.constant 0 : i32
    %c0_i32_1 = arith.constant 0 : i32
    %c0_i32_2 = arith.constant 0 : i32
    return %arg0, %2, %c0_i32_0, %c0_i32_1 : i32, i32, i32, i32
  }
  func.func @transform_2(%arg0: i32, %arg1: i32) -> (i32, i32, i32, i32) {
    %c32_i32 = arith.constant 32 : i32
    %0 = arith.muli %arg1, %c32_i32 : i32
    %c32_i32_0 = arith.constant 32 : i32
    %1 = arith.addi %0, %c32_i32_0 : i32
    %c31_i32 = arith.constant 31 : i32
    %2 = arith.minsi %1, %c31_i32 : i32
    %c0_i32 = arith.constant 0 : i32
    %c0_i32_1 = arith.constant 0 : i32
    %c0_i32_2 = arith.constant 0 : i32
    return %arg0, %2, %c0_i32, %c0_i32_1 : i32, i32, i32, i32
  }
  func.func @transform_3(%arg0: i32, %arg1: i32) -> (i32, i32) {
    %c0_i32 = arith.constant 0 : i32
    %c0_i32_0 = arith.constant 0 : i32
    %c0_i32_1 = arith.constant 0 : i32
    return %c0_i32, %c0_i32_0 : i32, i32
  }
  func.func @transform_4(%arg0: i32, %arg1: i32) -> (i32, i32) {
    %c0_i32 = arith.constant 0 : i32
    %c0_i32_0 = arith.constant 0 : i32
    %c0_i32_1 = arith.constant 0 : i32
    return %c0_i32, %c0_i32_0 : i32, i32
  }
  func.func @transform_5(%arg0: i32, %arg1: i32) -> (i32, i32) {
    %c0_i32 = arith.constant 0 : i32
    %c0_i32_0 = arith.constant 0 : i32
    %c0_i32_1 = arith.constant 0 : i32
    return %c0_i32, %c0_i32_0 : i32, i32
  }
  func.func @transform_6(%arg0: i32, %arg1: i32) -> (i32, i32, i32, i32) {
    %c0_i32 = arith.constant 0 : i32
    %c0_i32_0 = arith.constant 0 : i32
    %c0_i32_1 = arith.constant 0 : i32
    return %arg0, %arg1, %c0_i32, %c0_i32_0 : i32, i32, i32, i32
  }
}

</mosaic_0001>

<llo_original>
// kernel: conv_block_forward.1
$region0: #{conv_block_forward.1}
  #allocation0 [shape = 'u32[]', space=smem, size = 0x4, offset = 0x4, fixed_abs, tag = 'smem constant byte address 0x4 - core index']
  #allocation1 [shape = 'u32[72,128]{1,0:T(1,128)}', space=vmem, size = 0x9000, scoped, tag = 'internal scratch']
  #allocation2 [shape = 'f32[34,34,128]{2,1,0:T(8,128)}', space=vmem, size = 0xaa000, scoped, tag = 'scratch operand']
  %s0 = inlined_call_operand.vmem [shape: bf16[2,32,32,16], index: 0, kind: input, shape index: {}, may-alias: {0,1,2}]
  %s1 = inlined_call_operand.vmem [shape: bf16[2,32,32,16], index: 1, kind: input, shape index: {}, may-alias: {0,1,2}]
  %s2 = inlined_call_operand.vmem [shape: bf16[2,32,32,16], index: 2, kind: input, shape index: {}, may-alias: {0,1,2}]
  %s3 = inlined_call_operand.vmem [shape: bf16[1152,128], index: 3, kind: input, shape index: {}]
  %s4 = inlined_call_operand.vmem [shape: f32[1,128], index: 4, kind: input, shape index: {}]
  %s5 = inlined_call_operand.vmem [shape: f32[1,128], index: 5, kind: input, shape index: {}]
  %s6 = inlined_call_operand.vmem [shape: f32[2,32,32,128], index: 6, kind: output, shape index: {}]
  %s7 = sld [smem:[#allocation0]]
  $region65: #{conv_block_forward.1} parent=0
    _
  %s9 = ssub.s32 1, %s7
  %s10 = scalar_select 0, %s9, %s7
  loop: start=0, step=1, limit=4
  $region2: #{conv_block_forward.1} parent=0 // loop_pre_header
    _
  $region3: #{conv_block_forward.1} parent=0 // loop_header
    %s12 = sphi 0, %s16
    %p13 = scmp.ge.s32.totalorder %s12, 4
    %s19 = sphi 0, %s31
    %s20 = sphi 0, %s27
    %s21 = sphi 0, %s19
    %s22 = sphi 0, %s20
    %s23 = sphi 0, %s21
    %s24 = sphi 0, %s22
    %s36 = sphi 0, %s38
    %s39 = sphi 0, %s36
    %s40 = sphi 0, %s39
    %s56 = sphi 0, %s40
    %s72 = sphi 0, %s74
    %s75 = sphi 0, %s72
    %s76 = sphi 0, %s75
    %s92 = sphi 0, %s76
    %s108 = sphi 0, %s110
    %s111 = sphi 0, %s108
    %s112 = sphi 0, %s111
    %s128 = sphi 0, %s112
    %s132 = sphi 0, %s132
    %s134 = sphi 0, %s132
    %s135 = sphi 0, %s134
    %s149 = sphi 0, %s135
    %s153 = sphi 0, %s153
    %s155 = sphi 0, %s153
    %s156 = sphi 0, %s155
    %s170 = sphi 0, %s156
    %s174 = sphi 0, %s174
    %s176 = sphi 0, %s174
    %s177 = sphi 0, %s176
    %s191 = sphi 0, %s177
    %s199 = sphi 0, %s201
    %s202 = sphi 0, %s199
    %s203 = sphi 0, %s202
    %s219 = sphi 0, %s203
  $region4: #{conv_block_forward.1} parent=0 // loop_header_branch
    %15 = sbr.rel (%p13) target = $region8
  $region5: #{conv_block_forward.1} parent=0 // loop_body
    %s17 = ssub.s32 %s12, 1
    %s18 = ssub.s32 %s12, 2
    %s25 = sadd.s32 1, %s20
    %p26 = scmp.ge.s32.totalorder %s25, 1
    %s27 = scalar_select %p26, 0, %s25
    %s28 = sadd.s32 1, %s19
    %s29 = scalar_select %p26, %s28, %s19
    %p30 = scmp.ge.s32.totalorder %s29, 2
    %s31 = scalar_select %p30, 0, %s29
    %s32 = ssub.s32 %s19, %s31
    %s33 = ssub.s32 %s20, %s27
    %s34 = sor.u32 %s32, %s33
    %p35 = scmp.eq.s32.totalorder %s34, 0
    %s37 = sadd.s32 %s36, 1
    %s38 = scalar_select %p35, %s36, %s37
    %p41 = pneg %p35
    %p42 = scmp.eq.s32.totalorder %s12, 1
    %p43 = por %p41, %p42
    %p44 = scmp.ne.s32.totalorder %s36, %s39
    %p45 = scmp.eq.s32.totalorder %s12, 0
    %p46 = por %p44, %p45
    %p47 = scmp.ne.s32.totalorder %s36, %s39
    %p48 = scmp.eq.s32.totalorder %s17, 1
    %p49 = por %p47, %p48
    %p50 = scmp.ne.s32.totalorder %s39, %s40
    %p51 = scmp.eq.s32.totalorder %s17, 0
    %p52 = por %p50, %p51
    %p53 = scmp.ne.s32.totalorder %s39, %s40
    %p54 = scmp.eq.s32.totalorder %s18, 1
    %p55 = por %p53, %p54
    %p57 = scmp.ne.s32.totalorder %s40, %s56
    %p58 = scmp.eq.s32.totalorder %s18, 0
    %p59 = por %p57, %p58
    %s60 = smul.u32 %s20, 32
    %s61 = ssub.s32 %s60, 1
    %p62 = scmp.gt.s32.totalorder %s61, 0
    %s63 = scalar_select %p62, %s61, 0
    %s64 = smul.u32 %s27, 32
    %s65 = ssub.s32 %s64, 1
    %p66 = scmp.gt.s32.totalorder %s65, 0
    %s67 = scalar_select %p66, %s65, 0
    %s68 = ssub.s32 %s19, %s31
    %s69 = ssub.s32 %s63, %s67
    %s70 = sor.u32 %s68, %s69
    %p71 = scmp.eq.s32.totalorder %s70, 0
    %s73 = sadd.s32 %s72, 1
    %s74 = scalar_select %p71, %s72, %s73
    %p77 = pneg %p71
    %p78 = scmp.eq.s32.totalorder %s12, 1
    %p79 = por %p77, %p78
    %p80 = scmp.ne.s32.totalorder %s72, %s75
    %p81 = scmp.eq.s32.totalorder %s12, 0
    %p82 = por %p80, %p81
    %p83 = scmp.ne.s32.totalorder %s72, %s75
    %p84 = scmp.eq.s32.totalorder %s17, 1
    %p85 = por %p83, %p84
    %p86 = scmp.ne.s32.totalorder %s75, %s76
    %p87 = scmp.eq.s32.totalorder %s17, 0
    %p88 = por %p86, %p87
    %p89 = scmp.ne.s32.totalorder %s75, %s76
    %p90 = scmp.eq.s32.totalorder %s18, 1
    %p91 = por %p89, %p90
    %p93 = scmp.ne.s32.totalorder %s76, %s92
    %p94 = scmp.eq.s32.totalorder %s18, 0
    %p95 = por %p93, %p94
    %s96 = smul.u32 %s20, 32
    %s97 = sadd.s32 %s96, 32
    %p98 = scmp.lt.s32.totalorder %s97, 31
    %s99 = scalar_select %p98, %s97, 31
    %s100 = smul.u32 %s27, 32
    %s101 = sadd.s32 %s100, 32
    %p102 = scmp.lt.s32.totalorder %s101, 31
    %s103 = scalar_select %p102, %s101, 31
    %s104 = ssub.s32 %s19, %s31
    %s105 = ssub.s32 %s99, %s103
    %s106 = sor.u32 %s104, %s105
    %p107 = scmp.eq.s32.totalorder %s106, 0
    %s109 = sadd.s32 %s108, 1
    %s110 = scalar_select %p107, %s108, %s109
    %p113 = pneg %p107
    %p114 = scmp.eq.s32.totalorder %s12, 1
    %p115 = por %p113, %p114
    %p116 = scmp.ne.s32.totalorder %s108, %s111
    %p117 = scmp.eq.s32.totalorder %s12, 0
    %p118 = por %p116, %p117
    %p119 = scmp.ne.s32.totalorder %s108, %s111
    %p120 = scmp.eq.s32.totalorder %s17, 1
    %p121 = por %p119, %p120
    %p122 = scmp.ne.s32.totalorder %s111, %s112
    %p123 = scmp.eq.s32.totalorder %s17, 0
    %p124 = por %p122, %p123
    %p125 = scmp.ne.s32.totalorder %s111, %s112
    %p126 = scmp.eq.s32.totalorder %s18, 1
    %p127 = por %p125, %p126
    %p129 = scmp.ne.s32.totalorder %s112, %s128
    %p130 = scmp.eq.s32.totalorder %s18, 0
    %p131 = por %p129, %p130
    %s133 = sadd.s32 %s132, 1
    %p136 = scmp.eq.s32.totalorder %s12, 1
    %p137 = scmp.ne.s32.totalorder %s132, %s134
    %p138 = scmp.eq.s32.totalorder %s12, 0
    %p139 = por %p137, %p138
    %p140 = scmp.ne.s32.totalorder %s132, %s134
    %p141 = scmp.eq.s32.totalorder %s17, 1
    %p142 = por %p140, %p141
    %p143 = scmp.ne.s32.totalorder %s134, %s135
    %p144 = scmp.eq.s32.totalorder %s17, 0
    %p145 = por %p143, %p144
    %p146 = scmp.ne.s32.totalorder %s134, %s135
    %p147 = scmp.eq.s32.totalorder %s18, 1
    %p148 = por %p146, %p147
    %p150 = scmp.ne.s32.totalorder %s135, %s149
    %p151 = scmp.eq.s32.totalorder %s18, 0
    %p152 = por %p150, %p151
    %s154 = sadd.s32 %s153, 1
    %p157 = scmp.eq.s32.totalorder %s12, 1
    %p158 = scmp.ne.s32.totalorder %s153, %s155
    %p159 = scmp.eq.s32.totalorder %s12, 0
    %p160 = por %p158, %p159
    %p161 = scmp.ne.s32.totalorder %s153, %s155
    %p162 = scmp.eq.s32.totalorder %s17, 1
    %p163 = por %p161, %p162
    %p164 = scmp.ne.s32.totalorder %s155, %s156
    %p165 = scmp.eq.s32.totalorder %s17, 0
    %p166 = por %p164, %p165
    %p167 = scmp.ne.s32.totalorder %s155, %s156
    %p168 = scmp.eq.s32.totalorder %s18, 1
    %p169 = por %p167, %p168
    %p171 = scmp.ne.s32.totalorder %s156, %s170
    %p172 = scmp.eq.s32.totalorder %s18, 0
    %p173 = por %p171, %p172
    %s175 = sadd.s32 %s174, 1
    %p178 = scmp.eq.s32.totalorder %s12, 1
    %p179 = scmp.ne.s32.totalorder %s174, %s176
    %p180 = scmp.eq.s32.totalorder %s12, 0
    %p181 = por %p179, %p180
    %p182 = scmp.ne.s32.totalorder %s174, %s176
    %p183 = scmp.eq.s32.totalorder %s17, 1
    %p184 = por %p182, %p183
    %p185 = scmp.ne.s32.totalorder %s176, %s177
    %p186 = scmp.eq.s32.totalorder %s17, 0
    %p187 = por %p185, %p186
    %p188 = scmp.ne.s32.totalorder %s176, %s177
    %p189 = scmp.eq.s32.totalorder %s18, 1
    %p190 = por %p188, %p189
    %p192 = scmp.ne.s32.totalorder %s177, %s191
    %p193 = scmp.eq.s32.totalorder %s18, 0
    %p194 = por %p192, %p193
    %s195 = ssub.s32 %s19, %s31
    %s196 = ssub.s32 %s20, %s27
    %s197 = sor.u32 %s195, %s196
    %p198 = scmp.eq.s32.totalorder %s197, 0
    %s200 = sadd.s32 %s199, 1
    %s201 = scalar_select %p198, %s199, %s200
    %p204 = pneg %p198
    %p205 = scmp.eq.s32.totalorder %s12, 1
    %p206 = por %p204, %p205
    %p207 = scmp.ne.s32.totalorder %s199, %s202
    %p208 = scmp.eq.s32.totalorder %s12, 0
    %p209 = por %p207, %p208
    %p210 = scmp.ne.s32.totalorder %s199, %s202
    %p211 = scmp.eq.s32.totalorder %s17, 1
    %p212 = por %p210, %p211
    %p213 = scmp.ne.s32.totalorder %s202, %s203
    %p214 = scmp.eq.s32.totalorder %s17, 0
    %p215 = por %p213, %p214
    %p216 = scmp.ne.s32.totalorder %s202, %s203
    %p217 = scmp.eq.s32.totalorder %s18, 1
    %p218 = por %p216, %p217
    %p220 = scmp.ne.s32.totalorder %s203, %s219
    %p221 = scmp.eq.s32.totalorder %s18, 0
    %p222 = por %p220, %p221
    %p223 = scmp.le.s32.totalorder 1, %s12
    %p224 = scmp.lt.s32.totalorder %s12, 3
    %p225 = pnand %p223, %p224
    %p226 = pneg %p225
    // Predicated region
    $region9: #{conv_block_forward.1} parent=5 // pred_check
      _
    $region10: #{conv_block_forward.1} parent=5 // pred_check_branch
      %228 = sbr.rel (%p225) target = $region12
    $region11: #{conv_block_forward.1} parent=5 // pred_region
      %s229 = ssub.s32 %s12, 1
      // Predicated region
      $region13: #{conv_block_forward.1} parent=11 // pred_check
        %p230 = pneg %p145
      $region14: #{conv_block_forward.1} parent=11 // pred_check_branch
        %232 = sbr.rel (%p230) target = $region16
      $region15: #{conv_block_forward.1} parent=11 // pred_region
        _
      $region16: #{conv_block_forward.1} parent=11 // pred_fallthru
        _
      // Predicated region
      $region17: #{conv_block_forward.1} parent=11 // pred_check
        %p233 = pneg %p166
      $region18: #{conv_block_forward.1} parent=11 // pred_check_branch
        %235 = sbr.rel (%p233) target = $region20
      $region19: #{conv_block_forward.1} parent=11 // pred_region
        _
      $region20: #{conv_block_forward.1} parent=11 // pred_fallthru
        _
      // Predicated region
      $region21: #{conv_block_forward.1} parent=11 // pred_check
        %p236 = pneg %p187
      $region22: #{conv_block_forward.1} parent=11 // pred_check_branch
        %238 = sbr.rel (%p236) target = $region24
      $region23: #{conv_block_forward.1} parent=11 // pred_region
        _
      $region24: #{conv_block_forward.1} parent=11 // pred_fallthru
        _
    $region12: #{conv_block_forward.1} parent=5 // pred_fallthru
      _
    %p239 = scmp.lt.s32.totalorder %s12, 2
    // Predicated region
    $region25: #{conv_block_forward.1} parent=5 // pred_check
      %p240 = pneg %p239
    $region26: #{conv_block_forward.1} parent=5 // pred_check_branch
      %242 = sbr.rel (%p240) target = $region28
    $region27: #{conv_block_forward.1} parent=5 // pred_region
      // Predicated region
      $region29: #{conv_block_forward.1} parent=27 // pred_check
        %p243 = pneg %p46
      $region30: #{conv_block_forward.1} parent=27 // pred_check_branch
        %245 = sbr.rel (%p243) target = $region32
      $region31: #{conv_block_forward.1} parent=27 // pred_region
        %s246 = smul.u32 32, %s20
        %p247 = scmp.lt.s32.totalorder %s19, 1
        %s248 = scalar_select %p247, %s19, 1
        %p249 = scmp.lt.s32.totalorder %s246, 31
        %s250 = scalar_select %p249, %s246, 31
        %s251 = smul.addr %s250, 4
        %s252 = smul.addr %s248, 128
        %s253 = sadd.s32 %s251, %s252
        %s254 = smul.addr %s253, 4
        %s255 = scalar_lea.vmem %s0, %s254
        %s256 = smul.u32 32, %s20
      $region32: #{conv_block_forward.1} parent=27 // pred_fallthru
        _
      // Predicated region
      $region33: #{conv_block_forward.1} parent=27 // pred_check
        %p257 = pneg %p82
      $region34: #{conv_block_forward.1} parent=27 // pred_check_branch
        %259 = sbr.rel (%p257) target = $region36
      $region35: #{conv_block_forward.1} parent=27 // pred_region
        %s260 = smul.u32 %s20, 32
        %s261 = ssub.s32 %s260, 1
        %p262 = scmp.gt.s32.totalorder %s261, 0
        %s263 = scalar_select %p262, %s261, 0
        %p264 = scmp.lt.s32.totalorder %s19, 1
        %s265 = scalar_select %p264, %s19, 1
        %p266 = scmp.lt.s32.totalorder %s263, 31
        %s267 = scalar_select %p266, %s263, 31
        %s268 = smul.addr %s267, 4
        %s269 = smul.addr %s265, 128
        %s270 = sadd.s32 %s268, %s269
        %s271 = smul.addr %s270, 4
        %s272 = scalar_lea.vmem %s1, %s271
        %s273 = smul.u32 %s20, 32
        %s274 = ssub.s32 %s273, 1
        %p275 = scmp.gt.s32.totalorder %s274, 0
        %s276 = scalar_select %p275, %s274, 0
      $region36: #{conv_block_forward.1} parent=27 // pred_fallthru
        _
      // Predicated region
      $region37: #{conv_block_forward.1} parent=27 // pred_check
        %p277 = pneg %p118
      $region38: #{conv_block_forward.1} parent=27 // pred_check_branch
        %279 = sbr.rel (%p277) target = $region40
      $region39: #{conv_block_forward.1} parent=27 // pred_region
        %s280 = smul.u32 %s20, 32
        %s281 = sadd.s32 %s280, 32
        %p282 = scmp.lt.s32.totalorder %s281, 31
        %s283 = scalar_select %p282, %s281, 31
        %p284 = scmp.lt.s32.totalorder %s19, 1
        %s285 = scalar_select %p284, %s19, 1
        %p286 = scmp.lt.s32.totalorder %s283, 31
        %s287 = scalar_select %p286, %s283, 31
        %s288 = smul.addr %s287, 4
        %s289 = smul.addr %s285, 128
        %s290 = sadd.s32 %s288, %s289
        %s291 = smul.addr %s290, 4
        %s292 = scalar_lea.vmem %s2, %s291
        %s293 = smul.u32 %s20, 32
        %s294 = sadd.s32 %s293, 32
        %p295 = scmp.lt.s32.totalorder %s294, 31
        %s296 = scalar_select %p295, %s294, 31
      $region40: #{conv_block_forward.1} parent=27 // pred_fallthru
        _
    $region28: #{conv_block_forward.1} parent=5 // pred_fallthru
      _
    %p297 = scmp.le.s32.totalorder 1, %s12
    %p298 = scmp.lt.s32.totalorder %s12, 3
    %p299 = pnand %p297, %p298
    %p300 = pneg %p299
    // Predicated region
    $region41: #{conv_block_forward.1} parent=5 // pred_check
      _
    $region42: #{conv_block_forward.1} parent=5 // pred_check_branch
      %302 = sbr.rel (%p299) target = $region44
    $region43: #{conv_block_forward.1} parent=5 // pred_region
      %s303 = ssub.s32 %s12, 1
      %s304 = smul.u32 32, %s22
      %p305 = scmp.lt.s32.totalorder %s21, 1
      %s306 = scalar_select %p305, %s21, 1
      %p307 = scmp.lt.s32.totalorder %s304, 31
      %s308 = scalar_select %p307, %s304, 31
      %s309 = smul.addr %s308, 4
      %s310 = smul.addr %s306, 128
      %s311 = sadd.s32 %s309, %s310
      %s312 = smul.addr %s311, 4
      %s313 = scalar_lea.vmem %s0, %s312
      %p314 = pneg %p52
      %p315 = pneg %p49
      %s316 = smul.u32 %s22, 32
      %s317 = ssub.s32 %s316, 1
      %p318 = scmp.gt.s32.totalorder %s317, 0
      %s319 = scalar_select %p318, %s317, 0
      %p320 = scmp.lt.s32.totalorder %s21, 1
      %s321 = scalar_select %p320, %s21, 1
      %p322 = scmp.lt.s32.totalorder %s319, 31
      %s323 = scalar_select %p322, %s319, 31
      %s324 = smul.addr %s323, 4
      %s325 = smul.addr %s321, 128
      %s326 = sadd.s32 %s324, %s325
      %s327 = smul.addr %s326, 4
      %s328 = scalar_lea.vmem %s1, %s327
      %p329 = pneg %p88
      %p330 = pneg %p85
      %s331 = smul.u32 %s22, 32
      %s332 = sadd.s32 %s331, 32
      %p333 = scmp.lt.s32.totalorder %s332, 31
      %s334 = scalar_select %p333, %s332, 31
      %p335 = scmp.lt.s32.totalorder %s21, 1
      %s336 = scalar_select %p335, %s21, 1
      %p337 = scmp.lt.s32.totalorder %s334, 31
      %s338 = scalar_select %p337, %s334, 31
      %s339 = smul.addr %s338, 4
      %s340 = smul.addr %s336, 128
      %s341 = sadd.s32 %s339, %s340
      %s342 = smul.addr %s341, 4
      %s343 = scalar_lea.vmem %s2, %s342
      %p344 = pneg %p124
      %p345 = pneg %p121
      %p346 = pneg %p145
      %p347 = pneg %p142
      %p348 = pneg %p166
      %p349 = pneg %p163
      %p350 = pneg %p187
      %p351 = pneg %p184
      %p352 = pneg %p215
      %p353 = pneg %p212
      %s354 = smul.u32 32, %s22
      %p355 = scmp.lt.s32.totalorder %s21, 1
      %s356 = scalar_select %p355, %s21, 1
      %p357 = scmp.lt.s32.totalorder %s354, 31
      %s358 = scalar_select %p357, %s354, 31
      %s359 = smul.addr %s358, 4
      %s360 = smul.addr %s356, 128
      %s361 = sadd.s32 %s359, %s360
      %s362 = smul.addr %s361, 8
      %s363 = scalar_lea.vmem %s6, %s362
      %s364 = smul.u32 32, %s22
      %p365 = scmp.lt.s32.totalorder %s21, 1
      %s366 = scalar_select %p365, %s21, 1
      %p367 = scmp.lt.s32.totalorder %s364, 31
      %s368 = scalar_select %p367, %s364, 31
      %s369 = smul.addr %s368, 4
      %s370 = smul.addr %s366, 128
      %s371 = sadd.s32 %s369, %s370
      %s372 = smul.addr %s371, 4
      %s373 = scalar_lea.vmem %s0, %s372
      %s374 = smul.u32 32, %s22
      %s375 = smul.u32 %s22, 32
      %s376 = ssub.s32 %s375, 1
      %p377 = scmp.gt.s32.totalorder %s376, 0
      %s378 = scalar_select %p377, %s376, 0
      %p379 = scmp.lt.s32.totalorder %s21, 1
      %s380 = scalar_select %p379, %s21, 1
      %p381 = scmp.lt.s32.totalorder %s378, 31
      %s382 = scalar_select %p381, %s378, 31
      %s383 = smul.addr %s382, 4
      %s384 = smul.addr %s380, 128
      %s385 = sadd.s32 %s383, %s384
      %s386 = smul.addr %s385, 4
      %s387 = scalar_lea.vmem %s1, %s386
      %s388 = smul.u32 %s22, 32
      %s389 = ssub.s32 %s388, 1
      %p390 = scmp.gt.s32.totalorder %s389, 0
      %s391 = scalar_select %p390, %s389, 0
      %s392 = smul.u32 %s22, 32
      %s393 = sadd.s32 %s392, 32
      %p394 = scmp.lt.s32.totalorder %s393, 31
      %s395 = scalar_select %p394, %s393, 31
      %p396 = scmp.lt.s32.totalorder %s21, 1
      %s397 = scalar_select %p396, %s21, 1
      %p398 = scmp.lt.s32.totalorder %s395, 31
      %s399 = scalar_select %p398, %s395, 31
      %s400 = smul.addr %s399, 4
      %s401 = smul.addr %s397, 128
      %s402 = sadd.s32 %s400, %s401
      %s403 = smul.addr %s402, 4
      %s404 = scalar_lea.vmem %s2, %s403
      %s405 = smul.u32 %s22, 32
      %s406 = sadd.s32 %s405, 32
      %p407 = scmp.lt.s32.totalorder %s406, 31
      %s408 = scalar_select %p407, %s406, 31
      %s409 = smul.u32 32, %s22
      %p410 = scmp.lt.s32.totalorder %s21, 1
      %s411 = scalar_select %p410, %s21, 1
      %p412 = scmp.lt.s32.totalorder %s409, 31
      %s413 = scalar_select %p412, %s409, 31
      %s414 = smul.addr %s413, 4
      %s415 = smul.addr %s411, 128
      %s416 = sadd.s32 %s414, %s415
      %s417 = smul.addr %s416, 8
      %s418 = scalar_lea.vmem %s6, %s417
      %s419 = smul.u32 32, %s22
      %420 = vst [vmem:[#allocation2] sm:$0xff] 0.0
      %421 = vst [vmem:[#allocation2 + $0x8] sm:$0xff] 0.0
      %422 = vst [vmem:[#allocation2 + $0x10] sm:$0xff] 0.0
      %423 = vst [vmem:[#allocation2 + $0x18] sm:$0xff] 0.0
      %424 = vst [vmem:[#allocation2 + $0x20] sm:$0x3] 0.0
      %425 = vst [vmem:[#allocation2 + $0x28] sm:$0xff] 0.0
      %426 = vst [vmem:[#allocation2 + $0x30] sm:$0xff] 0.0
      %427 = vst [vmem:[#allocation2 + $0x38] sm:$0xff] 0.0
      %428 = vst [vmem:[#allocation2 + $0x40] sm:$0xff] 0.0
      %429 = vst [vmem:[#allocation2 + $0x48] sm:$0x3] 0.0
      %430 = vst [vmem:[#allocation2 + $0x50] sm:$0xff] 0.0
      %431 = vst [vmem:[#allocation2 + $0x58] sm:$0xff] 0.0
      %432 = vst [vmem:[#allocation2 + $0x60] sm:$0xff] 0.0
      %433 = vst [vmem:[#allocation2 + $0x68] sm:$0xff] 0.0
      %434 = vst [vmem:[#allocation2 + $0x70] sm:$0x3] 0.0
      %435 = vst [vmem:[#allocation2 + $0x78] sm:$0xff] 0.0
      %436 = vst [vmem:[#allocation2 + $0x80] sm:$0xff] 0.0
      %437 = vst [vmem:[#allocation2 + $0x88] sm:$0xff] 0.0
      %438 = vst [vmem:[#allocation2 + $0x90] sm:$0xff] 0.0
      %439 = vst [vmem:[#allocation2 + $0x98] sm:$0x3] 0.0
      %440 = vst [vmem:[#allocation2 + $0xa0] sm:$0xff] 0.0
      %441 = vst [vmem:[#allocation2 + $0xa8] sm:$0xff] 0.0
      %442 = vst [vmem:[#allocation2 + $0xb0] sm:$0xff] 0.0
      %443 = vst [vmem:[#allocation2 + $0xb8] sm:$0xff] 0.0
      %444 = vst [vmem:[#allocation2 + $0xc0] sm:$0x3] 0.0
      %445 = vst [vmem:[#allocation2 + $0xc8] sm:$0xff] 0.0
      %446 = vst [vmem:[#allocation2 + $0xd0] sm:$0xff] 0.0
      %447 = vst [vmem:[#allocation2 + $0xd8] sm:$0xff] 0.0
      %448 = vst [vmem:[#allocation2 + $0xe0] sm:$0xff] 0.0
      %449 = vst [vmem:[#allocation2 + $0xe8] sm:$0x3] 0.0
      %450 = vst [vmem:[#allocation2 + $0xf0] sm:$0xff] 0.0
      %451 = vst [vmem:[#allocation2 + $0xf8] sm:$0xff] 0.0
      %452 = vst [vmem:[#allocation2 + $0x100] sm:$0xff] 0.0
      %453 = vst [vmem:[#allocation2 + $0x108] sm:$0xff] 0.0
      %454 = vst [vmem:[#allocation2 + $0x110] sm:$0x3] 0.0
      %455 = vst [vmem:[#allocation2 + $0x118] sm:$0xff] 0.0
      %456 = vst [vmem:[#allocation2 + $0x120] sm:$0xff] 0.0
      %457 = vst [vmem:[#allocation2 + $0x128] sm:$0xff] 0.0
      %458 = vst [vmem:[#allocation2 + $0x130] sm:$0xff] 0.0
      %459 = vst [vmem:[#allocation2 + $0x138] sm:$0x3] 0.0
      %460 = vst [vmem:[#allocation2 + $0x140] sm:$0xff] 0.0
      %461 = vst [vmem:[#allocation2 + $0x148] sm:$0xff] 0.0
      %462 = vst [vmem:[#allocation2 + $0x150] sm:$0xff] 0.0
      %463 = vst [vmem:[#allocation2 + $0x158] sm:$0xff] 0.0
      %464 = vst [vmem:[#allocation2 + $0x160] sm:$0x3] 0.0
      %465 = vst [vmem:[#allocation2 + $0x168] sm:$0xff] 0.0
      %466 = vst [vmem:[#allocation2 + $0x170] sm:$0xff] 0.0
      %467 = vst [vmem:[#allocation2 + $0x178] sm:$0xff] 0.0
      %468 = vst [vmem:[#allocation2 + $0x180] sm:$0xff] 0.0
      %469 = vst [vmem:[#allocation2 + $0x188] sm:$0x3] 0.0
      %470 = vst [vmem:[#allocation2 + $0x190] sm:$0xff] 0.0
      %471 = vst [vmem:[#allocation2 + $0x198] sm:$0xff] 0.0
      %472 = vst [vmem:[#allocation2 + $0x1a0] sm:$0xff] 0.0
      %473 = vst [vmem:[#allocation2 + $0x1a8] sm:$0xff] 0.0
      %474 = vst [vmem:[#allocation2 + $0x1b0] sm:$0x3] 0.0
      %475 = vst [vmem:[#allocation2 + $0x1b8] sm:$0xff] 0.0
      %476 = vst [vmem:[#allocation2 + $0x1c0] sm:$0xff] 0.0
      %477 = vst [vmem:[#allocation2 + $0x1c8] sm:$0xff] 0.0
      %478 = vst [vmem:[#allocation2 + $0x1d0] sm:$0xff] 0.0
      %479 = vst [vmem:[#allocation2 + $0x1d8] sm:$0x3] 0.0
      %480 = vst [vmem:[#allocation2 + $0x1e0] sm:$0xff] 0.0
      %481 = vst [vmem:[#allocation2 + $0x1e8] sm:$0xff] 0.0
      %482 = vst [vmem:[#allocation2 + $0x1f0] sm:$0xff] 0.0
      %483 = vst [vmem:[#allocation2 + $0x1f8] sm:$0xff] 0.0
      %484 = vst [vmem:[#allocation2 + $0x200] sm:$0x3] 0.0
      %485 = vst [vmem:[#allocation2 + $0x208] sm:$0xff] 0.0
      %486 = vst [vmem:[#allocation2 + $0x210] sm:$0xff] 0.0
      %487 = vst [vmem:[#allocation2 + $0x218] sm:$0xff] 0.0
      %488 = vst [vmem:[#allocation2 + $0x220] sm:$0xff] 0.0
      %489 = vst [vmem:[#allocation2 + $0x228] sm:$0x3] 0.0
      %490 = vst [vmem:[#allocation2 + $0x230] sm:$0xff] 0.0
      %491 = vst [vmem:[#allocation2 + $0x238] sm:$0xff] 0.0
      %492 = vst [vmem:[#allocation2 + $0x240] sm:$0xff] 0.0
      %493 = vst [vmem:[#allocation2 + $0x248] sm:$0xff] 0.0
      %494 = vst [vmem:[#allocation2 + $0x250] sm:$0x3] 0.0
      %495 = vst [vmem:[#allocation2 + $0x258] sm:$0xff] 0.0
      %496 = vst [vmem:[#allocation2 + $0x260] sm:$0xff] 0.0
      %497 = vst [vmem:[#allocation2 + $0x268] sm:$0xff] 0.0
      %498 = vst [vmem:[#allocation2 + $0x270] sm:$0xff] 0.0
      %499 = vst [vmem:[#allocation2 + $0x278] sm:$0x3] 0.0
      %500 = vst [vmem:[#allocation2 + $0x280] sm:$0xff] 0.0
      %501 = vst [vmem:[#allocation2 + $0x288] sm:$0xff] 0.0
      %502 = vst [vmem:[#allocation2 + $0x290] sm:$0xff] 0.0
      %503 = vst [vmem:[#allocation2 + $0x298] sm:$0xff] 0.0
      %504 = vst [vmem:[#allocation2 + $0x2a0] sm:$0x3] 0.0
      %505 = vst [vmem:[#allocation2 + $0x2a8] sm:$0xff] 0.0
      %506 = vst [vmem:[#allocation2 + $0x2b0] sm:$0xff] 0.0
      %507 = vst [vmem:[#allocation2 + $0x2b8] sm:$0xff] 0.0
      %508 = vst [vmem:[#allocation2 + $0x2c0] sm:$0xff] 0.0
      %509 = vst [vmem:[#allocation2 + $0x2c8] sm:$0x3] 0.0
      %510 = vst [vmem:[#allocation2 + $0x2d0] sm:$0xff] 0.0
      %511 = vst [vmem:[#allocation2 + $0x2d8] sm:$0xff] 0.0
      %512 = vst [vmem:[#allocation2 + $0x2e0] sm:$0xff] 0.0
      %513 = vst [vmem:[#allocation2 + $0x2e8] sm:$0xff] 0.0
      %514 = vst [vmem:[#allocation2 + $0x2f0] sm:$0x3] 0.0
      %515 = vst [vmem:[#allocation2 + $0x2f8] sm:$0xff] 0.0
      %516 = vst [vmem:[#allocation2 + $0x300] sm:$0xff] 0.0
      %517 = vst [vmem:[#allocation2 + $0x308] sm:$0xff] 0.0
      %518 = vst [vmem:[#allocation2 + $0x310] sm:$0xff] 0.0
      %519 = vst [vmem:[#allocation2 + $0x318] sm:$0x3] 0.0
      %520 = vst [vmem:[#allocation2 + $0x320] sm:$0xff] 0.0
      %521 = vst [vmem:[#allocation2 + $0x328] sm:$0xff] 0.0
      %522 = vst [vmem:[#allocation2 + $0x330] sm:$0xff] 0.0
      %523 = vst [vmem:[#allocation2 + $0x338] sm:$0xff] 0.0
      %524 = vst [vmem:[#allocation2 + $0x340] sm:$0x3] 0.0
      %525 = vst [vmem:[#allocation2 + $0x348] sm:$0xff] 0.0
      %526 = vst [vmem:[#allocation2 + $0x350] sm:$0xff] 0.0
      %527 = vst [vmem:[#allocation2 + $0x358] sm:$0xff] 0.0
      %528 = vst [vmem:[#allocation2 + $0x360] sm:$0xff] 0.0
      %529 = vst [vmem:[#allocation2 + $0x368] sm:$0x3] 0.0
      %530 = vst [vmem:[#allocation2 + $0x370] sm:$0xff] 0.0
      %531 = vst [vmem:[#allocation2 + $0x378] sm:$0xff] 0.0
      %532 = vst [vmem:[#allocation2 + $0x380] sm:$0xff] 0.0
      %533 = vst [vmem:[#allocation2 + $0x388] sm:$0xff] 0.0
      %534 = vst [vmem:[#allocation2 + $0x390] sm:$0x3] 0.0
      %535 = vst [vmem:[#allocation2 + $0x398] sm:$0xff] 0.0
      %536 = vst [vmem:[#allocation2 + $0x3a0] sm:$0xff] 0.0
      %537 = vst [vmem:[#allocation2 + $0x3a8] sm:$0xff] 0.0
      %538 = vst [vmem:[#allocation2 + $0x3b0] sm:$0xff] 0.0
      %539 = vst [vmem:[#allocation2 + $0x3b8] sm:$0x3] 0.0
      %540 = vst [vmem:[#allocation2 + $0x3c0] sm:$0xff] 0.0
      %541 = vst [vmem:[#allocation2 + $0x3c8] sm:$0xff] 0.0
      %542 = vst [vmem:[#allocation2 + $0x3d0] sm:$0xff] 0.0
      %543 = vst [vmem:[#allocation2 + $0x3d8] sm:$0xff] 0.0
      %544 = vst [vmem:[#allocation2 + $0x3e0] sm:$0x3] 0.0
      %545 = vst [vmem:[#allocation2 + $0x3e8] sm:$0xff] 0.0
      %546 = vst [vmem:[#allocation2 + $0x3f0] sm:$0xff] 0.0
      %547 = vst [vmem:[#allocation2 + $0x3f8] sm:$0xff] 0.0
      %548 = vst [vmem:[#allocation2 + $0x400] sm:$0xff] 0.0
      %549 = vst [vmem:[#allocation2 + $0x408] sm:$0x3] 0.0
      %550 = vst [vmem:[#allocation2 + $0x410] sm:$0xff] 0.0
      %551 = vst [vmem:[#allocation2 + $0x418] sm:$0xff] 0.0
      %552 = vst [vmem:[#allocation2 + $0x420] sm:$0xff] 0.0
      %553 = vst [vmem:[#allocation2 + $0x428] sm:$0xff] 0.0
      %554 = vst [vmem:[#allocation2 + $0x430] sm:$0x3] 0.0
      %555 = vst [vmem:[#allocation2 + $0x438] sm:$0xff] 0.0
      %556 = vst [vmem:[#allocation2 + $0x440] sm:$0xff] 0.0
      %557 = vst [vmem:[#allocation2 + $0x448] sm:$0xff] 0.0
      %558 = vst [vmem:[#allocation2 + $0x450] sm:$0xff] 0.0
      %559 = vst [vmem:[#allocation2 + $0x458] sm:$0x3] 0.0
      %560 = vst [vmem:[#allocation2 + $0x460] sm:$0xff] 0.0
      %561 = vst [vmem:[#allocation2 + $0x468] sm:$0xff] 0.0
      %562 = vst [vmem:[#allocation2 + $0x470] sm:$0xff] 0.0
      %563 = vst [vmem:[#allocation2 + $0x478] sm:$0xff] 0.0
      %564 = vst [vmem:[#allocation2 + $0x480] sm:$0x3] 0.0
      %565 = vst [vmem:[#allocation2 + $0x488] sm:$0xff] 0.0
      %566 = vst [vmem:[#allocation2 + $0x490] sm:$0xff] 0.0
      %567 = vst [vmem:[#allocation2 + $0x498] sm:$0xff] 0.0
      %568 = vst [vmem:[#allocation2 + $0x4a0] sm:$0xff] 0.0
      %569 = vst [vmem:[#allocation2 + $0x4a8] sm:$0x3] 0.0
      %570 = vst [vmem:[#allocation2 + $0x4b0] sm:$0xff] 0.0
      %571 = vst [vmem:[#allocation2 + $0x4b8] sm:$0xff] 0.0
      %572 = vst [vmem:[#allocation2 + $0x4c0] sm:$0xff] 0.0
      %573 = vst [vmem:[#allocation2 + $0x4c8] sm:$0xff] 0.0
      %574 = vst [vmem:[#allocation2 + $0x4d0] sm:$0x3] 0.0
      %575 = vst [vmem:[#allocation2 + $0x4d8] sm:$0xff] 0.0
      %576 = vst [vmem:[#allocation2 + $0x4e0] sm:$0xff] 0.0
      %577 = vst [vmem:[#allocation2 + $0x4e8] sm:$0xff] 0.0
      %578 = vst [vmem:[#allocation2 + $0x4f0] sm:$0xff] 0.0
      %579 = vst [vmem:[#allocation2 + $0x4f8] sm:$0x3] 0.0
      %580 = vst [vmem:[#allocation2 + $0x500] sm:$0xff] 0.0
      %581 = vst [vmem:[#allocation2 + $0x508] sm:$0xff] 0.0
      %582 = vst [vmem:[#allocation2 + $0x510] sm:$0xff] 0.0
      %583 = vst [vmem:[#allocation2 + $0x518] sm:$0xff] 0.0
      %584 = vst [vmem:[#allocation2 + $0x520] sm:$0x3] 0.0
      %585 = vst [vmem:[#allocation2 + $0x528] sm:$0xff] 0.0
      %586 = vst [vmem:[#allocation2 + $0x530] sm:$0xff] 0.0
      %587 = vst [vmem:[#allocation2 + $0x538] sm:$0xff] 0.0
      %588 = vst [vmem:[#allocation2 + $0x540] sm:$0xff] 0.0
      %589 = vst [vmem:[#allocation2 + $0x548] sm:$0x3] 0.0
      %v590 = vld [vmem:[%s373] sm:$0xf]
      %v591 = vld [vmem:[%s373 + $0x4] sm:$0xf]
      %v592 = vld [vmem:[%s373 + $0x8] sm:$0xf]
      %v593 = vld [vmem:[%s373 + $0xc] sm:$0xf]
      %v594 = vld [vmem:[%s373 + $0x10] sm:$0xf]
      %v595 = vld [vmem:[%s373 + $0x14] sm:$0xf]
      %v596 = vld [vmem:[%s373 + $0x18] sm:$0xf]
      %v597 = vld [vmem:[%s373 + $0x1c] sm:$0xf]
      %v598 = vld [vmem:[%s373 + $0x20] sm:$0xf]
      %v599 = vld [vmem:[%s373 + $0x24] sm:$0xf]
      %v600 = vld [vmem:[%s373 + $0x28] sm:$0xf]
      %v601 = vld [vmem:[%s373 + $0x2c] sm:$0xf]
      %v602 = vld [vmem:[%s373 + $0x30] sm:$0xf]
      %v603 = vld [vmem:[%s373 + $0x34] sm:$0xf]
      %v604 = vld [vmem:[%s373 + $0x38] sm:$0xf]
      %v605 = vld [vmem:[%s373 + $0x3c] sm:$0xf]
      %v606 = vld [vmem:[%s373 + $0x40] sm:$0xf]
      %v607 = vld [vmem:[%s373 + $0x44] sm:$0xf]
      %v608 = vld [vmem:[%s373 + $0x48] sm:$0xf]
      %v609 = vld [vmem:[%s373 + $0x4c] sm:$0xf]
      %v610 = vld [vmem:[%s373 + $0x50] sm:$0xf]
      %v611 = vld [vmem:[%s373 + $0x54] sm:$0xf]
      %v612 = vld [vmem:[%s373 + $0x58] sm:$0xf]
      %v613 = vld [vmem:[%s373 + $0x5c] sm:$0xf]
      %v614 = vld [vmem:[%s373 + $0x60] sm:$0xf]
      %v615 = vld [vmem:[%s373 + $0x64] sm:$0xf]
      %v616 = vld [vmem:[%s373 + $0x68] sm:$0xf]
      %v617 = vld [vmem:[%s373 + $0x6c] sm:$0xf]
      %v618 = vld [vmem:[%s373 + $0x70] sm:$0xf]
      %v619 = vld [vmem:[%s373 + $0x74] sm:$0xf]
      %v620 = vld [vmem:[%s373 + $0x78] sm:$0xf]
      %v621 = vld [vmem:[%s373 + $0x7c] sm:$0xf]
      %v622 = vld [vmem:[%s373 + $0x80] sm:$0xf]
      %v623 = vld [vmem:[%s373 + $0x84] sm:$0xf]
      %v624 = vld [vmem:[%s373 + $0x88] sm:$0xf]
      %v625 = vld [vmem:[%s373 + $0x8c] sm:$0xf]
      %v626 = vld [vmem:[%s373 + $0x90] sm:$0xf]
      %v627 = vld [vmem:[%s373 + $0x94] sm:$0xf]
      %v628 = vld [vmem:[%s373 + $0x98] sm:$0xf]
      %v629 = vld [vmem:[%s373 + $0x9c] sm:$0xf]
      %v630 = vld [vmem:[%s373 + $0xa0] sm:$0xf]
      %v631 = vld [vmem:[%s373 + $0xa4] sm:$0xf]
      %v632 = vld [vmem:[%s373 + $0xa8] sm:$0xf]
      %v633 = vld [vmem:[%s373 + $0xac] sm:$0xf]
      %v634 = vld [vmem:[%s373 + $0xb0] sm:$0xf]
      %v635 = vld [vmem:[%s373 + $0xb4] sm:$0xf]
      %v636 = vld [vmem:[%s373 + $0xb8] sm:$0xf]
      %v637 = vld [vmem:[%s373 + $0xbc] sm:$0xf]
      %v638 = vld [vmem:[%s373 + $0xc0] sm:$0xf]
      %v639 = vld [vmem:[%s373 + $0xc4] sm:$0xf]
      %v640 = vld [vmem:[%s373 + $0xc8] sm:$0xf]
      %v641 = vld [vmem:[%s373 + $0xcc] sm:$0xf]
      %v642 = vld [vmem:[%s373 + $0xd0] sm:$0xf]
      %v643 = vld [vmem:[%s373 + $0xd4] sm:$0xf]
      %v644 = vld [vmem:[%s373 + $0xd8] sm:$0xf]
      %v645 = vld [vmem:[%s373 + $0xdc] sm:$0xf]
      %v646 = vld [vmem:[%s373 + $0xe0] sm:$0xf]
      %v647 = vld [vmem:[%s373 + $0xe4] sm:$0xf]
      %v648 = vld [vmem:[%s373 + $0xe8] sm:$0xf]
      %v649 = vld [vmem:[%s373 + $0xec] sm:$0xf]
      %v650 = vld [vmem:[%s373 + $0xf0] sm:$0xf]
      %v651 = vld [vmem:[%s373 + $0xf4] sm:$0xf]
      %v652 = vld [vmem:[%s373 + $0xf8] sm:$0xf]
      %v653 = vld [vmem:[%s373 + $0xfc] sm:$0xf]
      %v654 = vld [vmem:[%s373 + $0x100] sm:$0xf]
      %v655 = vld [vmem:[%s373 + $0x104] sm:$0xf]
      %v656 = vld [vmem:[%s373 + $0x108] sm:$0xf]
      %v657 = vld [vmem:[%s373 + $0x10c] sm:$0xf]
      %v658 = vld [vmem:[%s373 + $0x110] sm:$0xf]
      %v659 = vld [vmem:[%s373 + $0x114] sm:$0xf]
      %v660 = vld [vmem:[%s373 + $0x118] sm:$0xf]
      %v661 = vld [vmem:[%s373 + $0x11c] sm:$0xf]
      %v662 = vld [vmem:[%s373 + $0x120] sm:$0xf]
      %v663 = vld [vmem:[%s373 + $0x124] sm:$0xf]
      %v664 = vld [vmem:[%s373 + $0x128] sm:$0xf]
      %v665 = vld [vmem:[%s373 + $0x12c] sm:$0xf]
      %v666 = vld [vmem:[%s373 + $0x130] sm:$0xf]
      %v667 = vld [vmem:[%s373 + $0x134] sm:$0xf]
      %v668 = vld [vmem:[%s373 + $0x138] sm:$0xf]
      %v669 = vld [vmem:[%s373 + $0x13c] sm:$0xf]
      %v670 = vld [vmem:[%s373 + $0x140] sm:$0xf]
      %v671 = vld [vmem:[%s373 + $0x144] sm:$0xf]
      %v672 = vld [vmem:[%s373 + $0x148] sm:$0xf]
      %v673 = vld [vmem:[%s373 + $0x14c] sm:$0xf]
      %v674 = vld [vmem:[%s373 + $0x150] sm:$0xf]
      %v675 = vld [vmem:[%s373 + $0x154] sm:$0xf]
      %v676 = vld [vmem:[%s373 + $0x158] sm:$0xf]
      %v677 = vld [vmem:[%s373 + $0x15c] sm:$0xf]
      %v678 = vld [vmem:[%s373 + $0x160] sm:$0xf]
      %v679 = vld [vmem:[%s373 + $0x164] sm:$0xf]
      %v680 = vld [vmem:[%s373 + $0x168] sm:$0xf]
      %v681 = vld [vmem:[%s373 + $0x16c] sm:$0xf]
      %v682 = vld [vmem:[%s373 + $0x170] sm:$0xf]
      %v683 = vld [vmem:[%s373 + $0x174] sm:$0xf]
      %v684 = vld [vmem:[%s373 + $0x178] sm:$0xf]
      %v685 = vld [vmem:[%s373 + $0x17c] sm:$0xf]
      %v686 = vld [vmem:[%s373 + $0x180] sm:$0xf]
      %v687 = vld [vmem:[%s373 + $0x184] sm:$0xf]
      %v688 = vld [vmem:[%s373 + $0x188] sm:$0xf]
      %v689 = vld [vmem:[%s373 + $0x18c] sm:$0xf]
      %v690 = vld [vmem:[%s373 + $0x190] sm:$0xf]
      %v691 = vld [vmem:[%s373 + $0x194] sm:$0xf]
      %v692 = vld [vmem:[%s373 + $0x198] sm:$0xf]
      %v693 = vld [vmem:[%s373 + $0x19c] sm:$0xf]
      %v694 = vld [vmem:[%s373 + $0x1a0] sm:$0xf]
      %v695 = vld [vmem:[%s373 + $0x1a4] sm:$0xf]
      %v696 = vld [vmem:[%s373 + $0x1a8] sm:$0xf]
      %v697 = vld [vmem:[%s373 + $0x1ac] sm:$0xf]
      %v698 = vld [vmem:[%s373 + $0x1b0] sm:$0xf]
      %v699 = vld [vmem:[%s373 + $0x1b4] sm:$0xf]
      %v700 = vld [vmem:[%s373 + $0x1b8] sm:$0xf]
      %v701 = vld [vmem:[%s373 + $0x1bc] sm:$0xf]
      %v702 = vld [vmem:[%s373 + $0x1c0] sm:$0xf]
      %v703 = vld [vmem:[%s373 + $0x1c4] sm:$0xf]
      %v704 = vld [vmem:[%s373 + $0x1c8] sm:$0xf]
      %v705 = vld [vmem:[%s373 + $0x1cc] sm:$0xf]
      %v706 = vld [vmem:[%s373 + $0x1d0] sm:$0xf]
      %v707 = vld [vmem:[%s373 + $0x1d4] sm:$0xf]
      %v708 = vld [vmem:[%s373 + $0x1d8] sm:$0xf]
      %v709 = vld [vmem:[%s373 + $0x1dc] sm:$0xf]
      %v710 = vld [vmem:[%s373 + $0x1e0] sm:$0xf]
      %v711 = vld [vmem:[%s373 + $0x1e4] sm:$0xf]
      %v712 = vld [vmem:[%s373 + $0x1e8] sm:$0xf]
      %v713 = vld [vmem:[%s373 + $0x1ec] sm:$0xf]
      %v714 = vld [vmem:[%s373 + $0x1f0] sm:$0xf]
      %v715 = vld [vmem:[%s373 + $0x1f4] sm:$0xf]
      %v716 = vld [vmem:[%s373 + $0x1f8] sm:$0xf]
      %v717 = vld [vmem:[%s373 + $0x1fc] sm:$0xf]
      %v718 = vunpack.c.l.bf16 %v590
      %v719 = vunpack.c.l.bf16 %v591
      %v720 = vunpack.c.l.bf16 %v592
      %v721 = vunpack.c.l.bf16 %v593
      %v722 = vunpack.c.l.bf16 %v594
      %v723 = vunpack.c.l.bf16 %v595
      %v724 = vunpack.c.l.bf16 %v596
      %v725 = vunpack.c.l.bf16 %v597
      %v726 = vunpack.c.l.bf16 %v598
      %v727 = vunpack.c.l.bf16 %v599
      %v728 = vunpack.c.l.bf16 %v600
      %v729 = vunpack.c.l.bf16 %v601
      %v730 = vunpack.c.l.bf16 %v602
      %v731 = vunpack.c.l.bf16 %v603
      %v732 = vunpack.c.l.bf16 %v604
      %v733 = vunpack.c.l.bf16 %v605
      %v734 = vunpack.c.l.bf16 %v606
      %v735 = vunpack.c.l.bf16 %v607
      %v736 = vunpack.c.l.bf16 %v608
      %v737 = vunpack.c.l.bf16 %v609
      %v738 = vunpack.c.l.bf16 %v610
      %v739 = vunpack.c.l.bf16 %v611
      %v740 = vunpack.c.l.bf16 %v612
      %v741 = vunpack.c.l.bf16 %v613
      %v742 = vunpack.c.l.bf16 %v614
      %v743 = vunpack.c.l.bf16 %v615
      %v744 = vunpack.c.l.bf16 %v616
      %v745 = vunpack.c.l.bf16 %v617
      %v746 = vunpack.c.l.bf16 %v618
      %v747 = vunpack.c.l.bf16 %v619
      %v748 = vunpack.c.l.bf16 %v620
      %v749 = vunpack.c.l.bf16 %v621
      %v750 = vunpack.c.l.bf16 %v622
      %v751 = vunpack.c.l.bf16 %v623
      %v752 = vunpack.c.l.bf16 %v624
      %v753 = vunpack.c.l.bf16 %v625
      %v754 = vunpack.c.l.bf16 %v626
      %v755 = vunpack.c.l.bf16 %v627
      %v756 = vunpack.c.l.bf16 %v628
      %v757 = vunpack.c.l.bf16 %v629
      %v758 = vunpack.c.l.bf16 %v630
      %v759 = vunpack.c.l.bf16 %v631
      %v760 = vunpack.c.l.bf16 %v632
      %v761 = vunpack.c.l.bf16 %v633
      %v762 = vunpack.c.l.bf16 %v634
      %v763 = vunpack.c.l.bf16 %v635
      %v764 = vunpack.c.l.bf16 %v636
      %v765 = vunpack.c.l.bf16 %v637
      %v766 = vunpack.c.l.bf16 %v638
      %v767 = vunpack.c.l.bf16 %v639
      %v768 = vunpack.c.l.bf16 %v640
      %v769 = vunpack.c.l.bf16 %v641
      %v770 = vunpack.c.l.bf16 %v642
      %v771 = vunpack.c.l.bf16 %v643
      %v772 = vunpack.c.l.bf16 %v644
      %v773 = vunpack.c.l.bf16 %v645
      %v774 = vunpack.c.l.bf16 %v646
      %v775 = vunpack.c.l.bf16 %v647
      %v776 = vunpack.c.l.bf16 %v648
      %v777 = vunpack.c.l.bf16 %v649
      %v778 = vunpack.c.l.bf16 %v650
      %v779 = vunpack.c.l.bf16 %v651
      %v780 = vunpack.c.l.bf16 %v652
      %v781 = vunpack.c.l.bf16 %v653
      %v782 = vunpack.c.l.bf16 %v654
      %v783 = vunpack.c.l.bf16 %v655
      %v784 = vunpack.c.l.bf16 %v656
      %v785 = vunpack.c.l.bf16 %v657
      %v786 = vunpack.c.l.bf16 %v658
      %v787 = vunpack.c.l.bf16 %v659
      %v788 = vunpack.c.l.bf16 %v660
      %v789 = vunpack.c.l.bf16 %v661
      %v790 = vunpack.c.l.bf16 %v662
      %v791 = vunpack.c.l.bf16 %v663
      %v792 = vunpack.c.l.bf16 %v664
      %v793 = vunpack.c.l.bf16 %v665
      %v794 = vunpack.c.l.bf16 %v666
      %v795 = vunpack.c.l.bf16 %v667
      %v796 = vunpack.c.l.bf16 %v668
      %v797 = vunpack.c.l.bf16 %v669
      %v798 = vunpack.c.l.bf16 %v670
      %v799 = vunpack.c.l.bf16 %v671
      %v800 = vunpack.c.l.bf16 %v672
      %v801 = vunpack.c.l.bf16 %v673
      %v802 = vunpack.c.l.bf16 %v674
      %v803 = vunpack.c.l.bf16 %v675
      %v804 = vunpack.c.l.bf16 %v676
      %v805 = vunpack.c.l.bf16 %v677
      %v806 = vunpack.c.l.bf16 %v678
      %v807 = vunpack.c.l.bf16 %v679
      %v808 = vunpack.c.l.bf16 %v680
      %v809 = vunpack.c.l.bf16 %v681
      %v810 = vunpack.c.l.bf16 %v682
      %v811 = vunpack.c.l.bf16 %v683
      %v812 = vunpack.c.l.bf16 %v684
      %v813 = vunpack.c.l.bf16 %v685
      %v814 = vunpack.c.l.bf16 %v686
      %v815 = vunpack.c.l.bf16 %v687
      %v816 = vunpack.c.l.bf16 %v688
      %v817 = vunpack.c.l.bf16 %v689
      %v818 = vunpack.c.l.bf16 %v690
      %v819 = vunpack.c.l.bf16 %v691
      %v820 = vunpack.c.l.bf16 %v692
      %v821 = vunpack.c.l.bf16 %v693
      %v822 = vunpack.c.l.bf16 %v694
      %v823 = vunpack.c.l.bf16 %v695
      %v824 = vunpack.c.l.bf16 %v696
      %v825 = vunpack.c.l.bf16 %v697
      %v826 = vunpack.c.l.bf16 %v698
      %v827 = vunpack.c.l.bf16 %v699
      %v828 = vunpack.c.l.bf16 %v700
      %v829 = vunpack.c.l.bf16 %v701
      %v830 = vunpack.c.l.bf16 %v702
      %v831 = vunpack.c.l.bf16 %v703
      %v832 = vunpack.c.l.bf16 %v704
      %v833 = vunpack.c.l.bf16 %v705
      %v834 = vunpack.c.l.bf16 %v706
      %v835 = vunpack.c.l.bf16 %v707
      %v836 = vunpack.c.l.bf16 %v708
      %v837 = vunpack.c.l.bf16 %v709
      %v838 = vunpack.c.l.bf16 %v710
      %v839 = vunpack.c.l.bf16 %v711
      %v840 = vunpack.c.l.bf16 %v712
      %v841 = vunpack.c.l.bf16 %v713
      %v842 = vunpack.c.l.bf16 %v714
      %v843 = vunpack.c.l.bf16 %v715
      %v844 = vunpack.c.l.bf16 %v716
      %v845 = vunpack.c.l.bf16 %v717
      %s846 = scalar_lea.vmem [#allocation2], 40
      %vm847 = vcmask 130048
      %848 = vst.msk [vmem:[%s846 + $0x1] sm:$0xff] %vm847, %v718
      %849 = vst.msk [vmem:[%s846 + $0x9] sm:$0xff] %vm847, %v719
      %850 = vst.msk [vmem:[%s846 + $0x11] sm:$0xff] %vm847, %v720
      %851 = vst.msk [vmem:[%s846 + $0x19] sm:$0xff] %vm847, %v721
      %852 = vst.msk [vmem:[%s846 + $0x29] sm:$0xff] %vm847, %v722
      %853 = vst.msk [vmem:[%s846 + $0x31] sm:$0xff] %vm847, %v723
      %854 = vst.msk [vmem:[%s846 + $0x39] sm:$0xff] %vm847, %v724
      %855 = vst.msk [vmem:[%s846 + $0x41] sm:$0xff] %vm847, %v725
      %856 = vst.msk [vmem:[%s846 + $0x51] sm:$0xff] %vm847, %v726
      %857 = vst.msk [vmem:[%s846 + $0x59] sm:$0xff] %vm847, %v727
      %858 = vst.msk [vmem:[%s846 + $0x61] sm:$0xff] %vm847, %v728
      %859 = vst.msk [vmem:[%s846 + $0x69] sm:$0xff] %vm847, %v729
      %860 = vst.msk [vmem:[%s846 + $0x79] sm:$0xff] %vm847, %v730
      %861 = vst.msk [vmem:[%s846 + $0x81] sm:$0xff] %vm847, %v731
      %862 = vst.msk [vmem:[%s846 + $0x89] sm:$0xff] %vm847, %v732
      %863 = vst.msk [vmem:[%s846 + $0x91] sm:$0xff] %vm847, %v733
      %864 = vst.msk [vmem:[%s846 + $0xa1] sm:$0xff] %vm847, %v734
      %865 = vst.msk [vmem:[%s846 + $0xa9] sm:$0xff] %vm847, %v735
      %866 = vst.msk [vmem:[%s846 + $0xb1] sm:$0xff] %vm847, %v736
      %867 = vst.msk [vmem:[%s846 + $0xb9] sm:$0xff] %vm847, %v737
      %868 = vst.msk [vmem:[%s846 + $0xc9] sm:$0xff] %vm847, %v738
      %869 = vst.msk [vmem:[%s846 + $0xd1] sm:$0xff] %vm847, %v739
      %870 = vst.msk [vmem:[%s846 + $0xd9] sm:$0xff] %vm847, %v740
      %871 = vst.msk [vmem:[%s846 + $0xe1] sm:$0xff] %vm847, %v741
      %872 = vst.msk [vmem:[%s846 + $0xf1] sm:$0xff] %vm847, %v742
      %873 = vst.msk [vmem:[%s846 + $0xf9] sm:$0xff] %vm847, %v743
      %874 = vst.msk [vmem:[%s846 + $0x101] sm:$0xff] %vm847, %v744
      %875 = vst.msk [vmem:[%s846 + $0x109] sm:$0xff] %vm847, %v745
      %876 = vst.msk [vmem:[%s846 + $0x119] sm:$0xff] %vm847, %v746
      %877 = vst.msk [vmem:[%s846 + $0x121] sm:$0xff] %vm847, %v747
      %878 = vst.msk [vmem:[%s846 + $0x129] sm:$0xff] %vm847, %v748
      %879 = vst.msk [vmem:[%s846 + $0x131] sm:$0xff] %vm847, %v749
      %880 = vst.msk [vmem:[%s846 + $0x141] sm:$0xff] %vm847, %v750
      %881 = vst.msk [vmem:[%s846 + $0x149] sm:$0xff] %vm847, %v751
      %882 = vst.msk [vmem:[%s846 + $0x151] sm:$0xff] %vm847, %v752
      %883 = vst.msk [vmem:[%s846 + $0x159] sm:$0xff] %vm847, %v753
      %884 = vst.msk [vmem:[%s846 + $0x169] sm:$0xff] %vm847, %v754
      %885 = vst.msk [vmem:[%s846 + $0x171] sm:$0xff] %vm847, %v755
      %886 = vst.msk [vmem:[%s846 + $0x179] sm:$0xff] %vm847, %v756
      %887 = vst.msk [vmem:[%s846 + $0x181] sm:$0xff] %vm847, %v757
      %888 = vst.msk [vmem:[%s846 + $0x191] sm:$0xff] %vm847, %v758
      %889 = vst.msk [vmem:[%s846 + $0x199] sm:$0xff] %vm847, %v759
      %890 = vst.msk [vmem:[%s846 + $0x1a1] sm:$0xff] %vm847, %v760
      %891 = vst.msk [vmem:[%s846 + $0x1a9] sm:$0xff] %vm847, %v761
      %892 = vst.msk [vmem:[%s846 + $0x1b9] sm:$0xff] %vm847, %v762
      %893 = vst.msk [vmem:[%s846 + $0x1c1] sm:$0xff] %vm847, %v763
      %894 = vst.msk [vmem:[%s846 + $0x1c9] sm:$0xff] %vm847, %v764
      %895 = vst.msk [vmem:[%s846 + $0x1d1] sm:$0xff] %vm847, %v765
      %896 = vst.msk [vmem:[%s846 + $0x1e1] sm:$0xff] %vm847, %v766
      %897 = vst.msk [vmem:[%s846 + $0x1e9] sm:$0xff] %vm847, %v767
      %898 = vst.msk [vmem:[%s846 + $0x1f1] sm:$0xff] %vm847, %v768
      %899 = vst.msk [vmem:[%s846 + $0x1f9] sm:$0xff] %vm847, %v769
      %900 = vst.msk [vmem:[%s846 + $0x209] sm:$0xff] %vm847, %v770
      %901 = vst.msk [vmem:[%s846 + $0x211] sm:$0xff] %vm847, %v771
      %902 = vst.msk [vmem:[%s846 + $0x219] sm:$0xff] %vm847, %v772
      %903 = vst.msk [vmem:[%s846 + $0x221] sm:$0xff] %vm847, %v773
      %904 = vst.msk [vmem:[%s846 + $0x231] sm:$0xff] %vm847, %v774
      %905 = vst.msk [vmem:[%s846 + $0x239] sm:$0xff] %vm847, %v775
      %906 = vst.msk [vmem:[%s846 + $0x241] sm:$0xff] %vm847, %v776
      %907 = vst.msk [vmem:[%s846 + $0x249] sm:$0xff] %vm847, %v777
      %908 = vst.msk [vmem:[%s846 + $0x259] sm:$0xff] %vm847, %v778
      %909 = vst.msk [vmem:[%s846 + $0x261] sm:$0xff] %vm847, %v779
      %910 = vst.msk [vmem:[%s846 + $0x269] sm:$0xff] %vm847, %v780
      %911 = vst.msk [vmem:[%s846 + $0x271] sm:$0xff] %vm847, %v781
      %912 = vst.msk [vmem:[%s846 + $0x281] sm:$0xff] %vm847, %v782
      %913 = vst.msk [vmem:[%s846 + $0x289] sm:$0xff] %vm847, %v783
      %914 = vst.msk [vmem:[%s846 + $0x291] sm:$0xff] %vm847, %v784
      %915 = vst.msk [vmem:[%s846 + $0x299] sm:$0xff] %vm847, %v785
      %916 = vst.msk [vmem:[%s846 + $0x2a9] sm:$0xff] %vm847, %v786
      %917 = vst.msk [vmem:[%s846 + $0x2b1] sm:$0xff] %vm847, %v787
      %918 = vst.msk [vmem:[%s846 + $0x2b9] sm:$0xff] %vm847, %v788
      %919 = vst.msk [vmem:[%s846 + $0x2c1] sm:$0xff] %vm847, %v789
      %920 = vst.msk [vmem:[%s846 + $0x2d1] sm:$0xff] %vm847, %v790
      %921 = vst.msk [vmem:[%s846 + $0x2d9] sm:$0xff] %vm847, %v791
      %922 = vst.msk [vmem:[%s846 + $0x2e1] sm:$0xff] %vm847, %v792
      %923 = vst.msk [vmem:[%s846 + $0x2e9] sm:$0xff] %vm847, %v793
      %924 = vst.msk [vmem:[%s846 + $0x2f9] sm:$0xff] %vm847, %v794
      %925 = vst.msk [vmem:[%s846 + $0x301] sm:$0xff] %vm847, %v795
      %926 = vst.msk [vmem:[%s846 + $0x309] sm:$0xff] %vm847, %v796
      %927 = vst.msk [vmem:[%s846 + $0x311] sm:$0xff] %vm847, %v797
      %928 = vst.msk [vmem:[%s846 + $0x321] sm:$0xff] %vm847, %v798
      %929 = vst.msk [vmem:[%s846 + $0x329] sm:$0xff] %vm847, %v799
      %930 = vst.msk [vmem:[%s846 + $0x331] sm:$0xff] %vm847, %v800
      %931 = vst.msk [vmem:[%s846 + $0x339] sm:$0xff] %vm847, %v801
      %932 = vst.msk [vmem:[%s846 + $0x349] sm:$0xff] %vm847, %v802
      %933 = vst.msk [vmem:[%s846 + $0x351] sm:$0xff] %vm847, %v803
      %934 = vst.msk [vmem:[%s846 + $0x359] sm:$0xff] %vm847, %v804
      %935 = vst.msk [vmem:[%s846 + $0x361] sm:$0xff] %vm847, %v805
      %936 = vst.msk [vmem:[%s846 + $0x371] sm:$0xff] %vm847, %v806
      %937 = vst.msk [vmem:[%s846 + $0x379] sm:$0xff] %vm847, %v807
      %938 = vst.msk [vmem:[%s846 + $0x381] sm:$0xff] %vm847, %v808
      %939 = vst.msk [vmem:[%s846 + $0x389] sm:$0xff] %vm847, %v809
      %940 = vst.msk [vmem:[%s846 + $0x399] sm:$0xff] %vm847, %v810
      %941 = vst.msk [vmem:[%s846 + $0x3a1] sm:$0xff] %vm847, %v811
      %942 = vst.msk [vmem:[%s846 + $0x3a9] sm:$0xff] %vm847, %v812
      %943 = vst.msk [vmem:[%s846 + $0x3b1] sm:$0xff] %vm847, %v813
      %944 = vst.msk [vmem:[%s846 + $0x3c1] sm:$0xff] %vm847, %v814
      %945 = vst.msk [vmem:[%s846 + $0x3c9] sm:$0xff] %vm847, %v815
      %946 = vst.msk [vmem:[%s846 + $0x3d1] sm:$0xff] %vm847, %v816
      %947 = vst.msk [vmem:[%s846 + $0x3d9] sm:$0xff] %vm847, %v817
      %948 = vst.msk [vmem:[%s846 + $0x3e9] sm:$0xff] %vm847, %v818
      %949 = vst.msk [vmem:[%s846 + $0x3f1] sm:$0xff] %vm847, %v819
      %950 = vst.msk [vmem:[%s846 + $0x3f9] sm:$0xff] %vm847, %v820
      %951 = vst.msk [vmem:[%s846 + $0x401] sm:$0xff] %vm847, %v821
      %952 = vst.msk [vmem:[%s846 + $0x411] sm:$0xff] %vm847, %v822
      %953 = vst.msk [vmem:[%s846 + $0x419] sm:$0xff] %vm847, %v823
      %954 = vst.msk [vmem:[%s846 + $0x421] sm:$0xff] %vm847, %v824
      %955 = vst.msk [vmem:[%s846 + $0x429] sm:$0xff] %vm847, %v825
      %956 = vst.msk [vmem:[%s846 + $0x439] sm:$0xff] %vm847, %v826
      %957 = vst.msk [vmem:[%s846 + $0x441] sm:$0xff] %vm847, %v827
      %958 = vst.msk [vmem:[%s846 + $0x449] sm:$0xff] %vm847, %v828
      %959 = vst.msk [vmem:[%s846 + $0x451] sm:$0xff] %vm847, %v829
      %960 = vst.msk [vmem:[%s846 + $0x461] sm:$0xff] %vm847, %v830
      %961 = vst.msk [vmem:[%s846 + $0x469] sm:$0xff] %vm847, %v831
      %962 = vst.msk [vmem:[%s846 + $0x471] sm:$0xff] %vm847, %v832
      %963 = vst.msk [vmem:[%s846 + $0x479] sm:$0xff] %vm847, %v833
      %964 = vst.msk [vmem:[%s846 + $0x489] sm:$0xff] %vm847, %v834
      %965 = vst.msk [vmem:[%s846 + $0x491] sm:$0xff] %vm847, %v835
      %966 = vst.msk [vmem:[%s846 + $0x499] sm:$0xff] %vm847, %v836
      %967 = vst.msk [vmem:[%s846 + $0x4a1] sm:$0xff] %vm847, %v837
      %968 = vst.msk [vmem:[%s846 + $0x4b1] sm:$0xff] %vm847, %v838
      %969 = vst.msk [vmem:[%s846 + $0x4b9] sm:$0xff] %vm847, %v839
      %970 = vst.msk [vmem:[%s846 + $0x4c1] sm:$0xff] %vm847, %v840
      %971 = vst.msk [vmem:[%s846 + $0x4c9] sm:$0xff] %vm847, %v841
      %972 = vst.msk [vmem:[%s846 + $0x4d9] sm:$0xff] %vm847, %v842
      %973 = vst.msk [vmem:[%s846 + $0x4e1] sm:$0xff] %vm847, %v843
      %974 = vst.msk [vmem:[%s846 + $0x4e9] sm:$0xff] %vm847, %v844
      %975 = vst.msk [vmem:[%s846 + $0x4f1] sm:$0xff] %vm847, %v845
      %p976 = scmp.gt.s32.totalorder %s22, 0
      // Predicated region
      $region45: #{conv_block_forward.1} parent=43 // pred_check
        %p977 = pneg %p976
      $region46: #{conv_block_forward.1} parent=43 // pred_check_branch
        %979 = sbr.rel (%p977) target = $region48
      $region47: #{conv_block_forward.1} parent=43 // pred_region
        %v980 = vld [vmem:[%s387] sm:$0xf]
        %v981 = vld [vmem:[%s387 + $0x4] sm:$0xf]
        %v982 = vld [vmem:[%s387 + $0x8] sm:$0xf]
        %v983 = vld [vmem:[%s387 + $0xc] sm:$0xf]
        %v984 = vunpack.c.l.bf16 %v980
        %v985 = vunpack.c.l.bf16 %v981
        %v986 = vunpack.c.l.bf16 %v982
        %v987 = vunpack.c.l.bf16 %v983
        %988 = vst.msk [vmem:[#allocation2 + $0x1] sm:$0xff] %vm847, %v984
        %989 = vst.msk [vmem:[#allocation2 + $0x9] sm:$0xff] %vm847, %v985
        %990 = vst.msk [vmem:[#allocation2 + $0x11] sm:$0xff] %vm847, %v986
        %991 = vst.msk [vmem:[#allocation2 + $0x19] sm:$0xff] %vm847, %v987
      $region48: #{conv_block_forward.1} parent=43 // pred_fallthru
        _
      %p992 = scmp.lt.s32.totalorder %s22, 0
      // Predicated region
      $region49: #{conv_block_forward.1} parent=43 // pred_check
        %p993 = pneg %p992
      $region50: #{conv_block_forward.1} parent=43 // pred_check_branch
        %995 = sbr.rel (%p993) target = $region52
      $region51: #{conv_block_forward.1} parent=43 // pred_region
        %v996 = vld [vmem:[%s404] sm:$0xf]
        %v997 = vld [vmem:[%s404 + $0x4] sm:$0xf]
        %v998 = vld [vmem:[%s404 + $0x8] sm:$0xf]
        %v999 = vld [vmem:[%s404 + $0xc] sm:$0xf]
        %v1000 = vunpack.c.l.bf16 %v996
        %v1001 = vunpack.c.l.bf16 %v997
        %v1002 = vunpack.c.l.bf16 %v998
        %v1003 = vunpack.c.l.bf16 %v999
        %s1004 = scalar_lea.vmem [#allocation2], 1320
        %1005 = vst.msk [vmem:[%s1004 + $0x1] sm:$0xff] %vm847, %v1000
        %1006 = vst.msk [vmem:[%s1004 + $0x9] sm:$0xff] %vm847, %v1001
        %1007 = vst.msk [vmem:[%s1004 + $0x11] sm:$0xff] %vm847, %v1002
        %1008 = vst.msk [vmem:[%s1004 + $0x19] sm:$0xff] %vm847, %v1003
      $region52: #{conv_block_forward.1} parent=43 // pred_fallthru
        _
      %v1009 = vld [vmem:[#allocation2] sm:$0xff]
      %v1010 = vld [vmem:[#allocation2 + $0x8] sm:$0xff]
      %v1011 = vld [vmem:[#allocation2 + $0x10] sm:$0xff]
      %v1012 = vld [vmem:[#allocation2 + $0x18] sm:$0xff]
      %v1013 = vld [vmem:[#allocation2 + $0x20] sm:$0x3]
      %v1014 = vld [vmem:[#allocation2 + $0x28] sm:$0xff]
      %v1015 = vld [vmem:[#allocation2 + $0x30] sm:$0xff]
      %v1016 = vld [vmem:[#allocation2 + $0x38] sm:$0xff]
      %v1017 = vld [vmem:[#allocation2 + $0x40] sm:$0xff]
      %v1018 = vld [vmem:[#allocation2 + $0x48] sm:$0x3]
      %v1019 = vld [vmem:[#allocation2 + $0x50] sm:$0xff]
      %v1020 = vld [vmem:[#allocation2 + $0x58] sm:$0xff]
      %v1021 = vld [vmem:[#allocation2 + $0x60] sm:$0xff]
      %v1022 = vld [vmem:[#allocation2 + $0x68] sm:$0xff]
      %v1023 = vld [vmem:[#allocation2 + $0x70] sm:$0x3]
      %v1024 = vld [vmem:[#allocation2 + $0x78] sm:$0xff]
      %v1025 = vld [vmem:[#allocation2 + $0x80] sm:$0xff]
      %v1026 = vld [vmem:[#allocation2 + $0x88] sm:$0xff]
      %v1027 = vld [vmem:[#allocation2 + $0x90] sm:$0xff]
      %v1028 = vld [vmem:[#allocation2 + $0x98] sm:$0x3]
      %v1029 = vld [vmem:[#allocation2 + $0xa0] sm:$0xff]
      %v1030 = vld [vmem:[#allocation2 + $0xa8] sm:$0xff]
      %v1031 = vld [vmem:[#allocation2 + $0xb0] sm:$0xff]
      %v1032 = vld [vmem:[#allocation2 + $0xb8] sm:$0xff]
      %v1033 = vld [vmem:[#allocation2 + $0xc0] sm:$0x3]
      %v1034 = vld [vmem:[#allocation2 + $0xc8] sm:$0xff]
      %v1035 = vld [vmem:[#allocation2 + $0xd0] sm:$0xff]
      %v1036 = vld [vmem:[#allocation2 + $0xd8] sm:$0xff]
      %v1037 = vld [vmem:[#allocation2 + $0xe0] sm:$0xff]
      %v1038 = vld [vmem:[#allocation2 + $0xe8] sm:$0x3]
      %v1039 = vld [vmem:[#allocation2 + $0xf0] sm:$0xff]
      %v1040 = vld [vmem:[#allocation2 + $0xf8] sm:$0xff]
      %v1041 = vld [vmem:[#allocation2 + $0x100] sm:$0xff]
      %v1042 = vld [vmem:[#allocation2 + $0x108] sm:$0xff]
      %v1043 = vld [vmem:[#allocation2 + $0x110] sm:$0x3]
      %v1044 = vld [vmem:[#allocation2 + $0x118] sm:$0xff]
      %v1045 = vld [vmem:[#allocation2 + $0x120] sm:$0xff]
      %v1046 = vld [vmem:[#allocation2 + $0x128] sm:$0xff]
      %v1047 = vld [vmem:[#allocation2 + $0x130] sm:$0xff]
      %v1048 = vld [vmem:[#allocation2 + $0x138] sm:$0x3]
      %v1049 = vld [vmem:[#allocation2 + $0x140] sm:$0xff]
      %v1050 = vld [vmem:[#allocation2 + $0x148] sm:$0xff]
      %v1051 = vld [vmem:[#allocation2 + $0x150] sm:$0xff]
      %v1052 = vld [vmem:[#allocation2 + $0x158] sm:$0xff]
      %v1053 = vld [vmem:[#allocation2 + $0x160] sm:$0x3]
      %v1054 = vld [vmem:[#allocation2 + $0x168] sm:$0xff]
      %v1055 = vld [vmem:[#allocation2 + $0x170] sm:$0xff]
      %v1056 = vld [vmem:[#allocation2 + $0x178] sm:$0xff]
      %v1057 = vld [vmem:[#allocation2 + $0x180] sm:$0xff]
      %v1058 = vld [vmem:[#allocation2 + $0x188] sm:$0x3]
      %v1059 = vld [vmem:[#allocation2 + $0x190] sm:$0xff]
      %v1060 = vld [vmem:[#allocation2 + $0x198] sm:$0xff]
      %v1061 = vld [vmem:[#allocation2 + $0x1a0] sm:$0xff]
      %v1062 = vld [vmem:[#allocation2 + $0x1a8] sm:$0xff]
      %v1063 = vld [vmem:[#allocation2 + $0x1b0] sm:$0x3]
      %v1064 = vld [vmem:[#allocation2 + $0x1b8] sm:$0xff]
      %v1065 = vld [vmem:[#allocation2 + $0x1c0] sm:$0xff]
      %v1066 = vld [vmem:[#allocation2 + $0x1c8] sm:$0xff]
      %v1067 = vld [vmem:[#allocation2 + $0x1d0] sm:$0xff]
      %v1068 = vld [vmem:[#allocation2 + $0x1d8] sm:$0x3]
      %v1069 = vld [vmem:[#allocation2 + $0x1e0] sm:$0xff]
      %v1070 = vld [vmem:[#allocation2 + $0x1e8] sm:$0xff]
      %v1071 = vld [vmem:[#allocation2 + $0x1f0] sm:$0xff]
      %v1072 = vld [vmem:[#allocation2 + $0x1f8] sm:$0xff]
      %v1073 = vld [vmem:[#allocation2 + $0x200] sm:$0x3]
      %v1074 = vld [vmem:[#allocation2 + $0x208] sm:$0xff]
      %v1075 = vld [vmem:[#allocation2 + $0x210] sm:$0xff]
      %v1076 = vld [vmem:[#allocation2 + $0x218] sm:$0xff]
      %v1077 = vld [vmem:[#allocation2 + $0x220] sm:$0xff]
      %v1078 = vld [vmem:[#allocation2 + $0x228] sm:$0x3]
      %v1079 = vld [vmem:[#allocation2 + $0x230] sm:$0xff]
      %v1080 = vld [vmem:[#allocation2 + $0x238] sm:$0xff]
      %v1081 = vld [vmem:[#allocation2 + $0x240] sm:$0xff]
      %v1082 = vld [vmem:[#allocation2 + $0x248] sm:$0xff]
      %v1083 = vld [vmem:[#allocation2 + $0x250] sm:$0x3]
      %v1084 = vld [vmem:[#allocation2 + $0x258] sm:$0xff]
      %v1085 = vld [vmem:[#allocation2 + $0x260] sm:$0xff]
      %v1086 = vld [vmem:[#allocation2 + $0x268] sm:$0xff]
      %v1087 = vld [vmem:[#allocation2 + $0x270] sm:$0xff]
      %v1088 = vld [vmem:[#allocation2 + $0x278] sm:$0x3]
      %v1089 = vld [vmem:[#allocation2 + $0x280] sm:$0xff]
      %v1090 = vld [vmem:[#allocation2 + $0x288] sm:$0xff]
      %v1091 = vld [vmem:[#allocation2 + $0x290] sm:$0xff]
      %v1092 = vld [vmem:[#allocation2 + $0x298] sm:$0xff]
      %v1093 = vld [vmem:[#allocation2 + $0x2a0] sm:$0x3]
      %v1094 = vld [vmem:[#allocation2 + $0x2a8] sm:$0xff]
      %v1095 = vld [vmem:[#allocation2 + $0x2b0] sm:$0xff]
      %v1096 = vld [vmem:[#allocation2 + $0x2b8] sm:$0xff]
      %v1097 = vld [vmem:[#allocation2 + $0x2c0] sm:$0xff]
      %v1098 = vld [vmem:[#allocation2 + $0x2c8] sm:$0x3]
      %v1099 = vld [vmem:[#allocation2 + $0x2d0] sm:$0xff]
      %v1100 = vld [vmem:[#allocation2 + $0x2d8] sm:$0xff]
      %v1101 = vld [vmem:[#allocation2 + $0x2e0] sm:$0xff]
      %v1102 = vld [vmem:[#allocation2 + $0x2e8] sm:$0xff]
      %v1103 = vld [vmem:[#allocation2 + $0x2f0] sm:$0x3]
      %v1104 = vld [vmem:[#allocation2 + $0x2f8] sm:$0xff]
      %v1105 = vld [vmem:[#allocation2 + $0x300] sm:$0xff]
      %v1106 = vld [vmem:[#allocation2 + $0x308] sm:$0xff]
      %v1107 = vld [vmem:[#allocation2 + $0x310] sm:$0xff]
      %v1108 = vld [vmem:[#allocation2 + $0x318] sm:$0x3]
      %v1109 = vld [vmem:[#allocation2 + $0x320] sm:$0xff]
      %v1110 = vld [vmem:[#allocation2 + $0x328] sm:$0xff]
      %v1111 = vld [vmem:[#allocation2 + $0x330] sm:$0xff]
      %v1112 = vld [vmem:[#allocation2 + $0x338] sm:$0xff]
      %v1113 = vld [vmem:[#allocation2 + $0x340] sm:$0x3]
      %v1114 = vld [vmem:[#allocation2 + $0x348] sm:$0xff]
      %v1115 = vld [vmem:[#allocation2 + $0x350] sm:$0xff]
      %v1116 = vld [vmem:[#allocation2 + $0x358] sm:$0xff]
      %v1117 = vld [vmem:[#allocation2 + $0x360] sm:$0xff]
      %v1118 = vld [vmem:[#allocation2 + $0x368] sm:$0x3]
      %v1119 = vld [vmem:[#allocation2 + $0x370] sm:$0xff]
      %v1120 = vld [vmem:[#allocation2 + $0x378] sm:$0xff]
      %v1121 = vld [vmem:[#allocation2 + $0x380] sm:$0xff]
      %v1122 = vld [vmem:[#allocation2 + $0x388] sm:$0xff]
      %v1123 = vld [vmem:[#allocation2 + $0x390] sm:$0x3]
      %v1124 = vld [vmem:[#allocation2 + $0x398] sm:$0xff]
      %v1125 = vld [vmem:[#allocation2 + $0x3a0] sm:$0xff]
      %v1126 = vld [vmem:[#allocation2 + $0x3a8] sm:$0xff]
      %v1127 = vld [vmem:[#allocation2 + $0x3b0] sm:$0xff]
      %v1128 = vld [vmem:[#allocation2 + $0x3b8] sm:$0x3]
      %v1129 = vld [vmem:[#allocation2 + $0x3c0] sm:$0xff]
      %v1130 = vld [vmem:[#allocation2 + $0x3c8] sm:$0xff]
      %v1131 = vld [vmem:[#allocation2 + $0x3d0] sm:$0xff]
      %v1132 = vld [vmem:[#allocation2 + $0x3d8] sm:$0xff]
      %v1133 = vld [vmem:[#allocation2 + $0x3e0] sm:$0x3]
      %v1134 = vld [vmem:[#allocation2 + $0x3e8] sm:$0xff]
      %v1135 = vld [vmem:[#allocation2 + $0x3f0] sm:$0xff]
      %v1136 = vld [vmem:[#allocation2 + $0x3f8] sm:$0xff]
      %v1137 = vld [vmem:[#allocation2 + $0x400] sm:$0xff]
      %v1138 = vld [vmem:[#allocation2 + $0x408] sm:$0x3]
      %v1139 = vld [vmem:[#allocation2 + $0x410] sm:$0xff]
      %v1140 = vld [vmem:[#allocation2 + $0x418] sm:$0xff]
      %v1141 = vld [vmem:[#allocation2 + $0x420] sm:$0xff]
      %v1142 = vld [vmem:[#allocation2 + $0x428] sm:$0xff]
      %v1143 = vld [vmem:[#allocation2 + $0x430] sm:$0x3]
      %v1144 = vld [vmem:[#allocation2 + $0x438] sm:$0xff]
      %v1145 = vld [vmem:[#allocation2 + $0x440] sm:$0xff]
      %v1146 = vld [vmem:[#allocation2 + $0x448] sm:$0xff]
      %v1147 = vld [vmem:[#allocation2 + $0x450] sm:$0xff]
      %v1148 = vld [vmem:[#allocation2 + $0x458] sm:$0x3]
      %v1149 = vld [vmem:[#allocation2 + $0x460] sm:$0xff]
      %v1150 = vld [vmem:[#allocation2 + $0x468] sm:$0xff]
      %v1151 = vld [vmem:[#allocation2 + $0x470] sm:$0xff]
      %v1152 = vld [vmem:[#allocation2 + $0x478] sm:$0xff]
      %v1153 = vld [vmem:[#allocation2 + $0x480] sm:$0x3]
      %v1154 = vld [vmem:[#allocation2 + $0x488] sm:$0xff]
      %v1155 = vld [vmem:[#allocation2 + $0x490] sm:$0xff]
      %v1156 = vld [vmem:[#allocation2 + $0x498] sm:$0xff]
      %v1157 = vld [vmem:[#allocation2 + $0x4a0] sm:$0xff]
      %v1158 = vld [vmem:[#allocation2 + $0x4a8] sm:$0x3]
      %v1159 = vld [vmem:[#allocation2 + $0x4b0] sm:$0xff]
      %v1160 = vld [vmem:[#allocation2 + $0x4b8] sm:$0xff]
      %v1161 = vld [vmem:[#allocation2 + $0x4c0] sm:$0xff]
      %v1162 = vld [vmem:[#allocation2 + $0x4c8] sm:$0xff]
      %v1163 = vld [vmem:[#allocation2 + $0x4d0] sm:$0x3]
      %v1164 = vld [vmem:[#allocation2 + $0x4d8] sm:$0xff]
      %v1165 = vld [vmem:[#allocation2 + $0x4e0] sm:$0xff]
      %v1166 = vld [vmem:[#allocation2 + $0x4e8] sm:$0xff]
      %v1167 = vld [vmem:[#allocation2 + $0x4f0] sm:$0xff]
      %v1168 = vld [vmem:[#allocation2 + $0x4f8] sm:$0x3]
      %v1169 = vld [vmem:[#allocation2 + $0x500] sm:$0xff]
      %v1170 = vld [vmem:[#allocation2 + $0x508] sm:$0xff]
      %v1171 = vld [vmem:[#allocation2 + $0x510] sm:$0xff]
      %v1172 = vld [vmem:[#allocation2 + $0x518] sm:$0xff]
      %v1173 = vld [vmem:[#allocation2 + $0x520] sm:$0x3]
      %v1174 = vld [vmem:[#allocation2 + $0x528] sm:$0xff]
      %v1175 = vld [vmem:[#allocation2 + $0x530] sm:$0xff]
      %v1176 = vld [vmem:[#allocation2 + $0x538] sm:$0xff]
      %v1177 = vld [vmem:[#allocation2 + $0x540] sm:$0xff]
      %v1178 = vld [vmem:[#allocation2 + $0x548] sm:$0x3]
      %v1179 = vpack.c.bf16 %v1009, %v1009
      %v1180 = vpack.c.bf16 %v1010, %v1010
      %v1181 = vpack.c.bf16 %v1011, %v1011
      %v1182 = vpack.c.bf16 %v1012, %v1012
      %v1183 = vpack.c.bf16 %v1014, %v1014
      %v1184 = vpack.c.bf16 %v1015, %v1015
      %v1185 = vpack.c.bf16 %v1016, %v1016
      %v1186 = vpack.c.bf16 %v1017, %v1017
      %v1187 = vpack.c.bf16 %v1019, %v1019
      %v1188 = vpack.c.bf16 %v1020, %v1020
      %v1189 = vpack.c.bf16 %v1021, %v1021
      %v1190 = vpack.c.bf16 %v1022, %v1022
      %v1191 = vpack.c.bf16 %v1024, %v1024
      %v1192 = vpack.c.bf16 %v1025, %v1025
      %v1193 = vpack.c.bf16 %v1026, %v1026
      %v1194 = vpack.c.bf16 %v1027, %v1027
      %v1195 = vpack.c.bf16 %v1029, %v1029
      %v1196 = vpack.c.bf16 %v1030, %v1030
      %v1197 = vpack.c.bf16 %v1031, %v1031
      %v1198 = vpack.c.bf16 %v1032, %v1032
      %v1199 = vpack.c.bf16 %v1034, %v1034
      %v1200 = vpack.c.bf16 %v1035, %v1035
      %v1201 = vpack.c.bf16 %v1036, %v1036
      %v1202 = vpack.c.bf16 %v1037, %v1037
      %v1203 = vpack.c.bf16 %v1039, %v1039
      %v1204 = vpack.c.bf16 %v1040, %v1040
      %v1205 = vpack.c.bf16 %v1041, %v1041
      %v1206 = vpack.c.bf16 %v1042, %v1042
      %v1207 = vpack.c.bf16 %v1044, %v1044
      %v1208 = vpack.c.bf16 %v1045, %v1045
      %v1209 = vpack.c.bf16 %v1046, %v1046
      %v1210 = vpack.c.bf16 %v1047, %v1047
      %v1211 = vpack.c.bf16 %v1049, %v1049
      %v1212 = vpack.c.bf16 %v1050, %v1050
      %v1213 = vpack.c.bf16 %v1051, %v1051
      %v1214 = vpack.c.bf16 %v1052, %v1052
      %v1215 = vpack.c.bf16 %v1054, %v1054
      %v1216 = vpack.c.bf16 %v1055, %v1055
      %v1217 = vpack.c.bf16 %v1056, %v1056
      %v1218 = vpack.c.bf16 %v1057, %v1057
      %v1219 = vpack.c.bf16 %v1059, %v1059
      %v1220 = vpack.c.bf16 %v1060, %v1060
      %v1221 = vpack.c.bf16 %v1061, %v1061
      %v1222 = vpack.c.bf16 %v1062, %v1062
      %v1223 = vpack.c.bf16 %v1064, %v1064
      %v1224 = vpack.c.bf16 %v1065, %v1065
      %v1225 = vpack.c.bf16 %v1066, %v1066
      %v1226 = vpack.c.bf16 %v1067, %v1067
      %v1227 = vpack.c.bf16 %v1069, %v1069
      %v1228 = vpack.c.bf16 %v1070, %v1070
      %v1229 = vpack.c.bf16 %v1071, %v1071
      %v1230 = vpack.c.bf16 %v1072, %v1072
      %v1231 = vpack.c.bf16 %v1074, %v1074
      %v1232 = vpack.c.bf16 %v1075, %v1075
      %v1233 = vpack.c.bf16 %v1076, %v1076
      %v1234 = vpack.c.bf16 %v1077, %v1077
      %v1235 = vpack.c.bf16 %v1079, %v1079
      %v1236 = vpack.c.bf16 %v1080, %v1080
      %v1237 = vpack.c.bf16 %v1081, %v1081
      %v1238 = vpack.c.bf16 %v1082, %v1082
      %v1239 = vpack.c.bf16 %v1084, %v1084
      %v1240 = vpack.c.bf16 %v1085, %v1085
      %v1241 = vpack.c.bf16 %v1086, %v1086
      %v1242 = vpack.c.bf16 %v1087, %v1087
      %v1243 = vpack.c.bf16 %v1089, %v1089
      %v1244 = vpack.c.bf16 %v1090, %v1090
      %v1245 = vpack.c.bf16 %v1091, %v1091
      %v1246 = vpack.c.bf16 %v1092, %v1092
      %v1247 = vpack.c.bf16 %v1094, %v1094
      %v1248 = vpack.c.bf16 %v1095, %v1095
      %v1249 = vpack.c.bf16 %v1096, %v1096
      %v1250 = vpack.c.bf16 %v1097, %v1097
      %v1251 = vpack.c.bf16 %v1099, %v1099
      %v1252 = vpack.c.bf16 %v1100, %v1100
      %v1253 = vpack.c.bf16 %v1101, %v1101
      %v1254 = vpack.c.bf16 %v1102, %v1102
      %v1255 = vpack.c.bf16 %v1104, %v1104
      %v1256 = vpack.c.bf16 %v1105, %v1105
      %v1257 = vpack.c.bf16 %v1106, %v1106
      %v1258 = vpack.c.bf16 %v1107, %v1107
      %v1259 = vpack.c.bf16 %v1109, %v1109
      %v1260 = vpack.c.bf16 %v1110, %v1110
      %v1261 = vpack.c.bf16 %v1111, %v1111
      %v1262 = vpack.c.bf16 %v1112, %v1112
      %v1263 = vpack.c.bf16 %v1114, %v1114
      %v1264 = vpack.c.bf16 %v1115, %v1115
      %v1265 = vpack.c.bf16 %v1116, %v1116
      %v1266 = vpack.c.bf16 %v1117, %v1117
      %v1267 = vpack.c.bf16 %v1119, %v1119
      %v1268 = vpack.c.bf16 %v1120, %v1120
      %v1269 = vpack.c.bf16 %v1121, %v1121
      %v1270 = vpack.c.bf16 %v1122, %v1122
      %v1271 = vpack.c.bf16 %v1124, %v1124
      %v1272 = vpack.c.bf16 %v1125, %v1125
      %v1273 = vpack.c.bf16 %v1126, %v1126
      %v1274 = vpack.c.bf16 %v1127, %v1127
      %v1275 = vpack.c.bf16 %v1129, %v1129
      %v1276 = vpack.c.bf16 %v1130, %v1130
      %v1277 = vpack.c.bf16 %v1131, %v1131
      %v1278 = vpack.c.bf16 %v1132, %v1132
      %v1279 = vpack.c.bf16 %v1134, %v1134
      %v1280 = vpack.c.bf16 %v1135, %v1135
      %v1281 = vpack.c.bf16 %v1136, %v1136
      %v1282 = vpack.c.bf16 %v1137, %v1137
      %v1283 = vpack.c.bf16 %v1139, %v1139
      %v1284 = vpack.c.bf16 %v1140, %v1140
      %v1285 = vpack.c.bf16 %v1141, %v1141
      %v1286 = vpack.c.bf16 %v1142, %v1142
      %v1287 = vpack.c.bf16 %v1144, %v1144
      %v1288 = vpack.c.bf16 %v1145, %v1145
      %v1289 = vpack.c.bf16 %v1146, %v1146
      %v1290 = vpack.c.bf16 %v1147, %v1147
      %v1291 = vpack.c.bf16 %v1149, %v1149
      %v1292 = vpack.c.bf16 %v1150, %v1150
      %v1293 = vpack.c.bf16 %v1151, %v1151
      %v1294 = vpack.c.bf16 %v1152, %v1152
      %v1295 = vpack.c.bf16 %v1154, %v1154
      %v1296 = vpack.c.bf16 %v1155, %v1155
      %v1297 = vpack.c.bf16 %v1156, %v1156
      %v1298 = vpack.c.bf16 %v1157, %v1157
      %v1299 = vpack.c.bf16 %v1159, %v1159
      %v1300 = vpack.c.bf16 %v1160, %v1160
      %v1301 = vpack.c.bf16 %v1161, %v1161
      %v1302 = vpack.c.bf16 %v1162, %v1162
      %v1303 = vpack.c.bf16 %v1164, %v1164
      %v1304 = vpack.c.bf16 %v1165, %v1165
      %v1305 = vpack.c.bf16 %v1166, %v1166
      %v1306 = vpack.c.bf16 %v1167, %v1167
      %v1307 = vpack.c.bf16 %v1013, %v1013
      %v1308 = vpack.c.bf16 %v1018, %v1018
      %v1309 = vpack.c.bf16 %v1023, %v1023
      %v1310 = vpack.c.bf16 %v1028, %v1028
      %v1311 = vpack.c.bf16 %v1033, %v1033
      %v1312 = vpack.c.bf16 %v1038, %v1038
      %v1313 = vpack.c.bf16 %v1043, %v1043
      %v1314 = vpack.c.bf16 %v1048, %v1048
      %v1315 = vpack.c.bf16 %v1053, %v1053
      %v1316 = vpack.c.bf16 %v1058, %v1058
      %v1317 = vpack.c.bf16 %v1063, %v1063
      %v1318 = vpack.c.bf16 %v1068, %v1068
      %v1319 = vpack.c.bf16 %v1073, %v1073
      %v1320 = vpack.c.bf16 %v1078, %v1078
      %v1321 = vpack.c.bf16 %v1083, %v1083
      %v1322 = vpack.c.bf16 %v1088, %v1088
      %v1323 = vpack.c.bf16 %v1093, %v1093
      %v1324 = vpack.c.bf16 %v1098, %v1098
      %v1325 = vpack.c.bf16 %v1103, %v1103
      %v1326 = vpack.c.bf16 %v1108, %v1108
      %v1327 = vpack.c.bf16 %v1113, %v1113
      %v1328 = vpack.c.bf16 %v1118, %v1118
      %v1329 = vpack.c.bf16 %v1123, %v1123
      %v1330 = vpack.c.bf16 %v1128, %v1128
      %v1331 = vpack.c.bf16 %v1133, %v1133
      %v1332 = vpack.c.bf16 %v1138, %v1138
      %v1333 = vpack.c.bf16 %v1143, %v1143
      %v1334 = vpack.c.bf16 %v1148, %v1148
      %v1335 = vpack.c.bf16 %v1153, %v1153
      %v1336 = vpack.c.bf16 %v1158, %v1158
      %v1337 = vpack.c.bf16 %v1163, %v1163
      %v1338 = vpack.c.bf16 %v1168, %v1168
      %v1339 = vpack.c.bf16 %v1169, %v1169
      %v1340 = vpack.c.bf16 %v1170, %v1170
      %v1341 = vpack.c.bf16 %v1171, %v1171
      %v1342 = vpack.c.bf16 %v1172, %v1172
      %v1343 = vpack.c.bf16 %v1173, %v1173
      %v1344 = vpack.c.bf16 %v1174, %v1174
      %v1345 = vpack.c.bf16 %v1175, %v1175
      %v1346 = vpack.c.bf16 %v1176, %v1176
      %v1347 = vpack.c.bf16 %v1177, %v1177
      %v1348 = vpack.c.bf16 %v1178, %v1178
      %v1477 = vunpack.c.l.b16 %v1179
      %v1478 = vunpack.c.l.b16 %v1180
      %v1479 = vunpack.c.l.b16 %v1181
      %v1480 = vunpack.c.l.b16 %v1182
      %v1481 = vunpack.c.l.b16 %v1183
      %v1482 = vunpack.c.l.b16 %v1184
      %v1483 = vunpack.c.l.b16 %v1185
      %v1484 = vunpack.c.l.b16 %v1186
      %v1485 = vunpack.c.l.b16 %v1187
      %v1486 = vunpack.c.l.b16 %v1188
      %v1487 = vunpack.c.l.b16 %v1189
      %v1488 = vunpack.c.l.b16 %v1190
      %v1489 = vunpack.c.l.b16 %v1191
      %v1490 = vunpack.c.l.b16 %v1192
      %v1491 = vunpack.c.l.b16 %v1193
      %v1492 = vunpack.c.l.b16 %v1194
      %v1493 = vunpack.c.l.b16 %v1195
      %v1494 = vunpack.c.l.b16 %v1196
      %v1495 = vunpack.c.l.b16 %v1197
      %v1496 = vunpack.c.l.b16 %v1198
      %v1497 = vunpack.c.l.b16 %v1199
      %v1498 = vunpack.c.l.b16 %v1200
      %v1499 = vunpack.c.l.b16 %v1201
      %v1500 = vunpack.c.l.b16 %v1202
      %v1501 = vunpack.c.l.b16 %v1203
      %v1502 = vunpack.c.l.b16 %v1204
      %v1503 = vunpack.c.l.b16 %v1205
      %v1504 = vunpack.c.l.b16 %v1206
      %v1505 = vunpack.c.l.b16 %v1207
      %v1506 = vunpack.c.l.b16 %v1208
      %v1507 = vunpack.c.l.b16 %v1209
      %v1508 = vunpack.c.l.b16 %v1210
      %v1509 = vunpack.c.l.b16 %v1211
      %v1510 = vunpack.c.l.b16 %v1212
      %v1511 = vunpack.c.l.b16 %v1213
      %v1512 = vunpack.c.l.b16 %v1214
      %v1513 = vunpack.c.l.b16 %v1215
      %v1514 = vunpack.c.l.b16 %v1216
      %v1515 = vunpack.c.l.b16 %v1217
      %v1516 = vunpack.c.l.b16 %v1218
      %v1517 = vunpack.c.l.b16 %v1219
      %v1518 = vunpack.c.l.b16 %v1220
      %v1519 = vunpack.c.l.b16 %v1221
      %v1520 = vunpack.c.l.b16 %v1222
      %v1521 = vunpack.c.l.b16 %v1223
      %v1522 = vunpack.c.l.b16 %v1224
      %v1523 = vunpack.c.l.b16 %v1225
      %v1524 = vunpack.c.l.b16 %v1226
      %v1525 = vunpack.c.l.b16 %v1227
      %v1526 = vunpack.c.l.b16 %v1228
      %v1527 = vunpack.c.l.b16 %v1229
      %v1528 = vunpack.c.l.b16 %v1230
      %v1529 = vunpack.c.l.b16 %v1231
      %v1530 = vunpack.c.l.b16 %v1232
      %v1531 = vunpack.c.l.b16 %v1233
      %v1532 = vunpack.c.l.b16 %v1234
      %v1533 = vunpack.c.l.b16 %v1235
      %v1534 = vunpack.c.l.b16 %v1236
      %v1535 = vunpack.c.l.b16 %v1237
      %v1536 = vunpack.c.l.b16 %v1238
      %v1537 = vunpack.c.l.b16 %v1239
      %v1538 = vunpack.c.l.b16 %v1240
      %v1539 = vunpack.c.l.b16 %v1241
      %v1540 = vunpack.c.l.b16 %v1242
      %v1541 = vunpack.c.l.b16 %v1243
      %v1542 = vunpack.c.l.b16 %v1244
      %v1543 = vunpack.c.l.b16 %v1245
      %v1544 = vunpack.c.l.b16 %v1246
      %v1545 = vunpack.c.l.b16 %v1247
      %v1546 = vunpack.c.l.b16 %v1248
      %v1547 = vunpack.c.l.b16 %v1249
      %v1548 = vunpack.c.l.b16 %v1250
      %v1549 = vunpack.c.l.b16 %v1251
      %v1550 = vunpack.c.l.b16 %v1252
      %v1551 = vunpack.c.l.b16 %v1253
      %v1552 = vunpack.c.l.b16 %v1254
      %v1553 = vunpack.c.l.b16 %v1255
      %v1554 = vunpack.c.l.b16 %v1256
      %v1555 = vunpack.c.l.b16 %v1257
      %v1556 = vunpack.c.l.b16 %v1258
      %v1557 = vunpack.c.l.b16 %v1259
      %v1558 = vunpack.c.l.b16 %v1260
      %v1559 = vunpack.c.l.b16 %v1261
      %v1560 = vunpack.c.l.b16 %v1262
      %v1561 = vunpack.c.l.b16 %v1263
      %v1562 = vunpack.c.l.b16 %v1264
      %v1563 = vunpack.c.l.b16 %v1265
      %v1564 = vunpack.c.l.b16 %v1266
      %v1565 = vunpack.c.l.b16 %v1267
      %v1566 = vunpack.c.l.b16 %v1268
      %v1567 = vunpack.c.l.b16 %v1269
      %v1568 = vunpack.c.l.b16 %v1270
      %v1569 = vunpack.c.l.b16 %v1271
      %v1570 = vunpack.c.l.b16 %v1272
      %v1571 = vunpack.c.l.b16 %v1273
      %v1572 = vunpack.c.l.b16 %v1274
      %v1573 = vunpack.c.l.b16 %v1275
      %v1574 = vunpack.c.l.b16 %v1276
      %v1575 = vunpack.c.l.b16 %v1277
      %v1576 = vunpack.c.l.b16 %v1278
      %v1577 = vunpack.c.l.b16 %v1279
      %v1578 = vunpack.c.l.b16 %v1280
      %v1579 = vunpack.c.l.b16 %v1281
      %v1580 = vunpack.c.l.b16 %v1282
      %v1581 = vunpack.c.l.b16 %v1283
      %v1582 = vunpack.c.l.b16 %v1284
      %v1583 = vunpack.c.l.b16 %v1285
      %v1584 = vunpack.c.l.b16 %v1286
      %v1585 = vunpack.c.l.b16 %v1287
      %v1586 = vunpack.c.l.b16 %v1288
      %v1587 = vunpack.c.l.b16 %v1289
      %v1588 = vunpack.c.l.b16 %v1290
      %v1589 = vunpack.c.l.b16 %v1291
      %v1590 = vunpack.c.l.b16 %v1292
      %v1591 = vunpack.c.l.b16 %v1293
      %v1592 = vunpack.c.l.b16 %v1294
      %v1593 = vunpack.c.l.b16 %v1295
      %v1594 = vunpack.c.l.b16 %v1296
      %v1595 = vunpack.c.l.b16 %v1297
      %v1596 = vunpack.c.l.b16 %v1298
      %v1597 = vunpack.c.l.b16 %v1299
      %v1598 = vunpack.c.l.b16 %v1300
      %v1599 = vunpack.c.l.b16 %v1301
      %v1600 = vunpack.c.l.b16 %v1302
      %v1601 = vunpack.c.l.b16 %v1303
      %v1602 = vunpack.c.l.b16 %v1304
      %v1603 = vunpack.c.l.b16 %v1305
      %v1604 = vunpack.c.l.b16 %v1306
      %v1605 = vpack.c.b16 %v1478, %v1477
      %v1606 = vpack.c.b16 %v1480, %v1479
      %v1607 = vpack.c.b16 %v1482, %v1481
      %v1608 = vpack.c.b16 %v1484, %v1483
      %v1609 = vpack.c.b16 %v1486, %v1485
      %v1610 = vpack.c.b16 %v1488, %v1487
      %v1611 = vpack.c.b16 %v1490, %v1489
      %v1612 = vpack.c.b16 %v1492, %v1491
      %v1613 = vpack.c.b16 %v1494, %v1493
      %v1614 = vpack.c.b16 %v1496, %v1495
      %v1615 = vpack.c.b16 %v1498, %v1497
      %v1616 = vpack.c.b16 %v1500, %v1499
      %v1617 = vpack.c.b16 %v1502, %v1501
      %v1618 = vpack.c.b16 %v1504, %v1503
      %v1619 = vpack.c.b16 %v1506, %v1505
      %v1620 = vpack.c.b16 %v1508, %v1507
      %v1621 = vpack.c.b16 %v1510, %v1509
      %v1622 = vpack.c.b16 %v1512, %v1511
      %v1623 = vpack.c.b16 %v1514, %v1513
      %v1624 = vpack.c.b16 %v1516, %v1515
      %v1625 = vpack.c.b16 %v1518, %v1517
      %v1626 = vpack.c.b16 %v1520, %v1519
      %v1627 = vpack.c.b16 %v1522, %v1521
      %v1628 = vpack.c.b16 %v1524, %v1523
      %v1629 = vpack.c.b16 %v1526, %v1525
      %v1630 = vpack.c.b16 %v1528, %v1527
      %v1631 = vpack.c.b16 %v1530, %v1529
      %v1632 = vpack.c.b16 %v1532, %v1531
      %v1633 = vpack.c.b16 %v1534, %v1533
      %v1634 = vpack.c.b16 %v1536, %v1535
      %v1635 = vpack.c.b16 %v1538, %v1537
      %v1636 = vpack.c.b16 %v1540, %v1539
      %v1637 = vpack.c.b16 %v1542, %v1541
      %v1638 = vpack.c.b16 %v1544, %v1543
      %v1639 = vpack.c.b16 %v1546, %v1545
      %v1640 = vpack.c.b16 %v1548, %v1547
      %v1641 = vpack.c.b16 %v1550, %v1549
      %v1642 = vpack.c.b16 %v1552, %v1551
      %v1643 = vpack.c.b16 %v1554, %v1553
      %v1644 = vpack.c.b16 %v1556, %v1555
      %v1645 = vpack.c.b16 %v1558, %v1557
      %v1646 = vpack.c.b16 %v1560, %v1559
      %v1647 = vpack.c.b16 %v1562, %v1561
      %v1648 = vpack.c.b16 %v1564, %v1563
      %v1649 = vpack.c.b16 %v1566, %v1565
      %v1650 = vpack.c.b16 %v1568, %v1567
      %v1651 = vpack.c.b16 %v1570, %v1569
      %v1652 = vpack.c.b16 %v1572, %v1571
      %v1653 = vpack.c.b16 %v1574, %v1573
      %v1654 = vpack.c.b16 %v1576, %v1575
      %v1655 = vpack.c.b16 %v1578, %v1577
      %v1656 = vpack.c.b16 %v1580, %v1579
      %v1657 = vpack.c.b16 %v1582, %v1581
      %v1658 = vpack.c.b16 %v1584, %v1583
      %v1659 = vpack.c.b16 %v1586, %v1585
      %v1660 = vpack.c.b16 %v1588, %v1587
      %v1661 = vpack.c.b16 %v1590, %v1589
      %v1662 = vpack.c.b16 %v1592, %v1591
      %v1663 = vpack.c.b16 %v1594, %v1593
      %v1664 = vpack.c.b16 %v1596, %v1595
      %v1665 = vpack.c.b16 %v1598, %v1597
      %v1666 = vpack.c.b16 %v1600, %v1599
      %v1667 = vpack.c.b16 %v1602, %v1601
      %v1668 = vpack.c.b16 %v1604, %v1603
      %v1765 = vunpack.c.l.b16 %v1307
      %v1766 = vunpack.c.l.b16 %v1308
      %v1767 = vunpack.c.l.b16 %v1309
      %v1768 = vunpack.c.l.b16 %v1310
      %v1769 = vunpack.c.l.b16 %v1311
      %v1770 = vunpack.c.l.b16 %v1312
      %v1771 = vunpack.c.l.b16 %v1313
      %v1772 = vunpack.c.l.b16 %v1314
      %v1773 = vunpack.c.l.b16 %v1315
      %v1774 = vunpack.c.l.b16 %v1316
      %v1775 = vunpack.c.l.b16 %v1317
      %v1776 = vunpack.c.l.b16 %v1318
      %v1777 = vunpack.c.l.b16 %v1319
      %v1778 = vunpack.c.l.b16 %v1320
      %v1779 = vunpack.c.l.b16 %v1321
      %v1780 = vunpack.c.l.b16 %v1322
      %v1781 = vunpack.c.l.b16 %v1323
      %v1782 = vunpack.c.l.b16 %v1324
      %v1783 = vunpack.c.l.b16 %v1325
      %v1784 = vunpack.c.l.b16 %v1326
      %v1785 = vunpack.c.l.b16 %v1327
      %v1786 = vunpack.c.l.b16 %v1328
      %v1787 = vunpack.c.l.b16 %v1329
      %v1788 = vunpack.c.l.b16 %v1330
      %v1789 = vunpack.c.l.b16 %v1331
      %v1790 = vunpack.c.l.b16 %v1332
      %v1791 = vunpack.c.l.b16 %v1333
      %v1792 = vunpack.c.l.b16 %v1334
      %v1793 = vunpack.c.l.b16 %v1335
      %v1794 = vunpack.c.l.b16 %v1336
      %v1795 = vunpack.c.l.b16 %v1337
      %v1796 = vunpack.c.l.b16 %v1338
      %v1797 = vpack.c.b16 %v1765, %v1765
      %v1798 = vpack.c.b16 %v1766, %v1766
      %v1799 = vpack.c.b16 %v1767, %v1767
      %v1800 = vpack.c.b16 %v1768, %v1768
      %v1801 = vpack.c.b16 %v1769, %v1769
      %v1802 = vpack.c.b16 %v1770, %v1770
      %v1803 = vpack.c.b16 %v1771, %v1771
      %v1804 = vpack.c.b16 %v1772, %v1772
      %v1805 = vpack.c.b16 %v1773, %v1773
      %v1806 = vpack.c.b16 %v1774, %v1774
      %v1807 = vpack.c.b16 %v1775, %v1775
      %v1808 = vpack.c.b16 %v1776, %v1776
      %v1809 = vpack.c.b16 %v1777, %v1777
      %v1810 = vpack.c.b16 %v1778, %v1778
      %v1811 = vpack.c.b16 %v1779, %v1779
      %v1812 = vpack.c.b16 %v1780, %v1780
      %v1813 = vpack.c.b16 %v1781, %v1781
      %v1814 = vpack.c.b16 %v1782, %v1782
      %v1815 = vpack.c.b16 %v1783, %v1783
      %v1816 = vpack.c.b16 %v1784, %v1784
      %v1817 = vpack.c.b16 %v1785, %v1785
      %v1818 = vpack.c.b16 %v1786, %v1786
      %v1819 = vpack.c.b16 %v1787, %v1787
      %v1820 = vpack.c.b16 %v1788, %v1788
      %v1821 = vpack.c.b16 %v1789, %v1789
      %v1822 = vpack.c.b16 %v1790, %v1790
      %v1823 = vpack.c.b16 %v1791, %v1791
      %v1824 = vpack.c.b16 %v1792, %v1792
      %v1825 = vpack.c.b16 %v1793, %v1793
      %v1826 = vpack.c.b16 %v1794, %v1794
      %v1827 = vpack.c.b16 %v1795, %v1795
      %v1828 = vpack.c.b16 %v1796, %v1796
      %vm1829 = vsmask.f32 7424
      %v1831 = vshrl.u32 %v1605, 16
      %v1833 = vshll.u32 %v1605, 16
      %v1835 = vrot.slane %v1833, 1
      %v1836 = vor.u32 %v1831, %v1835
      %v1838 = vshll.u32 %v1606, 16
      %v1840 = vrot.slane %v1838, 1
      %v1841 = vsel %vm1829, %v1836, %v1840
      %v1842 = vshrl.u32 %v1606, 16
      %v1844 = vor.u32 %v1842, %v1840
      %v1846 = vshll.u32 %v1797, 16
      %v1848 = vrot.slane %v1846, 1
      %v1849 = vsel %vm1829, %v1844, %v1848
      %v1851 = vshrl.u32 %v1607, 16
      %v1853 = vshll.u32 %v1607, 16
      %v1855 = vrot.slane %v1853, 1
      %v1856 = vor.u32 %v1851, %v1855
      %v1858 = vshll.u32 %v1608, 16
      %v1860 = vrot.slane %v1858, 1
      %v1861 = vsel %vm1829, %v1856, %v1860
      %v1862 = vshrl.u32 %v1608, 16
      %v1864 = vor.u32 %v1862, %v1860
      %v1866 = vshll.u32 %v1798, 16
      %v1868 = vrot.slane %v1866, 1
      %v1869 = vsel %vm1829, %v1864, %v1868
      %v1871 = vshrl.u32 %v1609, 16
      %v1873 = vshll.u32 %v1609, 16
      %v1875 = vrot.slane %v1873, 1
      %v1876 = vor.u32 %v1871, %v1875
      %v1878 = vshll.u32 %v1610, 16
      %v1880 = vrot.slane %v1878, 1
      %v1881 = vsel %vm1829, %v1876, %v1880
      %v1882 = vshrl.u32 %v1610, 16
      %v1884 = vor.u32 %v1882, %v1880
      %v1886 = vshll.u32 %v1799, 16
      %v1888 = vrot.slane %v1886, 1
      %v1889 = vsel %vm1829, %v1884, %v1888
      %v1891 = vshrl.u32 %v1611, 16
      %v1893 = vshll.u32 %v1611, 16
      %v1895 = vrot.slane %v1893, 1
      %v1896 = vor.u32 %v1891, %v1895
      %v1898 = vshll.u32 %v1612, 16
      %v1900 = vrot.slane %v1898, 1
      %v1901 = vsel %vm1829, %v1896, %v1900
      %v1902 = vshrl.u32 %v1612, 16
      %v1904 = vor.u32 %v1902, %v1900
      %v1906 = vshll.u32 %v1800, 16
      %v1908 = vrot.slane %v1906, 1
      %v1909 = vsel %vm1829, %v1904, %v1908
      %v1911 = vshrl.u32 %v1613, 16
      %v1913 = vshll.u32 %v1613, 16
      %v1915 = vrot.slane %v1913, 1
      %v1916 = vor.u32 %v1911, %v1915
      %v1918 = vshll.u32 %v1614, 16
      %v1920 = vrot.slane %v1918, 1
      %v1921 = vsel %vm1829, %v1916, %v1920
      %v1922 = vshrl.u32 %v1614, 16
      %v1924 = vor.u32 %v1922, %v1920
      %v1926 = vshll.u32 %v1801, 16
      %v1928 = vrot.slane %v1926, 1
      %v1929 = vsel %vm1829, %v1924, %v1928
      %v1931 = vshrl.u32 %v1615, 16
      %v1933 = vshll.u32 %v1615, 16
      %v1935 = vrot.slane %v1933, 1
      %v1936 = vor.u32 %v1931, %v1935
      %v1938 = vshll.u32 %v1616, 16
      %v1940 = vrot.slane %v1938, 1
      %v1941 = vsel %vm1829, %v1936, %v1940
      %v1942 = vshrl.u32 %v1616, 16
      %v1944 = vor.u32 %v1942, %v1940
      %v1946 = vshll.u32 %v1802, 16
      %v1948 = vrot.slane %v1946, 1
      %v1949 = vsel %vm1829, %v1944, %v1948
      %v1951 = vshrl.u32 %v1617, 16
      %v1953 = vshll.u32 %v1617, 16
      %v1955 = vrot.slane %v1953, 1
      %v1956 = vor.u32 %v1951, %v1955
      %v1958 = vshll.u32 %v1618, 16
      %v1960 = vrot.slane %v1958, 1
      %v1961 = vsel %vm1829, %v1956, %v1960
      %v1962 = vshrl.u32 %v1618, 16
      %v1964 = vor.u32 %v1962, %v1960
      %v1966 = vshll.u32 %v1803, 16
      %v1968 = vrot.slane %v1966, 1
      %v1969 = vsel %vm1829, %v1964, %v1968
      %v1971 = vshrl.u32 %v1619, 16
      %v1973 = vshll.u32 %v1619, 16
      %v1975 = vrot.slane %v1973, 1
      %v1976 = vor.u32 %v1971, %v1975
      %v1978 = vshll.u32 %v1620, 16
      %v1980 = vrot.slane %v1978, 1
      %v1981 = vsel %vm1829, %v1976, %v1980
      %v1982 = vshrl.u32 %v1620, 16
      %v1984 = vor.u32 %v1982, %v1980
      %v1986 = vshll.u32 %v1804, 16
      %v1988 = vrot.slane %v1986, 1
      %v1989 = vsel %vm1829, %v1984, %v1988
      %v1991 = vshrl.u32 %v1621, 16
      %v1993 = vshll.u32 %v1621, 16
      %v1995 = vrot.slane %v1993, 1
      %v1996 = vor.u32 %v1991, %v1995
      %v1998 = vshll.u32 %v1622, 16
      %v2000 = vrot.slane %v1998, 1
      %v2001 = vsel %vm1829, %v1996, %v2000
      %v2002 = vshrl.u32 %v1622, 16
      %v2004 = vor.u32 %v2002, %v2000
      %v2006 = vshll.u32 %v1805, 16
      %v2008 = vrot.slane %v2006, 1
      %v2009 = vsel %vm1829, %v2004, %v2008
      %v2011 = vshrl.u32 %v1623, 16
      %v2013 = vshll.u32 %v1623, 16
      %v2015 = vrot.slane %v2013, 1
      %v2016 = vor.u32 %v2011, %v2015
      %v2018 = vshll.u32 %v1624, 16
      %v2020 = vrot.slane %v2018, 1
      %v2021 = vsel %vm1829, %v2016, %v2020
      %v2022 = vshrl.u32 %v1624, 16
      %v2024 = vor.u32 %v2022, %v2020
      %v2026 = vshll.u32 %v1806, 16
      %v2028 = vrot.slane %v2026, 1
      %v2029 = vsel %vm1829, %v2024, %v2028
      %v2031 = vshrl.u32 %v1625, 16
      %v2033 = vshll.u32 %v1625, 16
      %v2035 = vrot.slane %v2033, 1
      %v2036 = vor.u32 %v2031, %v2035
      %v2038 = vshll.u32 %v1626, 16
      %v2040 = vrot.slane %v2038, 1
      %v2041 = vsel %vm1829, %v2036, %v2040
      %v2042 = vshrl.u32 %v1626, 16
      %v2044 = vor.u32 %v2042, %v2040
      %v2046 = vshll.u32 %v1807, 16
      %v2048 = vrot.slane %v2046, 1
      %v2049 = vsel %vm1829, %v2044, %v2048
      %v2051 = vshrl.u32 %v1627, 16
      %v2053 = vshll.u32 %v1627, 16
      %v2055 = vrot.slane %v2053, 1
      %v2056 = vor.u32 %v2051, %v2055
      %v2058 = vshll.u32 %v1628, 16
      %v2060 = vrot.slane %v2058, 1
      %v2061 = vsel %vm1829, %v2056, %v2060
      %v2062 = vshrl.u32 %v1628, 16
      %v2064 = vor.u32 %v2062, %v2060
      %v2066 = vshll.u32 %v1808, 16
      %v2068 = vrot.slane %v2066, 1
      %v2069 = vsel %vm1829, %v2064, %v2068
      %v2071 = vshrl.u32 %v1629, 16
      %v2073 = vshll.u32 %v1629, 16
      %v2075 = vrot.slane %v2073, 1
      %v2076 = vor.u32 %v2071, %v2075
      %v2078 = vshll.u32 %v1630, 16
      %v2080 = vrot.slane %v2078, 1
      %v2081 = vsel %vm1829, %v2076, %v2080
      %v2082 = vshrl.u32 %v1630, 16
      %v2084 = vor.u32 %v2082, %v2080
      %v2086 = vshll.u32 %v1809, 16
      %v2088 = vrot.slane %v2086, 1
      %v2089 = vsel %vm1829, %v2084, %v2088
      %v2091 = vshrl.u32 %v1631, 16
      %v2093 = vshll.u32 %v1631, 16
      %v2095 = vrot.slane %v2093, 1
      %v2096 = vor.u32 %v2091, %v2095
      %v2098 = vshll.u32 %v1632, 16
      %v2100 = vrot.slane %v2098, 1
      %v2101 = vsel %vm1829, %v2096, %v2100
      %v2102 = vshrl.u32 %v1632, 16
      %v2104 = vor.u32 %v2102, %v2100
      %v2106 = vshll.u32 %v1810, 16
      %v2108 = vrot.slane %v2106, 1
      %v2109 = vsel %vm1829, %v2104, %v2108
      %v2111 = vshrl.u32 %v1633, 16
      %v2113 = vshll.u32 %v1633, 16
      %v2115 = vrot.slane %v2113, 1
      %v2116 = vor.u32 %v2111, %v2115
      %v2118 = vshll.u32 %v1634, 16
      %v2120 = vrot.slane %v2118, 1
      %v2121 = vsel %vm1829, %v2116, %v2120
      %v2122 = vshrl.u32 %v1634, 16
      %v2124 = vor.u32 %v2122, %v2120
      %v2126 = vshll.u32 %v1811, 16
      %v2128 = vrot.slane %v2126, 1
      %v2129 = vsel %vm1829, %v2124, %v2128
      %v2131 = vshrl.u32 %v1635, 16
      %v2133 = vshll.u32 %v1635, 16
      %v2135 = vrot.slane %v2133, 1
      %v2136 = vor.u32 %v2131, %v2135
      %v2138 = vshll.u32 %v1636, 16
      %v2140 = vrot.slane %v2138, 1
      %v2141 = vsel %vm1829, %v2136, %v2140
      %v2142 = vshrl.u32 %v1636, 16
      %v2144 = vor.u32 %v2142, %v2140
      %v2146 = vshll.u32 %v1812, 16
      %v2148 = vrot.slane %v2146, 1
      %v2149 = vsel %vm1829, %v2144, %v2148
      %v2151 = vshrl.u32 %v1637, 16
      %v2153 = vshll.u32 %v1637, 16
      %v2155 = vrot.slane %v2153, 1
      %v2156 = vor.u32 %v2151, %v2155
      %v2158 = vshll.u32 %v1638, 16
      %v2160 = vrot.slane %v2158, 1
      %v2161 = vsel %vm1829, %v2156, %v2160
      %v2162 = vshrl.u32 %v1638, 16
      %v2164 = vor.u32 %v2162, %v2160
      %v2166 = vshll.u32 %v1813, 16
      %v2168 = vrot.slane %v2166, 1
      %v2169 = vsel %vm1829, %v2164, %v2168
      %v2171 = vshrl.u32 %v1639, 16
      %v2173 = vshll.u32 %v1639, 16
      %v2175 = vrot.slane %v2173, 1
      %v2176 = vor.u32 %v2171, %v2175
      %v2178 = vshll.u32 %v1640, 16
      %v2180 = vrot.slane %v2178, 1
      %v2181 = vsel %vm1829, %v2176, %v2180
      %v2182 = vshrl.u32 %v1640, 16
      %v2184 = vor.u32 %v2182, %v2180
      %v2186 = vshll.u32 %v1814, 16
      %v2188 = vrot.slane %v2186, 1
      %v2189 = vsel %vm1829, %v2184, %v2188
      %v2191 = vshrl.u32 %v1641, 16
      %v2193 = vshll.u32 %v1641, 16
      %v2195 = vrot.slane %v2193, 1
      %v2196 = vor.u32 %v2191, %v2195
      %v2198 = vshll.u32 %v1642, 16
      %v2200 = vrot.slane %v2198, 1
      %v2201 = vsel %vm1829, %v2196, %v2200
      %v2202 = vshrl.u32 %v1642, 16
      %v2204 = vor.u32 %v2202, %v2200
      %v2206 = vshll.u32 %v1815, 16
      %v2208 = vrot.slane %v2206, 1
      %v2209 = vsel %vm1829, %v2204, %v2208
      %v2211 = vshrl.u32 %v1643, 16
      %v2213 = vshll.u32 %v1643, 16
      %v2215 = vrot.slane %v2213, 1
      %v2216 = vor.u32 %v2211, %v2215
      %v2218 = vshll.u32 %v1644, 16
      %v2220 = vrot.slane %v2218, 1
      %v2221 = vsel %vm1829, %v2216, %v2220
      %v2222 = vshrl.u32 %v1644, 16
      %v2224 = vor.u32 %v2222, %v2220
      %v2226 = vshll.u32 %v1816, 16
      %v2228 = vrot.slane %v2226, 1
      %v2229 = vsel %vm1829, %v2224, %v2228
      %v2231 = vshrl.u32 %v1645, 16
      %v2233 = vshll.u32 %v1645, 16
      %v2235 = vrot.slane %v2233, 1
      %v2236 = vor.u32 %v2231, %v2235
      %v2238 = vshll.u32 %v1646, 16
      %v2240 = vrot.slane %v2238, 1
      %v2241 = vsel %vm1829, %v2236, %v2240
      %v2242 = vshrl.u32 %v1646, 16
      %v2244 = vor.u32 %v2242, %v2240
      %v2246 = vshll.u32 %v1817, 16
      %v2248 = vrot.slane %v2246, 1
      %v2249 = vsel %vm1829, %v2244, %v2248
      %v2251 = vshrl.u32 %v1647, 16
      %v2253 = vshll.u32 %v1647, 16
      %v2255 = vrot.slane %v2253, 1
      %v2256 = vor.u32 %v2251, %v2255
      %v2258 = vshll.u32 %v1648, 16
      %v2260 = vrot.slane %v2258, 1
      %v2261 = vsel %vm1829, %v2256, %v2260
      %v2262 = vshrl.u32 %v1648, 16
      %v2264 = vor.u32 %v2262, %v2260
      %v2266 = vshll.u32 %v1818, 16
      %v2268 = vrot.slane %v2266, 1
      %v2269 = vsel %vm1829, %v2264, %v2268
      %v2271 = vshrl.u32 %v1649, 16
      %v2273 = vshll.u32 %v1649, 16
      %v2275 = vrot.slane %v2273, 1
      %v2276 = vor.u32 %v2271, %v2275
      %v2278 = vshll.u32 %v1650, 16
      %v2280 = vrot.slane %v2278, 1
      %v2281 = vsel %vm1829, %v2276, %v2280
      %v2282 = vshrl.u32 %v1650, 16
      %v2284 = vor.u32 %v2282, %v2280
      %v2286 = vshll.u32 %v1819, 16
      %v2288 = vrot.slane %v2286, 1
      %v2289 = vsel %vm1829, %v2284, %v2288
      %v2291 = vshrl.u32 %v1651, 16
      %v2293 = vshll.u32 %v1651, 16
      %v2295 = vrot.slane %v2293, 1
      %v2296 = vor.u32 %v2291, %v2295
      %v2298 = vshll.u32 %v1652, 16
      %v2300 = vrot.slane %v2298, 1
      %v2301 = vsel %vm1829, %v2296, %v2300
      %v2302 = vshrl.u32 %v1652, 16
      %v2304 = vor.u32 %v2302, %v2300
      %v2306 = vshll.u32 %v1820, 16
      %v2308 = vrot.slane %v2306, 1
      %v2309 = vsel %vm1829, %v2304, %v2308
      %v2311 = vshrl.u32 %v1653, 16
      %v2313 = vshll.u32 %v1653, 16
      %v2315 = vrot.slane %v2313, 1
      %v2316 = vor.u32 %v2311, %v2315
      %v2318 = vshll.u32 %v1654, 16
      %v2320 = vrot.slane %v2318, 1
      %v2321 = vsel %vm1829, %v2316, %v2320
      %v2322 = vshrl.u32 %v1654, 16
      %v2324 = vor.u32 %v2322, %v2320
      %v2326 = vshll.u32 %v1821, 16
      %v2328 = vrot.slane %v2326, 1
      %v2329 = vsel %vm1829, %v2324, %v2328
      %v2331 = vshrl.u32 %v1655, 16
      %v2333 = vshll.u32 %v1655, 16
      %v2335 = vrot.slane %v2333, 1
      %v2336 = vor.u32 %v2331, %v2335
      %v2338 = vshll.u32 %v1656, 16
      %v2340 = vrot.slane %v2338, 1
      %v2341 = vsel %vm1829, %v2336, %v2340
      %v2342 = vshrl.u32 %v1656, 16
      %v2344 = vor.u32 %v2342, %v2340
      %v2346 = vshll.u32 %v1822, 16
      %v2348 = vrot.slane %v2346, 1
      %v2349 = vsel %vm1829, %v2344, %v2348
      %v2351 = vshrl.u32 %v1657, 16
      %v2353 = vshll.u32 %v1657, 16
      %v2355 = vrot.slane %v2353, 1
      %v2356 = vor.u32 %v2351, %v2355
      %v2358 = vshll.u32 %v1658, 16
      %v2360 = vrot.slane %v2358, 1
      %v2361 = vsel %vm1829, %v2356, %v2360
      %v2362 = vshrl.u32 %v1658, 16
      %v2364 = vor.u32 %v2362, %v2360
      %v2366 = vshll.u32 %v1823, 16
      %v2368 = vrot.slane %v2366, 1
      %v2369 = vsel %vm1829, %v2364, %v2368
      %v2371 = vshrl.u32 %v1659, 16
      %v2373 = vshll.u32 %v1659, 16
      %v2375 = vrot.slane %v2373, 1
      %v2376 = vor.u32 %v2371, %v2375
      %v2378 = vshll.u32 %v1660, 16
      %v2380 = vrot.slane %v2378, 1
      %v2381 = vsel %vm1829, %v2376, %v2380
      %v2382 = vshrl.u32 %v1660, 16
      %v2384 = vor.u32 %v2382, %v2380
      %v2386 = vshll.u32 %v1824, 16
      %v2388 = vrot.slane %v2386, 1
      %v2389 = vsel %vm1829, %v2384, %v2388
      %v2391 = vshrl.u32 %v1661, 16
      %v2393 = vshll.u32 %v1661, 16
      %v2395 = vrot.slane %v2393, 1
      %v2396 = vor.u32 %v2391, %v2395
      %v2398 = vshll.u32 %v1662, 16
      %v2400 = vrot.slane %v2398, 1
      %v2401 = vsel %vm1829, %v2396, %v2400
      %v2402 = vshrl.u32 %v1662, 16
      %v2404 = vor.u32 %v2402, %v2400
      %v2406 = vshll.u32 %v1825, 16
      %v2408 = vrot.slane %v2406, 1
      %v2409 = vsel %vm1829, %v2404, %v2408
      %v2411 = vshrl.u32 %v1663, 16
      %v2413 = vshll.u32 %v1663, 16
      %v2415 = vrot.slane %v2413, 1
      %v2416 = vor.u32 %v2411, %v2415
      %v2418 = vshll.u32 %v1664, 16
      %v2420 = vrot.slane %v2418, 1
      %v2421 = vsel %vm1829, %v2416, %v2420
      %v2422 = vshrl.u32 %v1664, 16
      %v2424 = vor.u32 %v2422, %v2420
      %v2426 = vshll.u32 %v1826, 16
      %v2428 = vrot.slane %v2426, 1
      %v2429 = vsel %vm1829, %v2424, %v2428
      %v2431 = vshrl.u32 %v1665, 16
      %v2433 = vshll.u32 %v1665, 16
      %v2435 = vrot.slane %v2433, 1
      %v2436 = vor.u32 %v2431, %v2435
      %v2438 = vshll.u32 %v1666, 16
      %v2440 = vrot.slane %v2438, 1
      %v2441 = vsel %vm1829, %v2436, %v2440
      %v2442 = vshrl.u32 %v1666, 16
      %v2444 = vor.u32 %v2442, %v2440
      %v2446 = vshll.u32 %v1827, 16
      %v2448 = vrot.slane %v2446, 1
      %v2449 = vsel %vm1829, %v2444, %v2448
      %v2451 = vshrl.u32 %v1667, 16
      %v2453 = vshll.u32 %v1667, 16
      %v2455 = vrot.slane %v2453, 1
      %v2456 = vor.u32 %v2451, %v2455
      %v2458 = vshll.u32 %v1668, 16
      %v2460 = vrot.slane %v2458, 1
      %v2461 = vsel %vm1829, %v2456, %v2460
      %v2462 = vshrl.u32 %v1668, 16
      %v2464 = vor.u32 %v2462, %v2460
      %v2466 = vshll.u32 %v1828, 16
      %v2468 = vrot.slane %v2466, 1
      %v2469 = vsel %vm1829, %v2464, %v2468
      %vm2534 = vcmask 1046528
      %v2535 = vrot.slane %v1605, 1
      %v2536 = vrot.slane %v1606, 1
      %v2537 = vsel %vm2534, %v2535, %v2536
      %v2538 = vrot.slane %v1797, 1
      %v2539 = vsel %vm2534, %v2536, %v2538
      %v2540 = vrot.slane %v1607, 1
      %v2541 = vrot.slane %v1608, 1
      %v2542 = vsel %vm2534, %v2540, %v2541
      %v2543 = vrot.slane %v1798, 1
      %v2544 = vsel %vm2534, %v2541, %v2543
      %v2545 = vrot.slane %v1609, 1
      %v2546 = vrot.slane %v1610, 1
      %v2547 = vsel %vm2534, %v2545, %v2546
      %v2548 = vrot.slane %v1799, 1
      %v2549 = vsel %vm2534, %v2546, %v2548
      %v2550 = vrot.slane %v1611, 1
      %v2551 = vrot.slane %v1612, 1
      %v2552 = vsel %vm2534, %v2550, %v2551
      %v2553 = vrot.slane %v1800, 1
      %v2554 = vsel %vm2534, %v2551, %v2553
      %v2555 = vrot.slane %v1613, 1
      %v2556 = vrot.slane %v1614, 1
      %v2557 = vsel %vm2534, %v2555, %v2556
      %v2558 = vrot.slane %v1801, 1
      %v2559 = vsel %vm2534, %v2556, %v2558
      %v2560 = vrot.slane %v1615, 1
      %v2561 = vrot.slane %v1616, 1
      %v2562 = vsel %vm2534, %v2560, %v2561
      %v2563 = vrot.slane %v1802, 1
      %v2564 = vsel %vm2534, %v2561, %v2563
      %v2565 = vrot.slane %v1617, 1
      %v2566 = vrot.slane %v1618, 1
      %v2567 = vsel %vm2534, %v2565, %v2566
      %v2568 = vrot.slane %v1803, 1
      %v2569 = vsel %vm2534, %v2566, %v2568
      %v2570 = vrot.slane %v1619, 1
      %v2571 = vrot.slane %v1620, 1
      %v2572 = vsel %vm2534, %v2570, %v2571
      %v2573 = vrot.slane %v1804, 1
      %v2574 = vsel %vm2534, %v2571, %v2573
      %v2575 = vrot.slane %v1621, 1
      %v2576 = vrot.slane %v1622, 1
      %v2577 = vsel %vm2534, %v2575, %v2576
      %v2578 = vrot.slane %v1805, 1
      %v2579 = vsel %vm2534, %v2576, %v2578
      %v2580 = vrot.slane %v1623, 1
      %v2581 = vrot.slane %v1624, 1
      %v2582 = vsel %vm2534, %v2580, %v2581
      %v2583 = vrot.slane %v1806, 1
      %v2584 = vsel %vm2534, %v2581, %v2583
      %v2585 = vrot.slane %v1625, 1
      %v2586 = vrot.slane %v1626, 1
      %v2587 = vsel %vm2534, %v2585, %v2586
      %v2588 = vrot.slane %v1807, 1
      %v2589 = vsel %vm2534, %v2586, %v2588
      %v2590 = vrot.slane %v1627, 1
      %v2591 = vrot.slane %v1628, 1
      %v2592 = vsel %vm2534, %v2590, %v2591
      %v2593 = vrot.slane %v1808, 1
      %v2594 = vsel %vm2534, %v2591, %v2593
      %v2595 = vrot.slane %v1629, 1
      %v2596 = vrot.slane %v1630, 1
      %v2597 = vsel %vm2534, %v2595, %v2596
      %v2598 = vrot.slane %v1809, 1
      %v2599 = vsel %vm2534, %v2596, %v2598
      %v2600 = vrot.slane %v1631, 1
      %v2601 = vrot.slane %v1632, 1
      %v2602 = vsel %vm2534, %v2600, %v2601
      %v2603 = vrot.slane %v1810, 1
      %v2604 = vsel %vm2534, %v2601, %v2603
      %v2605 = vrot.slane %v1633, 1
      %v2606 = vrot.slane %v1634, 1
      %v2607 = vsel %vm2534, %v2605, %v2606
      %v2608 = vrot.slane %v1811, 1
      %v2609 = vsel %vm2534, %v2606, %v2608
      %v2610 = vrot.slane %v1635, 1
      %v2611 = vrot.slane %v1636, 1
      %v2612 = vsel %vm2534, %v2610, %v2611
      %v2613 = vrot.slane %v1812, 1
      %v2614 = vsel %vm2534, %v2611, %v2613
      %v2615 = vrot.slane %v1637, 1
      %v2616 = vrot.slane %v1638, 1
      %v2617 = vsel %vm2534, %v2615, %v2616
      %v2618 = vrot.slane %v1813, 1
      %v2619 = vsel %vm2534, %v2616, %v2618
      %v2620 = vrot.slane %v1639, 1
      %v2621 = vrot.slane %v1640, 1
      %v2622 = vsel %vm2534, %v2620, %v2621
      %v2623 = vrot.slane %v1814, 1
      %v2624 = vsel %vm2534, %v2621, %v2623
      %v2625 = vrot.slane %v1641, 1
      %v2626 = vrot.slane %v1642, 1
      %v2627 = vsel %vm2534, %v2625, %v2626
      %v2628 = vrot.slane %v1815, 1
      %v2629 = vsel %vm2534, %v2626, %v2628
      %v2630 = vrot.slane %v1643, 1
      %v2631 = vrot.slane %v1644, 1
      %v2632 = vsel %vm2534, %v2630, %v2631
      %v2633 = vrot.slane %v1816, 1
      %v2634 = vsel %vm2534, %v2631, %v2633
      %v2635 = vrot.slane %v1645, 1
      %v2636 = vrot.slane %v1646, 1
      %v2637 = vsel %vm2534, %v2635, %v2636
      %v2638 = vrot.slane %v1817, 1
      %v2639 = vsel %vm2534, %v2636, %v2638
      %v2640 = vrot.slane %v1647, 1
      %v2641 = vrot.slane %v1648, 1
      %v2642 = vsel %vm2534, %v2640, %v2641
      %v2643 = vrot.slane %v1818, 1
      %v2644 = vsel %vm2534, %v2641, %v2643
      %v2645 = vrot.slane %v1649, 1
      %v2646 = vrot.slane %v1650, 1
      %v2647 = vsel %vm2534, %v2645, %v2646
      %v2648 = vrot.slane %v1819, 1
      %v2649 = vsel %vm2534, %v2646, %v2648
      %v2650 = vrot.slane %v1651, 1
      %v2651 = vrot.slane %v1652, 1
      %v2652 = vsel %vm2534, %v2650, %v2651
      %v2653 = vrot.slane %v1820, 1
      %v2654 = vsel %vm2534, %v2651, %v2653
      %v2655 = vrot.slane %v1653, 1
      %v2656 = vrot.slane %v1654, 1
      %v2657 = vsel %vm2534, %v2655, %v2656
      %v2658 = vrot.slane %v1821, 1
      %v2659 = vsel %vm2534, %v2656, %v2658
      %v2660 = vrot.slane %v1655, 1
      %v2661 = vrot.slane %v1656, 1
      %v2662 = vsel %vm2534, %v2660, %v2661
      %v2663 = vrot.slane %v1822, 1
      %v2664 = vsel %vm2534, %v2661, %v2663
      %v2665 = vrot.slane %v1657, 1
      %v2666 = vrot.slane %v1658, 1
      %v2667 = vsel %vm2534, %v2665, %v2666
      %v2668 = vrot.slane %v1823, 1
      %v2669 = vsel %vm2534, %v2666, %v2668
      %v2670 = vrot.slane %v1659, 1
      %v2671 = vrot.slane %v1660, 1
      %v2672 = vsel %vm2534, %v2670, %v2671
      %v2673 = vrot.slane %v1824, 1
      %v2674 = vsel %vm2534, %v2671, %v2673
      %v2675 = vrot.slane %v1661, 1
      %v2676 = vrot.slane %v1662, 1
      %v2677 = vsel %vm2534, %v2675, %v2676
      %v2678 = vrot.slane %v1825, 1
      %v2679 = vsel %vm2534, %v2676, %v2678
      %v2680 = vrot.slane %v1663, 1
      %v2681 = vrot.slane %v1664, 1
      %v2682 = vsel %vm2534, %v2680, %v2681
      %v2683 = vrot.slane %v1826, 1
      %v2684 = vsel %vm2534, %v2681, %v2683
      %v2685 = vrot.slane %v1665, 1
      %v2686 = vrot.slane %v1666, 1
      %v2687 = vsel %vm2534, %v2685, %v2686
      %v2688 = vrot.slane %v1827, 1
      %v2689 = vsel %vm2534, %v2686, %v2688
      %v2690 = vrot.slane %v1667, 1
      %v2691 = vrot.slane %v1668, 1
      %v2692 = vsel %vm2534, %v2690, %v2691
      %v2693 = vrot.slane %v1828, 1
      %v2694 = vsel %vm2534, %v2691, %v2693
      %v2763 = vunpack.c.l.b16 %v1339
      %v2764 = vunpack.c.l.b16 %v1340
      %v2765 = vunpack.c.l.b16 %v1341
      %v2766 = vunpack.c.l.b16 %v1342
      %v2767 = vpack.c.b16 %v2764, %v2763
      %v2768 = vpack.c.b16 %v2766, %v2765
      %v2772 = vunpack.c.l.b16 %v1343
      %v2773 = vpack.c.b16 %v2772, %v2772
      %v2775 = vshrl.u32 %v2767, 16
      %v2777 = vshll.u32 %v2767, 16
      %v2779 = vrot.slane %v2777, 1
      %v2780 = vor.u32 %v2775, %v2779
      %v2782 = vshll.u32 %v2768, 16
      %v2784 = vrot.slane %v2782, 1
      %v2785 = vsel %vm1829, %v2780, %v2784
      %v2786 = vshrl.u32 %v2768, 16
      %v2788 = vor.u32 %v2786, %v2784
      %v2790 = vshll.u32 %v2773, 16
      %v2792 = vrot.slane %v2790, 1
      %v2793 = vsel %vm1829, %v2788, %v2792
      %v2796 = vrot.slane %v2767, 1
      %v2797 = vrot.slane %v2768, 1
      %v2798 = vsel %vm2534, %v2796, %v2797
      %v2799 = vrot.slane %v2773, 1
      %v2800 = vsel %vm2534, %v2797, %v2799
      %v2807 = vunpack.c.l.b16 %v1344
      %v2808 = vunpack.c.l.b16 %v1345
      %v2809 = vunpack.c.l.b16 %v1346
      %v2810 = vunpack.c.l.b16 %v1347
      %v2811 = vpack.c.b16 %v2808, %v2807
      %v2812 = vpack.c.b16 %v2810, %v2809
      %v2816 = vunpack.c.l.b16 %v1348
      %v2817 = vpack.c.b16 %v2816, %v2816
      %v2819 = vshrl.u32 %v2811, 16
      %v2821 = vshll.u32 %v2811, 16
      %v2823 = vrot.slane %v2821, 1
      %v2824 = vor.u32 %v2819, %v2823
      %v2826 = vshll.u32 %v2812, 16
      %v2828 = vrot.slane %v2826, 1
      %v2829 = vsel %vm1829, %v2824, %v2828
      %v2830 = vshrl.u32 %v2812, 16
      %v2832 = vor.u32 %v2830, %v2828
      %v2834 = vshll.u32 %v2817, 16
      %v2836 = vrot.slane %v2834, 1
      %v2837 = vsel %vm1829, %v2832, %v2836
      %v2840 = vrot.slane %v2811, 1
      %v2841 = vrot.slane %v2812, 1
      %v2842 = vsel %vm2534, %v2840, %v2841
      %v2843 = vrot.slane %v2817, 1
      %v2844 = vsel %vm2534, %v2841, %v2843
      %v2847 = vld [vmem:[%s3] sm:$0xf]
      %v2848 = vld [vmem:[%s3 + $0x4] sm:$0xf]
      %v2849 = vld [vmem:[%s3 + $0x8] sm:$0xf]
      %v2850 = vld [vmem:[%s3 + $0xc] sm:$0xf]
      %v2851 = vld [vmem:[%s3 + $0x10] sm:$0xf]
      %v2852 = vld [vmem:[%s3 + $0x14] sm:$0xf]
      %v2853 = vld [vmem:[%s3 + $0x18] sm:$0xf]
      %v2854 = vld [vmem:[%s3 + $0x1c] sm:$0xf]
      %v2855 = vld [vmem:[%s3 + $0x20] sm:$0xf]
      %v2856 = vld [vmem:[%s3 + $0x24] sm:$0xf]
      %v2857 = vld [vmem:[%s3 + $0x28] sm:$0xf]
      %v2858 = vld [vmem:[%s3 + $0x2c] sm:$0xf]
      %v2859 = vld [vmem:[%s3 + $0x30] sm:$0xf]
      %v2860 = vld [vmem:[%s3 + $0x34] sm:$0xf]
      %v2861 = vld [vmem:[%s3 + $0x38] sm:$0xf]
      %v2862 = vld [vmem:[%s3 + $0x3c] sm:$0xf]
      %v2863 = vld [vmem:[%s3 + $0x40] sm:$0xf]
      %v2864 = vld [vmem:[%s3 + $0x44] sm:$0xf]
      %v2865 = vld [vmem:[%s3 + $0x48] sm:$0xf]
      %v2866 = vld [vmem:[%s3 + $0x4c] sm:$0xf]
      %v2867 = vld [vmem:[%s3 + $0x50] sm:$0xf]
      %v2868 = vld [vmem:[%s3 + $0x54] sm:$0xf]
      %v2869 = vld [vmem:[%s3 + $0x58] sm:$0xf]
      %v2870 = vld [vmem:[%s3 + $0x5c] sm:$0xf]
      %v2871 = vld [vmem:[%s3 + $0x60] sm:$0xf]
      %v2872 = vld [vmem:[%s3 + $0x64] sm:$0xf]
      %v2873 = vld [vmem:[%s3 + $0x68] sm:$0xf]
      %v2874 = vld [vmem:[%s3 + $0x6c] sm:$0xf]
      %v2875 = vld [vmem:[%s3 + $0x70] sm:$0xf]
      %v2876 = vld [vmem:[%s3 + $0x74] sm:$0xf]
      %v2877 = vld [vmem:[%s3 + $0x78] sm:$0xf]
      %v2878 = vld [vmem:[%s3 + $0x7c] sm:$0xf]
      %v2879 = vld [vmem:[%s3 + $0x80] sm:$0xf]
      %v2880 = vld [vmem:[%s3 + $0x84] sm:$0xf]
      %v2881 = vld [vmem:[%s3 + $0x88] sm:$0xf]
      %v2882 = vld [vmem:[%s3 + $0x8c] sm:$0xf]
      %v2883 = vld [vmem:[%s3 + $0x90] sm:$0xf]
      %v2884 = vld [vmem:[%s3 + $0x94] sm:$0xf]
      %v2885 = vld [vmem:[%s3 + $0x98] sm:$0xf]
      %v2886 = vld [vmem:[%s3 + $0x9c] sm:$0xf]
      %v2887 = vld [vmem:[%s3 + $0xa0] sm:$0xf]
      %v2888 = vld [vmem:[%s3 + $0xa4] sm:$0xf]
      %v2889 = vld [vmem:[%s3 + $0xa8] sm:$0xf]
      %v2890 = vld [vmem:[%s3 + $0xac] sm:$0xf]
      %v2891 = vld [vmem:[%s3 + $0xb0] sm:$0xf]
      %v2892 = vld [vmem:[%s3 + $0xb4] sm:$0xf]
      %v2893 = vld [vmem:[%s3 + $0xb8] sm:$0xf]
      %v2894 = vld [vmem:[%s3 + $0xbc] sm:$0xf]
      %v2895 = vld [vmem:[%s3 + $0xc0] sm:$0xf]
      %v2896 = vld [vmem:[%s3 + $0xc4] sm:$0xf]
      %v2897 = vld [vmem:[%s3 + $0xc8] sm:$0xf]
      %v2898 = vld [vmem:[%s3 + $0xcc] sm:$0xf]
      %v2899 = vld [vmem:[%s3 + $0xd0] sm:$0xf]
      %v2900 = vld [vmem:[%s3 + $0xd4] sm:$0xf]
      %v2901 = vld [vmem:[%s3 + $0xd8] sm:$0xf]
      %v2902 = vld [vmem:[%s3 + $0xdc] sm:$0xf]
      %v2903 = vld [vmem:[%s3 + $0xe0] sm:$0xf]
      %v2904 = vld [vmem:[%s3 + $0xe4] sm:$0xf]
      %v2905 = vld [vmem:[%s3 + $0xe8] sm:$0xf]
      %v2906 = vld [vmem:[%s3 + $0xec] sm:$0xf]
      %v2907 = vld [vmem:[%s3 + $0xf0] sm:$0xf]
      %v2908 = vld [vmem:[%s3 + $0xf4] sm:$0xf]
      %v2909 = vld [vmem:[%s3 + $0xf8] sm:$0xf]
      %v2910 = vld [vmem:[%s3 + $0xfc] sm:$0xf]
      %v2911 = vld [vmem:[%s3 + $0x100] sm:$0xf]
      %v2912 = vld [vmem:[%s3 + $0x104] sm:$0xf]
      %v2913 = vld [vmem:[%s3 + $0x108] sm:$0xf]
      %v2914 = vld [vmem:[%s3 + $0x10c] sm:$0xf]
      %v2915 = vld [vmem:[%s3 + $0x110] sm:$0xf]
      %v2916 = vld [vmem:[%s3 + $0x114] sm:$0xf]
      %v2917 = vld [vmem:[%s3 + $0x118] sm:$0xf]
      %v2918 = vld [vmem:[%s3 + $0x11c] sm:$0xf]
      %v2919 = vld [vmem:[%s3 + $0x120] sm:$0xf]
      %v2920 = vld [vmem:[%s3 + $0x124] sm:$0xf]
      %v2921 = vld [vmem:[%s3 + $0x128] sm:$0xf]
      %v2922 = vld [vmem:[%s3 + $0x12c] sm:$0xf]
      %v2923 = vld [vmem:[%s3 + $0x130] sm:$0xf]
      %v2924 = vld [vmem:[%s3 + $0x134] sm:$0xf]
      %v2925 = vld [vmem:[%s3 + $0x138] sm:$0xf]
      %v2926 = vld [vmem:[%s3 + $0x13c] sm:$0xf]
      %v2927 = vld [vmem:[%s3 + $0x140] sm:$0xf]
      %v2928 = vld [vmem:[%s3 + $0x144] sm:$0xf]
      %v2929 = vld [vmem:[%s3 + $0x148] sm:$0xf]
      %v2930 = vld [vmem:[%s3 + $0x14c] sm:$0xf]
      %v2931 = vld [vmem:[%s3 + $0x150] sm:$0xf]
      %v2932 = vld [vmem:[%s3 + $0x154] sm:$0xf]
      %v2933 = vld [vmem:[%s3 + $0x158] sm:$0xf]
      %v2934 = vld [vmem:[%s3 + $0x15c] sm:$0xf]
      %v2935 = vld [vmem:[%s3 + $0x160] sm:$0xf]
      %v2936 = vld [vmem:[%s3 + $0x164] sm:$0xf]
      %v2937 = vld [vmem:[%s3 + $0x168] sm:$0xf]
      %v2938 = vld [vmem:[%s3 + $0x16c] sm:$0xf]
      %v2939 = vld [vmem:[%s3 + $0x170] sm:$0xf]
      %v2940 = vld [vmem:[%s3 + $0x174] sm:$0xf]
      %v2941 = vld [vmem:[%s3 + $0x178] sm:$0xf]
      %v2942 = vld [vmem:[%s3 + $0x17c] sm:$0xf]
      %v2943 = vld [vmem:[%s3 + $0x180] sm:$0xf]
      %v2944 = vld [vmem:[%s3 + $0x184] sm:$0xf]
      %v2945 = vld [vmem:[%s3 + $0x188] sm:$0xf]
      %v2946 = vld [vmem:[%s3 + $0x18c] sm:$0xf]
      %v2947 = vld [vmem:[%s3 + $0x190] sm:$0xf]
      %v2948 = vld [vmem:[%s3 + $0x194] sm:$0xf]
      %v2949 = vld [vmem:[%s3 + $0x198] sm:$0xf]
      %v2950 = vld [vmem:[%s3 + $0x19c] sm:$0xf]
      %v2951 = vld [vmem:[%s3 + $0x1a0] sm:$0xf]
      %v2952 = vld [vmem:[%s3 + $0x1a4] sm:$0xf]
      %v2953 = vld [vmem:[%s3 + $0x1a8] sm:$0xf]
      %v2954 = vld [vmem:[%s3 + $0x1ac] sm:$0xf]
      %v2955 = vld [vmem:[%s3 + $0x1b0] sm:$0xf]
      %v2956 = vld [vmem:[%s3 + $0x1b4] sm:$0xf]
      %v2957 = vld [vmem:[%s3 + $0x1b8] sm:$0xf]
      %v2958 = vld [vmem:[%s3 + $0x1bc] sm:$0xf]
      %v2959 = vld [vmem:[%s3 + $0x1c0] sm:$0xf]
      %v2960 = vld [vmem:[%s3 + $0x1c4] sm:$0xf]
      %v2961 = vld [vmem:[%s3 + $0x1c8] sm:$0xf]
      %v2962 = vld [vmem:[%s3 + $0x1cc] sm:$0xf]
      %v2963 = vld [vmem:[%s3 + $0x1d0] sm:$0xf]
      %v2964 = vld [vmem:[%s3 + $0x1d4] sm:$0xf]
      %v2965 = vld [vmem:[%s3 + $0x1d8] sm:$0xf]
      %v2966 = vld [vmem:[%s3 + $0x1dc] sm:$0xf]
      %v2967 = vld [vmem:[%s3 + $0x1e0] sm:$0xf]
      %v2968 = vld [vmem:[%s3 + $0x1e4] sm:$0xf]
      %v2969 = vld [vmem:[%s3 + $0x1e8] sm:$0xf]
      %v2970 = vld [vmem:[%s3 + $0x1ec] sm:$0xf]
      %v2971 = vld [vmem:[%s3 + $0x1f0] sm:$0xf]
      %v2972 = vld [vmem:[%s3 + $0x1f4] sm:$0xf]
      %v2973 = vld [vmem:[%s3 + $0x1f8] sm:$0xf]
      %v2974 = vld [vmem:[%s3 + $0x1fc] sm:$0xf]
      %v2975 = vld [vmem:[%s3 + $0x200] sm:$0xf]
      %v2976 = vld [vmem:[%s3 + $0x204] sm:$0xf]
      %v2977 = vld [vmem:[%s3 + $0x208] sm:$0xf]
      %v2978 = vld [vmem:[%s3 + $0x20c] sm:$0xf]
      %v2979 = vld [vmem:[%s3 + $0x210] sm:$0xf]
      %v2980 = vld [vmem:[%s3 + $0x214] sm:$0xf]
      %v2981 = vld [vmem:[%s3 + $0x218] sm:$0xf]
      %v2982 = vld [vmem:[%s3 + $0x21c] sm:$0xf]
      %v2983 = vld [vmem:[%s3 + $0x220] sm:$0xf]
      %v2984 = vld [vmem:[%s3 + $0x224] sm:$0xf]
      %v2985 = vld [vmem:[%s3 + $0x228] sm:$0xf]
      %v2986 = vld [vmem:[%s3 + $0x22c] sm:$0xf]
      %v2987 = vld [vmem:[%s3 + $0x230] sm:$0xf]
      %v2988 = vld [vmem:[%s3 + $0x234] sm:$0xf]
      %v2989 = vld [vmem:[%s3 + $0x238] sm:$0xf]
      %v2990 = vld [vmem:[%s3 + $0x23c] sm:$0xf]
      %v3135 = vunpack.c.l.b16 %v2847
      %v3136 = vunpack.c.l.b16 %v2848
      %v3137 = vunpack.c.l.b16 %v2849
      %v3138 = vunpack.c.l.b16 %v2850
      %v3139 = vunpack.c.l.b16 %v2851
      %v3140 = vunpack.c.l.b16 %v2852
      %v3141 = vunpack.c.l.b16 %v2853
      %v3142 = vunpack.c.l.b16 %v2854
      %v3143 = vunpack.c.l.b16 %v2855
      %v3144 = vunpack.c.l.b16 %v2856
      %v3145 = vunpack.c.l.b16 %v2857
      %v3146 = vunpack.c.l.b16 %v2858
      %v3147 = vunpack.c.l.b16 %v2859
      %v3148 = vunpack.c.l.b16 %v2860
      %v3149 = vunpack.c.l.b16 %v2861
      %v3150 = vunpack.c.l.b16 %v2862
      %v3151 = vunpack.c.l.b16 %v2863
      %v3152 = vunpack.c.l.b16 %v2864
      %v3153 = vunpack.c.l.b16 %v2865
      %v3154 = vunpack.c.l.b16 %v2866
      %v3155 = vunpack.c.l.b16 %v2867
      %v3156 = vunpack.c.l.b16 %v2868
      %v3157 = vunpack.c.l.b16 %v2869
      %v3158 = vunpack.c.l.b16 %v2870
      %v3159 = vunpack.c.l.b16 %v2871
      %v3160 = vunpack.c.l.b16 %v2872
      %v3161 = vunpack.c.l.b16 %v2873
      %v3162 = vunpack.c.l.b16 %v2874
      %v3163 = vunpack.c.l.b16 %v2875
      %v3164 = vunpack.c.l.b16 %v2876
      %v3165 = vunpack.c.l.b16 %v2877
      %v3166 = vunpack.c.l.b16 %v2878
      %v3167 = vunpack.c.l.b16 %v2879
      %v3168 = vunpack.c.l.b16 %v2880
      %v3169 = vunpack.c.l.b16 %v2881
      %v3170 = vunpack.c.l.b16 %v2882
      %v3171 = vunpack.c.l.b16 %v2883
      %v3172 = vunpack.c.l.b16 %v2884
      %v3173 = vunpack.c.l.b16 %v2885
      %v3174 = vunpack.c.l.b16 %v2886
      %v3175 = vunpack.c.l.b16 %v2887
      %v3176 = vunpack.c.l.b16 %v2888
      %v3177 = vunpack.c.l.b16 %v2889
      %v3178 = vunpack.c.l.b16 %v2890
      %v3179 = vunpack.c.l.b16 %v2891
      %v3180 = vunpack.c.l.b16 %v2892
      %v3181 = vunpack.c.l.b16 %v2893
      %v3182 = vunpack.c.l.b16 %v2894
      %v3183 = vunpack.c.l.b16 %v2895
      %v3184 = vunpack.c.l.b16 %v2896
      %v3185 = vunpack.c.l.b16 %v2897
      %v3186 = vunpack.c.l.b16 %v2898
      %v3187 = vunpack.c.l.b16 %v2899
      %v3188 = vunpack.c.l.b16 %v2900
      %v3189 = vunpack.c.l.b16 %v2901
      %v3190 = vunpack.c.l.b16 %v2902
      %v3191 = vunpack.c.l.b16 %v2903
      %v3192 = vunpack.c.l.b16 %v2904
      %v3193 = vunpack.c.l.b16 %v2905
      %v3194 = vunpack.c.l.b16 %v2906
      %v3195 = vunpack.c.l.b16 %v2907
      %v3196 = vunpack.c.l.b16 %v2908
      %v3197 = vunpack.c.l.b16 %v2909
      %v3198 = vunpack.c.l.b16 %v2910
      %v3199 = vunpack.c.l.b16 %v2911
      %v3200 = vunpack.c.l.b16 %v2912
      %v3201 = vunpack.c.l.b16 %v2913
      %v3202 = vunpack.c.l.b16 %v2914
      %v3203 = vunpack.c.l.b16 %v2915
      %v3204 = vunpack.c.l.b16 %v2916
      %v3205 = vunpack.c.l.b16 %v2917
      %v3206 = vunpack.c.l.b16 %v2918
      %v3207 = vunpack.c.l.b16 %v2919
      %v3208 = vunpack.c.l.b16 %v2920
      %v3209 = vunpack.c.l.b16 %v2921
      %v3210 = vunpack.c.l.b16 %v2922
      %v3211 = vunpack.c.l.b16 %v2923
      %v3212 = vunpack.c.l.b16 %v2924
      %v3213 = vunpack.c.l.b16 %v2925
      %v3214 = vunpack.c.l.b16 %v2926
      %v3215 = vunpack.c.l.b16 %v2927
      %v3216 = vunpack.c.l.b16 %v2928
      %v3217 = vunpack.c.l.b16 %v2929
      %v3218 = vunpack.c.l.b16 %v2930
      %v3219 = vunpack.c.l.b16 %v2931
      %v3220 = vunpack.c.l.b16 %v2932
      %v3221 = vunpack.c.l.b16 %v2933
      %v3222 = vunpack.c.l.b16 %v2934
      %v3223 = vunpack.c.l.b16 %v2935
      %v3224 = vunpack.c.l.b16 %v2936
      %v3225 = vunpack.c.l.b16 %v2937
      %v3226 = vunpack.c.l.b16 %v2938
      %v3227 = vunpack.c.l.b16 %v2939
      %v3228 = vunpack.c.l.b16 %v2940
      %v3229 = vunpack.c.l.b16 %v2941
      %v3230 = vunpack.c.l.b16 %v2942
      %v3231 = vunpack.c.l.b16 %v2943
      %v3232 = vunpack.c.l.b16 %v2944
      %v3233 = vunpack.c.l.b16 %v2945
      %v3234 = vunpack.c.l.b16 %v2946
      %v3235 = vunpack.c.l.b16 %v2947
      %v3236 = vunpack.c.l.b16 %v2948
      %v3237 = vunpack.c.l.b16 %v2949
      %v3238 = vunpack.c.l.b16 %v2950
      %v3239 = vunpack.c.l.b16 %v2951
      %v3240 = vunpack.c.l.b16 %v2952
      %v3241 = vunpack.c.l.b16 %v2953
      %v3242 = vunpack.c.l.b16 %v2954
      %v3243 = vunpack.c.l.b16 %v2955
      %v3244 = vunpack.c.l.b16 %v2956
      %v3245 = vunpack.c.l.b16 %v2957
      %v3246 = vunpack.c.l.b16 %v2958
      %v3247 = vunpack.c.l.b16 %v2959
      %v3248 = vunpack.c.l.b16 %v2960
      %v3249 = vunpack.c.l.b16 %v2961
      %v3250 = vunpack.c.l.b16 %v2962
      %v3251 = vunpack.c.l.b16 %v2963
      %v3252 = vunpack.c.l.b16 %v2964
      %v3253 = vunpack.c.l.b16 %v2965
      %v3254 = vunpack.c.l.b16 %v2966
      %v3255 = vunpack.c.l.b16 %v2967
      %v3256 = vunpack.c.l.b16 %v2968
      %v3257 = vunpack.c.l.b16 %v2969
      %v3258 = vunpack.c.l.b16 %v2970
      %v3259 = vunpack.c.l.b16 %v2971
      %v3260 = vunpack.c.l.b16 %v2972
      %v3261 = vunpack.c.l.b16 %v2973
      %v3262 = vunpack.c.l.b16 %v2974
      %v3263 = vunpack.c.l.b16 %v2975
      %v3264 = vunpack.c.l.b16 %v2976
      %v3265 = vunpack.c.l.b16 %v2977
      %v3266 = vunpack.c.l.b16 %v2978
      %v3267 = vunpack.c.l.b16 %v2979
      %v3268 = vunpack.c.l.b16 %v2980
      %v3269 = vunpack.c.l.b16 %v2981
      %v3270 = vunpack.c.l.b16 %v2982
      %v3271 = vunpack.c.l.b16 %v2983
      %v3272 = vunpack.c.l.b16 %v2984
      %v3273 = vunpack.c.l.b16 %v2985
      %v3274 = vunpack.c.l.b16 %v2986
      %v3275 = vunpack.c.l.b16 %v2987
      %v3276 = vunpack.c.l.b16 %v2988
      %v3277 = vunpack.c.l.b16 %v2989
      %v3278 = vunpack.c.l.b16 %v2990
      %v3279 = vpack.c.b16 %v3136, %v3135
      %v3280 = vpack.c.b16 %v3138, %v3137
      %v3281 = vpack.c.b16 %v3140, %v3139
      %v3282 = vpack.c.b16 %v3142, %v3141
      %v3283 = vpack.c.b16 %v3144, %v3143
      %v3284 = vpack.c.b16 %v3146, %v3145
      %v3285 = vpack.c.b16 %v3148, %v3147
      %v3286 = vpack.c.b16 %v3150, %v3149
      %v3287 = vpack.c.b16 %v3152, %v3151
      %v3288 = vpack.c.b16 %v3154, %v3153
      %v3289 = vpack.c.b16 %v3156, %v3155
      %v3290 = vpack.c.b16 %v3158, %v3157
      %v3291 = vpack.c.b16 %v3160, %v3159
      %v3292 = vpack.c.b16 %v3162, %v3161
      %v3293 = vpack.c.b16 %v3164, %v3163
      %v3294 = vpack.c.b16 %v3166, %v3165
      %v3295 = vpack.c.b16 %v3168, %v3167
      %v3296 = vpack.c.b16 %v3170, %v3169
      %v3297 = vpack.c.b16 %v3172, %v3171
      %v3298 = vpack.c.b16 %v3174, %v3173
      %v3299 = vpack.c.b16 %v3176, %v3175
      %v3300 = vpack.c.b16 %v3178, %v3177
      %v3301 = vpack.c.b16 %v3180, %v3179
      %v3302 = vpack.c.b16 %v3182, %v3181
      %v3303 = vpack.c.b16 %v3184, %v3183
      %v3304 = vpack.c.b16 %v3186, %v3185
      %v3305 = vpack.c.b16 %v3188, %v3187
      %v3306 = vpack.c.b16 %v3190, %v3189
      %v3307 = vpack.c.b16 %v3192, %v3191
      %v3308 = vpack.c.b16 %v3194, %v3193
      %v3309 = vpack.c.b16 %v3196, %v3195
      %v3310 = vpack.c.b16 %v3198, %v3197
      %v3311 = vpack.c.b16 %v3200, %v3199
      %v3312 = vpack.c.b16 %v3202, %v3201
      %v3313 = vpack.c.b16 %v3204, %v3203
      %v3314 = vpack.c.b16 %v3206, %v3205
      %v3315 = vpack.c.b16 %v3208, %v3207
      %v3316 = vpack.c.b16 %v3210, %v3209
      %v3317 = vpack.c.b16 %v3212, %v3211
      %v3318 = vpack.c.b16 %v3214, %v3213
      %v3319 = vpack.c.b16 %v3216, %v3215
      %v3320 = vpack.c.b16 %v3218, %v3217
      %v3321 = vpack.c.b16 %v3220, %v3219
      %v3322 = vpack.c.b16 %v3222, %v3221
      %v3323 = vpack.c.b16 %v3224, %v3223
      %v3324 = vpack.c.b16 %v3226, %v3225
      %v3325 = vpack.c.b16 %v3228, %v3227
      %v3326 = vpack.c.b16 %v3230, %v3229
      %v3327 = vpack.c.b16 %v3232, %v3231
      %v3328 = vpack.c.b16 %v3234, %v3233
      %v3329 = vpack.c.b16 %v3236, %v3235
      %v3330 = vpack.c.b16 %v3238, %v3237
      %v3331 = vpack.c.b16 %v3240, %v3239
      %v3332 = vpack.c.b16 %v3242, %v3241
      %v3333 = vpack.c.b16 %v3244, %v3243
      %v3334 = vpack.c.b16 %v3246, %v3245
      %v3335 = vpack.c.b16 %v3248, %v3247
      %v3336 = vpack.c.b16 %v3250, %v3249
      %v3337 = vpack.c.b16 %v3252, %v3251
      %v3338 = vpack.c.b16 %v3254, %v3253
      %v3339 = vpack.c.b16 %v3256, %v3255
      %v3340 = vpack.c.b16 %v3258, %v3257
      %v3341 = vpack.c.b16 %v3260, %v3259
      %v3342 = vpack.c.b16 %v3262, %v3261
      %v3343 = vpack.c.b16 %v3264, %v3263
      %v3344 = vpack.c.b16 %v3266, %v3265
      %v3345 = vpack.c.b16 %v3268, %v3267
      %v3346 = vpack.c.b16 %v3270, %v3269
      %v3347 = vpack.c.b16 %v3272, %v3271
      %v3348 = vpack.c.b16 %v3274, %v3273
      %v3349 = vpack.c.b16 %v3276, %v3275
      %v3350 = vpack.c.b16 %v3278, %v3277
      %3423 = vmatpush.bf16.msra.mxu0 %v3286
      %3424 = vmatpush.bf16.msra.mxu0 %v3285
      %3425 = vmatpush.bf16.msra.mxu0 %v3284
      %3426 = vmatpush.bf16.msra.mxu0 %v3283
      %3427 = vmatpush.bf16.msra.mxu0 %v3282
      %3428 = vmatpush.bf16.msra.mxu0 %v3281
      %3429 = vmatpush.bf16.msra.mxu0 %v3280
      %3430 = vmatpush.bf16.msra.mxu0 %v3279
      %3431 = vmatmul.bf16.gmra.mxu0 %v1605
      %v3432 = vpop.f32.mrf.mxu0
      %v3433 = vadd.f32 0.0, %v3432
      %v3434 = vpop.f32.mrf.mxu0
      %v3435 = vadd.f32 0.0, %v3434
      %3436 = vmatmul.bf16.gmra.mxu0 %v1606
      %v3437 = vpop.f32.mrf.mxu0
      %v3438 = vadd.f32 0.0, %v3437
      %v3439 = vpop.f32.mrf.mxu0
      %v3440 = vadd.f32 0.0, %v3439
      %3441 = vmatmul.bf16.gmra.mxu0 %v1607
      %v3442 = vpop.f32.mrf.mxu0
      %v3443 = vadd.f32 0.0, %v3442
      %v3444 = vpop.f32.mrf.mxu0
      %v3445 = vadd.f32 0.0, %v3444
      %3446 = vmatmul.bf16.gmra.mxu0 %v1608
      %v3447 = vpop.f32.mrf.mxu0
      %v3448 = vadd.f32 0.0, %v3447
      %v3449 = vpop.f32.mrf.mxu0
      %v3450 = vadd.f32 0.0, %v3449
      %3451 = vmatmul.bf16.gmra.mxu0 %v1609
      %v3452 = vpop.f32.mrf.mxu0
      %v3453 = vadd.f32 0.0, %v3452
      %v3454 = vpop.f32.mrf.mxu0
      %v3455 = vadd.f32 0.0, %v3454
      %3456 = vmatmul.bf16.gmra.mxu0 %v1610
      %v3457 = vpop.f32.mrf.mxu0
      %v3458 = vadd.f32 0.0, %v3457
      %v3459 = vpop.f32.mrf.mxu0
      %v3460 = vadd.f32 0.0, %v3459
      %3461 = vmatmul.bf16.gmra.mxu0 %v1611
      %v3462 = vpop.f32.mrf.mxu0
      %v3463 = vadd.f32 0.0, %v3462
      %v3464 = vpop.f32.mrf.mxu0
      %v3465 = vadd.f32 0.0, %v3464
      %3466 = vmatmul.bf16.gmra.mxu0 %v1612
      %v3467 = vpop.f32.mrf.mxu0
      %v3468 = vadd.f32 0.0, %v3467
      %v3469 = vpop.f32.mrf.mxu0
      %v3470 = vadd.f32 0.0, %v3469
      %3471 = vmatmul.bf16.gmra.mxu0 %v1613
      %v3472 = vpop.f32.mrf.mxu0
      %v3473 = vadd.f32 0.0, %v3472
      %v3474 = vpop.f32.mrf.mxu0
      %v3475 = vadd.f32 0.0, %v3474
      %3476 = vmatmul.bf16.gmra.mxu0 %v1614
      %v3477 = vpop.f32.mrf.mxu0
      %v3478 = vadd.f32 0.0, %v3477
      %v3479 = vpop.f32.mrf.mxu0
      %v3480 = vadd.f32 0.0, %v3479
      %3481 = vmatmul.bf16.gmra.mxu0 %v1615
      %v3482 = vpop.f32.mrf.mxu0
      %v3483 = vadd.f32 0.0, %v3482
      %v3484 = vpop.f32.mrf.mxu0
      %v3485 = vadd.f32 0.0, %v3484
      %3486 = vmatmul.bf16.gmra.mxu0 %v1616
      %v3487 = vpop.f32.mrf.mxu0
      %v3488 = vadd.f32 0.0, %v3487
      %v3489 = vpop.f32.mrf.mxu0
      %v3490 = vadd.f32 0.0, %v3489
      %3491 = vmatmul.bf16.gmra.mxu0 %v1617
      %v3492 = vpop.f32.mrf.mxu0
      %v3493 = vadd.f32 0.0, %v3492
      %v3494 = vpop.f32.mrf.mxu0
      %v3495 = vadd.f32 0.0, %v3494
      %3496 = vmatmul.bf16.gmra.mxu0 %v1618
      %v3497 = vpop.f32.mrf.mxu0
      %v3498 = vadd.f32 0.0, %v3497
      %v3499 = vpop.f32.mrf.mxu0
      %v3500 = vadd.f32 0.0, %v3499
      %3501 = vmatmul.bf16.gmra.mxu0 %v1619
      %v3502 = vpop.f32.mrf.mxu0
      %v3503 = vadd.f32 0.0, %v3502
      %v3504 = vpop.f32.mrf.mxu0
      %v3505 = vadd.f32 0.0, %v3504
      %3506 = vmatmul.bf16.gmra.mxu0 %v1620
      %v3507 = vpop.f32.mrf.mxu0
      %v3508 = vadd.f32 0.0, %v3507
      %v3509 = vpop.f32.mrf.mxu0
      %v3510 = vadd.f32 0.0, %v3509
      %3511 = vmatmul.bf16.gmra.mxu0 %v1621
      %v3512 = vpop.f32.mrf.mxu0
      %v3513 = vadd.f32 0.0, %v3512
      %v3514 = vpop.f32.mrf.mxu0
      %v3515 = vadd.f32 0.0, %v3514
      %3516 = vmatmul.bf16.gmra.mxu0 %v1622
      %v3517 = vpop.f32.mrf.mxu0
      %v3518 = vadd.f32 0.0, %v3517
      %v3519 = vpop.f32.mrf.mxu0
      %v3520 = vadd.f32 0.0, %v3519
      %3521 = vmatmul.bf16.gmra.mxu0 %v1623
      %v3522 = vpop.f32.mrf.mxu0
      %v3523 = vadd.f32 0.0, %v3522
      %v3524 = vpop.f32.mrf.mxu0
      %v3525 = vadd.f32 0.0, %v3524
      %3526 = vmatmul.bf16.gmra.mxu0 %v1624
      %v3527 = vpop.f32.mrf.mxu0
      %v3528 = vadd.f32 0.0, %v3527
      %v3529 = vpop.f32.mrf.mxu0
      %v3530 = vadd.f32 0.0, %v3529
      %3531 = vmatmul.bf16.gmra.mxu0 %v1625
      %v3532 = vpop.f32.mrf.mxu0
      %v3533 = vadd.f32 0.0, %v3532
      %v3534 = vpop.f32.mrf.mxu0
      %v3535 = vadd.f32 0.0, %v3534
      %3536 = vmatmul.bf16.gmra.mxu0 %v1626
      %v3537 = vpop.f32.mrf.mxu0
      %v3538 = vadd.f32 0.0, %v3537
      %v3539 = vpop.f32.mrf.mxu0
      %v3540 = vadd.f32 0.0, %v3539
      %3541 = vmatmul.bf16.gmra.mxu0 %v1627
      %v3542 = vpop.f32.mrf.mxu0
      %v3543 = vadd.f32 0.0, %v3542
      %v3544 = vpop.f32.mrf.mxu0
      %v3545 = vadd.f32 0.0, %v3544
      %3546 = vmatmul.bf16.gmra.mxu0 %v1628
      %v3547 = vpop.f32.mrf.mxu0
      %v3548 = vadd.f32 0.0, %v3547
      %v3549 = vpop.f32.mrf.mxu0
      %v3550 = vadd.f32 0.0, %v3549
      %3551 = vmatmul.bf16.gmra.mxu0 %v1629
      %v3552 = vpop.f32.mrf.mxu0
      %v3553 = vadd.f32 0.0, %v3552
      %v3554 = vpop.f32.mrf.mxu0
      %v3555 = vadd.f32 0.0, %v3554
      %3556 = vmatmul.bf16.gmra.mxu0 %v1630
      %v3557 = vpop.f32.mrf.mxu0
      %v3558 = vadd.f32 0.0, %v3557
      %v3559 = vpop.f32.mrf.mxu0
      %v3560 = vadd.f32 0.0, %v3559
      %3561 = vmatmul.bf16.gmra.mxu0 %v1631
      %v3562 = vpop.f32.mrf.mxu0
      %v3563 = vadd.f32 0.0, %v3562
      %v3564 = vpop.f32.mrf.mxu0
      %v3565 = vadd.f32 0.0, %v3564
      %3566 = vmatmul.bf16.gmra.mxu0 %v1632
      %v3567 = vpop.f32.mrf.mxu0
      %v3568 = vadd.f32 0.0, %v3567
      %v3569 = vpop.f32.mrf.mxu0
      %v3570 = vadd.f32 0.0, %v3569
      %3571 = vmatmul.bf16.gmra.mxu0 %v1633
      %v3572 = vpop.f32.mrf.mxu0
      %v3573 = vadd.f32 0.0, %v3572
      %v3574 = vpop.f32.mrf.mxu0
      %v3575 = vadd.f32 0.0, %v3574
      %3576 = vmatmul.bf16.gmra.mxu0 %v1634
      %v3577 = vpop.f32.mrf.mxu0
      %v3578 = vadd.f32 0.0, %v3577
      %v3579 = vpop.f32.mrf.mxu0
      %v3580 = vadd.f32 0.0, %v3579
      %3581 = vmatmul.bf16.gmra.mxu0 %v1635
      %v3582 = vpop.f32.mrf.mxu0
      %v3583 = vadd.f32 0.0, %v3582
      %v3584 = vpop.f32.mrf.mxu0
      %v3585 = vadd.f32 0.0, %v3584
      %3586 = vmatmul.bf16.gmra.mxu0 %v1636
      %v3587 = vpop.f32.mrf.mxu0
      %v3588 = vadd.f32 0.0, %v3587
      %v3589 = vpop.f32.mrf.mxu0
      %v3590 = vadd.f32 0.0, %v3589
      %3591 = vmatmul.bf16.gmra.mxu0 %v1637
      %v3592 = vpop.f32.mrf.mxu0
      %v3593 = vadd.f32 0.0, %v3592
      %v3594 = vpop.f32.mrf.mxu0
      %v3595 = vadd.f32 0.0, %v3594
      %3596 = vmatmul.bf16.gmra.mxu0 %v1638
      %v3597 = vpop.f32.mrf.mxu0
      %v3598 = vadd.f32 0.0, %v3597
      %v3599 = vpop.f32.mrf.mxu0
      %v3600 = vadd.f32 0.0, %v3599
      %3601 = vmatmul.bf16.gmra.mxu0 %v1639
      %v3602 = vpop.f32.mrf.mxu0
      %v3603 = vadd.f32 0.0, %v3602
      %v3604 = vpop.f32.mrf.mxu0
      %v3605 = vadd.f32 0.0, %v3604
      %3606 = vmatmul.bf16.gmra.mxu0 %v1640
      %v3607 = vpop.f32.mrf.mxu0
      %v3608 = vadd.f32 0.0, %v3607
      %v3609 = vpop.f32.mrf.mxu0
      %v3610 = vadd.f32 0.0, %v3609
      %3611 = vmatmul.bf16.gmra.mxu0 %v1641
      %v3612 = vpop.f32.mrf.mxu0
      %v3613 = vadd.f32 0.0, %v3612
      %v3614 = vpop.f32.mrf.mxu0
      %v3615 = vadd.f32 0.0, %v3614
      %3616 = vmatmul.bf16.gmra.mxu0 %v1642
      %v3617 = vpop.f32.mrf.mxu0
      %v3618 = vadd.f32 0.0, %v3617
      %v3619 = vpop.f32.mrf.mxu0
      %v3620 = vadd.f32 0.0, %v3619
      %3621 = vmatmul.bf16.gmra.mxu0 %v1643
      %v3622 = vpop.f32.mrf.mxu0
      %v3623 = vadd.f32 0.0, %v3622
      %v3624 = vpop.f32.mrf.mxu0
      %v3625 = vadd.f32 0.0, %v3624
      %3626 = vmatmul.bf16.gmra.mxu0 %v1644
      %v3627 = vpop.f32.mrf.mxu0
      %v3628 = vadd.f32 0.0, %v3627
      %v3629 = vpop.f32.mrf.mxu0
      %v3630 = vadd.f32 0.0, %v3629
      %3631 = vmatmul.bf16.gmra.mxu0 %v1645
      %v3632 = vpop.f32.mrf.mxu0
      %v3633 = vadd.f32 0.0, %v3632
      %v3634 = vpop.f32.mrf.mxu0
      %v3635 = vadd.f32 0.0, %v3634
      %3636 = vmatmul.bf16.gmra.mxu0 %v1646
      %v3637 = vpop.f32.mrf.mxu0
      %v3638 = vadd.f32 0.0, %v3637
      %v3639 = vpop.f32.mrf.mxu0
      %v3640 = vadd.f32 0.0, %v3639
      %3641 = vmatmul.bf16.gmra.mxu0 %v1647
      %v3642 = vpop.f32.mrf.mxu0
      %v3643 = vadd.f32 0.0, %v3642
      %v3644 = vpop.f32.mrf.mxu0
      %v3645 = vadd.f32 0.0, %v3644
      %3646 = vmatmul.bf16.gmra.mxu0 %v1648
      %v3647 = vpop.f32.mrf.mxu0
      %v3648 = vadd.f32 0.0, %v3647
      %v3649 = vpop.f32.mrf.mxu0
      %v3650 = vadd.f32 0.0, %v3649
      %3651 = vmatmul.bf16.gmra.mxu0 %v1649
      %v3652 = vpop.f32.mrf.mxu0
      %v3653 = vadd.f32 0.0, %v3652
      %v3654 = vpop.f32.mrf.mxu0
      %v3655 = vadd.f32 0.0, %v3654
      %3656 = vmatmul.bf16.gmra.mxu0 %v1650
      %v3657 = vpop.f32.mrf.mxu0
      %v3658 = vadd.f32 0.0, %v3657
      %v3659 = vpop.f32.mrf.mxu0
      %v3660 = vadd.f32 0.0, %v3659
      %3661 = vmatmul.bf16.gmra.mxu0 %v1651
      %v3662 = vpop.f32.mrf.mxu0
      %v3663 = vadd.f32 0.0, %v3662
      %v3664 = vpop.f32.mrf.mxu0
      %v3665 = vadd.f32 0.0, %v3664
      %3666 = vmatmul.bf16.gmra.mxu0 %v1652
      %v3667 = vpop.f32.mrf.mxu0
      %v3668 = vadd.f32 0.0, %v3667
      %v3669 = vpop.f32.mrf.mxu0
      %v3670 = vadd.f32 0.0, %v3669
      %3671 = vmatmul.bf16.gmra.mxu0 %v1653
      %v3672 = vpop.f32.mrf.mxu0
      %v3673 = vadd.f32 0.0, %v3672
      %v3674 = vpop.f32.mrf.mxu0
      %v3675 = vadd.f32 0.0, %v3674
      %3676 = vmatmul.bf16.gmra.mxu0 %v1654
      %v3677 = vpop.f32.mrf.mxu0
      %v3678 = vadd.f32 0.0, %v3677
      %v3679 = vpop.f32.mrf.mxu0
      %v3680 = vadd.f32 0.0, %v3679
      %3681 = vmatmul.bf16.gmra.mxu0 %v1655
      %v3682 = vpop.f32.mrf.mxu0
      %v3683 = vadd.f32 0.0, %v3682
      %v3684 = vpop.f32.mrf.mxu0
      %v3685 = vadd.f32 0.0, %v3684
      %3686 = vmatmul.bf16.gmra.mxu0 %v1656
      %v3687 = vpop.f32.mrf.mxu0
      %v3688 = vadd.f32 0.0, %v3687
      %v3689 = vpop.f32.mrf.mxu0
      %v3690 = vadd.f32 0.0, %v3689
      %3691 = vmatmul.bf16.gmra.mxu0 %v1657
      %v3692 = vpop.f32.mrf.mxu0
      %v3693 = vadd.f32 0.0, %v3692
      %v3694 = vpop.f32.mrf.mxu0
      %v3695 = vadd.f32 0.0, %v3694
      %3696 = vmatmul.bf16.gmra.mxu0 %v1658
      %v3697 = vpop.f32.mrf.mxu0
      %v3698 = vadd.f32 0.0, %v3697
      %v3699 = vpop.f32.mrf.mxu0
      %v3700 = vadd.f32 0.0, %v3699
      %3701 = vmatmul.bf16.gmra.mxu0 %v1659
      %v3702 = vpop.f32.mrf.mxu0
      %v3703 = vadd.f32 0.0, %v3702
      %v3704 = vpop.f32.mrf.mxu0
      %v3705 = vadd.f32 0.0, %v3704
      %3706 = vmatmul.bf16.gmra.mxu0 %v1660
      %v3707 = vpop.f32.mrf.mxu0
      %v3708 = vadd.f32 0.0, %v3707
      %v3709 = vpop.f32.mrf.mxu0
      %v3710 = vadd.f32 0.0, %v3709
      %3711 = vmatmul.bf16.gmra.mxu0 %v1661
      %v3712 = vpop.f32.mrf.mxu0
      %v3713 = vadd.f32 0.0, %v3712
      %v3714 = vpop.f32.mrf.mxu0
      %v3715 = vadd.f32 0.0, %v3714
      %3716 = vmatmul.bf16.gmra.mxu0 %v1662
      %v3717 = vpop.f32.mrf.mxu0
      %v3718 = vadd.f32 0.0, %v3717
      %v3719 = vpop.f32.mrf.mxu0
      %v3720 = vadd.f32 0.0, %v3719
      %3721 = vmatmul.bf16.gmra.mxu0 %v1663
      %v3722 = vpop.f32.mrf.mxu0
      %v3723 = vadd.f32 0.0, %v3722
      %v3724 = vpop.f32.mrf.mxu0
      %v3725 = vadd.f32 0.0, %v3724
      %3726 = vmatmul.bf16.gmra.mxu0 %v1664
      %v3727 = vpop.f32.mrf.mxu0
      %v3728 = vadd.f32 0.0, %v3727
      %v3729 = vpop.f32.mrf.mxu0
      %v3730 = vadd.f32 0.0, %v3729
      %3731 = vmatmul.bf16.gmra.mxu0 %v1665
      %v3732 = vpop.f32.mrf.mxu0
      %v3733 = vadd.f32 0.0, %v3732
      %v3734 = vpop.f32.mrf.mxu0
      %v3735 = vadd.f32 0.0, %v3734
      %3736 = vmatmul.bf16.gmra.mxu0 %v1666
      %v3737 = vpop.f32.mrf.mxu0
      %v3738 = vadd.f32 0.0, %v3737
      %v3739 = vpop.f32.mrf.mxu0
      %v3740 = vadd.f32 0.0, %v3739
      %3741 = vmatmul.bf16.gmra.mxu0 %v1667
      %v3742 = vpop.f32.mrf.mxu0
      %v3743 = vadd.f32 0.0, %v3742
      %v3744 = vpop.f32.mrf.mxu0
      %v3745 = vadd.f32 0.0, %v3744
      %3746 = vmatmul.bf16.gmra.mxu0 %v1668
      %v3747 = vpop.f32.mrf.mxu0
      %v3748 = vadd.f32 0.0, %v3747
      %v3749 = vpop.f32.mrf.mxu0
      %v3750 = vadd.f32 0.0, %v3749
      %3751 = vdwg.mxu0
      %3752 = vmatpush.bf16.msra.mxu0 %v3294
      %3753 = vmatpush.bf16.msra.mxu0 %v3293
      %3754 = vmatpush.bf16.msra.mxu0 %v3292
      %3755 = vmatpush.bf16.msra.mxu0 %v3291
      %3756 = vmatpush.bf16.msra.mxu0 %v3290
      %3757 = vmatpush.bf16.msra.mxu0 %v3289
      %3758 = vmatpush.bf16.msra.mxu0 %v3288
      %3759 = vmatpush.bf16.msra.mxu0 %v3287
      %3760 = vmatmul.bf16.gmra.mxu0 %v1841
      %v3761 = vpop.f32.mrf.mxu0
      %v3762 = vadd.f32 %v3433, %v3761
      %v3763 = vpop.f32.mrf.mxu0
      %v3764 = vadd.f32 %v3435, %v3763
      %3765 = vmatmul.bf16.gmra.mxu0 %v1849
      %v3766 = vpop.f32.mrf.mxu0
      %v3767 = vadd.f32 %v3438, %v3766
      %v3768 = vpop.f32.mrf.mxu0
      %v3769 = vadd.f32 %v3440, %v3768
      %3770 = vmatmul.bf16.gmra.mxu0 %v1861
      %v3771 = vpop.f32.mrf.mxu0
      %v3772 = vadd.f32 %v3443, %v3771
      %v3773 = vpop.f32.mrf.mxu0
      %v3774 = vadd.f32 %v3445, %v3773
      %3775 = vmatmul.bf16.gmra.mxu0 %v1869
      %v3776 = vpop.f32.mrf.mxu0
      %v3777 = vadd.f32 %v3448, %v3776
      %v3778 = vpop.f32.mrf.mxu0
      %v3779 = vadd.f32 %v3450, %v3778
      %3780 = vmatmul.bf16.gmra.mxu0 %v1881
      %v3781 = vpop.f32.mrf.mxu0
      %v3782 = vadd.f32 %v3453, %v3781
      %v3783 = vpop.f32.mrf.mxu0
      %v3784 = vadd.f32 %v3455, %v3783
      %3785 = vmatmul.bf16.gmra.mxu0 %v1889
      %v3786 = vpop.f32.mrf.mxu0
      %v3787 = vadd.f32 %v3458, %v3786
      %v3788 = vpop.f32.mrf.mxu0
      %v3789 = vadd.f32 %v3460, %v3788
      %3790 = vmatmul.bf16.gmra.mxu0 %v1901
      %v3791 = vpop.f32.mrf.mxu0
      %v3792 = vadd.f32 %v3463, %v3791
      %v3793 = vpop.f32.mrf.mxu0
      %v3794 = vadd.f32 %v3465, %v3793
      %3795 = vmatmul.bf16.gmra.mxu0 %v1909
      %v3796 = vpop.f32.mrf.mxu0
      %v3797 = vadd.f32 %v3468, %v3796
      %v3798 = vpop.f32.mrf.mxu0
      %v3799 = vadd.f32 %v3470, %v3798
      %3800 = vmatmul.bf16.gmra.mxu0 %v1921
      %v3801 = vpop.f32.mrf.mxu0
      %v3802 = vadd.f32 %v3473, %v3801
      %v3803 = vpop.f32.mrf.mxu0
      %v3804 = vadd.f32 %v3475, %v3803
      %3805 = vmatmul.bf16.gmra.mxu0 %v1929
      %v3806 = vpop.f32.mrf.mxu0
      %v3807 = vadd.f32 %v3478, %v3806
      %v3808 = vpop.f32.mrf.mxu0
      %v3809 = vadd.f32 %v3480, %v3808
      %3810 = vmatmul.bf16.gmra.mxu0 %v1941
      %v3811 = vpop.f32.mrf.mxu0
      %v3812 = vadd.f32 %v3483, %v3811
      %v3813 = vpop.f32.mrf.mxu0
      %v3814 = vadd.f32 %v3485, %v3813
      %3815 = vmatmul.bf16.gmra.mxu0 %v1949
      %v3816 = vpop.f32.mrf.mxu0
      %v3817 = vadd.f32 %v3488, %v3816
      %v3818 = vpop.f32.mrf.mxu0
      %v3819 = vadd.f32 %v3490, %v3818
      %3820 = vmatmul.bf16.gmra.mxu0 %v1961
      %v3821 = vpop.f32.mrf.mxu0
      %v3822 = vadd.f32 %v3493, %v3821
      %v3823 = vpop.f32.mrf.mxu0
      %v3824 = vadd.f32 %v3495, %v3823
      %3825 = vmatmul.bf16.gmra.mxu0 %v1969
      %v3826 = vpop.f32.mrf.mxu0
      %v3827 = vadd.f32 %v3498, %v3826
      %v3828 = vpop.f32.mrf.mxu0
      %v3829 = vadd.f32 %v3500, %v3828
      %3830 = vmatmul.bf16.gmra.mxu0 %v1981
      %v3831 = vpop.f32.mrf.mxu0
      %v3832 = vadd.f32 %v3503, %v3831
      %v3833 = vpop.f32.mrf.mxu0
      %v3834 = vadd.f32 %v3505, %v3833
      %3835 = vmatmul.bf16.gmra.mxu0 %v1989
      %v3836 = vpop.f32.mrf.mxu0
      %v3837 = vadd.f32 %v3508, %v3836
      %v3838 = vpop.f32.mrf.mxu0
      %v3839 = vadd.f32 %v3510, %v3838
      %3840 = vmatmul.bf16.gmra.mxu0 %v2001
      %v3841 = vpop.f32.mrf.mxu0
      %v3842 = vadd.f32 %v3513, %v3841
      %v3843 = vpop.f32.mrf.mxu0
      %v3844 = vadd.f32 %v3515, %v3843
      %3845 = vmatmul.bf16.gmra.mxu0 %v2009
      %v3846 = vpop.f32.mrf.mxu0
      %v3847 = vadd.f32 %v3518, %v3846
      %v3848 = vpop.f32.mrf.mxu0
      %v3849 = vadd.f32 %v3520, %v3848
      %3850 = vmatmul.bf16.gmra.mxu0 %v2021
      %v3851 = vpop.f32.mrf.mxu0
      %v3852 = vadd.f32 %v3523, %v3851
      %v3853 = vpop.f32.mrf.mxu0
      %v3854 = vadd.f32 %v3525, %v3853
      %3855 = vmatmul.bf16.gmra.mxu0 %v2029
      %v3856 = vpop.f32.mrf.mxu0
      %v3857 = vadd.f32 %v3528, %v3856
      %v3858 = vpop.f32.mrf.mxu0
      %v3859 = vadd.f32 %v3530, %v3858
      %3860 = vmatmul.bf16.gmra.mxu0 %v2041
      %v3861 = vpop.f32.mrf.mxu0
      %v3862 = vadd.f32 %v3533, %v3861
      %v3863 = vpop.f32.mrf.mxu0
      %v3864 = vadd.f32 %v3535, %v3863
      %3865 = vmatmul.bf16.gmra.mxu0 %v2049
      %v3866 = vpop.f32.mrf.mxu0
      %v3867 = vadd.f32 %v3538, %v3866
      %v3868 = vpop.f32.mrf.mxu0
      %v3869 = vadd.f32 %v3540, %v3868
      %3870 = vmatmul.bf16.gmra.mxu0 %v2061
      %v3871 = vpop.f32.mrf.mxu0
      %v3872 = vadd.f32 %v3543, %v3871
      %v3873 = vpop.f32.mrf.mxu0
      %v3874 = vadd.f32 %v3545, %v3873
      %3875 = vmatmul.bf16.gmra.mxu0 %v2069
      %v3876 = vpop.f32.mrf.mxu0
      %v3877 = vadd.f32 %v3548, %v3876
      %v3878 = vpop.f32.mrf.mxu0
      %v3879 = vadd.f32 %v3550, %v3878
      %3880 = vmatmul.bf16.gmra.mxu0 %v2081
      %v3881 = vpop.f32.mrf.mxu0
      %v3882 = vadd.f32 %v3553, %v3881
      %v3883 = vpop.f32.mrf.mxu0
      %v3884 = vadd.f32 %v3555, %v3883
      %3885 = vmatmul.bf16.gmra.mxu0 %v2089
      %v3886 = vpop.f32.mrf.mxu0
      %v3887 = vadd.f32 %v3558, %v3886
      %v3888 = vpop.f32.mrf.mxu0
      %v3889 = vadd.f32 %v3560, %v3888
      %3890 = vmatmul.bf16.gmra.mxu0 %v2101
      %v3891 = vpop.f32.mrf.mxu0
      %v3892 = vadd.f32 %v3563, %v3891
      %v3893 = vpop.f32.mrf.mxu0
      %v3894 = vadd.f32 %v3565, %v3893
      %3895 = vmatmul.bf16.gmra.mxu0 %v2109
      %v3896 = vpop.f32.mrf.mxu0
      %v3897 = vadd.f32 %v3568, %v3896
      %v3898 = vpop.f32.mrf.mxu0
      %v3899 = vadd.f32 %v3570, %v3898
      %3900 = vmatmul.bf16.gmra.mxu0 %v2121
      %v3901 = vpop.f32.mrf.mxu0
      %v3902 = vadd.f32 %v3573, %v3901
      %v3903 = vpop.f32.mrf.mxu0
      %v3904 = vadd.f32 %v3575, %v3903
      %3905 = vmatmul.bf16.gmra.mxu0 %v2129
      %v3906 = vpop.f32.mrf.mxu0
      %v3907 = vadd.f32 %v3578, %v3906
      %v3908 = vpop.f32.mrf.mxu0
      %v3909 = vadd.f32 %v3580, %v3908
      %3910 = vmatmul.bf16.gmra.mxu0 %v2141
      %v3911 = vpop.f32.mrf.mxu0
      %v3912 = vadd.f32 %v3583, %v3911
      %v3913 = vpop.f32.mrf.mxu0
      %v3914 = vadd.f32 %v3585, %v3913
      %3915 = vmatmul.bf16.gmra.mxu0 %v2149
      %v3916 = vpop.f32.mrf.mxu0
      %v3917 = vadd.f32 %v3588, %v3916
      %v3918 = vpop.f32.mrf.mxu0
      %v3919 = vadd.f32 %v3590, %v3918
      %3920 = vmatmul.bf16.gmra.mxu0 %v2161
      %v3921 = vpop.f32.mrf.mxu0
      %v3922 = vadd.f32 %v3593, %v3921
      %v3923 = vpop.f32.mrf.mxu0
      %v3924 = vadd.f32 %v3595, %v3923
      %3925 = vmatmul.bf16.gmra.mxu0 %v2169
      %v3926 = vpop.f32.mrf.mxu0
      %v3927 = vadd.f32 %v3598, %v3926
      %v3928 = vpop.f32.mrf.mxu0
      %v3929 = vadd.f32 %v3600, %v3928
      %3930 = vmatmul.bf16.gmra.mxu0 %v2181
      %v3931 = vpop.f32.mrf.mxu0
      %v3932 = vadd.f32 %v3603, %v3931
      %v3933 = vpop.f32.mrf.mxu0
      %v3934 = vadd.f32 %v3605, %v3933
      %3935 = vmatmul.bf16.gmra.mxu0 %v2189
      %v3936 = vpop.f32.mrf.mxu0
      %v3937 = vadd.f32 %v3608, %v3936
      %v3938 = vpop.f32.mrf.mxu0
      %v3939 = vadd.f32 %v3610, %v3938
      %3940 = vmatmul.bf16.gmra.mxu0 %v2201
      %v3941 = vpop.f32.mrf.mxu0
      %v3942 = vadd.f32 %v3613, %v3941
      %v3943 = vpop.f32.mrf.mxu0
      %v3944 = vadd.f32 %v3615, %v3943
      %3945 = vmatmul.bf16.gmra.mxu0 %v2209
      %v3946 = vpop.f32.mrf.mxu0
      %v3947 = vadd.f32 %v3618, %v3946
      %v3948 = vpop.f32.mrf.mxu0
      %v3949 = vadd.f32 %v3620, %v3948
      %3950 = vmatmul.bf16.gmra.mxu0 %v2221
      %v3951 = vpop.f32.mrf.mxu0
      %v3952 = vadd.f32 %v3623, %v3951
      %v3953 = vpop.f32.mrf.mxu0
      %v3954 = vadd.f32 %v3625, %v3953
      %3955 = vmatmul.bf16.gmra.mxu0 %v2229
      %v3956 = vpop.f32.mrf.mxu0
      %v3957 = vadd.f32 %v3628, %v3956
      %v3958 = vpop.f32.mrf.mxu0
      %v3959 = vadd.f32 %v3630, %v3958
      %3960 = vmatmul.bf16.gmra.mxu0 %v2241
      %v3961 = vpop.f32.mrf.mxu0
      %v3962 = vadd.f32 %v3633, %v3961
      %v3963 = vpop.f32.mrf.mxu0
      %v3964 = vadd.f32 %v3635, %v3963
      %3965 = vmatmul.bf16.gmra.mxu0 %v2249
      %v3966 = vpop.f32.mrf.mxu0
      %v3967 = vadd.f32 %v3638, %v3966
      %v3968 = vpop.f32.mrf.mxu0
      %v3969 = vadd.f32 %v3640, %v3968
      %3970 = vmatmul.bf16.gmra.mxu0 %v2261
      %v3971 = vpop.f32.mrf.mxu0
      %v3972 = vadd.f32 %v3643, %v3971
      %v3973 = vpop.f32.mrf.mxu0
      %v3974 = vadd.f32 %v3645, %v3973
      %3975 = vmatmul.bf16.gmra.mxu0 %v2269
      %v3976 = vpop.f32.mrf.mxu0
      %v3977 = vadd.f32 %v3648, %v3976
      %v3978 = vpop.f32.mrf.mxu0
      %v3979 = vadd.f32 %v3650, %v3978
      %3980 = vmatmul.bf16.gmra.mxu0 %v2281
      %v3981 = vpop.f32.mrf.mxu0
      %v3982 = vadd.f32 %v3653, %v3981
      %v3983 = vpop.f32.mrf.mxu0
      %v3984 = vadd.f32 %v3655, %v3983
      %3985 = vmatmul.bf16.gmra.mxu0 %v2289
      %v3986 = vpop.f32.mrf.mxu0
      %v3987 = vadd.f32 %v3658, %v3986
      %v3988 = vpop.f32.mrf.mxu0
      %v3989 = vadd.f32 %v3660, %v3988
      %3990 = vmatmul.bf16.gmra.mxu0 %v2301
      %v3991 = vpop.f32.mrf.mxu0
      %v3992 = vadd.f32 %v3663, %v3991
      %v3993 = vpop.f32.mrf.mxu0
      %v3994 = vadd.f32 %v3665, %v3993
      %3995 = vmatmul.bf16.gmra.mxu0 %v2309
      %v3996 = vpop.f32.mrf.mxu0
      %v3997 = vadd.f32 %v3668, %v3996
      %v3998 = vpop.f32.mrf.mxu0
      %v3999 = vadd.f32 %v3670, %v3998
      %4000 = vmatmul.bf16.gmra.mxu0 %v2321
      %v4001 = vpop.f32.mrf.mxu0
      %v4002 = vadd.f32 %v3673, %v4001
      %v4003 = vpop.f32.mrf.mxu0
      %v4004 = vadd.f32 %v3675, %v4003
      %4005 = vmatmul.bf16.gmra.mxu0 %v2329
      %v4006 = vpop.f32.mrf.mxu0
      %v4007 = vadd.f32 %v3678, %v4006
      %v4008 = vpop.f32.mrf.mxu0
      %v4009 = vadd.f32 %v3680, %v4008
      %4010 = vmatmul.bf16.gmra.mxu0 %v2341
      %v4011 = vpop.f32.mrf.mxu0
      %v4012 = vadd.f32 %v3683, %v4011
      %v4013 = vpop.f32.mrf.mxu0
      %v4014 = vadd.f32 %v3685, %v4013
      %4015 = vmatmul.bf16.gmra.mxu0 %v2349
      %v4016 = vpop.f32.mrf.mxu0
      %v4017 = vadd.f32 %v3688, %v4016
      %v4018 = vpop.f32.mrf.mxu0
      %v4019 = vadd.f32 %v3690, %v4018
      %4020 = vmatmul.bf16.gmra.mxu0 %v2361
      %v4021 = vpop.f32.mrf.mxu0
      %v4022 = vadd.f32 %v3693, %v4021
      %v4023 = vpop.f32.mrf.mxu0
      %v4024 = vadd.f32 %v3695, %v4023
      %4025 = vmatmul.bf16.gmra.mxu0 %v2369
      %v4026 = vpop.f32.mrf.mxu0
      %v4027 = vadd.f32 %v3698, %v4026
      %v4028 = vpop.f32.mrf.mxu0
      %v4029 = vadd.f32 %v3700, %v4028
      %4030 = vmatmul.bf16.gmra.mxu0 %v2381
      %v4031 = vpop.f32.mrf.mxu0
      %v4032 = vadd.f32 %v3703, %v4031
      %v4033 = vpop.f32.mrf.mxu0
      %v4034 = vadd.f32 %v3705, %v4033
      %4035 = vmatmul.bf16.gmra.mxu0 %v2389
      %v4036 = vpop.f32.mrf.mxu0
      %v4037 = vadd.f32 %v3708, %v4036
      %v4038 = vpop.f32.mrf.mxu0
      %v4039 = vadd.f32 %v3710, %v4038
      %4040 = vmatmul.bf16.gmra.mxu0 %v2401
      %v4041 = vpop.f32.mrf.mxu0
      %v4042 = vadd.f32 %v3713, %v4041
      %v4043 = vpop.f32.mrf.mxu0
      %v4044 = vadd.f32 %v3715, %v4043
      %4045 = vmatmul.bf16.gmra.mxu0 %v2409
      %v4046 = vpop.f32.mrf.mxu0
      %v4047 = vadd.f32 %v3718, %v4046
      %v4048 = vpop.f32.mrf.mxu0
      %v4049 = vadd.f32 %v3720, %v4048
      %4050 = vmatmul.bf16.gmra.mxu0 %v2421
      %v4051 = vpop.f32.mrf.mxu0
      %v4052 = vadd.f32 %v3723, %v4051
      %v4053 = vpop.f32.mrf.mxu0
      %v4054 = vadd.f32 %v3725, %v4053
      %4055 = vmatmul.bf16.gmra.mxu0 %v2429
      %v4056 = vpop.f32.mrf.mxu0
      %v4057 = vadd.f32 %v3728, %v4056
      %v4058 = vpop.f32.mrf.mxu0
      %v4059 = vadd.f32 %v3730, %v4058
      %4060 = vmatmul.bf16.gmra.mxu0 %v2441
      %v4061 = vpop.f32.mrf.mxu0
      %v4062 = vadd.f32 %v3733, %v4061
      %v4063 = vpop.f32.mrf.mxu0
      %v4064 = vadd.f32 %v3735, %v4063
      %4065 = vmatmul.bf16.gmra.mxu0 %v2449
      %v4066 = vpop.f32.mrf.mxu0
      %v4067 = vadd.f32 %v3738, %v4066
      %v4068 = vpop.f32.mrf.mxu0
      %v4069 = vadd.f32 %v3740, %v4068
      %4070 = vmatmul.bf16.gmra.mxu0 %v2461
      %v4071 = vpop.f32.mrf.mxu0
      %v4072 = vadd.f32 %v3743, %v4071
      %v4073 = vpop.f32.mrf.mxu0
      %v4074 = vadd.f32 %v3745, %v4073
      %4075 = vmatmul.bf16.gmra.mxu0 %v2469
      %v4076 = vpop.f32.mrf.mxu0
      %v4077 = vadd.f32 %v3748, %v4076
      %v4078 = vpop.f32.mrf.mxu0
      %v4079 = vadd.f32 %v3750, %v4078
      %4080 = vdwg.mxu0
      %4081 = vmatpush.bf16.msra.mxu0 %v3302
      %4082 = vmatpush.bf16.msra.mxu0 %v3301
      %4083 = vmatpush.bf16.msra.mxu0 %v3300
      %4084 = vmatpush.bf16.msra.mxu0 %v3299
      %4085 = vmatpush.bf16.msra.mxu0 %v3298
      %4086 = vmatpush.bf16.msra.mxu0 %v3297
      %4087 = vmatpush.bf16.msra.mxu0 %v3296
      %4088 = vmatpush.bf16.msra.mxu0 %v3295
      %4089 = vmatmul.bf16.gmra.mxu0 %v2537
      %v4090 = vpop.f32.mrf.mxu0
      %v4091 = vadd.f32 %v3762, %v4090
      %v4092 = vpop.f32.mrf.mxu0
      %v4093 = vadd.f32 %v3764, %v4092
      %4094 = vmatmul.bf16.gmra.mxu0 %v2539
      %v4095 = vpop.f32.mrf.mxu0
      %v4096 = vadd.f32 %v3767, %v4095
      %v4097 = vpop.f32.mrf.mxu0
      %v4098 = vadd.f32 %v3769, %v4097
      %4099 = vmatmul.bf16.gmra.mxu0 %v2542
      %v4100 = vpop.f32.mrf.mxu0
      %v4101 = vadd.f32 %v3772, %v4100
      %v4102 = vpop.f32.mrf.mxu0
      %v4103 = vadd.f32 %v3774, %v4102
      %4104 = vmatmul.bf16.gmra.mxu0 %v2544
      %v4105 = vpop.f32.mrf.mxu0
      %v4106 = vadd.f32 %v3777, %v4105
      %v4107 = vpop.f32.mrf.mxu0
      %v4108 = vadd.f32 %v3779, %v4107
      %4109 = vmatmul.bf16.gmra.mxu0 %v2547
      %v4110 = vpop.f32.mrf.mxu0
      %v4111 = vadd.f32 %v3782, %v4110
      %v4112 = vpop.f32.mrf.mxu0
      %v4113 = vadd.f32 %v3784, %v4112
      %4114 = vmatmul.bf16.gmra.mxu0 %v2549
      %v4115 = vpop.f32.mrf.mxu0
      %v4116 = vadd.f32 %v3787, %v4115
      %v4117 = vpop.f32.mrf.mxu0
      %v4118 = vadd.f32 %v3789, %v4117
      %4119 = vmatmul.bf16.gmra.mxu0 %v2552
      %v4120 = vpop.f32.mrf.mxu0
      %v4121 = vadd.f32 %v3792, %v4120
      %v4122 = vpop.f32.mrf.mxu0
      %v4123 = vadd.f32 %v3794, %v4122
      %4124 = vmatmul.bf16.gmra.mxu0 %v2554
      %v4125 = vpop.f32.mrf.mxu0
      %v4126 = vadd.f32 %v3797, %v4125
      %v4127 = vpop.f32.mrf.mxu0
      %v4128 = vadd.f32 %v3799, %v4127
      %4129 = vmatmul.bf16.gmra.mxu0 %v2557
      %v4130 = vpop.f32.mrf.mxu0
      %v4131 = vadd.f32 %v3802, %v4130
      %v4132 = vpop.f32.mrf.mxu0
      %v4133 = vadd.f32 %v3804, %v4132
      %4134 = vmatmul.bf16.gmra.mxu0 %v2559
      %v4135 = vpop.f32.mrf.mxu0
      %v4136 = vadd.f32 %v3807, %v4135
      %v4137 = vpop.f32.mrf.mxu0
      %v4138 = vadd.f32 %v3809, %v4137
      %4139 = vmatmul.bf16.gmra.mxu0 %v2562
      %v4140 = vpop.f32.mrf.mxu0
      %v4141 = vadd.f32 %v3812, %v4140
      %v4142 = vpop.f32.mrf.mxu0
      %v4143 = vadd.f32 %v3814, %v4142
      %4144 = vmatmul.bf16.gmra.mxu0 %v2564
      %v4145 = vpop.f32.mrf.mxu0
      %v4146 = vadd.f32 %v3817, %v4145
      %v4147 = vpop.f32.mrf.mxu0
      %v4148 = vadd.f32 %v3819, %v4147
      %4149 = vmatmul.bf16.gmra.mxu0 %v2567
      %v4150 = vpop.f32.mrf.mxu0
      %v4151 = vadd.f32 %v3822, %v4150
      %v4152 = vpop.f32.mrf.mxu0
      %v4153 = vadd.f32 %v3824, %v4152
      %4154 = vmatmul.bf16.gmra.mxu0 %v2569
      %v4155 = vpop.f32.mrf.mxu0
      %v4156 = vadd.f32 %v3827, %v4155
      %v4157 = vpop.f32.mrf.mxu0
      %v4158 = vadd.f32 %v3829, %v4157
      %4159 = vmatmul.bf16.gmra.mxu0 %v2572
      %v4160 = vpop.f32.mrf.mxu0
      %v4161 = vadd.f32 %v3832, %v4160
      %v4162 = vpop.f32.mrf.mxu0
      %v4163 = vadd.f32 %v3834, %v4162
      %4164 = vmatmul.bf16.gmra.mxu0 %v2574
      %v4165 = vpop.f32.mrf.mxu0
      %v4166 = vadd.f32 %v3837, %v4165
      %v4167 = vpop.f32.mrf.mxu0
      %v4168 = vadd.f32 %v3839, %v4167
      %4169 = vmatmul.bf16.gmra.mxu0 %v2577
      %v4170 = vpop.f32.mrf.mxu0
      %v4171 = vadd.f32 %v3842, %v4170
      %v4172 = vpop.f32.mrf.mxu0
      %v4173 = vadd.f32 %v3844, %v4172
      %4174 = vmatmul.bf16.gmra.mxu0 %v2579
      %v4175 = vpop.f32.mrf.mxu0
      %v4176 = vadd.f32 %v3847, %v4175
      %v4177 = vpop.f32.mrf.mxu0
      %v4178 = vadd.f32 %v3849, %v4177
      %4179 = vmatmul.bf16.gmra.mxu0 %v2582
      %v4180 = vpop.f32.mrf.mxu0
      %v4181 = vadd.f32 %v3852, %v4180
      %v4182 = vpop.f32.mrf.mxu0
      %v4183 = vadd.f32 %v3854, %v4182
      %4184 = vmatmul.bf16.gmra.mxu0 %v2584
      %v4185 = vpop.f32.mrf.mxu0
      %v4186 = vadd.f32 %v3857, %v4185
      %v4187 = vpop.f32.mrf.mxu0
      %v4188 = vadd.f32 %v3859, %v4187
      %4189 = vmatmul.bf16.gmra.mxu0 %v2587
      %v4190 = vpop.f32.mrf.mxu0
      %v4191 = vadd.f32 %v3862, %v4190
      %v4192 = vpop.f32.mrf.mxu0
      %v4193 = vadd.f32 %v3864, %v4192
      %4194 = vmatmul.bf16.gmra.mxu0 %v2589
      %v4195 = vpop.f32.mrf.mxu0
      %v4196 = vadd.f32 %v3867, %v4195
      %v4197 = vpop.f32.mrf.mxu0
      %v4198 = vadd.f32 %v3869, %v4197
      %4199 = vmatmul.bf16.gmra.mxu0 %v2592
      %v4200 = vpop.f32.mrf.mxu0
      %v4201 = vadd.f32 %v3872, %v4200
      %v4202 = vpop.f32.mrf.mxu0
      %v4203 = vadd.f32 %v3874, %v4202
      %4204 = vmatmul.bf16.gmra.mxu0 %v2594
      %v4205 = vpop.f32.mrf.mxu0
      %v4206 = vadd.f32 %v3877, %v4205
      %v4207 = vpop.f32.mrf.mxu0
      %v4208 = vadd.f32 %v3879, %v4207
      %4209 = vmatmul.bf16.gmra.mxu0 %v2597
      %v4210 = vpop.f32.mrf.mxu0
      %v4211 = vadd.f32 %v3882, %v4210
      %v4212 = vpop.f32.mrf.mxu0
      %v4213 = vadd.f32 %v3884, %v4212
      %4214 = vmatmul.bf16.gmra.mxu0 %v2599
      %v4215 = vpop.f32.mrf.mxu0
      %v4216 = vadd.f32 %v3887, %v4215
      %v4217 = vpop.f32.mrf.mxu0
      %v4218 = vadd.f32 %v3889, %v4217
      %4219 = vmatmul.bf16.gmra.mxu0 %v2602
      %v4220 = vpop.f32.mrf.mxu0
      %v4221 = vadd.f32 %v3892, %v4220
      %v4222 = vpop.f32.mrf.mxu0
      %v4223 = vadd.f32 %v3894, %v4222
      %4224 = vmatmul.bf16.gmra.mxu0 %v2604
      %v4225 = vpop.f32.mrf.mxu0
      %v4226 = vadd.f32 %v3897, %v4225
      %v4227 = vpop.f32.mrf.mxu0
      %v4228 = vadd.f32 %v3899, %v4227
      %4229 = vmatmul.bf16.gmra.mxu0 %v2607
      %v4230 = vpop.f32.mrf.mxu0
      %v4231 = vadd.f32 %v3902, %v4230
      %v4232 = vpop.f32.mrf.mxu0
      %v4233 = vadd.f32 %v3904, %v4232
      %4234 = vmatmul.bf16.gmra.mxu0 %v2609
      %v4235 = vpop.f32.mrf.mxu0
      %v4236 = vadd.f32 %v3907, %v4235
      %v4237 = vpop.f32.mrf.mxu0
      %v4238 = vadd.f32 %v3909, %v4237
      %4239 = vmatmul.bf16.gmra.mxu0 %v2612
      %v4240 = vpop.f32.mrf.mxu0
      %v4241 = vadd.f32 %v3912, %v4240
      %v4242 = vpop.f32.mrf.mxu0
      %v4243 = vadd.f32 %v3914, %v4242
      %4244 = vmatmul.bf16.gmra.mxu0 %v2614
      %v4245 = vpop.f32.mrf.mxu0
      %v4246 = vadd.f32 %v3917, %v4245
      %v4247 = vpop.f32.mrf.mxu0
      %v4248 = vadd.f32 %v3919, %v4247
      %4249 = vmatmul.bf16.gmra.mxu0 %v2617
      %v4250 = vpop.f32.mrf.mxu0
      %v4251 = vadd.f32 %v3922, %v4250
      %v4252 = vpop.f32.mrf.mxu0
      %v4253 = vadd.f32 %v3924, %v4252
      %4254 = vmatmul.bf16.gmra.mxu0 %v2619
      %v4255 = vpop.f32.mrf.mxu0
      %v4256 = vadd.f32 %v3927, %v4255
      %v4257 = vpop.f32.mrf.mxu0
      %v4258 = vadd.f32 %v3929, %v4257
      %4259 = vmatmul.bf16.gmra.mxu0 %v2622
      %v4260 = vpop.f32.mrf.mxu0
      %v4261 = vadd.f32 %v3932, %v4260
      %v4262 = vpop.f32.mrf.mxu0
      %v4263 = vadd.f32 %v3934, %v4262
      %4264 = vmatmul.bf16.gmra.mxu0 %v2624
      %v4265 = vpop.f32.mrf.mxu0
      %v4266 = vadd.f32 %v3937, %v4265
      %v4267 = vpop.f32.mrf.mxu0
      %v4268 = vadd.f32 %v3939, %v4267
      %4269 = vmatmul.bf16.gmra.mxu0 %v2627
      %v4270 = vpop.f32.mrf.mxu0
      %v4271 = vadd.f32 %v3942, %v4270
      %v4272 = vpop.f32.mrf.mxu0
      %v4273 = vadd.f32 %v3944, %v4272
      %4274 = vmatmul.bf16.gmra.mxu0 %v2629
      %v4275 = vpop.f32.mrf.mxu0
      %v4276 = vadd.f32 %v3947, %v4275
      %v4277 = vpop.f32.mrf.mxu0
      %v4278 = vadd.f32 %v3949, %v4277
      %4279 = vmatmul.bf16.gmra.mxu0 %v2632
      %v4280 = vpop.f32.mrf.mxu0
      %v4281 = vadd.f32 %v3952, %v4280
      %v4282 = vpop.f32.mrf.mxu0
      %v4283 = vadd.f32 %v3954, %v4282
      %4284 = vmatmul.bf16.gmra.mxu0 %v2634
      %v4285 = vpop.f32.mrf.mxu0
      %v4286 = vadd.f32 %v3957, %v4285
      %v4287 = vpop.f32.mrf.mxu0
      %v4288 = vadd.f32 %v3959, %v4287
      %4289 = vmatmul.bf16.gmra.mxu0 %v2637
      %v4290 = vpop.f32.mrf.mxu0
      %v4291 = vadd.f32 %v3962, %v4290
      %v4292 = vpop.f32.mrf.mxu0
      %v4293 = vadd.f32 %v3964, %v4292
      %4294 = vmatmul.bf16.gmra.mxu0 %v2639
      %v4295 = vpop.f32.mrf.mxu0
      %v4296 = vadd.f32 %v3967, %v4295
      %v4297 = vpop.f32.mrf.mxu0
      %v4298 = vadd.f32 %v3969, %v4297
      %4299 = vmatmul.bf16.gmra.mxu0 %v2642
      %v4300 = vpop.f32.mrf.mxu0
      %v4301 = vadd.f32 %v3972, %v4300
      %v4302 = vpop.f32.mrf.mxu0
      %v4303 = vadd.f32 %v3974, %v4302
      %4304 = vmatmul.bf16.gmra.mxu0 %v2644
      %v4305 = vpop.f32.mrf.mxu0
      %v4306 = vadd.f32 %v3977, %v4305
      %v4307 = vpop.f32.mrf.mxu0
      %v4308 = vadd.f32 %v3979, %v4307
      %4309 = vmatmul.bf16.gmra.mxu0 %v2647
      %v4310 = vpop.f32.mrf.mxu0
      %v4311 = vadd.f32 %v3982, %v4310
      %v4312 = vpop.f32.mrf.mxu0
      %v4313 = vadd.f32 %v3984, %v4312
      %4314 = vmatmul.bf16.gmra.mxu0 %v2649
      %v4315 = vpop.f32.mrf.mxu0
      %v4316 = vadd.f32 %v3987, %v4315
      %v4317 = vpop.f32.mrf.mxu0
      %v4318 = vadd.f32 %v3989, %v4317
      %4319 = vmatmul.bf16.gmra.mxu0 %v2652
      %v4320 = vpop.f32.mrf.mxu0
      %v4321 = vadd.f32 %v3992, %v4320
      %v4322 = vpop.f32.mrf.mxu0
      %v4323 = vadd.f32 %v3994, %v4322
      %4324 = vmatmul.bf16.gmra.mxu0 %v2654
      %v4325 = vpop.f32.mrf.mxu0
      %v4326 = vadd.f32 %v3997, %v4325
      %v4327 = vpop.f32.mrf.mxu0
      %v4328 = vadd.f32 %v3999, %v4327
      %4329 = vmatmul.bf16.gmra.mxu0 %v2657
      %v4330 = vpop.f32.mrf.mxu0
      %v4331 = vadd.f32 %v4002, %v4330
      %v4332 = vpop.f32.mrf.mxu0
      %v4333 = vadd.f32 %v4004, %v4332
      %4334 = vmatmul.bf16.gmra.mxu0 %v2659
      %v4335 = vpop.f32.mrf.mxu0
      %v4336 = vadd.f32 %v4007, %v4335
      %v4337 = vpop.f32.mrf.mxu0
      %v4338 = vadd.f32 %v4009, %v4337
      %4339 = vmatmul.bf16.gmra.mxu0 %v2662
      %v4340 = vpop.f32.mrf.mxu0
      %v4341 = vadd.f32 %v4012, %v4340
      %v4342 = vpop.f32.mrf.mxu0
      %v4343 = vadd.f32 %v4014, %v4342
      %4344 = vmatmul.bf16.gmra.mxu0 %v2664
      %v4345 = vpop.f32.mrf.mxu0
      %v4346 = vadd.f32 %v4017, %v4345
      %v4347 = vpop.f32.mrf.mxu0
      %v4348 = vadd.f32 %v4019, %v4347
      %4349 = vmatmul.bf16.gmra.mxu0 %v2667
      %v4350 = vpop.f32.mrf.mxu0
      %v4351 = vadd.f32 %v4022, %v4350
      %v4352 = vpop.f32.mrf.mxu0
      %v4353 = vadd.f32 %v4024, %v4352
      %4354 = vmatmul.bf16.gmra.mxu0 %v2669
      %v4355 = vpop.f32.mrf.mxu0
      %v4356 = vadd.f32 %v4027, %v4355
      %v4357 = vpop.f32.mrf.mxu0
      %v4358 = vadd.f32 %v4029, %v4357
      %4359 = vmatmul.bf16.gmra.mxu0 %v2672
      %v4360 = vpop.f32.mrf.mxu0
      %v4361 = vadd.f32 %v4032, %v4360
      %v4362 = vpop.f32.mrf.mxu0
      %v4363 = vadd.f32 %v4034, %v4362
      %4364 = vmatmul.bf16.gmra.mxu0 %v2674
      %v4365 = vpop.f32.mrf.mxu0
      %v4366 = vadd.f32 %v4037, %v4365
      %v4367 = vpop.f32.mrf.mxu0
      %v4368 = vadd.f32 %v4039, %v4367
      %4369 = vmatmul.bf16.gmra.mxu0 %v2677
      %v4370 = vpop.f32.mrf.mxu0
      %v4371 = vadd.f32 %v4042, %v4370
      %v4372 = vpop.f32.mrf.mxu0
      %v4373 = vadd.f32 %v4044, %v4372
      %4374 = vmatmul.bf16.gmra.mxu0 %v2679
      %v4375 = vpop.f32.mrf.mxu0
      %v4376 = vadd.f32 %v4047, %v4375
      %v4377 = vpop.f32.mrf.mxu0
      %v4378 = vadd.f32 %v4049, %v4377
      %4379 = vmatmul.bf16.gmra.mxu0 %v2682
      %v4380 = vpop.f32.mrf.mxu0
      %v4381 = vadd.f32 %v4052, %v4380
      %v4382 = vpop.f32.mrf.mxu0
      %v4383 = vadd.f32 %v4054, %v4382
      %4384 = vmatmul.bf16.gmra.mxu0 %v2684
      %v4385 = vpop.f32.mrf.mxu0
      %v4386 = vadd.f32 %v4057, %v4385
      %v4387 = vpop.f32.mrf.mxu0
      %v4388 = vadd.f32 %v4059, %v4387
      %4389 = vmatmul.bf16.gmra.mxu0 %v2687
      %v4390 = vpop.f32.mrf.mxu0
      %v4391 = vadd.f32 %v4062, %v4390
      %v4392 = vpop.f32.mrf.mxu0
      %v4393 = vadd.f32 %v4064, %v4392
      %4394 = vmatmul.bf16.gmra.mxu0 %v2689
      %v4395 = vpop.f32.mrf.mxu0
      %v4396 = vadd.f32 %v4067, %v4395
      %v4397 = vpop.f32.mrf.mxu0
      %v4398 = vadd.f32 %v4069, %v4397
      %4399 = vmatmul.bf16.gmra.mxu0 %v2692
      %v4400 = vpop.f32.mrf.mxu0
      %v4401 = vadd.f32 %v4072, %v4400
      %v4402 = vpop.f32.mrf.mxu0
      %v4403 = vadd.f32 %v4074, %v4402
      %4404 = vmatmul.bf16.gmra.mxu0 %v2694
      %v4405 = vpop.f32.mrf.mxu0
      %v4406 = vadd.f32 %v4077, %v4405
      %v4407 = vpop.f32.mrf.mxu0
      %v4408 = vadd.f32 %v4079, %v4407
      %4409 = vdwg.mxu0
      %4410 = vmatpush.bf16.msra.mxu0 %v3310
      %4411 = vmatpush.bf16.msra.mxu0 %v3309
      %4412 = vmatpush.bf16.msra.mxu0 %v3308
      %4413 = vmatpush.bf16.msra.mxu0 %v3307
      %4414 = vmatpush.bf16.msra.mxu0 %v3306
      %4415 = vmatpush.bf16.msra.mxu0 %v3305
      %4416 = vmatpush.bf16.msra.mxu0 %v3304
      %4417 = vmatpush.bf16.msra.mxu0 %v3303
      %4418 = vmatmul.bf16.gmra.mxu0 %v1607
      %v4419 = vpop.f32.mrf.mxu0
      %v4420 = vadd.f32 %v4091, %v4419
      %v4421 = vpop.f32.mrf.mxu0
      %v4422 = vadd.f32 %v4093, %v4421
      %4423 = vmatmul.bf16.gmra.mxu0 %v1608
      %v4424 = vpop.f32.mrf.mxu0
      %v4425 = vadd.f32 %v4096, %v4424
      %v4426 = vpop.f32.mrf.mxu0
      %v4427 = vadd.f32 %v4098, %v4426
      %4428 = vmatmul.bf16.gmra.mxu0 %v1609
      %v4429 = vpop.f32.mrf.mxu0
      %v4430 = vadd.f32 %v4101, %v4429
      %v4431 = vpop.f32.mrf.mxu0
      %v4432 = vadd.f32 %v4103, %v4431
      %4433 = vmatmul.bf16.gmra.mxu0 %v1610
      %v4434 = vpop.f32.mrf.mxu0
      %v4435 = vadd.f32 %v4106, %v4434
      %v4436 = vpop.f32.mrf.mxu0
      %v4437 = vadd.f32 %v4108, %v4436
      %4438 = vmatmul.bf16.gmra.mxu0 %v1611
      %v4439 = vpop.f32.mrf.mxu0
      %v4440 = vadd.f32 %v4111, %v4439
      %v4441 = vpop.f32.mrf.mxu0
      %v4442 = vadd.f32 %v4113, %v4441
      %4443 = vmatmul.bf16.gmra.mxu0 %v1612
      %v4444 = vpop.f32.mrf.mxu0
      %v4445 = vadd.f32 %v4116, %v4444
      %v4446 = vpop.f32.mrf.mxu0
      %v4447 = vadd.f32 %v4118, %v4446
      %4448 = vmatmul.bf16.gmra.mxu0 %v1613
      %v4449 = vpop.f32.mrf.mxu0
      %v4450 = vadd.f32 %v4121, %v4449
      %v4451 = vpop.f32.mrf.mxu0
      %v4452 = vadd.f32 %v4123, %v4451
      %4453 = vmatmul.bf16.gmra.mxu0 %v1614
      %v4454 = vpop.f32.mrf.mxu0
      %v4455 = vadd.f32 %v4126, %v4454
      %v4456 = vpop.f32.mrf.mxu0
      %v4457 = vadd.f32 %v4128, %v4456
      %4458 = vmatmul.bf16.gmra.mxu0 %v1615
      %v4459 = vpop.f32.mrf.mxu0
      %v4460 = vadd.f32 %v4131, %v4459
      %v4461 = vpop.f32.mrf.mxu0
      %v4462 = vadd.f32 %v4133, %v4461
      %4463 = vmatmul.bf16.gmra.mxu0 %v1616
      %v4464 = vpop.f32.mrf.mxu0
      %v4465 = vadd.f32 %v4136, %v4464
      %v4466 = vpop.f32.mrf.mxu0
      %v4467 = vadd.f32 %v4138, %v4466
      %4468 = vmatmul.bf16.gmra.mxu0 %v1617
      %v4469 = vpop.f32.mrf.mxu0
      %v4470 = vadd.f32 %v4141, %v4469
      %v4471 = vpop.f32.mrf.mxu0
      %v4472 = vadd.f32 %v4143, %v4471
      %4473 = vmatmul.bf16.gmra.mxu0 %v1618
      %v4474 = vpop.f32.mrf.mxu0
      %v4475 = vadd.f32 %v4146, %v4474
      %v4476 = vpop.f32.mrf.mxu0
      %v4477 = vadd.f32 %v4148, %v4476
      %4478 = vmatmul.bf16.gmra.mxu0 %v1619
      %v4479 = vpop.f32.mrf.mxu0
      %v4480 = vadd.f32 %v4151, %v4479
      %v4481 = vpop.f32.mrf.mxu0
      %v4482 = vadd.f32 %v4153, %v4481
      %4483 = vmatmul.bf16.gmra.mxu0 %v1620
      %v4484 = vpop.f32.mrf.mxu0
      %v4485 = vadd.f32 %v4156, %v4484
      %v4486 = vpop.f32.mrf.mxu0
      %v4487 = vadd.f32 %v4158, %v4486
      %4488 = vmatmul.bf16.gmra.mxu0 %v1621
      %v4489 = vpop.f32.mrf.mxu0
      %v4490 = vadd.f32 %v4161, %v4489
      %v4491 = vpop.f32.mrf.mxu0
      %v4492 = vadd.f32 %v4163, %v4491
      %4493 = vmatmul.bf16.gmra.mxu0 %v1622
      %v4494 = vpop.f32.mrf.mxu0
      %v4495 = vadd.f32 %v4166, %v4494
      %v4496 = vpop.f32.mrf.mxu0
      %v4497 = vadd.f32 %v4168, %v4496
      %4498 = vmatmul.bf16.gmra.mxu0 %v1623
      %v4499 = vpop.f32.mrf.mxu0
      %v4500 = vadd.f32 %v4171, %v4499
      %v4501 = vpop.f32.mrf.mxu0
      %v4502 = vadd.f32 %v4173, %v4501
      %4503 = vmatmul.bf16.gmra.mxu0 %v1624
      %v4504 = vpop.f32.mrf.mxu0
      %v4505 = vadd.f32 %v4176, %v4504
      %v4506 = vpop.f32.mrf.mxu0
      %v4507 = vadd.f32 %v4178, %v4506
      %4508 = vmatmul.bf16.gmra.mxu0 %v1625
      %v4509 = vpop.f32.mrf.mxu0
      %v4510 = vadd.f32 %v4181, %v4509
      %v4511 = vpop.f32.mrf.mxu0
      %v4512 = vadd.f32 %v4183, %v4511
      %4513 = vmatmul.bf16.gmra.mxu0 %v1626
      %v4514 = vpop.f32.mrf.mxu0
      %v4515 = vadd.f32 %v4186, %v4514
      %v4516 = vpop.f32.mrf.mxu0
      %v4517 = vadd.f32 %v4188, %v4516
      %4518 = vmatmul.bf16.gmra.mxu0 %v1627
      %v4519 = vpop.f32.mrf.mxu0
      %v4520 = vadd.f32 %v4191, %v4519
      %v4521 = vpop.f32.mrf.mxu0
      %v4522 = vadd.f32 %v4193, %v4521
      %4523 = vmatmul.bf16.gmra.mxu0 %v1628
      %v4524 = vpop.f32.mrf.mxu0
      %v4525 = vadd.f32 %v4196, %v4524
      %v4526 = vpop.f32.mrf.mxu0
      %v4527 = vadd.f32 %v4198, %v4526
      %4528 = vmatmul.bf16.gmra.mxu0 %v1629
      %v4529 = vpop.f32.mrf.mxu0
      %v4530 = vadd.f32 %v4201, %v4529
      %v4531 = vpop.f32.mrf.mxu0
      %v4532 = vadd.f32 %v4203, %v4531
      %4533 = vmatmul.bf16.gmra.mxu0 %v1630
      %v4534 = vpop.f32.mrf.mxu0
      %v4535 = vadd.f32 %v4206, %v4534
      %v4536 = vpop.f32.mrf.mxu0
      %v4537 = vadd.f32 %v4208, %v4536
      %4538 = vmatmul.bf16.gmra.mxu0 %v1631
      %v4539 = vpop.f32.mrf.mxu0
      %v4540 = vadd.f32 %v4211, %v4539
      %v4541 = vpop.f32.mrf.mxu0
      %v4542 = vadd.f32 %v4213, %v4541
      %4543 = vmatmul.bf16.gmra.mxu0 %v1632
      %v4544 = vpop.f32.mrf.mxu0
      %v4545 = vadd.f32 %v4216, %v4544
      %v4546 = vpop.f32.mrf.mxu0
      %v4547 = vadd.f32 %v4218, %v4546
      %4548 = vmatmul.bf16.gmra.mxu0 %v1633
      %v4549 = vpop.f32.mrf.mxu0
      %v4550 = vadd.f32 %v4221, %v4549
      %v4551 = vpop.f32.mrf.mxu0
      %v4552 = vadd.f32 %v4223, %v4551
      %4553 = vmatmul.bf16.gmra.mxu0 %v1634
      %v4554 = vpop.f32.mrf.mxu0
      %v4555 = vadd.f32 %v4226, %v4554
      %v4556 = vpop.f32.mrf.mxu0
      %v4557 = vadd.f32 %v4228, %v4556
      %4558 = vmatmul.bf16.gmra.mxu0 %v1635
      %v4559 = vpop.f32.mrf.mxu0
      %v4560 = vadd.f32 %v4231, %v4559
      %v4561 = vpop.f32.mrf.mxu0
      %v4562 = vadd.f32 %v4233, %v4561
      %4563 = vmatmul.bf16.gmra.mxu0 %v1636
      %v4564 = vpop.f32.mrf.mxu0
      %v4565 = vadd.f32 %v4236, %v4564
      %v4566 = vpop.f32.mrf.mxu0
      %v4567 = vadd.f32 %v4238, %v4566
      %4568 = vmatmul.bf16.gmra.mxu0 %v1637
      %v4569 = vpop.f32.mrf.mxu0
      %v4570 = vadd.f32 %v4241, %v4569
      %v4571 = vpop.f32.mrf.mxu0
      %v4572 = vadd.f32 %v4243, %v4571
      %4573 = vmatmul.bf16.gmra.mxu0 %v1638
      %v4574 = vpop.f32.mrf.mxu0
      %v4575 = vadd.f32 %v4246, %v4574
      %v4576 = vpop.f32.mrf.mxu0
      %v4577 = vadd.f32 %v4248, %v4576
      %4578 = vmatmul.bf16.gmra.mxu0 %v1639
      %v4579 = vpop.f32.mrf.mxu0
      %v4580 = vadd.f32 %v4251, %v4579
      %v4581 = vpop.f32.mrf.mxu0
      %v4582 = vadd.f32 %v4253, %v4581
      %4583 = vmatmul.bf16.gmra.mxu0 %v1640
      %v4584 = vpop.f32.mrf.mxu0
      %v4585 = vadd.f32 %v4256, %v4584
      %v4586 = vpop.f32.mrf.mxu0
      %v4587 = vadd.f32 %v4258, %v4586
      %4588 = vmatmul.bf16.gmra.mxu0 %v1641
      %v4589 = vpop.f32.mrf.mxu0
      %v4590 = vadd.f32 %v4261, %v4589
      %v4591 = vpop.f32.mrf.mxu0
      %v4592 = vadd.f32 %v4263, %v4591
      %4593 = vmatmul.bf16.gmra.mxu0 %v1642
      %v4594 = vpop.f32.mrf.mxu0
      %v4595 = vadd.f32 %v4266, %v4594
      %v4596 = vpop.f32.mrf.mxu0
      %v4597 = vadd.f32 %v4268, %v4596
      %4598 = vmatmul.bf16.gmra.mxu0 %v1643
      %v4599 = vpop.f32.mrf.mxu0
      %v4600 = vadd.f32 %v4271, %v4599
      %v4601 = vpop.f32.mrf.mxu0
      %v4602 = vadd.f32 %v4273, %v4601
      %4603 = vmatmul.bf16.gmra.mxu0 %v1644
      %v4604 = vpop.f32.mrf.mxu0
      %v4605 = vadd.f32 %v4276, %v4604
      %v4606 = vpop.f32.mrf.mxu0
      %v4607 = vadd.f32 %v4278, %v4606
      %4608 = vmatmul.bf16.gmra.mxu0 %v1645
      %v4609 = vpop.f32.mrf.mxu0
      %v4610 = vadd.f32 %v4281, %v4609
      %v4611 = vpop.f32.mrf.mxu0
      %v4612 = vadd.f32 %v4283, %v4611
      %4613 = vmatmul.bf16.gmra.mxu0 %v1646
      %v4614 = vpop.f32.mrf.mxu0
      %v4615 = vadd.f32 %v4286, %v4614
      %v4616 = vpop.f32.mrf.mxu0
      %v4617 = vadd.f32 %v4288, %v4616
      %4618 = vmatmul.bf16.gmra.mxu0 %v1647
      %v4619 = vpop.f32.mrf.mxu0
      %v4620 = vadd.f32 %v4291, %v4619
      %v4621 = vpop.f32.mrf.mxu0
      %v4622 = vadd.f32 %v4293, %v4621
      %4623 = vmatmul.bf16.gmra.mxu0 %v1648
      %v4624 = vpop.f32.mrf.mxu0
      %v4625 = vadd.f32 %v4296, %v4624
      %v4626 = vpop.f32.mrf.mxu0
      %v4627 = vadd.f32 %v4298, %v4626
      %4628 = vmatmul.bf16.gmra.mxu0 %v1649
      %v4629 = vpop.f32.mrf.mxu0
      %v4630 = vadd.f32 %v4301, %v4629
      %v4631 = vpop.f32.mrf.mxu0
      %v4632 = vadd.f32 %v4303, %v4631
      %4633 = vmatmul.bf16.gmra.mxu0 %v1650
      %v4634 = vpop.f32.mrf.mxu0
      %v4635 = vadd.f32 %v4306, %v4634
      %v4636 = vpop.f32.mrf.mxu0
      %v4637 = vadd.f32 %v4308, %v4636
      %4638 = vmatmul.bf16.gmra.mxu0 %v1651
      %v4639 = vpop.f32.mrf.mxu0
      %v4640 = vadd.f32 %v4311, %v4639
      %v4641 = vpop.f32.mrf.mxu0
      %v4642 = vadd.f32 %v4313, %v4641
      %4643 = vmatmul.bf16.gmra.mxu0 %v1652
      %v4644 = vpop.f32.mrf.mxu0
      %v4645 = vadd.f32 %v4316, %v4644
      %v4646 = vpop.f32.mrf.mxu0
      %v4647 = vadd.f32 %v4318, %v4646
      %4648 = vmatmul.bf16.gmra.mxu0 %v1653
      %v4649 = vpop.f32.mrf.mxu0
      %v4650 = vadd.f32 %v4321, %v4649
      %v4651 = vpop.f32.mrf.mxu0
      %v4652 = vadd.f32 %v4323, %v4651
      %4653 = vmatmul.bf16.gmra.mxu0 %v1654
      %v4654 = vpop.f32.mrf.mxu0
      %v4655 = vadd.f32 %v4326, %v4654
      %v4656 = vpop.f32.mrf.mxu0
      %v4657 = vadd.f32 %v4328, %v4656
      %4658 = vmatmul.bf16.gmra.mxu0 %v1655
      %v4659 = vpop.f32.mrf.mxu0
      %v4660 = vadd.f32 %v4331, %v4659
      %v4661 = vpop.f32.mrf.mxu0
      %v4662 = vadd.f32 %v4333, %v4661
      %4663 = vmatmul.bf16.gmra.mxu0 %v1656
      %v4664 = vpop.f32.mrf.mxu0
      %v4665 = vadd.f32 %v4336, %v4664
      %v4666 = vpop.f32.mrf.mxu0
      %v4667 = vadd.f32 %v4338, %v4666
      %4668 = vmatmul.bf16.gmra.mxu0 %v1657
      %v4669 = vpop.f32.mrf.mxu0
      %v4670 = vadd.f32 %v4341, %v4669
      %v4671 = vpop.f32.mrf.mxu0
      %v4672 = vadd.f32 %v4343, %v4671
      %4673 = vmatmul.bf16.gmra.mxu0 %v1658
      %v4674 = vpop.f32.mrf.mxu0
      %v4675 = vadd.f32 %v4346, %v4674
      %v4676 = vpop.f32.mrf.mxu0
      %v4677 = vadd.f32 %v4348, %v4676
      %4678 = vmatmul.bf16.gmra.mxu0 %v1659
      %v4679 = vpop.f32.mrf.mxu0
      %v4680 = vadd.f32 %v4351, %v4679
      %v4681 = vpop.f32.mrf.mxu0
      %v4682 = vadd.f32 %v4353, %v4681
      %4683 = vmatmul.bf16.gmra.mxu0 %v1660
      %v4684 = vpop.f32.mrf.mxu0
      %v4685 = vadd.f32 %v4356, %v4684
      %v4686 = vpop.f32.mrf.mxu0
      %v4687 = vadd.f32 %v4358, %v4686
      %4688 = vmatmul.bf16.gmra.mxu0 %v1661
      %v4689 = vpop.f32.mrf.mxu0
      %v4690 = vadd.f32 %v4361, %v4689
      %v4691 = vpop.f32.mrf.mxu0
      %v4692 = vadd.f32 %v4363, %v4691
      %4693 = vmatmul.bf16.gmra.mxu0 %v1662
      %v4694 = vpop.f32.mrf.mxu0
      %v4695 = vadd.f32 %v4366, %v4694
      %v4696 = vpop.f32.mrf.mxu0
      %v4697 = vadd.f32 %v4368, %v4696
      %4698 = vmatmul.bf16.gmra.mxu0 %v1663
      %v4699 = vpop.f32.mrf.mxu0
      %v4700 = vadd.f32 %v4371, %v4699
      %v4701 = vpop.f32.mrf.mxu0
      %v4702 = vadd.f32 %v4373, %v4701
      %4703 = vmatmul.bf16.gmra.mxu0 %v1664
      %v4704 = vpop.f32.mrf.mxu0
      %v4705 = vadd.f32 %v4376, %v4704
      %v4706 = vpop.f32.mrf.mxu0
      %v4707 = vadd.f32 %v4378, %v4706
      %4708 = vmatmul.bf16.gmra.mxu0 %v1665
      %v4709 = vpop.f32.mrf.mxu0
      %v4710 = vadd.f32 %v4381, %v4709
      %v4711 = vpop.f32.mrf.mxu0
      %v4712 = vadd.f32 %v4383, %v4711
      %4713 = vmatmul.bf16.gmra.mxu0 %v1666
      %v4714 = vpop.f32.mrf.mxu0
      %v4715 = vadd.f32 %v4386, %v4714
      %v4716 = vpop.f32.mrf.mxu0
      %v4717 = vadd.f32 %v4388, %v4716
      %4718 = vmatmul.bf16.gmra.mxu0 %v1667
      %v4719 = vpop.f32.mrf.mxu0
      %v4720 = vadd.f32 %v4391, %v4719
      %v4721 = vpop.f32.mrf.mxu0
      %v4722 = vadd.f32 %v4393, %v4721
      %4723 = vmatmul.bf16.gmra.mxu0 %v1668
      %v4724 = vpop.f32.mrf.mxu0
      %v4725 = vadd.f32 %v4396, %v4724
      %v4726 = vpop.f32.mrf.mxu0
      %v4727 = vadd.f32 %v4398, %v4726
      %4728 = vmatmul.bf16.gmra.mxu0 %v2767
      %v4729 = vpop.f32.mrf.mxu0
      %v4730 = vadd.f32 %v4401, %v4729
      %v4731 = vpop.f32.mrf.mxu0
      %v4732 = vadd.f32 %v4403, %v4731
      %4733 = vmatmul.bf16.gmra.mxu0 %v2768
      %v4734 = vpop.f32.mrf.mxu0
      %v4735 = vadd.f32 %v4406, %v4734
      %v4736 = vpop.f32.mrf.mxu0
      %v4737 = vadd.f32 %v4408, %v4736
      %4738 = vdwg.mxu0
      %4739 = vmatpush.bf16.msra.mxu0 %v3318
      %4740 = vmatpush.bf16.msra.mxu0 %v3317
      %4741 = vmatpush.bf16.msra.mxu0 %v3316
      %4742 = vmatpush.bf16.msra.mxu0 %v3315
      %4743 = vmatpush.bf16.msra.mxu0 %v3314
      %4744 = vmatpush.bf16.msra.mxu0 %v3313
      %4745 = vmatpush.bf16.msra.mxu0 %v3312
      %4746 = vmatpush.bf16.msra.mxu0 %v3311
      %4747 = vmatmul.bf16.gmra.mxu0 %v1861
      %v4748 = vpop.f32.mrf.mxu0
      %v4749 = vadd.f32 %v4420, %v4748
      %v4750 = vpop.f32.mrf.mxu0
      %v4751 = vadd.f32 %v4422, %v4750
      %4752 = vmatmul.bf16.gmra.mxu0 %v1869
      %v4753 = vpop.f32.mrf.mxu0
      %v4754 = vadd.f32 %v4425, %v4753
      %v4755 = vpop.f32.mrf.mxu0
      %v4756 = vadd.f32 %v4427, %v4755
      %4757 = vmatmul.bf16.gmra.mxu0 %v1881
      %v4758 = vpop.f32.mrf.mxu0
      %v4759 = vadd.f32 %v4430, %v4758
      %v4760 = vpop.f32.mrf.mxu0
      %v4761 = vadd.f32 %v4432, %v4760
      %4762 = vmatmul.bf16.gmra.mxu0 %v1889
      %v4763 = vpop.f32.mrf.mxu0
      %v4764 = vadd.f32 %v4435, %v4763
      %v4765 = vpop.f32.mrf.mxu0
      %v4766 = vadd.f32 %v4437, %v4765
      %4767 = vmatmul.bf16.gmra.mxu0 %v1901
      %v4768 = vpop.f32.mrf.mxu0
      %v4769 = vadd.f32 %v4440, %v4768
      %v4770 = vpop.f32.mrf.mxu0
      %v4771 = vadd.f32 %v4442, %v4770
      %4772 = vmatmul.bf16.gmra.mxu0 %v1909
      %v4773 = vpop.f32.mrf.mxu0
      %v4774 = vadd.f32 %v4445, %v4773
      %v4775 = vpop.f32.mrf.mxu0
      %v4776 = vadd.f32 %v4447, %v4775
      %4777 = vmatmul.bf16.gmra.mxu0 %v1921
      %v4778 = vpop.f32.mrf.mxu0
      %v4779 = vadd.f32 %v4450, %v4778
      %v4780 = vpop.f32.mrf.mxu0
      %v4781 = vadd.f32 %v4452, %v4780
      %4782 = vmatmul.bf16.gmra.mxu0 %v1929
      %v4783 = vpop.f32.mrf.mxu0
      %v4784 = vadd.f32 %v4455, %v4783
      %v4785 = vpop.f32.mrf.mxu0
      %v4786 = vadd.f32 %v4457, %v4785
      %4787 = vmatmul.bf16.gmra.mxu0 %v1941
      %v4788 = vpop.f32.mrf.mxu0
      %v4789 = vadd.f32 %v4460, %v4788
      %v4790 = vpop.f32.mrf.mxu0
      %v4791 = vadd.f32 %v4462, %v4790
      %4792 = vmatmul.bf16.gmra.mxu0 %v1949
      %v4793 = vpop.f32.mrf.mxu0
      %v4794 = vadd.f32 %v4465, %v4793
      %v4795 = vpop.f32.mrf.mxu0
      %v4796 = vadd.f32 %v4467, %v4795
      %4797 = vmatmul.bf16.gmra.mxu0 %v1961
      %v4798 = vpop.f32.mrf.mxu0
      %v4799 = vadd.f32 %v4470, %v4798
      %v4800 = vpop.f32.mrf.mxu0
      %v4801 = vadd.f32 %v4472, %v4800
      %4802 = vmatmul.bf16.gmra.mxu0 %v1969
      %v4803 = vpop.f32.mrf.mxu0
      %v4804 = vadd.f32 %v4475, %v4803
      %v4805 = vpop.f32.mrf.mxu0
      %v4806 = vadd.f32 %v4477, %v4805
      %4807 = vmatmul.bf16.gmra.mxu0 %v1981
      %v4808 = vpop.f32.mrf.mxu0
      %v4809 = vadd.f32 %v4480, %v4808
      %v4810 = vpop.f32.mrf.mxu0
      %v4811 = vadd.f32 %v4482, %v4810
      %4812 = vmatmul.bf16.gmra.mxu0 %v1989
      %v4813 = vpop.f32.mrf.mxu0
      %v4814 = vadd.f32 %v4485, %v4813
      %v4815 = vpop.f32.mrf.mxu0
      %v4816 = vadd.f32 %v4487, %v4815
      %4817 = vmatmul.bf16.gmra.mxu0 %v2001
      %v4818 = vpop.f32.mrf.mxu0
      %v4819 = vadd.f32 %v4490, %v4818
      %v4820 = vpop.f32.mrf.mxu0
      %v4821 = vadd.f32 %v4492, %v4820
      %4822 = vmatmul.bf16.gmra.mxu0 %v2009
      %v4823 = vpop.f32.mrf.mxu0
      %v4824 = vadd.f32 %v4495, %v4823
      %v4825 = vpop.f32.mrf.mxu0
      %v4826 = vadd.f32 %v4497, %v4825
      %4827 = vmatmul.bf16.gmra.mxu0 %v2021
      %v4828 = vpop.f32.mrf.mxu0
      %v4829 = vadd.f32 %v4500, %v4828
      %v4830 = vpop.f32.mrf.mxu0
      %v4831 = vadd.f32 %v4502, %v4830
      %4832 = vmatmul.bf16.gmra.mxu0 %v2029
      %v4833 = vpop.f32.mrf.mxu0
      %v4834 = vadd.f32 %v4505, %v4833
      %v4835 = vpop.f32.mrf.mxu0
      %v4836 = vadd.f32 %v4507, %v4835
      %4837 = vmatmul.bf16.gmra.mxu0 %v2041
      %v4838 = vpop.f32.mrf.mxu0
      %v4839 = vadd.f32 %v4510, %v4838
      %v4840 = vpop.f32.mrf.mxu0
      %v4841 = vadd.f32 %v4512, %v4840
      %4842 = vmatmul.bf16.gmra.mxu0 %v2049
      %v4843 = vpop.f32.mrf.mxu0
      %v4844 = vadd.f32 %v4515, %v4843
      %v4845 = vpop.f32.mrf.mxu0
      %v4846 = vadd.f32 %v4517, %v4845
      %4847 = vmatmul.bf16.gmra.mxu0 %v2061
      %v4848 = vpop.f32.mrf.mxu0
      %v4849 = vadd.f32 %v4520, %v4848
      %v4850 = vpop.f32.mrf.mxu0
      %v4851 = vadd.f32 %v4522, %v4850
      %4852 = vmatmul.bf16.gmra.mxu0 %v2069
      %v4853 = vpop.f32.mrf.mxu0
      %v4854 = vadd.f32 %v4525, %v4853
      %v4855 = vpop.f32.mrf.mxu0
      %v4856 = vadd.f32 %v4527, %v4855
      %4857 = vmatmul.bf16.gmra.mxu0 %v2081
      %v4858 = vpop.f32.mrf.mxu0
      %v4859 = vadd.f32 %v4530, %v4858
      %v4860 = vpop.f32.mrf.mxu0
      %v4861 = vadd.f32 %v4532, %v4860
      %4862 = vmatmul.bf16.gmra.mxu0 %v2089
      %v4863 = vpop.f32.mrf.mxu0
      %v4864 = vadd.f32 %v4535, %v4863
      %v4865 = vpop.f32.mrf.mxu0
      %v4866 = vadd.f32 %v4537, %v4865
      %4867 = vmatmul.bf16.gmra.mxu0 %v2101
      %v4868 = vpop.f32.mrf.mxu0
      %v4869 = vadd.f32 %v4540, %v4868
      %v4870 = vpop.f32.mrf.mxu0
      %v4871 = vadd.f32 %v4542, %v4870
      %4872 = vmatmul.bf16.gmra.mxu0 %v2109
      %v4873 = vpop.f32.mrf.mxu0
      %v4874 = vadd.f32 %v4545, %v4873
      %v4875 = vpop.f32.mrf.mxu0
      %v4876 = vadd.f32 %v4547, %v4875
      %4877 = vmatmul.bf16.gmra.mxu0 %v2121
      %v4878 = vpop.f32.mrf.mxu0
      %v4879 = vadd.f32 %v4550, %v4878
      %v4880 = vpop.f32.mrf.mxu0
      %v4881 = vadd.f32 %v4552, %v4880
      %4882 = vmatmul.bf16.gmra.mxu0 %v2129
      %v4883 = vpop.f32.mrf.mxu0
      %v4884 = vadd.f32 %v4555, %v4883
      %v4885 = vpop.f32.mrf.mxu0
      %v4886 = vadd.f32 %v4557, %v4885
      %4887 = vmatmul.bf16.gmra.mxu0 %v2141
      %v4888 = vpop.f32.mrf.mxu0
      %v4889 = vadd.f32 %v4560, %v4888
      %v4890 = vpop.f32.mrf.mxu0
      %v4891 = vadd.f32 %v4562, %v4890
      %4892 = vmatmul.bf16.gmra.mxu0 %v2149
      %v4893 = vpop.f32.mrf.mxu0
      %v4894 = vadd.f32 %v4565, %v4893
      %v4895 = vpop.f32.mrf.mxu0
      %v4896 = vadd.f32 %v4567, %v4895
      %4897 = vmatmul.bf16.gmra.mxu0 %v2161
      %v4898 = vpop.f32.mrf.mxu0
      %v4899 = vadd.f32 %v4570, %v4898
      %v4900 = vpop.f32.mrf.mxu0
      %v4901 = vadd.f32 %v4572, %v4900
      %4902 = vmatmul.bf16.gmra.mxu0 %v2169
      %v4903 = vpop.f32.mrf.mxu0
      %v4904 = vadd.f32 %v4575, %v4903
      %v4905 = vpop.f32.mrf.mxu0
      %v4906 = vadd.f32 %v4577, %v4905
      %4907 = vmatmul.bf16.gmra.mxu0 %v2181
      %v4908 = vpop.f32.mrf.mxu0
      %v4909 = vadd.f32 %v4580, %v4908
      %v4910 = vpop.f32.mrf.mxu0
      %v4911 = vadd.f32 %v4582, %v4910
      %4912 = vmatmul.bf16.gmra.mxu0 %v2189
      %v4913 = vpop.f32.mrf.mxu0
      %v4914 = vadd.f32 %v4585, %v4913
      %v4915 = vpop.f32.mrf.mxu0
      %v4916 = vadd.f32 %v4587, %v4915
      %4917 = vmatmul.bf16.gmra.mxu0 %v2201
      %v4918 = vpop.f32.mrf.mxu0
      %v4919 = vadd.f32 %v4590, %v4918
      %v4920 = vpop.f32.mrf.mxu0
      %v4921 = vadd.f32 %v4592, %v4920
      %4922 = vmatmul.bf16.gmra.mxu0 %v2209
      %v4923 = vpop.f32.mrf.mxu0
      %v4924 = vadd.f32 %v4595, %v4923
      %v4925 = vpop.f32.mrf.mxu0
      %v4926 = vadd.f32 %v4597, %v4925
      %4927 = vmatmul.bf16.gmra.mxu0 %v2221
      %v4928 = vpop.f32.mrf.mxu0
      %v4929 = vadd.f32 %v4600, %v4928
      %v4930 = vpop.f32.mrf.mxu0
      %v4931 = vadd.f32 %v4602, %v4930
      %4932 = vmatmul.bf16.gmra.mxu0 %v2229
      %v4933 = vpop.f32.mrf.mxu0
      %v4934 = vadd.f32 %v4605, %v4933
      %v4935 = vpop.f32.mrf.mxu0
      %v4936 = vadd.f32 %v4607, %v4935
      %4937 = vmatmul.bf16.gmra.mxu0 %v2241
      %v4938 = vpop.f32.mrf.mxu0
      %v4939 = vadd.f32 %v4610, %v4938
      %v4940 = vpop.f32.mrf.mxu0
      %v4941 = vadd.f32 %v4612, %v4940
      %4942 = vmatmul.bf16.gmra.mxu0 %v2249
      %v4943 = vpop.f32.mrf.mxu0
      %v4944 = vadd.f32 %v4615, %v4943
      %v4945 = vpop.f32.mrf.mxu0
      %v4946 = vadd.f32 %v4617, %v4945
      %4947 = vmatmul.bf16.gmra.mxu0 %v2261
      %v4948 = vpop.f32.mrf.mxu0
      %v4949 = vadd.f32 %v4620, %v4948
      %v4950 = vpop.f32.mrf.mxu0
      %v4951 = vadd.f32 %v4622, %v4950
      %4952 = vmatmul.bf16.gmra.mxu0 %v2269
      %v4953 = vpop.f32.mrf.mxu0
      %v4954 = vadd.f32 %v4625, %v4953
      %v4955 = vpop.f32.mrf.mxu0
      %v4956 = vadd.f32 %v4627, %v4955
      %4957 = vmatmul.bf16.gmra.mxu0 %v2281
      %v4958 = vpop.f32.mrf.mxu0
      %v4959 = vadd.f32 %v4630, %v4958
      %v4960 = vpop.f32.mrf.mxu0
      %v4961 = vadd.f32 %v4632, %v4960
      %4962 = vmatmul.bf16.gmra.mxu0 %v2289
      %v4963 = vpop.f32.mrf.mxu0
      %v4964 = vadd.f32 %v4635, %v4963
      %v4965 = vpop.f32.mrf.mxu0
      %v4966 = vadd.f32 %v4637, %v4965
      %4967 = vmatmul.bf16.gmra.mxu0 %v2301
      %v4968 = vpop.f32.mrf.mxu0
      %v4969 = vadd.f32 %v4640, %v4968
      %v4970 = vpop.f32.mrf.mxu0
      %v4971 = vadd.f32 %v4642, %v4970
      %4972 = vmatmul.bf16.gmra.mxu0 %v2309
      %v4973 = vpop.f32.mrf.mxu0
      %v4974 = vadd.f32 %v4645, %v4973
      %v4975 = vpop.f32.mrf.mxu0
      %v4976 = vadd.f32 %v4647, %v4975
      %4977 = vmatmul.bf16.gmra.mxu0 %v2321
      %v4978 = vpop.f32.mrf.mxu0
      %v4979 = vadd.f32 %v4650, %v4978
      %v4980 = vpop.f32.mrf.mxu0
      %v4981 = vadd.f32 %v4652, %v4980
      %4982 = vmatmul.bf16.gmra.mxu0 %v2329
      %v4983 = vpop.f32.mrf.mxu0
      %v4984 = vadd.f32 %v4655, %v4983
      %v4985 = vpop.f32.mrf.mxu0
      %v4986 = vadd.f32 %v4657, %v4985
      %4987 = vmatmul.bf16.gmra.mxu0 %v2341
      %v4988 = vpop.f32.mrf.mxu0
      %v4989 = vadd.f32 %v4660, %v4988
      %v4990 = vpop.f32.mrf.mxu0
      %v4991 = vadd.f32 %v4662, %v4990
      %4992 = vmatmul.bf16.gmra.mxu0 %v2349
      %v4993 = vpop.f32.mrf.mxu0
      %v4994 = vadd.f32 %v4665, %v4993
      %v4995 = vpop.f32.mrf.mxu0
      %v4996 = vadd.f32 %v4667, %v4995
      %4997 = vmatmul.bf16.gmra.mxu0 %v2361
      %v4998 = vpop.f32.mrf.mxu0
      %v4999 = vadd.f32 %v4670, %v4998
      %v5000 = vpop.f32.mrf.mxu0
      %v5001 = vadd.f32 %v4672, %v5000
      %5002 = vmatmul.bf16.gmra.mxu0 %v2369
      %v5003 = vpop.f32.mrf.mxu0
      %v5004 = vadd.f32 %v4675, %v5003
      %v5005 = vpop.f32.mrf.mxu0
      %v5006 = vadd.f32 %v4677, %v5005
      %5007 = vmatmul.bf16.gmra.mxu0 %v2381
      %v5008 = vpop.f32.mrf.mxu0
      %v5009 = vadd.f32 %v4680, %v5008
      %v5010 = vpop.f32.mrf.mxu0
      %v5011 = vadd.f32 %v4682, %v5010
      %5012 = vmatmul.bf16.gmra.mxu0 %v2389
      %v5013 = vpop.f32.mrf.mxu0
      %v5014 = vadd.f32 %v4685, %v5013
      %v5015 = vpop.f32.mrf.mxu0
      %v5016 = vadd.f32 %v4687, %v5015
      %5017 = vmatmul.bf16.gmra.mxu0 %v2401
      %v5018 = vpop.f32.mrf.mxu0
      %v5019 = vadd.f32 %v4690, %v5018
      %v5020 = vpop.f32.mrf.mxu0
      %v5021 = vadd.f32 %v4692, %v5020
      %5022 = vmatmul.bf16.gmra.mxu0 %v2409
      %v5023 = vpop.f32.mrf.mxu0
      %v5024 = vadd.f32 %v4695, %v5023
      %v5025 = vpop.f32.mrf.mxu0
      %v5026 = vadd.f32 %v4697, %v5025
      %5027 = vmatmul.bf16.gmra.mxu0 %v2421
      %v5028 = vpop.f32.mrf.mxu0
      %v5029 = vadd.f32 %v4700, %v5028
      %v5030 = vpop.f32.mrf.mxu0
      %v5031 = vadd.f32 %v4702, %v5030
      %5032 = vmatmul.bf16.gmra.mxu0 %v2429
      %v5033 = vpop.f32.mrf.mxu0
      %v5034 = vadd.f32 %v4705, %v5033
      %v5035 = vpop.f32.mrf.mxu0
      %v5036 = vadd.f32 %v4707, %v5035
      %5037 = vmatmul.bf16.gmra.mxu0 %v2441
      %v5038 = vpop.f32.mrf.mxu0
      %v5039 = vadd.f32 %v4710, %v5038
      %v5040 = vpop.f32.mrf.mxu0
      %v5041 = vadd.f32 %v4712, %v5040
      %5042 = vmatmul.bf16.gmra.mxu0 %v2449
      %v5043 = vpop.f32.mrf.mxu0
      %v5044 = vadd.f32 %v4715, %v5043
      %v5045 = vpop.f32.mrf.mxu0
      %v5046 = vadd.f32 %v4717, %v5045
      %5047 = vmatmul.bf16.gmra.mxu0 %v2461
      %v5048 = vpop.f32.mrf.mxu0
      %v5049 = vadd.f32 %v4720, %v5048
      %v5050 = vpop.f32.mrf.mxu0
      %v5051 = vadd.f32 %v4722, %v5050
      %5052 = vmatmul.bf16.gmra.mxu0 %v2469
      %v5053 = vpop.f32.mrf.mxu0
      %v5054 = vadd.f32 %v4725, %v5053
      %v5055 = vpop.f32.mrf.mxu0
      %v5056 = vadd.f32 %v4727, %v5055
      %5057 = vmatmul.bf16.gmra.mxu0 %v2785
      %v5058 = vpop.f32.mrf.mxu0
      %v5059 = vadd.f32 %v4730, %v5058
      %v5060 = vpop.f32.mrf.mxu0
      %v5061 = vadd.f32 %v4732, %v5060
      %5062 = vmatmul.bf16.gmra.mxu0 %v2793
      %v5063 = vpop.f32.mrf.mxu0
      %v5064 = vadd.f32 %v4735, %v5063
      %v5065 = vpop.f32.mrf.mxu0
      %v5066 = vadd.f32 %v4737, %v5065
      %5067 = vdwg.mxu0
      %5068 = vmatpush.bf16.msra.mxu0 %v3326
      %5069 = vmatpush.bf16.msra.mxu0 %v3325
      %5070 = vmatpush.bf16.msra.mxu0 %v3324
      %5071 = vmatpush.bf16.msra.mxu0 %v3323
      %5072 = vmatpush.bf16.msra.mxu0 %v3322
      %5073 = vmatpush.bf16.msra.mxu0 %v3321
      %5074 = vmatpush.bf16.msra.mxu0 %v3320
      %5075 = vmatpush.bf16.msra.mxu0 %v3319
      %5076 = vmatmul.bf16.gmra.mxu0 %v2542
      %v5077 = vpop.f32.mrf.mxu0
      %v5078 = vadd.f32 %v4749, %v5077
      %v5079 = vpop.f32.mrf.mxu0
      %v5080 = vadd.f32 %v4751, %v5079
      %5081 = vmatmul.bf16.gmra.mxu0 %v2544
      %v5082 = vpop.f32.mrf.mxu0
      %v5083 = vadd.f32 %v4754, %v5082
      %v5084 = vpop.f32.mrf.mxu0
      %v5085 = vadd.f32 %v4756, %v5084
      %5086 = vmatmul.bf16.gmra.mxu0 %v2547
      %v5087 = vpop.f32.mrf.mxu0
      %v5088 = vadd.f32 %v4759, %v5087
      %v5089 = vpop.f32.mrf.mxu0
      %v5090 = vadd.f32 %v4761, %v5089
      %5091 = vmatmul.bf16.gmra.mxu0 %v2549
      %v5092 = vpop.f32.mrf.mxu0
      %v5093 = vadd.f32 %v4764, %v5092
      %v5094 = vpop.f32.mrf.mxu0
      %v5095 = vadd.f32 %v4766, %v5094
      %5096 = vmatmul.bf16.gmra.mxu0 %v2552
      %v5097 = vpop.f32.mrf.mxu0
      %v5098 = vadd.f32 %v4769, %v5097
      %v5099 = vpop.f32.mrf.mxu0
      %v5100 = vadd.f32 %v4771, %v5099
      %5101 = vmatmul.bf16.gmra.mxu0 %v2554
      %v5102 = vpop.f32.mrf.mxu0
      %v5103 = vadd.f32 %v4774, %v5102
      %v5104 = vpop.f32.mrf.mxu0
      %v5105 = vadd.f32 %v4776, %v5104
      %5106 = vmatmul.bf16.gmra.mxu0 %v2557
      %v5107 = vpop.f32.mrf.mxu0
      %v5108 = vadd.f32 %v4779, %v5107
      %v5109 = vpop.f32.mrf.mxu0
      %v5110 = vadd.f32 %v4781, %v5109
      %5111 = vmatmul.bf16.gmra.mxu0 %v2559
      %v5112 = vpop.f32.mrf.mxu0
      %v5113 = vadd.f32 %v4784, %v5112
      %v5114 = vpop.f32.mrf.mxu0
      %v5115 = vadd.f32 %v4786, %v5114
      %5116 = vmatmul.bf16.gmra.mxu0 %v2562
      %v5117 = vpop.f32.mrf.mxu0
      %v5118 = vadd.f32 %v4789, %v5117
      %v5119 = vpop.f32.mrf.mxu0
      %v5120 = vadd.f32 %v4791, %v5119
      %5121 = vmatmul.bf16.gmra.mxu0 %v2564
      %v5122 = vpop.f32.mrf.mxu0
      %v5123 = vadd.f32 %v4794, %v5122
      %v5124 = vpop.f32.mrf.mxu0
      %v5125 = vadd.f32 %v4796, %v5124
      %5126 = vmatmul.bf16.gmra.mxu0 %v2567
      %v5127 = vpop.f32.mrf.mxu0
      %v5128 = vadd.f32 %v4799, %v5127
      %v5129 = vpop.f32.mrf.mxu0
      %v5130 = vadd.f32 %v4801, %v5129
      %5131 = vmatmul.bf16.gmra.mxu0 %v2569
      %v5132 = vpop.f32.mrf.mxu0
      %v5133 = vadd.f32 %v4804, %v5132
      %v5134 = vpop.f32.mrf.mxu0
      %v5135 = vadd.f32 %v4806, %v5134
      %5136 = vmatmul.bf16.gmra.mxu0 %v2572
      %v5137 = vpop.f32.mrf.mxu0
      %v5138 = vadd.f32 %v4809, %v5137
      %v5139 = vpop.f32.mrf.mxu0
      %v5140 = vadd.f32 %v4811, %v5139
      %5141 = vmatmul.bf16.gmra.mxu0 %v2574
      %v5142 = vpop.f32.mrf.mxu0
      %v5143 = vadd.f32 %v4814, %v5142
      %v5144 = vpop.f32.mrf.mxu0
      %v5145 = vadd.f32 %v4816, %v5144
      %5146 = vmatmul.bf16.gmra.mxu0 %v2577
      %v5147 = vpop.f32.mrf.mxu0
      %v5148 = vadd.f32 %v4819, %v5147
      %v5149 = vpop.f32.mrf.mxu0
      %v5150 = vadd.f32 %v4821, %v5149
      %5151 = vmatmul.bf16.gmra.mxu0 %v2579
      %v5152 = vpop.f32.mrf.mxu0
      %v5153 = vadd.f32 %v4824, %v5152
      %v5154 = vpop.f32.mrf.mxu0
      %v5155 = vadd.f32 %v4826, %v5154
      %5156 = vmatmul.bf16.gmra.mxu0 %v2582
      %v5157 = vpop.f32.mrf.mxu0
      %v5158 = vadd.f32 %v4829, %v5157
      %v5159 = vpop.f32.mrf.mxu0
      %v5160 = vadd.f32 %v4831, %v5159
      %5161 = vmatmul.bf16.gmra.mxu0 %v2584
      %v5162 = vpop.f32.mrf.mxu0
      %v5163 = vadd.f32 %v4834, %v5162
      %v5164 = vpop.f32.mrf.mxu0
      %v5165 = vadd.f32 %v4836, %v5164
      %5166 = vmatmul.bf16.gmra.mxu0 %v2587
      %v5167 = vpop.f32.mrf.mxu0
      %v5168 = vadd.f32 %v4839, %v5167
      %v5169 = vpop.f32.mrf.mxu0
      %v5170 = vadd.f32 %v4841, %v5169
      %5171 = vmatmul.bf16.gmra.mxu0 %v2589
      %v5172 = vpop.f32.mrf.mxu0
      %v5173 = vadd.f32 %v4844, %v5172
      %v5174 = vpop.f32.mrf.mxu0
      %v5175 = vadd.f32 %v4846, %v5174
      %5176 = vmatmul.bf16.gmra.mxu0 %v2592
      %v5177 = vpop.f32.mrf.mxu0
      %v5178 = vadd.f32 %v4849, %v5177
      %v5179 = vpop.f32.mrf.mxu0
      %v5180 = vadd.f32 %v4851, %v5179
      %5181 = vmatmul.bf16.gmra.mxu0 %v2594
      %v5182 = vpop.f32.mrf.mxu0
      %v5183 = vadd.f32 %v4854, %v5182
      %v5184 = vpop.f32.mrf.mxu0
      %v5185 = vadd.f32 %v4856, %v5184
      %5186 = vmatmul.bf16.gmra.mxu0 %v2597
      %v5187 = vpop.f32.mrf.mxu0
      %v5188 = vadd.f32 %v4859, %v5187
      %v5189 = vpop.f32.mrf.mxu0
      %v5190 = vadd.f32 %v4861, %v5189
      %5191 = vmatmul.bf16.gmra.mxu0 %v2599
      %v5192 = vpop.f32.mrf.mxu0
      %v5193 = vadd.f32 %v4864, %v5192
      %v5194 = vpop.f32.mrf.mxu0
      %v5195 = vadd.f32 %v4866, %v5194
      %5196 = vmatmul.bf16.gmra.mxu0 %v2602
      %v5197 = vpop.f32.mrf.mxu0
      %v5198 = vadd.f32 %v4869, %v5197
      %v5199 = vpop.f32.mrf.mxu0
      %v5200 = vadd.f32 %v4871, %v5199
      %5201 = vmatmul.bf16.gmra.mxu0 %v2604
      %v5202 = vpop.f32.mrf.mxu0
      %v5203 = vadd.f32 %v4874, %v5202
      %v5204 = vpop.f32.mrf.mxu0
      %v5205 = vadd.f32 %v4876, %v5204
      %5206 = vmatmul.bf16.gmra.mxu0 %v2607
      %v5207 = vpop.f32.mrf.mxu0
      %v5208 = vadd.f32 %v4879, %v5207
      %v5209 = vpop.f32.mrf.mxu0
      %v5210 = vadd.f32 %v4881, %v5209
      %5211 = vmatmul.bf16.gmra.mxu0 %v2609
      %v5212 = vpop.f32.mrf.mxu0
      %v5213 = vadd.f32 %v4884, %v5212
      %v5214 = vpop.f32.mrf.mxu0
      %v5215 = vadd.f32 %v4886, %v5214
      %5216 = vmatmul.bf16.gmra.mxu0 %v2612
      %v5217 = vpop.f32.mrf.mxu0
      %v5218 = vadd.f32 %v4889, %v5217
      %v5219 = vpop.f32.mrf.mxu0
      %v5220 = vadd.f32 %v4891, %v5219
      %5221 = vmatmul.bf16.gmra.mxu0 %v2614
      %v5222 = vpop.f32.mrf.mxu0
      %v5223 = vadd.f32 %v4894, %v5222
      %v5224 = vpop.f32.mrf.mxu0
      %v5225 = vadd.f32 %v4896, %v5224
      %5226 = vmatmul.bf16.gmra.mxu0 %v2617
      %v5227 = vpop.f32.mrf.mxu0
      %v5228 = vadd.f32 %v4899, %v5227
      %v5229 = vpop.f32.mrf.mxu0
      %v5230 = vadd.f32 %v4901, %v5229
      %5231 = vmatmul.bf16.gmra.mxu0 %v2619
      %v5232 = vpop.f32.mrf.mxu0
      %v5233 = vadd.f32 %v4904, %v5232
      %v5234 = vpop.f32.mrf.mxu0
      %v5235 = vadd.f32 %v4906, %v5234
      %5236 = vmatmul.bf16.gmra.mxu0 %v2622
      %v5237 = vpop.f32.mrf.mxu0
      %v5238 = vadd.f32 %v4909, %v5237
      %v5239 = vpop.f32.mrf.mxu0
      %v5240 = vadd.f32 %v4911, %v5239
      %5241 = vmatmul.bf16.gmra.mxu0 %v2624
      %v5242 = vpop.f32.mrf.mxu0
      %v5243 = vadd.f32 %v4914, %v5242
      %v5244 = vpop.f32.mrf.mxu0
      %v5245 = vadd.f32 %v4916, %v5244
      %5246 = vmatmul.bf16.gmra.mxu0 %v2627
      %v5247 = vpop.f32.mrf.mxu0
      %v5248 = vadd.f32 %v4919, %v5247
      %v5249 = vpop.f32.mrf.mxu0
      %v5250 = vadd.f32 %v4921, %v5249
      %5251 = vmatmul.bf16.gmra.mxu0 %v2629
      %v5252 = vpop.f32.mrf.mxu0
      %v5253 = vadd.f32 %v4924, %v5252
      %v5254 = vpop.f32.mrf.mxu0
      %v5255 = vadd.f32 %v4926, %v5254
      %5256 = vmatmul.bf16.gmra.mxu0 %v2632
      %v5257 = vpop.f32.mrf.mxu0
      %v5258 = vadd.f32 %v4929, %v5257
      %v5259 = vpop.f32.mrf.mxu0
      %v5260 = vadd.f32 %v4931, %v5259
      %5261 = vmatmul.bf16.gmra.mxu0 %v2634
      %v5262 = vpop.f32.mrf.mxu0
      %v5263 = vadd.f32 %v4934, %v5262
      %v5264 = vpop.f32.mrf.mxu0
      %v5265 = vadd.f32 %v4936, %v5264
      %5266 = vmatmul.bf16.gmra.mxu0 %v2637
      %v5267 = vpop.f32.mrf.mxu0
      %v5268 = vadd.f32 %v4939, %v5267
      %v5269 = vpop.f32.mrf.mxu0
      %v5270 = vadd.f32 %v4941, %v5269
      %5271 = vmatmul.bf16.gmra.mxu0 %v2639
      %v5272 = vpop.f32.mrf.mxu0
      %v5273 = vadd.f32 %v4944, %v5272
      %v5274 = vpop.f32.mrf.mxu0
      %v5275 = vadd.f32 %v4946, %v5274
      %5276 = vmatmul.bf16.gmra.mxu0 %v2642
      %v5277 = vpop.f32.mrf.mxu0
      %v5278 = vadd.f32 %v4949, %v5277
      %v5279 = vpop.f32.mrf.mxu0
      %v5280 = vadd.f32 %v4951, %v5279
      %5281 = vmatmul.bf16.gmra.mxu0 %v2644
      %v5282 = vpop.f32.mrf.mxu0
      %v5283 = vadd.f32 %v4954, %v5282
      %v5284 = vpop.f32.mrf.mxu0
      %v5285 = vadd.f32 %v4956, %v5284
      %5286 = vmatmul.bf16.gmra.mxu0 %v2647
      %v5287 = vpop.f32.mrf.mxu0
      %v5288 = vadd.f32 %v4959, %v5287
      %v5289 = vpop.f32.mrf.mxu0
      %v5290 = vadd.f32 %v4961, %v5289
      %5291 = vmatmul.bf16.gmra.mxu0 %v2649
      %v5292 = vpop.f32.mrf.mxu0
      %v5293 = vadd.f32 %v4964, %v5292
      %v5294 = vpop.f32.mrf.mxu0
      %v5295 = vadd.f32 %v4966, %v5294
      %5296 = vmatmul.bf16.gmra.mxu0 %v2652
      %v5297 = vpop.f32.mrf.mxu0
      %v5298 = vadd.f32 %v4969, %v5297
      %v5299 = vpop.f32.mrf.mxu0
      %v5300 = vadd.f32 %v4971, %v5299
      %5301 = vmatmul.bf16.gmra.mxu0 %v2654
      %v5302 = vpop.f32.mrf.mxu0
      %v5303 = vadd.f32 %v4974, %v5302
      %v5304 = vpop.f32.mrf.mxu0
      %v5305 = vadd.f32 %v4976, %v5304
      %5306 = vmatmul.bf16.gmra.mxu0 %v2657
      %v5307 = vpop.f32.mrf.mxu0
      %v5308 = vadd.f32 %v4979, %v5307
      %v5309 = vpop.f32.mrf.mxu0
      %v5310 = vadd.f32 %v4981, %v5309
      %5311 = vmatmul.bf16.gmra.mxu0 %v2659
      %v5312 = vpop.f32.mrf.mxu0
      %v5313 = vadd.f32 %v4984, %v5312
      %v5314 = vpop.f32.mrf.mxu0
      %v5315 = vadd.f32 %v4986, %v5314
      %5316 = vmatmul.bf16.gmra.mxu0 %v2662
      %v5317 = vpop.f32.mrf.mxu0
      %v5318 = vadd.f32 %v4989, %v5317
      %v5319 = vpop.f32.mrf.mxu0
      %v5320 = vadd.f32 %v4991, %v5319
      %5321 = vmatmul.bf16.gmra.mxu0 %v2664
      %v5322 = vpop.f32.mrf.mxu0
      %v5323 = vadd.f32 %v4994, %v5322
      %v5324 = vpop.f32.mrf.mxu0
      %v5325 = vadd.f32 %v4996, %v5324
      %5326 = vmatmul.bf16.gmra.mxu0 %v2667
      %v5327 = vpop.f32.mrf.mxu0
      %v5328 = vadd.f32 %v4999, %v5327
      %v5329 = vpop.f32.mrf.mxu0
      %v5330 = vadd.f32 %v5001, %v5329
      %5331 = vmatmul.bf16.gmra.mxu0 %v2669
      %v5332 = vpop.f32.mrf.mxu0
      %v5333 = vadd.f32 %v5004, %v5332
      %v5334 = vpop.f32.mrf.mxu0
      %v5335 = vadd.f32 %v5006, %v5334
      %5336 = vmatmul.bf16.gmra.mxu0 %v2672
      %v5337 = vpop.f32.mrf.mxu0
      %v5338 = vadd.f32 %v5009, %v5337
      %v5339 = vpop.f32.mrf.mxu0
      %v5340 = vadd.f32 %v5011, %v5339
      %5341 = vmatmul.bf16.gmra.mxu0 %v2674
      %v5342 = vpop.f32.mrf.mxu0
      %v5343 = vadd.f32 %v5014, %v5342
      %v5344 = vpop.f32.mrf.mxu0
      %v5345 = vadd.f32 %v5016, %v5344
      %5346 = vmatmul.bf16.gmra.mxu0 %v2677
      %v5347 = vpop.f32.mrf.mxu0
      %v5348 = vadd.f32 %v5019, %v5347
      %v5349 = vpop.f32.mrf.mxu0
      %v5350 = vadd.f32 %v5021, %v5349
      %5351 = vmatmul.bf16.gmra.mxu0 %v2679
      %v5352 = vpop.f32.mrf.mxu0
      %v5353 = vadd.f32 %v5024, %v5352
      %v5354 = vpop.f32.mrf.mxu0
      %v5355 = vadd.f32 %v5026, %v5354
      %5356 = vmatmul.bf16.gmra.mxu0 %v2682
      %v5357 = vpop.f32.mrf.mxu0
      %v5358 = vadd.f32 %v5029, %v5357
      %v5359 = vpop.f32.mrf.mxu0
      %v5360 = vadd.f32 %v5031, %v5359
      %5361 = vmatmul.bf16.gmra.mxu0 %v2684
      %v5362 = vpop.f32.mrf.mxu0
      %v5363 = vadd.f32 %v5034, %v5362
      %v5364 = vpop.f32.mrf.mxu0
      %v5365 = vadd.f32 %v5036, %v5364
      %5366 = vmatmul.bf16.gmra.mxu0 %v2687
      %v5367 = vpop.f32.mrf.mxu0
      %v5368 = vadd.f32 %v5039, %v5367
      %v5369 = vpop.f32.mrf.mxu0
      %v5370 = vadd.f32 %v5041, %v5369
      %5371 = vmatmul.bf16.gmra.mxu0 %v2689
      %v5372 = vpop.f32.mrf.mxu0
      %v5373 = vadd.f32 %v5044, %v5372
      %v5374 = vpop.f32.mrf.mxu0
      %v5375 = vadd.f32 %v5046, %v5374
      %5376 = vmatmul.bf16.gmra.mxu0 %v2692
      %v5377 = vpop.f32.mrf.mxu0
      %v5378 = vadd.f32 %v5049, %v5377
      %v5379 = vpop.f32.mrf.mxu0
      %v5380 = vadd.f32 %v5051, %v5379
      %5381 = vmatmul.bf16.gmra.mxu0 %v2694
      %v5382 = vpop.f32.mrf.mxu0
      %v5383 = vadd.f32 %v5054, %v5382
      %v5384 = vpop.f32.mrf.mxu0
      %v5385 = vadd.f32 %v5056, %v5384
      %5386 = vmatmul.bf16.gmra.mxu0 %v2798
      %v5387 = vpop.f32.mrf.mxu0
      %v5388 = vadd.f32 %v5059, %v5387
      %v5389 = vpop.f32.mrf.mxu0
      %v5390 = vadd.f32 %v5061, %v5389
      %5391 = vmatmul.bf16.gmra.mxu0 %v2800
      %v5392 = vpop.f32.mrf.mxu0
      %v5393 = vadd.f32 %v5064, %v5392
      %v5394 = vpop.f32.mrf.mxu0
      %v5395 = vadd.f32 %v5066, %v5394
      %5396 = vdwg.mxu0
      %5397 = vmatpush.bf16.msra.mxu0 %v3334
      %5398 = vmatpush.bf16.msra.mxu0 %v3333
      %5399 = vmatpush.bf16.msra.mxu0 %v3332
      %5400 = vmatpush.bf16.msra.mxu0 %v3331
      %5401 = vmatpush.bf16.msra.mxu0 %v3330
      %5402 = vmatpush.bf16.msra.mxu0 %v3329
      %5403 = vmatpush.bf16.msra.mxu0 %v3328
      %5404 = vmatpush.bf16.msra.mxu0 %v3327
      %5405 = vmatmul.bf16.gmra.mxu0 %v1609
      %v5406 = vpop.f32.mrf.mxu0
      %v5407 = vadd.f32 %v5078, %v5406
      %v5408 = vpop.f32.mrf.mxu0
      %v5409 = vadd.f32 %v5080, %v5408
      %5410 = vmatmul.bf16.gmra.mxu0 %v1610
      %v5411 = vpop.f32.mrf.mxu0
      %v5412 = vadd.f32 %v5083, %v5411
      %v5413 = vpop.f32.mrf.mxu0
      %v5414 = vadd.f32 %v5085, %v5413
      %5415 = vmatmul.bf16.gmra.mxu0 %v1611
      %v5416 = vpop.f32.mrf.mxu0
      %v5417 = vadd.f32 %v5088, %v5416
      %v5418 = vpop.f32.mrf.mxu0
      %v5419 = vadd.f32 %v5090, %v5418
      %5420 = vmatmul.bf16.gmra.mxu0 %v1612
      %v5421 = vpop.f32.mrf.mxu0
      %v5422 = vadd.f32 %v5093, %v5421
      %v5423 = vpop.f32.mrf.mxu0
      %v5424 = vadd.f32 %v5095, %v5423
      %5425 = vmatmul.bf16.gmra.mxu0 %v1613
      %v5426 = vpop.f32.mrf.mxu0
      %v5427 = vadd.f32 %v5098, %v5426
      %v5428 = vpop.f32.mrf.mxu0
      %v5429 = vadd.f32 %v5100, %v5428
      %5430 = vmatmul.bf16.gmra.mxu0 %v1614
      %v5431 = vpop.f32.mrf.mxu0
      %v5432 = vadd.f32 %v5103, %v5431
      %v5433 = vpop.f32.mrf.mxu0
      %v5434 = vadd.f32 %v5105, %v5433
      %5435 = vmatmul.bf16.gmra.mxu0 %v1615
      %v5436 = vpop.f32.mrf.mxu0
      %v5437 = vadd.f32 %v5108, %v5436
      %v5438 = vpop.f32.mrf.mxu0
      %v5439 = vadd.f32 %v5110, %v5438
      %5440 = vmatmul.bf16.gmra.mxu0 %v1616
      %v5441 = vpop.f32.mrf.mxu0
      %v5442 = vadd.f32 %v5113, %v5441
      %v5443 = vpop.f32.mrf.mxu0
      %v5444 = vadd.f32 %v5115, %v5443
      %5445 = vmatmul.bf16.gmra.mxu0 %v1617
      %v5446 = vpop.f32.mrf.mxu0
      %v5447 = vadd.f32 %v5118, %v5446
      %v5448 = vpop.f32.mrf.mxu0
      %v5449 = vadd.f32 %v5120, %v5448
      %5450 = vmatmul.bf16.gmra.mxu0 %v1618
      %v5451 = vpop.f32.mrf.mxu0
      %v5452 = vadd.f32 %v5123, %v5451
      %v5453 = vpop.f32.mrf.mxu0
      %v5454 = vadd.f32 %v5125, %v5453
      %5455 = vmatmul.bf16.gmra.mxu0 %v1619
      %v5456 = vpop.f32.mrf.mxu0
      %v5457 = vadd.f32 %v5128, %v5456
      %v5458 = vpop.f32.mrf.mxu0
      %v5459 = vadd.f32 %v5130, %v5458
      %5460 = vmatmul.bf16.gmra.mxu0 %v1620
      %v5461 = vpop.f32.mrf.mxu0
      %v5462 = vadd.f32 %v5133, %v5461
      %v5463 = vpop.f32.mrf.mxu0
      %v5464 = vadd.f32 %v5135, %v5463
      %5465 = vmatmul.bf16.gmra.mxu0 %v1621
      %v5466 = vpop.f32.mrf.mxu0
      %v5467 = vadd.f32 %v5138, %v5466
      %v5468 = vpop.f32.mrf.mxu0
      %v5469 = vadd.f32 %v5140, %v5468
      %5470 = vmatmul.bf16.gmra.mxu0 %v1622
      %v5471 = vpop.f32.mrf.mxu0
      %v5472 = vadd.f32 %v5143, %v5471
      %v5473 = vpop.f32.mrf.mxu0
      %v5474 = vadd.f32 %v5145, %v5473
      %5475 = vmatmul.bf16.gmra.mxu0 %v1623
      %v5476 = vpop.f32.mrf.mxu0
      %v5477 = vadd.f32 %v5148, %v5476
      %v5478 = vpop.f32.mrf.mxu0
      %v5479 = vadd.f32 %v5150, %v5478
      %5480 = vmatmul.bf16.gmra.mxu0 %v1624
      %v5481 = vpop.f32.mrf.mxu0
      %v5482 = vadd.f32 %v5153, %v5481
      %v5483 = vpop.f32.mrf.mxu0
      %v5484 = vadd.f32 %v5155, %v5483
      %5485 = vmatmul.bf16.gmra.mxu0 %v1625
      %v5486 = vpop.f32.mrf.mxu0
      %v5487 = vadd.f32 %v5158, %v5486
      %v5488 = vpop.f32.mrf.mxu0
      %v5489 = vadd.f32 %v5160, %v5488
      %5490 = vmatmul.bf16.gmra.mxu0 %v1626
      %v5491 = vpop.f32.mrf.mxu0
      %v5492 = vadd.f32 %v5163, %v5491
      %v5493 = vpop.f32.mrf.mxu0
      %v5494 = vadd.f32 %v5165, %v5493
      %5495 = vmatmul.bf16.gmra.mxu0 %v1627
      %v5496 = vpop.f32.mrf.mxu0
      %v5497 = vadd.f32 %v5168, %v5496
      %v5498 = vpop.f32.mrf.mxu0
      %v5499 = vadd.f32 %v5170, %v5498
      %5500 = vmatmul.bf16.gmra.mxu0 %v1628
      %v5501 = vpop.f32.mrf.mxu0
      %v5502 = vadd.f32 %v5173, %v5501
      %v5503 = vpop.f32.mrf.mxu0
      %v5504 = vadd.f32 %v5175, %v5503
      %5505 = vmatmul.bf16.gmra.mxu0 %v1629
      %v5506 = vpop.f32.mrf.mxu0
      %v5507 = vadd.f32 %v5178, %v5506
      %v5508 = vpop.f32.mrf.mxu0
      %v5509 = vadd.f32 %v5180, %v5508
      %5510 = vmatmul.bf16.gmra.mxu0 %v1630
      %v5511 = vpop.f32.mrf.mxu0
      %v5512 = vadd.f32 %v5183, %v5511
      %v5513 = vpop.f32.mrf.mxu0
      %v5514 = vadd.f32 %v5185, %v5513
      %5515 = vmatmul.bf16.gmra.mxu0 %v1631
      %v5516 = vpop.f32.mrf.mxu0
      %v5517 = vadd.f32 %v5188, %v5516
      %v5518 = vpop.f32.mrf.mxu0
      %v5519 = vadd.f32 %v5190, %v5518
      %5520 = vmatmul.bf16.gmra.mxu0 %v1632
      %v5521 = vpop.f32.mrf.mxu0
      %v5522 = vadd.f32 %v5193, %v5521
      %v5523 = vpop.f32.mrf.mxu0
      %v5524 = vadd.f32 %v5195, %v5523
      %5525 = vmatmul.bf16.gmra.mxu0 %v1633
      %v5526 = vpop.f32.mrf.mxu0
      %v5527 = vadd.f32 %v5198, %v5526
      %v5528 = vpop.f32.mrf.mxu0
      %v5529 = vadd.f32 %v5200, %v5528
      %5530 = vmatmul.bf16.gmra.mxu0 %v1634
      %v5531 = vpop.f32.mrf.mxu0
      %v5532 = vadd.f32 %v5203, %v5531
      %v5533 = vpop.f32.mrf.mxu0
      %v5534 = vadd.f32 %v5205, %v5533
      %5535 = vmatmul.bf16.gmra.mxu0 %v1635
      %v5536 = vpop.f32.mrf.mxu0
      %v5537 = vadd.f32 %v5208, %v5536
      %v5538 = vpop.f32.mrf.mxu0
      %v5539 = vadd.f32 %v5210, %v5538
      %5540 = vmatmul.bf16.gmra.mxu0 %v1636
      %v5541 = vpop.f32.mrf.mxu0
      %v5542 = vadd.f32 %v5213, %v5541
      %v5543 = vpop.f32.mrf.mxu0
      %v5544 = vadd.f32 %v5215, %v5543
      %5545 = vmatmul.bf16.gmra.mxu0 %v1637
      %v5546 = vpop.f32.mrf.mxu0
      %v5547 = vadd.f32 %v5218, %v5546
      %v5548 = vpop.f32.mrf.mxu0
      %v5549 = vadd.f32 %v5220, %v5548
      %5550 = vmatmul.bf16.gmra.mxu0 %v1638
      %v5551 = vpop.f32.mrf.mxu0
      %v5552 = vadd.f32 %v5223, %v5551
      %v5553 = vpop.f32.mrf.mxu0
      %v5554 = vadd.f32 %v5225, %v5553
      %5555 = vmatmul.bf16.gmra.mxu0 %v1639
      %v5556 = vpop.f32.mrf.mxu0
      %v5557 = vadd.f32 %v5228, %v5556
      %v5558 = vpop.f32.mrf.mxu0
      %v5559 = vadd.f32 %v5230, %v5558
      %5560 = vmatmul.bf16.gmra.mxu0 %v1640
      %v5561 = vpop.f32.mrf.mxu0
      %v5562 = vadd.f32 %v5233, %v5561
      %v5563 = vpop.f32.mrf.mxu0
      %v5564 = vadd.f32 %v5235, %v5563
      %5565 = vmatmul.bf16.gmra.mxu0 %v1641
      %v5566 = vpop.f32.mrf.mxu0
      %v5567 = vadd.f32 %v5238, %v5566
      %v5568 = vpop.f32.mrf.mxu0
      %v5569 = vadd.f32 %v5240, %v5568
      %5570 = vmatmul.bf16.gmra.mxu0 %v1642
      %v5571 = vpop.f32.mrf.mxu0
      %v5572 = vadd.f32 %v5243, %v5571
      %v5573 = vpop.f32.mrf.mxu0
      %v5574 = vadd.f32 %v5245, %v5573
      %5575 = vmatmul.bf16.gmra.mxu0 %v1643
      %v5576 = vpop.f32.mrf.mxu0
      %v5577 = vadd.f32 %v5248, %v5576
      %v5578 = vpop.f32.mrf.mxu0
      %v5579 = vadd.f32 %v5250, %v5578
      %5580 = vmatmul.bf16.gmra.mxu0 %v1644
      %v5581 = vpop.f32.mrf.mxu0
      %v5582 = vadd.f32 %v5253, %v5581
      %v5583 = vpop.f32.mrf.mxu0
      %v5584 = vadd.f32 %v5255, %v5583
      %5585 = vmatmul.bf16.gmra.mxu0 %v1645
      %v5586 = vpop.f32.mrf.mxu0
      %v5587 = vadd.f32 %v5258, %v5586
      %v5588 = vpop.f32.mrf.mxu0
      %v5589 = vadd.f32 %v5260, %v5588
      %5590 = vmatmul.bf16.gmra.mxu0 %v1646
      %v5591 = vpop.f32.mrf.mxu0
      %v5592 = vadd.f32 %v5263, %v5591
      %v5593 = vpop.f32.mrf.mxu0
      %v5594 = vadd.f32 %v5265, %v5593
      %5595 = vmatmul.bf16.gmra.mxu0 %v1647
      %v5596 = vpop.f32.mrf.mxu0
      %v5597 = vadd.f32 %v5268, %v5596
      %v5598 = vpop.f32.mrf.mxu0
      %v5599 = vadd.f32 %v5270, %v5598
      %5600 = vmatmul.bf16.gmra.mxu0 %v1648
      %v5601 = vpop.f32.mrf.mxu0
      %v5602 = vadd.f32 %v5273, %v5601
      %v5603 = vpop.f32.mrf.mxu0
      %v5604 = vadd.f32 %v5275, %v5603
      %5605 = vmatmul.bf16.gmra.mxu0 %v1649
      %v5606 = vpop.f32.mrf.mxu0
      %v5607 = vadd.f32 %v5278, %v5606
      %v5608 = vpop.f32.mrf.mxu0
      %v5609 = vadd.f32 %v5280, %v5608
      %5610 = vmatmul.bf16.gmra.mxu0 %v1650
      %v5611 = vpop.f32.mrf.mxu0
      %v5612 = vadd.f32 %v5283, %v5611
      %v5613 = vpop.f32.mrf.mxu0
      %v5614 = vadd.f32 %v5285, %v5613
      %5615 = vmatmul.bf16.gmra.mxu0 %v1651
      %v5616 = vpop.f32.mrf.mxu0
      %v5617 = vadd.f32 %v5288, %v5616
      %v5618 = vpop.f32.mrf.mxu0
      %v5619 = vadd.f32 %v5290, %v5618
      %5620 = vmatmul.bf16.gmra.mxu0 %v1652
      %v5621 = vpop.f32.mrf.mxu0
      %v5622 = vadd.f32 %v5293, %v5621
      %v5623 = vpop.f32.mrf.mxu0
      %v5624 = vadd.f32 %v5295, %v5623
      %5625 = vmatmul.bf16.gmra.mxu0 %v1653
      %v5626 = vpop.f32.mrf.mxu0
      %v5627 = vadd.f32 %v5298, %v5626
      %v5628 = vpop.f32.mrf.mxu0
      %v5629 = vadd.f32 %v5300, %v5628
      %5630 = vmatmul.bf16.gmra.mxu0 %v1654
      %v5631 = vpop.f32.mrf.mxu0
      %v5632 = vadd.f32 %v5303, %v5631
      %v5633 = vpop.f32.mrf.mxu0
      %v5634 = vadd.f32 %v5305, %v5633
      %5635 = vmatmul.bf16.gmra.mxu0 %v1655
      %v5636 = vpop.f32.mrf.mxu0
      %v5637 = vadd.f32 %v5308, %v5636
      %v5638 = vpop.f32.mrf.mxu0
      %v5639 = vadd.f32 %v5310, %v5638
      %5640 = vmatmul.bf16.gmra.mxu0 %v1656
      %v5641 = vpop.f32.mrf.mxu0
      %v5642 = vadd.f32 %v5313, %v5641
      %v5643 = vpop.f32.mrf.mxu0
      %v5644 = vadd.f32 %v5315, %v5643
      %5645 = vmatmul.bf16.gmra.mxu0 %v1657
      %v5646 = vpop.f32.mrf.mxu0
      %v5647 = vadd.f32 %v5318, %v5646
      %v5648 = vpop.f32.mrf.mxu0
      %v5649 = vadd.f32 %v5320, %v5648
      %5650 = vmatmul.bf16.gmra.mxu0 %v1658
      %v5651 = vpop.f32.mrf.mxu0
      %v5652 = vadd.f32 %v5323, %v5651
      %v5653 = vpop.f32.mrf.mxu0
      %v5654 = vadd.f32 %v5325, %v5653
      %5655 = vmatmul.bf16.gmra.mxu0 %v1659
      %v5656 = vpop.f32.mrf.mxu0
      %v5657 = vadd.f32 %v5328, %v5656
      %v5658 = vpop.f32.mrf.mxu0
      %v5659 = vadd.f32 %v5330, %v5658
      %5660 = vmatmul.bf16.gmra.mxu0 %v1660
      %v5661 = vpop.f32.mrf.mxu0
      %v5662 = vadd.f32 %v5333, %v5661
      %v5663 = vpop.f32.mrf.mxu0
      %v5664 = vadd.f32 %v5335, %v5663
      %5665 = vmatmul.bf16.gmra.mxu0 %v1661
      %v5666 = vpop.f32.mrf.mxu0
      %v5667 = vadd.f32 %v5338, %v5666
      %v5668 = vpop.f32.mrf.mxu0
      %v5669 = vadd.f32 %v5340, %v5668
      %5670 = vmatmul.bf16.gmra.mxu0 %v1662
      %v5671 = vpop.f32.mrf.mxu0
      %v5672 = vadd.f32 %v5343, %v5671
      %v5673 = vpop.f32.mrf.mxu0
      %v5674 = vadd.f32 %v5345, %v5673
      %5675 = vmatmul.bf16.gmra.mxu0 %v1663
      %v5676 = vpop.f32.mrf.mxu0
      %v5677 = vadd.f32 %v5348, %v5676
      %v5678 = vpop.f32.mrf.mxu0
      %v5679 = vadd.f32 %v5350, %v5678
      %5680 = vmatmul.bf16.gmra.mxu0 %v1664
      %v5681 = vpop.f32.mrf.mxu0
      %v5682 = vadd.f32 %v5353, %v5681
      %v5683 = vpop.f32.mrf.mxu0
      %v5684 = vadd.f32 %v5355, %v5683
      %5685 = vmatmul.bf16.gmra.mxu0 %v1665
      %v5686 = vpop.f32.mrf.mxu0
      %v5687 = vadd.f32 %v5358, %v5686
      %v5688 = vpop.f32.mrf.mxu0
      %v5689 = vadd.f32 %v5360, %v5688
      %5690 = vmatmul.bf16.gmra.mxu0 %v1666
      %v5691 = vpop.f32.mrf.mxu0
      %v5692 = vadd.f32 %v5363, %v5691
      %v5693 = vpop.f32.mrf.mxu0
      %v5694 = vadd.f32 %v5365, %v5693
      %5695 = vmatmul.bf16.gmra.mxu0 %v1667
      %v5696 = vpop.f32.mrf.mxu0
      %v5697 = vadd.f32 %v5368, %v5696
      %v5698 = vpop.f32.mrf.mxu0
      %v5699 = vadd.f32 %v5370, %v5698
      %5700 = vmatmul.bf16.gmra.mxu0 %v1668
      %v5701 = vpop.f32.mrf.mxu0
      %v5702 = vadd.f32 %v5373, %v5701
      %v5703 = vpop.f32.mrf.mxu0
      %v5704 = vadd.f32 %v5375, %v5703
      %5705 = vmatmul.bf16.gmra.mxu0 %v2767
      %v5706 = vpop.f32.mrf.mxu0
      %v5707 = vadd.f32 %v5378, %v5706
      %v5708 = vpop.f32.mrf.mxu0
      %v5709 = vadd.f32 %v5380, %v5708
      %5710 = vmatmul.bf16.gmra.mxu0 %v2768
      %v5711 = vpop.f32.mrf.mxu0
      %v5712 = vadd.f32 %v5383, %v5711
      %v5713 = vpop.f32.mrf.mxu0
      %v5714 = vadd.f32 %v5385, %v5713
      %5715 = vmatmul.bf16.gmra.mxu0 %v2811
      %v5716 = vpop.f32.mrf.mxu0
      %v5717 = vadd.f32 %v5388, %v5716
      %v5718 = vpop.f32.mrf.mxu0
      %v5719 = vadd.f32 %v5390, %v5718
      %5720 = vmatmul.bf16.gmra.mxu0 %v2812
      %v5721 = vpop.f32.mrf.mxu0
      %v5722 = vadd.f32 %v5393, %v5721
      %v5723 = vpop.f32.mrf.mxu0
      %v5724 = vadd.f32 %v5395, %v5723
      %5725 = vdwg.mxu0
      %5726 = vmatpush.bf16.msra.mxu0 %v3342
      %5727 = vmatpush.bf16.msra.mxu0 %v3341
      %5728 = vmatpush.bf16.msra.mxu0 %v3340
      %5729 = vmatpush.bf16.msra.mxu0 %v3339
      %5730 = vmatpush.bf16.msra.mxu0 %v3338
      %5731 = vmatpush.bf16.msra.mxu0 %v3337
      %5732 = vmatpush.bf16.msra.mxu0 %v3336
      %5733 = vmatpush.bf16.msra.mxu0 %v3335
      %5734 = vmatmul.bf16.gmra.mxu0 %v1881
      %v5735 = vpop.f32.mrf.mxu0
      %v5736 = vadd.f32 %v5407, %v5735
      %v5737 = vpop.f32.mrf.mxu0
      %v5738 = vadd.f32 %v5409, %v5737
      %5739 = vmatmul.bf16.gmra.mxu0 %v1889
      %v5740 = vpop.f32.mrf.mxu0
      %v5741 = vadd.f32 %v5412, %v5740
      %v5742 = vpop.f32.mrf.mxu0
      %v5743 = vadd.f32 %v5414, %v5742
      %5744 = vmatmul.bf16.gmra.mxu0 %v1901
      %v5745 = vpop.f32.mrf.mxu0
      %v5746 = vadd.f32 %v5417, %v5745
      %v5747 = vpop.f32.mrf.mxu0
      %v5748 = vadd.f32 %v5419, %v5747
      %5749 = vmatmul.bf16.gmra.mxu0 %v1909
      %v5750 = vpop.f32.mrf.mxu0
      %v5751 = vadd.f32 %v5422, %v5750
      %v5752 = vpop.f32.mrf.mxu0
      %v5753 = vadd.f32 %v5424, %v5752
      %5754 = vmatmul.bf16.gmra.mxu0 %v1921
      %v5755 = vpop.f32.mrf.mxu0
      %v5756 = vadd.f32 %v5427, %v5755
      %v5757 = vpop.f32.mrf.mxu0
      %v5758 = vadd.f32 %v5429, %v5757
      %5759 = vmatmul.bf16.gmra.mxu0 %v1929
      %v5760 = vpop.f32.mrf.mxu0
      %v5761 = vadd.f32 %v5432, %v5760
      %v5762 = vpop.f32.mrf.mxu0
      %v5763 = vadd.f32 %v5434, %v5762
      %5764 = vmatmul.bf16.gmra.mxu0 %v1941
      %v5765 = vpop.f32.mrf.mxu0
      %v5766 = vadd.f32 %v5437, %v5765
      %v5767 = vpop.f32.mrf.mxu0
      %v5768 = vadd.f32 %v5439, %v5767
      %5769 = vmatmul.bf16.gmra.mxu0 %v1949
      %v5770 = vpop.f32.mrf.mxu0
      %v5771 = vadd.f32 %v5442, %v5770
      %v5772 = vpop.f32.mrf.mxu0
      %v5773 = vadd.f32 %v5444, %v5772
      %5774 = vmatmul.bf16.gmra.mxu0 %v1961
      %v5775 = vpop.f32.mrf.mxu0
      %v5776 = vadd.f32 %v5447, %v5775
      %v5777 = vpop.f32.mrf.mxu0
      %v5778 = vadd.f32 %v5449, %v5777
      %5779 = vmatmul.bf16.gmra.mxu0 %v1969
      %v5780 = vpop.f32.mrf.mxu0
      %v5781 = vadd.f32 %v5452, %v5780
      %v5782 = vpop.f32.mrf.mxu0
      %v5783 = vadd.f32 %v5454, %v5782
      %5784 = vmatmul.bf16.gmra.mxu0 %v1981
      %v5785 = vpop.f32.mrf.mxu0
      %v5786 = vadd.f32 %v5457, %v5785
      %v5787 = vpop.f32.mrf.mxu0
      %v5788 = vadd.f32 %v5459, %v5787
      %5789 = vmatmul.bf16.gmra.mxu0 %v1989
      %v5790 = vpop.f32.mrf.mxu0
      %v5791 = vadd.f32 %v5462, %v5790
      %v5792 = vpop.f32.mrf.mxu0
      %v5793 = vadd.f32 %v5464, %v5792
      %5794 = vmatmul.bf16.gmra.mxu0 %v2001
      %v5795 = vpop.f32.mrf.mxu0
      %v5796 = vadd.f32 %v5467, %v5795
      %v5797 = vpop.f32.mrf.mxu0
      %v5798 = vadd.f32 %v5469, %v5797
      %5799 = vmatmul.bf16.gmra.mxu0 %v2009
      %v5800 = vpop.f32.mrf.mxu0
      %v5801 = vadd.f32 %v5472, %v5800
      %v5802 = vpop.f32.mrf.mxu0
      %v5803 = vadd.f32 %v5474, %v5802
      %5804 = vmatmul.bf16.gmra.mxu0 %v2021
      %v5805 = vpop.f32.mrf.mxu0
      %v5806 = vadd.f32 %v5477, %v5805
      %v5807 = vpop.f32.mrf.mxu0
      %v5808 = vadd.f32 %v5479, %v5807
      %5809 = vmatmul.bf16.gmra.mxu0 %v2029
      %v5810 = vpop.f32.mrf.mxu0
      %v5811 = vadd.f32 %v5482, %v5810
      %v5812 = vpop.f32.mrf.mxu0
      %v5813 = vadd.f32 %v5484, %v5812
      %5814 = vmatmul.bf16.gmra.mxu0 %v2041
      %v5815 = vpop.f32.mrf.mxu0
      %v5816 = vadd.f32 %v5487, %v5815
      %v5817 = vpop.f32.mrf.mxu0
      %v5818 = vadd.f32 %v5489, %v5817
      %5819 = vmatmul.bf16.gmra.mxu0 %v2049
      %v5820 = vpop.f32.mrf.mxu0
      %v5821 = vadd.f32 %v5492, %v5820
      %v5822 = vpop.f32.mrf.mxu0
      %v5823 = vadd.f32 %v5494, %v5822
      %5824 = vmatmul.bf16.gmra.mxu0 %v2061
      %v5825 = vpop.f32.mrf.mxu0
      %v5826 = vadd.f32 %v5497, %v5825
      %v5827 = vpop.f32.mrf.mxu0
      %v5828 = vadd.f32 %v5499, %v5827
      %5829 = vmatmul.bf16.gmra.mxu0 %v2069
      %v5830 = vpop.f32.mrf.mxu0
      %v5831 = vadd.f32 %v5502, %v5830
      %v5832 = vpop.f32.mrf.mxu0
      %v5833 = vadd.f32 %v5504, %v5832
      %5834 = vmatmul.bf16.gmra.mxu0 %v2081
      %v5835 = vpop.f32.mrf.mxu0
      %v5836 = vadd.f32 %v5507, %v5835
      %v5837 = vpop.f32.mrf.mxu0
      %v5838 = vadd.f32 %v5509, %v5837
      %5839 = vmatmul.bf16.gmra.mxu0 %v2089
      %v5840 = vpop.f32.mrf.mxu0
      %v5841 = vadd.f32 %v5512, %v5840
      %v5842 = vpop.f32.mrf.mxu0
      %v5843 = vadd.f32 %v5514, %v5842
      %5844 = vmatmul.bf16.gmra.mxu0 %v2101
      %v5845 = vpop.f32.mrf.mxu0
      %v5846 = vadd.f32 %v5517, %v5845
      %v5847 = vpop.f32.mrf.mxu0
      %v5848 = vadd.f32 %v5519, %v5847
      %5849 = vmatmul.bf16.gmra.mxu0 %v2109
      %v5850 = vpop.f32.mrf.mxu0
      %v5851 = vadd.f32 %v5522, %v5850
      %v5852 = vpop.f32.mrf.mxu0
      %v5853 = vadd.f32 %v5524, %v5852
      %5854 = vmatmul.bf16.gmra.mxu0 %v2121
      %v5855 = vpop.f32.mrf.mxu0
      %v5856 = vadd.f32 %v5527, %v5855
      %v5857 = vpop.f32.mrf.mxu0
      %v5858 = vadd.f32 %v5529, %v5857
      %5859 = vmatmul.bf16.gmra.mxu0 %v2129
      %v5860 = vpop.f32.mrf.mxu0
      %v5861 = vadd.f32 %v5532, %v5860
      %v5862 = vpop.f32.mrf.mxu0
      %v5863 = vadd.f32 %v5534, %v5862
      %5864 = vmatmul.bf16.gmra.mxu0 %v2141
      %v5865 = vpop.f32.mrf.mxu0
      %v5866 = vadd.f32 %v5537, %v5865
      %v5867 = vpop.f32.mrf.mxu0
      %v5868 = vadd.f32 %v5539, %v5867
      %5869 = vmatmul.bf16.gmra.mxu0 %v2149
      %v5870 = vpop.f32.mrf.mxu0
      %v5871 = vadd.f32 %v5542, %v5870
      %v5872 = vpop.f32.mrf.mxu0
      %v5873 = vadd.f32 %v5544, %v5872
      %5874 = vmatmul.bf16.gmra.mxu0 %v2161
      %v5875 = vpop.f32.mrf.mxu0
      %v5876 = vadd.f32 %v5547, %v5875
      %v5877 = vpop.f32.mrf.mxu0
      %v5878 = vadd.f32 %v5549, %v5877
      %5879 = vmatmul.bf16.gmra.mxu0 %v2169
      %v5880 = vpop.f32.mrf.mxu0
      %v5881 = vadd.f32 %v5552, %v5880
      %v5882 = vpop.f32.mrf.mxu0
      %v5883 = vadd.f32 %v5554, %v5882
      %5884 = vmatmul.bf16.gmra.mxu0 %v2181
      %v5885 = vpop.f32.mrf.mxu0
      %v5886 = vadd.f32 %v5557, %v5885
      %v5887 = vpop.f32.mrf.mxu0
      %v5888 = vadd.f32 %v5559, %v5887
      %5889 = vmatmul.bf16.gmra.mxu0 %v2189
      %v5890 = vpop.f32.mrf.mxu0
      %v5891 = vadd.f32 %v5562, %v5890
      %v5892 = vpop.f32.mrf.mxu0
      %v5893 = vadd.f32 %v5564, %v5892
      %5894 = vmatmul.bf16.gmra.mxu0 %v2201
      %v5895 = vpop.f32.mrf.mxu0
      %v5896 = vadd.f32 %v5567, %v5895
      %v5897 = vpop.f32.mrf.mxu0
      %v5898 = vadd.f32 %v5569, %v5897
      %5899 = vmatmul.bf16.gmra.mxu0 %v2209
      %v5900 = vpop.f32.mrf.mxu0
      %v5901 = vadd.f32 %v5572, %v5900
      %v5902 = vpop.f32.mrf.mxu0
      %v5903 = vadd.f32 %v5574, %v5902
      %5904 = vmatmul.bf16.gmra.mxu0 %v2221
      %v5905 = vpop.f32.mrf.mxu0
      %v5906 = vadd.f32 %v5577, %v5905
      %v5907 = vpop.f32.mrf.mxu0
      %v5908 = vadd.f32 %v5579, %v5907
      %5909 = vmatmul.bf16.gmra.mxu0 %v2229
      %v5910 = vpop.f32.mrf.mxu0
      %v5911 = vadd.f32 %v5582, %v5910
      %v5912 = vpop.f32.mrf.mxu0
      %v5913 = vadd.f32 %v5584, %v5912
      %5914 = vmatmul.bf16.gmra.mxu0 %v2241
      %v5915 = vpop.f32.mrf.mxu0
      %v5916 = vadd.f32 %v5587, %v5915
      %v5917 = vpop.f32.mrf.mxu0
      %v5918 = vadd.f32 %v5589, %v5917
      %5919 = vmatmul.bf16.gmra.mxu0 %v2249
      %v5920 = vpop.f32.mrf.mxu0
      %v5921 = vadd.f32 %v5592, %v5920
      %v5922 = vpop.f32.mrf.mxu0
      %v5923 = vadd.f32 %v5594, %v5922
      %5924 = vmatmul.bf16.gmra.mxu0 %v2261
      %v5925 = vpop.f32.mrf.mxu0
      %v5926 = vadd.f32 %v5597, %v5925
      %v5927 = vpop.f32.mrf.mxu0
      %v5928 = vadd.f32 %v5599, %v5927
      %5929 = vmatmul.bf16.gmra.mxu0 %v2269
      %v5930 = vpop.f32.mrf.mxu0
      %v5931 = vadd.f32 %v5602, %v5930
      %v5932 = vpop.f32.mrf.mxu0
      %v5933 = vadd.f32 %v5604, %v5932
      %5934 = vmatmul.bf16.gmra.mxu0 %v2281
      %v5935 = vpop.f32.mrf.mxu0
      %v5936 = vadd.f32 %v5607, %v5935
      %v5937 = vpop.f32.mrf.mxu0
      %v5938 = vadd.f32 %v5609, %v5937
      %5939 = vmatmul.bf16.gmra.mxu0 %v2289
      %v5940 = vpop.f32.mrf.mxu0
      %v5941 = vadd.f32 %v5612, %v5940
      %v5942 = vpop.f32.mrf.mxu0
      %v5943 = vadd.f32 %v5614, %v5942
      %5944 = vmatmul.bf16.gmra.mxu0 %v2301
      %v5945 = vpop.f32.mrf.mxu0
      %v5946 = vadd.f32 %v5617, %v5945
      %v5947 = vpop.f32.mrf.mxu0
      %v5948 = vadd.f32 %v5619, %v5947
      %5949 = vmatmul.bf16.gmra.mxu0 %v2309
      %v5950 = vpop.f32.mrf.mxu0
      %v5951 = vadd.f32 %v5622, %v5950
      %v5952 = vpop.f32.mrf.mxu0
      %v5953 = vadd.f32 %v5624, %v5952
      %5954 = vmatmul.bf16.gmra.mxu0 %v2321
      %v5955 = vpop.f32.mrf.mxu0
      %v5956 = vadd.f32 %v5627, %v5955
      %v5957 = vpop.f32.mrf.mxu0
      %v5958 = vadd.f32 %v5629, %v5957
      %5959 = vmatmul.bf16.gmra.mxu0 %v2329
      %v5960 = vpop.f32.mrf.mxu0
      %v5961 = vadd.f32 %v5632, %v5960
      %v5962 = vpop.f32.mrf.mxu0
      %v5963 = vadd.f32 %v5634, %v5962
      %5964 = vmatmul.bf16.gmra.mxu0 %v2341
      %v5965 = vpop.f32.mrf.mxu0
      %v5966 = vadd.f32 %v5637, %v5965
      %v5967 = vpop.f32.mrf.mxu0
      %v5968 = vadd.f32 %v5639, %v5967
      %5969 = vmatmul.bf16.gmra.mxu0 %v2349
      %v5970 = vpop.f32.mrf.mxu0
      %v5971 = vadd.f32 %v5642, %v5970
      %v5972 = vpop.f32.mrf.mxu0
      %v5973 = vadd.f32 %v5644, %v5972
      %5974 = vmatmul.bf16.gmra.mxu0 %v2361
      %v5975 = vpop.f32.mrf.mxu0
      %v5976 = vadd.f32 %v5647, %v5975
      %v5977 = vpop.f32.mrf.mxu0
      %v5978 = vadd.f32 %v5649, %v5977
      %5979 = vmatmul.bf16.gmra.mxu0 %v2369
      %v5980 = vpop.f32.mrf.mxu0
      %v5981 = vadd.f32 %v5652, %v5980
      %v5982 = vpop.f32.mrf.mxu0
      %v5983 = vadd.f32 %v5654, %v5982
      %5984 = vmatmul.bf16.gmra.mxu0 %v2381
      %v5985 = vpop.f32.mrf.mxu0
      %v5986 = vadd.f32 %v5657, %v5985
      %v5987 = vpop.f32.mrf.mxu0
      %v5988 = vadd.f32 %v5659, %v5987
      %5989 = vmatmul.bf16.gmra.mxu0 %v2389
      %v5990 = vpop.f32.mrf.mxu0
      %v5991 = vadd.f32 %v5662, %v5990
      %v5992 = vpop.f32.mrf.mxu0
      %v5993 = vadd.f32 %v5664, %v5992
      %5994 = vmatmul.bf16.gmra.mxu0 %v2401
      %v5995 = vpop.f32.mrf.mxu0
      %v5996 = vadd.f32 %v5667, %v5995
      %v5997 = vpop.f32.mrf.mxu0
      %v5998 = vadd.f32 %v5669, %v5997
      %5999 = vmatmul.bf16.gmra.mxu0 %v2409
      %v6000 = vpop.f32.mrf.mxu0
      %v6001 = vadd.f32 %v5672, %v6000
      %v6002 = vpop.f32.mrf.mxu0
      %v6003 = vadd.f32 %v5674, %v6002
      %6004 = vmatmul.bf16.gmra.mxu0 %v2421
      %v6005 = vpop.f32.mrf.mxu0
      %v6006 = vadd.f32 %v5677, %v6005
      %v6007 = vpop.f32.mrf.mxu0
      %v6008 = vadd.f32 %v5679, %v6007
      %6009 = vmatmul.bf16.gmra.mxu0 %v2429
      %v6010 = vpop.f32.mrf.mxu0
      %v6011 = vadd.f32 %v5682, %v6010
      %v6012 = vpop.f32.mrf.mxu0
      %v6013 = vadd.f32 %v5684, %v6012
      %6014 = vmatmul.bf16.gmra.mxu0 %v2441
      %v6015 = vpop.f32.mrf.mxu0
      %v6016 = vadd.f32 %v5687, %v6015
      %v6017 = vpop.f32.mrf.mxu0
      %v6018 = vadd.f32 %v5689, %v6017
      %6019 = vmatmul.bf16.gmra.mxu0 %v2449
      %v6020 = vpop.f32.mrf.mxu0
      %v6021 = vadd.f32 %v5692, %v6020
      %v6022 = vpop.f32.mrf.mxu0
      %v6023 = vadd.f32 %v5694, %v6022
      %6024 = vmatmul.bf16.gmra.mxu0 %v2461
      %v6025 = vpop.f32.mrf.mxu0
      %v6026 = vadd.f32 %v5697, %v6025
      %v6027 = vpop.f32.mrf.mxu0
      %v6028 = vadd.f32 %v5699, %v6027
      %6029 = vmatmul.bf16.gmra.mxu0 %v2469
      %v6030 = vpop.f32.mrf.mxu0
      %v6031 = vadd.f32 %v5702, %v6030
      %v6032 = vpop.f32.mrf.mxu0
      %v6033 = vadd.f32 %v5704, %v6032
      %6034 = vmatmul.bf16.gmra.mxu0 %v2785
      %v6035 = vpop.f32.mrf.mxu0
      %v6036 = vadd.f32 %v5707, %v6035
      %v6037 = vpop.f32.mrf.mxu0
      %v6038 = vadd.f32 %v5709, %v6037
      %6039 = vmatmul.bf16.gmra.mxu0 %v2793
      %v6040 = vpop.f32.mrf.mxu0
      %v6041 = vadd.f32 %v5712, %v6040
      %v6042 = vpop.f32.mrf.mxu0
      %v6043 = vadd.f32 %v5714, %v6042
      %6044 = vmatmul.bf16.gmra.mxu0 %v2829
      %v6045 = vpop.f32.mrf.mxu0
      %v6046 = vadd.f32 %v5717, %v6045
      %v6047 = vpop.f32.mrf.mxu0
      %v6048 = vadd.f32 %v5719, %v6047
      %6049 = vmatmul.bf16.gmra.mxu0 %v2837
      %v6050 = vpop.f32.mrf.mxu0
      %v6051 = vadd.f32 %v5722, %v6050
      %v6052 = vpop.f32.mrf.mxu0
      %v6053 = vadd.f32 %v5724, %v6052
      %6054 = vdwg.mxu0
      %6055 = vmatpush.bf16.msra.mxu0 %v3350
      %6056 = vmatpush.bf16.msra.mxu0 %v3349
      %6057 = vmatpush.bf16.msra.mxu0 %v3348
      %6058 = vmatpush.bf16.msra.mxu0 %v3347
      %6059 = vmatpush.bf16.msra.mxu0 %v3346
      %6060 = vmatpush.bf16.msra.mxu0 %v3345
      %6061 = vmatpush.bf16.msra.mxu0 %v3344
      %6062 = vmatpush.bf16.msra.mxu0 %v3343
      %6063 = vmatmul.bf16.gmra.mxu0 %v2547
      %v6064 = vpop.f32.mrf.mxu0
      %v6065 = vadd.f32 %v5736, %v6064
      %v6066 = vpop.f32.mrf.mxu0
      %v6067 = vadd.f32 %v5738, %v6066
      %6068 = vmatmul.bf16.gmra.mxu0 %v2549
      %v6069 = vpop.f32.mrf.mxu0
      %v6070 = vadd.f32 %v5741, %v6069
      %v6071 = vpop.f32.mrf.mxu0
      %v6072 = vadd.f32 %v5743, %v6071
      %6073 = vmatmul.bf16.gmra.mxu0 %v2552
      %v6074 = vpop.f32.mrf.mxu0
      %v6075 = vadd.f32 %v5746, %v6074
      %v6076 = vpop.f32.mrf.mxu0
      %v6077 = vadd.f32 %v5748, %v6076
      %6078 = vmatmul.bf16.gmra.mxu0 %v2554
      %v6079 = vpop.f32.mrf.mxu0
      %v6080 = vadd.f32 %v5751, %v6079
      %v6081 = vpop.f32.mrf.mxu0
      %v6082 = vadd.f32 %v5753, %v6081
      %6083 = vmatmul.bf16.gmra.mxu0 %v2557
      %v6084 = vpop.f32.mrf.mxu0
      %v6085 = vadd.f32 %v5756, %v6084
      %v6086 = vpop.f32.mrf.mxu0
      %v6087 = vadd.f32 %v5758, %v6086
      %6088 = vmatmul.bf16.gmra.mxu0 %v2559
      %v6089 = vpop.f32.mrf.mxu0
      %v6090 = vadd.f32 %v5761, %v6089
      %v6091 = vpop.f32.mrf.mxu0
      %v6092 = vadd.f32 %v5763, %v6091
      %6093 = vmatmul.bf16.gmra.mxu0 %v2562
      %v6094 = vpop.f32.mrf.mxu0
      %v6095 = vadd.f32 %v5766, %v6094
      %v6096 = vpop.f32.mrf.mxu0
      %v6097 = vadd.f32 %v5768, %v6096
      %6098 = vmatmul.bf16.gmra.mxu0 %v2564
      %v6099 = vpop.f32.mrf.mxu0
      %v6100 = vadd.f32 %v5771, %v6099
      %v6101 = vpop.f32.mrf.mxu0
      %v6102 = vadd.f32 %v5773, %v6101
      %6103 = vmatmul.bf16.gmra.mxu0 %v2567
      %v6104 = vpop.f32.mrf.mxu0
      %v6105 = vadd.f32 %v5776, %v6104
      %v6106 = vpop.f32.mrf.mxu0
      %v6107 = vadd.f32 %v5778, %v6106
      %6108 = vmatmul.bf16.gmra.mxu0 %v2569
      %v6109 = vpop.f32.mrf.mxu0
      %v6110 = vadd.f32 %v5781, %v6109
      %v6111 = vpop.f32.mrf.mxu0
      %v6112 = vadd.f32 %v5783, %v6111
      %6113 = vmatmul.bf16.gmra.mxu0 %v2572
      %v6114 = vpop.f32.mrf.mxu0
      %v6115 = vadd.f32 %v5786, %v6114
      %v6116 = vpop.f32.mrf.mxu0
      %v6117 = vadd.f32 %v5788, %v6116
      %6118 = vmatmul.bf16.gmra.mxu0 %v2574
      %v6119 = vpop.f32.mrf.mxu0
      %v6120 = vadd.f32 %v5791, %v6119
      %v6121 = vpop.f32.mrf.mxu0
      %v6122 = vadd.f32 %v5793, %v6121
      %6123 = vmatmul.bf16.gmra.mxu0 %v2577
      %v6124 = vpop.f32.mrf.mxu0
      %v6125 = vadd.f32 %v5796, %v6124
      %v6126 = vpop.f32.mrf.mxu0
      %v6127 = vadd.f32 %v5798, %v6126
      %6128 = vmatmul.bf16.gmra.mxu0 %v2579
      %v6129 = vpop.f32.mrf.mxu0
      %v6130 = vadd.f32 %v5801, %v6129
      %v6131 = vpop.f32.mrf.mxu0
      %v6132 = vadd.f32 %v5803, %v6131
      %6133 = vmatmul.bf16.gmra.mxu0 %v2582
      %v6134 = vpop.f32.mrf.mxu0
      %v6135 = vadd.f32 %v5806, %v6134
      %v6136 = vpop.f32.mrf.mxu0
      %v6137 = vadd.f32 %v5808, %v6136
      %6138 = vmatmul.bf16.gmra.mxu0 %v2584
      %v6139 = vpop.f32.mrf.mxu0
      %v6140 = vadd.f32 %v5811, %v6139
      %v6141 = vpop.f32.mrf.mxu0
      %v6142 = vadd.f32 %v5813, %v6141
      %6143 = vmatmul.bf16.gmra.mxu0 %v2587
      %v6144 = vpop.f32.mrf.mxu0
      %v6145 = vadd.f32 %v5816, %v6144
      %v6146 = vpop.f32.mrf.mxu0
      %v6147 = vadd.f32 %v5818, %v6146
      %6148 = vmatmul.bf16.gmra.mxu0 %v2589
      %v6149 = vpop.f32.mrf.mxu0
      %v6150 = vadd.f32 %v5821, %v6149
      %v6151 = vpop.f32.mrf.mxu0
      %v6152 = vadd.f32 %v5823, %v6151
      %6153 = vmatmul.bf16.gmra.mxu0 %v2592
      %v6154 = vpop.f32.mrf.mxu0
      %v6155 = vadd.f32 %v5826, %v6154
      %v6156 = vpop.f32.mrf.mxu0
      %v6157 = vadd.f32 %v5828, %v6156
      %6158 = vmatmul.bf16.gmra.mxu0 %v2594
      %v6159 = vpop.f32.mrf.mxu0
      %v6160 = vadd.f32 %v5831, %v6159
      %v6161 = vpop.f32.mrf.mxu0
      %v6162 = vadd.f32 %v5833, %v6161
      %6163 = vmatmul.bf16.gmra.mxu0 %v2597
      %v6164 = vpop.f32.mrf.mxu0
      %v6165 = vadd.f32 %v5836, %v6164
      %v6166 = vpop.f32.mrf.mxu0
      %v6167 = vadd.f32 %v5838, %v6166
      %6168 = vmatmul.bf16.gmra.mxu0 %v2599
      %v6169 = vpop.f32.mrf.mxu0
      %v6170 = vadd.f32 %v5841, %v6169
      %v6171 = vpop.f32.mrf.mxu0
      %v6172 = vadd.f32 %v5843, %v6171
      %6173 = vmatmul.bf16.gmra.mxu0 %v2602
      %v6174 = vpop.f32.mrf.mxu0
      %v6175 = vadd.f32 %v5846, %v6174
      %v6176 = vpop.f32.mrf.mxu0
      %v6177 = vadd.f32 %v5848, %v6176
      %6178 = vmatmul.bf16.gmra.mxu0 %v2604
      %v6179 = vpop.f32.mrf.mxu0
      %v6180 = vadd.f32 %v5851, %v6179
      %v6181 = vpop.f32.mrf.mxu0
      %v6182 = vadd.f32 %v5853, %v6181
      %6183 = vmatmul.bf16.gmra.mxu0 %v2607
      %v6184 = vpop.f32.mrf.mxu0
      %v6185 = vadd.f32 %v5856, %v6184
      %v6186 = vpop.f32.mrf.mxu0
      %v6187 = vadd.f32 %v5858, %v6186
      %6188 = vmatmul.bf16.gmra.mxu0 %v2609
      %v6189 = vpop.f32.mrf.mxu0
      %v6190 = vadd.f32 %v5861, %v6189
      %v6191 = vpop.f32.mrf.mxu0
      %v6192 = vadd.f32 %v5863, %v6191
      %6193 = vmatmul.bf16.gmra.mxu0 %v2612
      %v6194 = vpop.f32.mrf.mxu0
      %v6195 = vadd.f32 %v5866, %v6194
      %v6196 = vpop.f32.mrf.mxu0
      %v6197 = vadd.f32 %v5868, %v6196
      %6198 = vmatmul.bf16.gmra.mxu0 %v2614
      %v6199 = vpop.f32.mrf.mxu0
      %v6200 = vadd.f32 %v5871, %v6199
      %v6201 = vpop.f32.mrf.mxu0
      %v6202 = vadd.f32 %v5873, %v6201
      %6203 = vmatmul.bf16.gmra.mxu0 %v2617
      %v6204 = vpop.f32.mrf.mxu0
      %v6205 = vadd.f32 %v5876, %v6204
      %v6206 = vpop.f32.mrf.mxu0
      %v6207 = vadd.f32 %v5878, %v6206
      %6208 = vmatmul.bf16.gmra.mxu0 %v2619
      %v6209 = vpop.f32.mrf.mxu0
      %v6210 = vadd.f32 %v5881, %v6209
      %v6211 = vpop.f32.mrf.mxu0
      %v6212 = vadd.f32 %v5883, %v6211
      %6213 = vmatmul.bf16.gmra.mxu0 %v2622
      %v6214 = vpop.f32.mrf.mxu0
      %v6215 = vadd.f32 %v5886, %v6214
      %v6216 = vpop.f32.mrf.mxu0
      %v6217 = vadd.f32 %v5888, %v6216
      %6218 = vmatmul.bf16.gmra.mxu0 %v2624
      %v6219 = vpop.f32.mrf.mxu0
      %v6220 = vadd.f32 %v5891, %v6219
      %v6221 = vpop.f32.mrf.mxu0
      %v6222 = vadd.f32 %v5893, %v6221
      %6223 = vmatmul.bf16.gmra.mxu0 %v2627
      %v6224 = vpop.f32.mrf.mxu0
      %v6225 = vadd.f32 %v5896, %v6224
      %v6226 = vpop.f32.mrf.mxu0
      %v6227 = vadd.f32 %v5898, %v6226
      %6228 = vmatmul.bf16.gmra.mxu0 %v2629
      %v6229 = vpop.f32.mrf.mxu0
      %v6230 = vadd.f32 %v5901, %v6229
      %v6231 = vpop.f32.mrf.mxu0
      %v6232 = vadd.f32 %v5903, %v6231
      %6233 = vmatmul.bf16.gmra.mxu0 %v2632
      %v6234 = vpop.f32.mrf.mxu0
      %v6235 = vadd.f32 %v5906, %v6234
      %v6236 = vpop.f32.mrf.mxu0
      %v6237 = vadd.f32 %v5908, %v6236
      %6238 = vmatmul.bf16.gmra.mxu0 %v2634
      %v6239 = vpop.f32.mrf.mxu0
      %v6240 = vadd.f32 %v5911, %v6239
      %v6241 = vpop.f32.mrf.mxu0
      %v6242 = vadd.f32 %v5913, %v6241
      %6243 = vmatmul.bf16.gmra.mxu0 %v2637
      %v6244 = vpop.f32.mrf.mxu0
      %v6245 = vadd.f32 %v5916, %v6244
      %v6246 = vpop.f32.mrf.mxu0
      %v6247 = vadd.f32 %v5918, %v6246
      %6248 = vmatmul.bf16.gmra.mxu0 %v2639
      %v6249 = vpop.f32.mrf.mxu0
      %v6250 = vadd.f32 %v5921, %v6249
      %v6251 = vpop.f32.mrf.mxu0
      %v6252 = vadd.f32 %v5923, %v6251
      %6253 = vmatmul.bf16.gmra.mxu0 %v2642
      %v6254 = vpop.f32.mrf.mxu0
      %v6255 = vadd.f32 %v5926, %v6254
      %v6256 = vpop.f32.mrf.mxu0
      %v6257 = vadd.f32 %v5928, %v6256
      %6258 = vmatmul.bf16.gmra.mxu0 %v2644
      %v6259 = vpop.f32.mrf.mxu0
      %v6260 = vadd.f32 %v5931, %v6259
      %v6261 = vpop.f32.mrf.mxu0
      %v6262 = vadd.f32 %v5933, %v6261
      %6263 = vmatmul.bf16.gmra.mxu0 %v2647
      %v6264 = vpop.f32.mrf.mxu0
      %v6265 = vadd.f32 %v5936, %v6264
      %v6266 = vpop.f32.mrf.mxu0
      %v6267 = vadd.f32 %v5938, %v6266
      %6268 = vmatmul.bf16.gmra.mxu0 %v2649
      %v6269 = vpop.f32.mrf.mxu0
      %v6270 = vadd.f32 %v5941, %v6269
      %v6271 = vpop.f32.mrf.mxu0
      %v6272 = vadd.f32 %v5943, %v6271
      %6273 = vmatmul.bf16.gmra.mxu0 %v2652
      %v6274 = vpop.f32.mrf.mxu0
      %v6275 = vadd.f32 %v5946, %v6274
      %v6276 = vpop.f32.mrf.mxu0
      %v6277 = vadd.f32 %v5948, %v6276
      %6278 = vmatmul.bf16.gmra.mxu0 %v2654
      %v6279 = vpop.f32.mrf.mxu0
      %v6280 = vadd.f32 %v5951, %v6279
      %v6281 = vpop.f32.mrf.mxu0
      %v6282 = vadd.f32 %v5953, %v6281
      %6283 = vmatmul.bf16.gmra.mxu0 %v2657
      %v6284 = vpop.f32.mrf.mxu0
      %v6285 = vadd.f32 %v5956, %v6284
      %v6286 = vpop.f32.mrf.mxu0
      %v6287 = vadd.f32 %v5958, %v6286
      %6288 = vmatmul.bf16.gmra.mxu0 %v2659
      %v6289 = vpop.f32.mrf.mxu0
      %v6290 = vadd.f32 %v5961, %v6289
      %v6291 = vpop.f32.mrf.mxu0
      %v6292 = vadd.f32 %v5963, %v6291
      %6293 = vmatmul.bf16.gmra.mxu0 %v2662
      %v6294 = vpop.f32.mrf.mxu0
      %v6295 = vadd.f32 %v5966, %v6294
      %v6296 = vpop.f32.mrf.mxu0
      %v6297 = vadd.f32 %v5968, %v6296
      %6298 = vmatmul.bf16.gmra.mxu0 %v2664
      %v6299 = vpop.f32.mrf.mxu0
      %v6300 = vadd.f32 %v5971, %v6299
      %v6301 = vpop.f32.mrf.mxu0
      %v6302 = vadd.f32 %v5973, %v6301
      %6303 = vmatmul.bf16.gmra.mxu0 %v2667
      %v6304 = vpop.f32.mrf.mxu0
      %v6305 = vadd.f32 %v5976, %v6304
      %v6306 = vpop.f32.mrf.mxu0
      %v6307 = vadd.f32 %v5978, %v6306
      %6308 = vmatmul.bf16.gmra.mxu0 %v2669
      %v6309 = vpop.f32.mrf.mxu0
      %v6310 = vadd.f32 %v5981, %v6309
      %v6311 = vpop.f32.mrf.mxu0
      %v6312 = vadd.f32 %v5983, %v6311
      %6313 = vmatmul.bf16.gmra.mxu0 %v2672
      %v6314 = vpop.f32.mrf.mxu0
      %v6315 = vadd.f32 %v5986, %v6314
      %v6316 = vpop.f32.mrf.mxu0
      %v6317 = vadd.f32 %v5988, %v6316
      %6318 = vmatmul.bf16.gmra.mxu0 %v2674
      %v6319 = vpop.f32.mrf.mxu0
      %v6320 = vadd.f32 %v5991, %v6319
      %v6321 = vpop.f32.mrf.mxu0
      %v6322 = vadd.f32 %v5993, %v6321
      %6323 = vmatmul.bf16.gmra.mxu0 %v2677
      %v6324 = vpop.f32.mrf.mxu0
      %v6325 = vadd.f32 %v5996, %v6324
      %v6326 = vpop.f32.mrf.mxu0
      %v6327 = vadd.f32 %v5998, %v6326
      %6328 = vmatmul.bf16.gmra.mxu0 %v2679
      %v6329 = vpop.f32.mrf.mxu0
      %v6330 = vadd.f32 %v6001, %v6329
      %v6331 = vpop.f32.mrf.mxu0
      %v6332 = vadd.f32 %v6003, %v6331
      %6333 = vmatmul.bf16.gmra.mxu0 %v2682
      %v6334 = vpop.f32.mrf.mxu0
      %v6335 = vadd.f32 %v6006, %v6334
      %v6336 = vpop.f32.mrf.mxu0
      %v6337 = vadd.f32 %v6008, %v6336
      %6338 = vmatmul.bf16.gmra.mxu0 %v2684
      %v6339 = vpop.f32.mrf.mxu0
      %v6340 = vadd.f32 %v6011, %v6339
      %v6341 = vpop.f32.mrf.mxu0
      %v6342 = vadd.f32 %v6013, %v6341
      %6343 = vmatmul.bf16.gmra.mxu0 %v2687
      %v6344 = vpop.f32.mrf.mxu0
      %v6345 = vadd.f32 %v6016, %v6344
      %v6346 = vpop.f32.mrf.mxu0
      %v6347 = vadd.f32 %v6018, %v6346
      %6348 = vmatmul.bf16.gmra.mxu0 %v2689
      %v6349 = vpop.f32.mrf.mxu0
      %v6350 = vadd.f32 %v6021, %v6349
      %v6351 = vpop.f32.mrf.mxu0
      %v6352 = vadd.f32 %v6023, %v6351
      %6353 = vmatmul.bf16.gmra.mxu0 %v2692
      %v6354 = vpop.f32.mrf.mxu0
      %v6355 = vadd.f32 %v6026, %v6354
      %v6356 = vpop.f32.mrf.mxu0
      %v6357 = vadd.f32 %v6028, %v6356
      %6358 = vmatmul.bf16.gmra.mxu0 %v2694
      %v6359 = vpop.f32.mrf.mxu0
      %v6360 = vadd.f32 %v6031, %v6359
      %v6361 = vpop.f32.mrf.mxu0
      %v6362 = vadd.f32 %v6033, %v6361
      %6363 = vmatmul.bf16.gmra.mxu0 %v2798
      %v6364 = vpop.f32.mrf.mxu0
      %v6365 = vadd.f32 %v6036, %v6364
      %v6366 = vpop.f32.mrf.mxu0
      %v6367 = vadd.f32 %v6038, %v6366
      %6368 = vmatmul.bf16.gmra.mxu0 %v2800
      %v6369 = vpop.f32.mrf.mxu0
      %v6370 = vadd.f32 %v6041, %v6369
      %v6371 = vpop.f32.mrf.mxu0
      %v6372 = vadd.f32 %v6043, %v6371
      %6373 = vmatmul.bf16.gmra.mxu0 %v2842
      %v6374 = vpop.f32.mrf.mxu0
      %v6375 = vadd.f32 %v6046, %v6374
      %v6376 = vpop.f32.mrf.mxu0
      %v6377 = vadd.f32 %v6048, %v6376
      %6378 = vmatmul.bf16.gmra.mxu0 %v2844
      %v6379 = vpop.f32.mrf.mxu0
      %v6380 = vadd.f32 %v6051, %v6379
      %v6381 = vpop.f32.mrf.mxu0
      %v6382 = vadd.f32 %v6053, %v6381
      %6383 = vdwg.mxu0
      %v6384 = vld [vmem:[%s4] sm:$0x1]
      %v6386 = vperm.slane %v6384, 0
      %v6388 = vmul.f32 %v6065, %v6386
      %v6389 = vmul.f32 %v6067, %v6386
      %v6390 = vmul.f32 %v6070, %v6386
      %v6391 = vmul.f32 %v6072, %v6386
      %v6392 = vmul.f32 %v6075, %v6386
      %v6393 = vmul.f32 %v6077, %v6386
      %v6394 = vmul.f32 %v6080, %v6386
      %v6395 = vmul.f32 %v6082, %v6386
      %v6396 = vmul.f32 %v6085, %v6386
      %v6397 = vmul.f32 %v6087, %v6386
      %v6398 = vmul.f32 %v6090, %v6386
      %v6399 = vmul.f32 %v6092, %v6386
      %v6400 = vmul.f32 %v6095, %v6386
      %v6401 = vmul.f32 %v6097, %v6386
      %v6402 = vmul.f32 %v6100, %v6386
      %v6403 = vmul.f32 %v6102, %v6386
      %v6404 = vmul.f32 %v6105, %v6386
      %v6405 = vmul.f32 %v6107, %v6386
      %v6406 = vmul.f32 %v6110, %v6386
      %v6407 = vmul.f32 %v6112, %v6386
      %v6408 = vmul.f32 %v6115, %v6386
      %v6409 = vmul.f32 %v6117, %v6386
      %v6410 = vmul.f32 %v6120, %v6386
      %v6411 = vmul.f32 %v6122, %v6386
      %v6412 = vmul.f32 %v6125, %v6386
      %v6413 = vmul.f32 %v6127, %v6386
      %v6414 = vmul.f32 %v6130, %v6386
      %v6415 = vmul.f32 %v6132, %v6386
      %v6416 = vmul.f32 %v6135, %v6386
      %v6417 = vmul.f32 %v6137, %v6386
      %v6418 = vmul.f32 %v6140, %v6386
      %v6419 = vmul.f32 %v6142, %v6386
      %v6420 = vmul.f32 %v6145, %v6386
      %v6421 = vmul.f32 %v6147, %v6386
      %v6422 = vmul.f32 %v6150, %v6386
      %v6423 = vmul.f32 %v6152, %v6386
      %v6424 = vmul.f32 %v6155, %v6386
      %v6425 = vmul.f32 %v6157, %v6386
      %v6426 = vmul.f32 %v6160, %v6386
      %v6427 = vmul.f32 %v6162, %v6386
      %v6428 = vmul.f32 %v6165, %v6386
      %v6429 = vmul.f32 %v6167, %v6386
      %v6430 = vmul.f32 %v6170, %v6386
      %v6431 = vmul.f32 %v6172, %v6386
      %v6432 = vmul.f32 %v6175, %v6386
      %v6433 = vmul.f32 %v6177, %v6386
      %v6434 = vmul.f32 %v6180, %v6386
      %v6435 = vmul.f32 %v6182, %v6386
      %v6436 = vmul.f32 %v6185, %v6386
      %v6437 = vmul.f32 %v6187, %v6386
      %v6438 = vmul.f32 %v6190, %v6386
      %v6439 = vmul.f32 %v6192, %v6386
      %v6440 = vmul.f32 %v6195, %v6386
      %v6441 = vmul.f32 %v6197, %v6386
      %v6442 = vmul.f32 %v6200, %v6386
      %v6443 = vmul.f32 %v6202, %v6386
      %v6444 = vmul.f32 %v6205, %v6386
      %v6445 = vmul.f32 %v6207, %v6386
      %v6446 = vmul.f32 %v6210, %v6386
      %v6447 = vmul.f32 %v6212, %v6386
      %v6448 = vmul.f32 %v6215, %v6386
      %v6449 = vmul.f32 %v6217, %v6386
      %v6450 = vmul.f32 %v6220, %v6386
      %v6451 = vmul.f32 %v6222, %v6386
      %v6452 = vmul.f32 %v6225, %v6386
      %v6453 = vmul.f32 %v6227, %v6386
      %v6454 = vmul.f32 %v6230, %v6386
      %v6455 = vmul.f32 %v6232, %v6386
      %v6456 = vmul.f32 %v6235, %v6386
      %v6457 = vmul.f32 %v6237, %v6386
      %v6458 = vmul.f32 %v6240, %v6386
      %v6459 = vmul.f32 %v6242, %v6386
      %v6460 = vmul.f32 %v6245, %v6386
      %v6461 = vmul.f32 %v6247, %v6386
      %v6462 = vmul.f32 %v6250, %v6386
      %v6463 = vmul.f32 %v6252, %v6386
      %v6464 = vmul.f32 %v6255, %v6386
      %v6465 = vmul.f32 %v6257, %v6386
      %v6466 = vmul.f32 %v6260, %v6386
      %v6467 = vmul.f32 %v6262, %v6386
      %v6468 = vmul.f32 %v6265, %v6386
      %v6469 = vmul.f32 %v6267, %v6386
      %v6470 = vmul.f32 %v6270, %v6386
      %v6471 = vmul.f32 %v6272, %v6386
      %v6472 = vmul.f32 %v6275, %v6386
      %v6473 = vmul.f32 %v6277, %v6386
      %v6474 = vmul.f32 %v6280, %v6386
      %v6475 = vmul.f32 %v6282, %v6386
      %v6476 = vmul.f32 %v6285, %v6386
      %v6477 = vmul.f32 %v6287, %v6386
      %v6478 = vmul.f32 %v6290, %v6386
      %v6479 = vmul.f32 %v6292, %v6386
      %v6480 = vmul.f32 %v6295, %v6386
      %v6481 = vmul.f32 %v6297, %v6386
      %v6482 = vmul.f32 %v6300, %v6386
      %v6483 = vmul.f32 %v6302, %v6386
      %v6484 = vmul.f32 %v6305, %v6386
      %v6485 = vmul.f32 %v6307, %v6386
      %v6486 = vmul.f32 %v6310, %v6386
      %v6487 = vmul.f32 %v6312, %v6386
      %v6488 = vmul.f32 %v6315, %v6386
      %v6489 = vmul.f32 %v6317, %v6386
      %v6490 = vmul.f32 %v6320, %v6386
      %v6491 = vmul.f32 %v6322, %v6386
      %v6492 = vmul.f32 %v6325, %v6386
      %v6493 = vmul.f32 %v6327, %v6386
      %v6494 = vmul.f32 %v6330, %v6386
      %v6495 = vmul.f32 %v6332, %v6386
      %v6496 = vmul.f32 %v6335, %v6386
      %v6497 = vmul.f32 %v6337, %v6386
      %v6498 = vmul.f32 %v6340, %v6386
      %v6499 = vmul.f32 %v6342, %v6386
      %v6500 = vmul.f32 %v6345, %v6386
      %v6501 = vmul.f32 %v6347, %v6386
      %v6502 = vmul.f32 %v6350, %v6386
      %v6503 = vmul.f32 %v6352, %v6386
      %v6504 = vmul.f32 %v6355, %v6386
      %v6505 = vmul.f32 %v6357, %v6386
      %v6506 = vmul.f32 %v6360, %v6386
      %v6507 = vmul.f32 %v6362, %v6386
      %v6508 = vmul.f32 %v6365, %v6386
      %v6509 = vmul.f32 %v6367, %v6386
      %v6510 = vmul.f32 %v6370, %v6386
      %v6511 = vmul.f32 %v6372, %v6386
      %v6512 = vmul.f32 %v6375, %v6386
      %v6513 = vmul.f32 %v6377, %v6386
      %v6514 = vmul.f32 %v6380, %v6386
      %v6515 = vmul.f32 %v6382, %v6386
      %v6516 = vld [vmem:[%s5] sm:$0x1]
      %v6518 = vperm.slane %v6516, 0
      %v6520 = vadd.f32 %v6388, %v6518
      %v6521 = vadd.f32 %v6389, %v6518
      %v6522 = vadd.f32 %v6390, %v6518
      %v6523 = vadd.f32 %v6391, %v6518
      %v6524 = vadd.f32 %v6392, %v6518
      %v6525 = vadd.f32 %v6393, %v6518
      %v6526 = vadd.f32 %v6394, %v6518
      %v6527 = vadd.f32 %v6395, %v6518
      %v6528 = vadd.f32 %v6396, %v6518
      %v6529 = vadd.f32 %v6397, %v6518
      %v6530 = vadd.f32 %v6398, %v6518
      %v6531 = vadd.f32 %v6399, %v6518
      %v6532 = vadd.f32 %v6400, %v6518
      %v6533 = vadd.f32 %v6401, %v6518
      %v6534 = vadd.f32 %v6402, %v6518
      %v6535 = vadd.f32 %v6403, %v6518
      %v6536 = vadd.f32 %v6404, %v6518
      %v6537 = vadd.f32 %v6405, %v6518
      %v6538 = vadd.f32 %v6406, %v6518
      %v6539 = vadd.f32 %v6407, %v6518
      %v6540 = vadd.f32 %v6408, %v6518
      %v6541 = vadd.f32 %v6409, %v6518
      %v6542 = vadd.f32 %v6410, %v6518
      %v6543 = vadd.f32 %v6411, %v6518
      %v6544 = vadd.f32 %v6412, %v6518
      %v6545 = vadd.f32 %v6413, %v6518
      %v6546 = vadd.f32 %v6414, %v6518
      %v6547 = vadd.f32 %v6415, %v6518
      %v6548 = vadd.f32 %v6416, %v6518
      %v6549 = vadd.f32 %v6417, %v6518
      %v6550 = vadd.f32 %v6418, %v6518
      %v6551 = vadd.f32 %v6419, %v6518
      %v6552 = vadd.f32 %v6420, %v6518
      %v6553 = vadd.f32 %v6421, %v6518
      %v6554 = vadd.f32 %v6422, %v6518
      %v6555 = vadd.f32 %v6423, %v6518
      %v6556 = vadd.f32 %v6424, %v6518
      %v6557 = vadd.f32 %v6425, %v6518
      %v6558 = vadd.f32 %v6426, %v6518
      %v6559 = vadd.f32 %v6427, %v6518
      %v6560 = vadd.f32 %v6428, %v6518
      %v6561 = vadd.f32 %v6429, %v6518
      %v6562 = vadd.f32 %v6430, %v6518
      %v6563 = vadd.f32 %v6431, %v6518
      %v6564 = vadd.f32 %v6432, %v6518
      %v6565 = vadd.f32 %v6433, %v6518
      %v6566 = vadd.f32 %v6434, %v6518
      %v6567 = vadd.f32 %v6435, %v6518
      %v6568 = vadd.f32 %v6436, %v6518
      %v6569 = vadd.f32 %v6437, %v6518
      %v6570 = vadd.f32 %v6438, %v6518
      %v6571 = vadd.f32 %v6439, %v6518
      %v6572 = vadd.f32 %v6440, %v6518
      %v6573 = vadd.f32 %v6441, %v6518
      %v6574 = vadd.f32 %v6442, %v6518
      %v6575 = vadd.f32 %v6443, %v6518
      %v6576 = vadd.f32 %v6444, %v6518
      %v6577 = vadd.f32 %v6445, %v6518
      %v6578 = vadd.f32 %v6446, %v6518
      %v6579 = vadd.f32 %v6447, %v6518
      %v6580 = vadd.f32 %v6448, %v6518
      %v6581 = vadd.f32 %v6449, %v6518
      %v6582 = vadd.f32 %v6450, %v6518
      %v6583 = vadd.f32 %v6451, %v6518
      %v6584 = vadd.f32 %v6452, %v6518
      %v6585 = vadd.f32 %v6453, %v6518
      %v6586 = vadd.f32 %v6454, %v6518
      %v6587 = vadd.f32 %v6455, %v6518
      %v6588 = vadd.f32 %v6456, %v6518
      %v6589 = vadd.f32 %v6457, %v6518
      %v6590 = vadd.f32 %v6458, %v6518
      %v6591 = vadd.f32 %v6459, %v6518
      %v6592 = vadd.f32 %v6460, %v6518
      %v6593 = vadd.f32 %v6461, %v6518
      %v6594 = vadd.f32 %v6462, %v6518
      %v6595 = vadd.f32 %v6463, %v6518
      %v6596 = vadd.f32 %v6464, %v6518
      %v6597 = vadd.f32 %v6465, %v6518
      %v6598 = vadd.f32 %v6466, %v6518
      %v6599 = vadd.f32 %v6467, %v6518
      %v6600 = vadd.f32 %v6468, %v6518
      %v6601 = vadd.f32 %v6469, %v6518
      %v6602 = vadd.f32 %v6470, %v6518
      %v6603 = vadd.f32 %v6471, %v6518
      %v6604 = vadd.f32 %v6472, %v6518
      %v6605 = vadd.f32 %v6473, %v6518
      %v6606 = vadd.f32 %v6474, %v6518
      %v6607 = vadd.f32 %v6475, %v6518
      %v6608 = vadd.f32 %v6476, %v6518
      %v6609 = vadd.f32 %v6477, %v6518
      %v6610 = vadd.f32 %v6478, %v6518
      %v6611 = vadd.f32 %v6479, %v6518
      %v6612 = vadd.f32 %v6480, %v6518
      %v6613 = vadd.f32 %v6481, %v6518
      %v6614 = vadd.f32 %v6482, %v6518
      %v6615 = vadd.f32 %v6483, %v6518
      %v6616 = vadd.f32 %v6484, %v6518
      %v6617 = vadd.f32 %v6485, %v6518
      %v6618 = vadd.f32 %v6486, %v6518
      %v6619 = vadd.f32 %v6487, %v6518
      %v6620 = vadd.f32 %v6488, %v6518
      %v6621 = vadd.f32 %v6489, %v6518
      %v6622 = vadd.f32 %v6490, %v6518
      %v6623 = vadd.f32 %v6491, %v6518
      %v6624 = vadd.f32 %v6492, %v6518
      %v6625 = vadd.f32 %v6493, %v6518
      %v6626 = vadd.f32 %v6494, %v6518
      %v6627 = vadd.f32 %v6495, %v6518
      %v6628 = vadd.f32 %v6496, %v6518
      %v6629 = vadd.f32 %v6497, %v6518
      %v6630 = vadd.f32 %v6498, %v6518
      %v6631 = vadd.f32 %v6499, %v6518
      %v6632 = vadd.f32 %v6500, %v6518
      %v6633 = vadd.f32 %v6501, %v6518
      %v6634 = vadd.f32 %v6502, %v6518
      %v6635 = vadd.f32 %v6503, %v6518
      %v6636 = vadd.f32 %v6504, %v6518
      %v6637 = vadd.f32 %v6505, %v6518
      %v6638 = vadd.f32 %v6506, %v6518
      %v6639 = vadd.f32 %v6507, %v6518
      %v6640 = vadd.f32 %v6508, %v6518
      %v6641 = vadd.f32 %v6509, %v6518
      %v6642 = vadd.f32 %v6510, %v6518
      %v6643 = vadd.f32 %v6511, %v6518
      %v6644 = vadd.f32 %v6512, %v6518
      %v6645 = vadd.f32 %v6513, %v6518
      %v6646 = vadd.f32 %v6514, %v6518
      %v6647 = vadd.f32 %v6515, %v6518
      %v6648 = vmax.f32 %v6520, 0.0
      %v6649 = vmax.f32 %v6521, 0.0
      %v6650 = vmax.f32 %v6522, 0.0
      %v6651 = vmax.f32 %v6523, 0.0
      %v6652 = vmax.f32 %v6524, 0.0
      %v6653 = vmax.f32 %v6525, 0.0
      %v6654 = vmax.f32 %v6526, 0.0
      %v6655 = vmax.f32 %v6527, 0.0
      %v6656 = vmax.f32 %v6528, 0.0
      %v6657 = vmax.f32 %v6529, 0.0
      %v6658 = vmax.f32 %v6530, 0.0
      %v6659 = vmax.f32 %v6531, 0.0
      %v6660 = vmax.f32 %v6532, 0.0
      %v6661 = vmax.f32 %v6533, 0.0
      %v6662 = vmax.f32 %v6534, 0.0
      %v6663 = vmax.f32 %v6535, 0.0
      %v6664 = vmax.f32 %v6536, 0.0
      %v6665 = vmax.f32 %v6537, 0.0
      %v6666 = vmax.f32 %v6538, 0.0
      %v6667 = vmax.f32 %v6539, 0.0
      %v6668 = vmax.f32 %v6540, 0.0
      %v6669 = vmax.f32 %v6541, 0.0
      %v6670 = vmax.f32 %v6542, 0.0
      %v6671 = vmax.f32 %v6543, 0.0
      %v6672 = vmax.f32 %v6544, 0.0
      %v6673 = vmax.f32 %v6545, 0.0
      %v6674 = vmax.f32 %v6546, 0.0
      %v6675 = vmax.f32 %v6547, 0.0
      %v6676 = vmax.f32 %v6548, 0.0
      %v6677 = vmax.f32 %v6549, 0.0
      %v6678 = vmax.f32 %v6550, 0.0
      %v6679 = vmax.f32 %v6551, 0.0
      %v6680 = vmax.f32 %v6552, 0.0
      %v6681 = vmax.f32 %v6553, 0.0
      %v6682 = vmax.f32 %v6554, 0.0
      %v6683 = vmax.f32 %v6555, 0.0
      %v6684 = vmax.f32 %v6556, 0.0
      %v6685 = vmax.f32 %v6557, 0.0
      %v6686 = vmax.f32 %v6558, 0.0
      %v6687 = vmax.f32 %v6559, 0.0
      %v6688 = vmax.f32 %v6560, 0.0
      %v6689 = vmax.f32 %v6561, 0.0
      %v6690 = vmax.f32 %v6562, 0.0
      %v6691 = vmax.f32 %v6563, 0.0
      %v6692 = vmax.f32 %v6564, 0.0
      %v6693 = vmax.f32 %v6565, 0.0
      %v6694 = vmax.f32 %v6566, 0.0
      %v6695 = vmax.f32 %v6567, 0.0
      %v6696 = vmax.f32 %v6568, 0.0
      %v6697 = vmax.f32 %v6569, 0.0
      %v6698 = vmax.f32 %v6570, 0.0
      %v6699 = vmax.f32 %v6571, 0.0
      %v6700 = vmax.f32 %v6572, 0.0
      %v6701 = vmax.f32 %v6573, 0.0
      %v6702 = vmax.f32 %v6574, 0.0
      %v6703 = vmax.f32 %v6575, 0.0
      %v6704 = vmax.f32 %v6576, 0.0
      %v6705 = vmax.f32 %v6577, 0.0
      %v6706 = vmax.f32 %v6578, 0.0
      %v6707 = vmax.f32 %v6579, 0.0
      %v6708 = vmax.f32 %v6580, 0.0
      %v6709 = vmax.f32 %v6581, 0.0
      %v6710 = vmax.f32 %v6582, 0.0
      %v6711 = vmax.f32 %v6583, 0.0
      %v6712 = vmax.f32 %v6584, 0.0
      %v6713 = vmax.f32 %v6585, 0.0
      %v6714 = vmax.f32 %v6586, 0.0
      %v6715 = vmax.f32 %v6587, 0.0
      %v6716 = vmax.f32 %v6588, 0.0
      %v6717 = vmax.f32 %v6589, 0.0
      %v6718 = vmax.f32 %v6590, 0.0
      %v6719 = vmax.f32 %v6591, 0.0
      %v6720 = vmax.f32 %v6592, 0.0
      %v6721 = vmax.f32 %v6593, 0.0
      %v6722 = vmax.f32 %v6594, 0.0
      %v6723 = vmax.f32 %v6595, 0.0
      %v6724 = vmax.f32 %v6596, 0.0
      %v6725 = vmax.f32 %v6597, 0.0
      %v6726 = vmax.f32 %v6598, 0.0
      %v6727 = vmax.f32 %v6599, 0.0
      %v6728 = vmax.f32 %v6600, 0.0
      %v6729 = vmax.f32 %v6601, 0.0
      %v6730 = vmax.f32 %v6602, 0.0
      %v6731 = vmax.f32 %v6603, 0.0
      %v6732 = vmax.f32 %v6604, 0.0
      %v6733 = vmax.f32 %v6605, 0.0
      %v6734 = vmax.f32 %v6606, 0.0
      %v6735 = vmax.f32 %v6607, 0.0
      %v6736 = vmax.f32 %v6608, 0.0
      %v6737 = vmax.f32 %v6609, 0.0
      %v6738 = vmax.f32 %v6610, 0.0
      %v6739 = vmax.f32 %v6611, 0.0
      %v6740 = vmax.f32 %v6612, 0.0
      %v6741 = vmax.f32 %v6613, 0.0
      %v6742 = vmax.f32 %v6614, 0.0
      %v6743 = vmax.f32 %v6615, 0.0
      %v6744 = vmax.f32 %v6616, 0.0
      %v6745 = vmax.f32 %v6617, 0.0
      %v6746 = vmax.f32 %v6618, 0.0
      %v6747 = vmax.f32 %v6619, 0.0
      %v6748 = vmax.f32 %v6620, 0.0
      %v6749 = vmax.f32 %v6621, 0.0
      %v6750 = vmax.f32 %v6622, 0.0
      %v6751 = vmax.f32 %v6623, 0.0
      %v6752 = vmax.f32 %v6624, 0.0
      %v6753 = vmax.f32 %v6625, 0.0
      %v6754 = vmax.f32 %v6626, 0.0
      %v6755 = vmax.f32 %v6627, 0.0
      %v6756 = vmax.f32 %v6628, 0.0
      %v6757 = vmax.f32 %v6629, 0.0
      %v6758 = vmax.f32 %v6630, 0.0
      %v6759 = vmax.f32 %v6631, 0.0
      %v6760 = vmax.f32 %v6632, 0.0
      %v6761 = vmax.f32 %v6633, 0.0
      %v6762 = vmax.f32 %v6634, 0.0
      %v6763 = vmax.f32 %v6635, 0.0
      %v6764 = vmax.f32 %v6636, 0.0
      %v6765 = vmax.f32 %v6637, 0.0
      %v6766 = vmax.f32 %v6638, 0.0
      %v6767 = vmax.f32 %v6639, 0.0
      %v6768 = vmax.f32 %v6640, 0.0
      %v6769 = vmax.f32 %v6641, 0.0
      %v6770 = vmax.f32 %v6642, 0.0
      %v6771 = vmax.f32 %v6643, 0.0
      %v6772 = vmax.f32 %v6644, 0.0
      %v6773 = vmax.f32 %v6645, 0.0
      %v6774 = vmax.f32 %v6646, 0.0
      %v6775 = vmax.f32 %v6647, 0.0
      %6776 = vst [vmem:[%s418] sm:$0xff] %v6648
      %6777 = vst [vmem:[%s418 + $0x8] sm:$0xff] %v6649
      %6778 = vst [vmem:[%s418 + $0x10] sm:$0xff] %v6650
      %6779 = vst [vmem:[%s418 + $0x18] sm:$0xff] %v6651
      %6780 = vst [vmem:[%s418 + $0x20] sm:$0xff] %v6652
      %6781 = vst [vmem:[%s418 + $0x28] sm:$0xff] %v6653
      %6782 = vst [vmem:[%s418 + $0x30] sm:$0xff] %v6654
      %6783 = vst [vmem:[%s418 + $0x38] sm:$0xff] %v6655
      %6784 = vst [vmem:[%s418 + $0x40] sm:$0xff] %v6656
      %6785 = vst [vmem:[%s418 + $0x48] sm:$0xff] %v6657
      %6786 = vst [vmem:[%s418 + $0x50] sm:$0xff] %v6658
      %6787 = vst [vmem:[%s418 + $0x58] sm:$0xff] %v6659
      %6788 = vst [vmem:[%s418 + $0x60] sm:$0xff] %v6660
      %6789 = vst [vmem:[%s418 + $0x68] sm:$0xff] %v6661
      %6790 = vst [vmem:[%s418 + $0x70] sm:$0xff] %v6662
      %6791 = vst [vmem:[%s418 + $0x78] sm:$0xff] %v6663
      %6792 = vst [vmem:[%s418 + $0x80] sm:$0xff] %v6664
      %6793 = vst [vmem:[%s418 + $0x88] sm:$0xff] %v6665
      %6794 = vst [vmem:[%s418 + $0x90] sm:$0xff] %v6666
      %6795 = vst [vmem:[%s418 + $0x98] sm:$0xff] %v6667
      %6796 = vst [vmem:[%s418 + $0xa0] sm:$0xff] %v6668
      %6797 = vst [vmem:[%s418 + $0xa8] sm:$0xff] %v6669
      %6798 = vst [vmem:[%s418 + $0xb0] sm:$0xff] %v6670
      %6799 = vst [vmem:[%s418 + $0xb8] sm:$0xff] %v6671
      %6800 = vst [vmem:[%s418 + $0xc0] sm:$0xff] %v6672
      %6801 = vst [vmem:[%s418 + $0xc8] sm:$0xff] %v6673
      %6802 = vst [vmem:[%s418 + $0xd0] sm:$0xff] %v6674
      %6803 = vst [vmem:[%s418 + $0xd8] sm:$0xff] %v6675
      %6804 = vst [vmem:[%s418 + $0xe0] sm:$0xff] %v6676
      %6805 = vst [vmem:[%s418 + $0xe8] sm:$0xff] %v6677
      %6806 = vst [vmem:[%s418 + $0xf0] sm:$0xff] %v6678
      %6807 = vst [vmem:[%s418 + $0xf8] sm:$0xff] %v6679
      %6808 = vst [vmem:[%s418 + $0x100] sm:$0xff] %v6680
      %6809 = vst [vmem:[%s418 + $0x108] sm:$0xff] %v6681
      %6810 = vst [vmem:[%s418 + $0x110] sm:$0xff] %v6682
      %6811 = vst [vmem:[%s418 + $0x118] sm:$0xff] %v6683
      %6812 = vst [vmem:[%s418 + $0x120] sm:$0xff] %v6684
      %6813 = vst [vmem:[%s418 + $0x128] sm:$0xff] %v6685
      %6814 = vst [vmem:[%s418 + $0x130] sm:$0xff] %v6686
      %6815 = vst [vmem:[%s418 + $0x138] sm:$0xff] %v6687
      %6816 = vst [vmem:[%s418 + $0x140] sm:$0xff] %v6688
      %6817 = vst [vmem:[%s418 + $0x148] sm:$0xff] %v6689
      %6818 = vst [vmem:[%s418 + $0x150] sm:$0xff] %v6690
      %6819 = vst [vmem:[%s418 + $0x158] sm:$0xff] %v6691
      %6820 = vst [vmem:[%s418 + $0x160] sm:$0xff] %v6692
      %6821 = vst [vmem:[%s418 + $0x168] sm:$0xff] %v6693
      %6822 = vst [vmem:[%s418 + $0x170] sm:$0xff] %v6694
      %6823 = vst [vmem:[%s418 + $0x178] sm:$0xff] %v6695
      %6824 = vst [vmem:[%s418 + $0x180] sm:$0xff] %v6696
      %6825 = vst [vmem:[%s418 + $0x188] sm:$0xff] %v6697
      %6826 = vst [vmem:[%s418 + $0x190] sm:$0xff] %v6698
      %6827 = vst [vmem:[%s418 + $0x198] sm:$0xff] %v6699
      %6828 = vst [vmem:[%s418 + $0x1a0] sm:$0xff] %v6700
      %6829 = vst [vmem:[%s418 + $0x1a8] sm:$0xff] %v6701
      %6830 = vst [vmem:[%s418 + $0x1b0] sm:$0xff] %v6702
      %6831 = vst [vmem:[%s418 + $0x1b8] sm:$0xff] %v6703
      %6832 = vst [vmem:[%s418 + $0x1c0] sm:$0xff] %v6704
      %6833 = vst [vmem:[%s418 + $0x1c8] sm:$0xff] %v6705
      %6834 = vst [vmem:[%s418 + $0x1d0] sm:$0xff] %v6706
      %6835 = vst [vmem:[%s418 + $0x1d8] sm:$0xff] %v6707
      %6836 = vst [vmem:[%s418 + $0x1e0] sm:$0xff] %v6708
      %6837 = vst [vmem:[%s418 + $0x1e8] sm:$0xff] %v6709
      %6838 = vst [vmem:[%s418 + $0x1f0] sm:$0xff] %v6710
      %6839 = vst [vmem:[%s418 + $0x1f8] sm:$0xff] %v6711
      %6840 = vst [vmem:[%s418 + $0x200] sm:$0xff] %v6712
      %6841 = vst [vmem:[%s418 + $0x208] sm:$0xff] %v6713
      %6842 = vst [vmem:[%s418 + $0x210] sm:$0xff] %v6714
      %6843 = vst [vmem:[%s418 + $0x218] sm:$0xff] %v6715
      %6844 = vst [vmem:[%s418 + $0x220] sm:$0xff] %v6716
      %6845 = vst [vmem:[%s418 + $0x228] sm:$0xff] %v6717
      %6846 = vst [vmem:[%s418 + $0x230] sm:$0xff] %v6718
      %6847 = vst [vmem:[%s418 + $0x238] sm:$0xff] %v6719
      %6848 = vst [vmem:[%s418 + $0x240] sm:$0xff] %v6720
      %6849 = vst [vmem:[%s418 + $0x248] sm:$0xff] %v6721
      %6850 = vst [vmem:[%s418 + $0x250] sm:$0xff] %v6722
      %6851 = vst [vmem:[%s418 + $0x258] sm:$0xff] %v6723
      %6852 = vst [vmem:[%s418 + $0x260] sm:$0xff] %v6724
      %6853 = vst [vmem:[%s418 + $0x268] sm:$0xff] %v6725
      %6854 = vst [vmem:[%s418 + $0x270] sm:$0xff] %v6726
      %6855 = vst [vmem:[%s418 + $0x278] sm:$0xff] %v6727
      %6856 = vst [vmem:[%s418 + $0x280] sm:$0xff] %v6728
      %6857 = vst [vmem:[%s418 + $0x288] sm:$0xff] %v6729
      %6858 = vst [vmem:[%s418 + $0x290] sm:$0xff] %v6730
      %6859 = vst [vmem:[%s418 + $0x298] sm:$0xff] %v6731
      %6860 = vst [vmem:[%s418 + $0x2a0] sm:$0xff] %v6732
      %6861 = vst [vmem:[%s418 + $0x2a8] sm:$0xff] %v6733
      %6862 = vst [vmem:[%s418 + $0x2b0] sm:$0xff] %v6734
      %6863 = vst [vmem:[%s418 + $0x2b8] sm:$0xff] %v6735
      %6864 = vst [vmem:[%s418 + $0x2c0] sm:$0xff] %v6736
      %6865 = vst [vmem:[%s418 + $0x2c8] sm:$0xff] %v6737
      %6866 = vst [vmem:[%s418 + $0x2d0] sm:$0xff] %v6738
      %6867 = vst [vmem:[%s418 + $0x2d8] sm:$0xff] %v6739
      %6868 = vst [vmem:[%s418 + $0x2e0] sm:$0xff] %v6740
      %6869 = vst [vmem:[%s418 + $0x2e8] sm:$0xff] %v6741
      %6870 = vst [vmem:[%s418 + $0x2f0] sm:$0xff] %v6742
      %6871 = vst [vmem:[%s418 + $0x2f8] sm:$0xff] %v6743
      %6872 = vst [vmem:[%s418 + $0x300] sm:$0xff] %v6744
      %6873 = vst [vmem:[%s418 + $0x308] sm:$0xff] %v6745
      %6874 = vst [vmem:[%s418 + $0x310] sm:$0xff] %v6746
      %6875 = vst [vmem:[%s418 + $0x318] sm:$0xff] %v6747
      %6876 = vst [vmem:[%s418 + $0x320] sm:$0xff] %v6748
      %6877 = vst [vmem:[%s418 + $0x328] sm:$0xff] %v6749
      %6878 = vst [vmem:[%s418 + $0x330] sm:$0xff] %v6750
      %6879 = vst [vmem:[%s418 + $0x338] sm:$0xff] %v6751
      %6880 = vst [vmem:[%s418 + $0x340] sm:$0xff] %v6752
      %6881 = vst [vmem:[%s418 + $0x348] sm:$0xff] %v6753
      %6882 = vst [vmem:[%s418 + $0x350] sm:$0xff] %v6754
      %6883 = vst [vmem:[%s418 + $0x358] sm:$0xff] %v6755
      %6884 = vst [vmem:[%s418 + $0x360] sm:$0xff] %v6756
      %6885 = vst [vmem:[%s418 + $0x368] sm:$0xff] %v6757
      %6886 = vst [vmem:[%s418 + $0x370] sm:$0xff] %v6758
      %6887 = vst [vmem:[%s418 + $0x378] sm:$0xff] %v6759
      %6888 = vst [vmem:[%s418 + $0x380] sm:$0xff] %v6760
      %6889 = vst [vmem:[%s418 + $0x388] sm:$0xff] %v6761
      %6890 = vst [vmem:[%s418 + $0x390] sm:$0xff] %v6762
      %6891 = vst [vmem:[%s418 + $0x398] sm:$0xff] %v6763
      %6892 = vst [vmem:[%s418 + $0x3a0] sm:$0xff] %v6764
      %6893 = vst [vmem:[%s418 + $0x3a8] sm:$0xff] %v6765
      %6894 = vst [vmem:[%s418 + $0x3b0] sm:$0xff] %v6766
      %6895 = vst [vmem:[%s418 + $0x3b8] sm:$0xff] %v6767
      %6896 = vst [vmem:[%s418 + $0x3c0] sm:$0xff] %v6768
      %6897 = vst [vmem:[%s418 + $0x3c8] sm:$0xff] %v6769
      %6898 = vst [vmem:[%s418 + $0x3d0] sm:$0xff] %v6770
      %6899 = vst [vmem:[%s418 + $0x3d8] sm:$0xff] %v6771
      %6900 = vst [vmem:[%s418 + $0x3e0] sm:$0xff] %v6772
      %6901 = vst [vmem:[%s418 + $0x3e8] sm:$0xff] %v6773
      %6902 = vst [vmem:[%s418 + $0x3f0] sm:$0xff] %v6774
      %6903 = vst [vmem:[%s418 + $0x3f8] sm:$0xff] %v6775
      %s6904 = smul.u32 32, %s22
      %p6905 = scmp.lt.s32.totalorder %s21, 1
      %s6906 = scalar_select %p6905, %s21, 1
      %p6907 = scmp.lt.s32.totalorder %s6904, 31
      %s6908 = scalar_select %p6907, %s6904, 31
      %s6909 = smul.addr %s6908, 4
      %s6910 = smul.addr %s6906, 128
      %s6911 = sadd.s32 %s6909, %s6910
      %s6912 = smul.addr %s6911, 8
      %s6913 = scalar_lea.vmem %s6, %s6912
      // Predicated region
      $region53: #{conv_block_forward.1} parent=43 // pred_check
        %p6914 = pneg %p212
      $region54: #{conv_block_forward.1} parent=43 // pred_check_branch
        %6916 = sbr.rel (%p6914) target = $region56
      $region55: #{conv_block_forward.1} parent=43 // pred_region
        %s6917 = smul.u32 32, %s22
      $region56: #{conv_block_forward.1} parent=43 // pred_fallthru
        _
    $region44: #{conv_block_forward.1} parent=5 // pred_fallthru
      _
    %p6918 = scmp.le.s32.totalorder 2, %s12
    // Predicated region
    $region57: #{conv_block_forward.1} parent=5 // pred_check
      %p6919 = pneg %p6918
    $region58: #{conv_block_forward.1} parent=5 // pred_check_branch
      %6921 = sbr.rel (%p6919) target = $region60
    $region59: #{conv_block_forward.1} parent=5 // pred_region
      %s6922 = ssub.s32 %s12, 2
      // Predicated region
      $region61: #{conv_block_forward.1} parent=59 // pred_check
        %p6923 = pneg %p218
      $region62: #{conv_block_forward.1} parent=59 // pred_check_branch
        %6925 = sbr.rel (%p6923) target = $region64
      $region63: #{conv_block_forward.1} parent=59 // pred_region
        %s6926 = smul.u32 32, %s24
        %p6927 = scmp.lt.s32.totalorder %s23, 1
        %s6928 = scalar_select %p6927, %s23, 1
        %p6929 = scmp.lt.s32.totalorder %s6926, 31
        %s6930 = scalar_select %p6929, %s6926, 31
        %s6931 = smul.addr %s6930, 4
        %s6932 = smul.addr %s6928, 128
        %s6933 = sadd.s32 %s6931, %s6932
        %s6934 = smul.addr %s6933, 8
        %s6935 = scalar_lea.vmem %s6, %s6934
      $region64: #{conv_block_forward.1} parent=59 // pred_fallthru
        _
    $region60: #{conv_block_forward.1} parent=5 // pred_fallthru
      _
  $region6: #{conv_block_forward.1} parent=0 // loop_footer
    %s16 = sadd.s32 1, %s12
  $region7: #{conv_block_forward.1} parent=0 // loop_footer_branch
    %11 = sbr.rel target = $region3
  $region8: #{conv_block_forward.1} parent=0 // loop_exit
    _

</llo_original>
